<compile_context>
chip_gen: v7x
topology: tpu7x:2x2x1
jax: 0.10.0
libtpu: 0.0.40
codegen_flags: <defaults>
</compile_context>

<pallas_src>
import functools

import jax
import jax.numpy as jnp
from jax.experimental import pallas as pl
from jax.experimental.pallas import tpu as pltpu

NEG_SLOPE = 0.01                 # nn.LeakyReLU default
BN_EPS = 1e-5                    # nn.BatchNorm2d default
VMEM_LIMIT = 32 * 1024 * 1024    # safe on v5e / v6e / v7x
_CONV_COUT = (8, 16, 32, 64)     # fixed architecture


# --------- fused conv layer: matmul + BN (batch stats) + LeakyReLU -----------
def _conv_bn_lrelu_kernel(cols_ref, w_ref, g_ref, b_ref, o_ref, *, cout, inv_m):
    # Lane-dense matmul: (Mr, r*K) @ (r*K, 128), 128 = r*cout, block-diag weight
    #   => y[p, j*cout + c] == conv_out[p*r + j, c]
    y = jnp.dot(cols_ref[...], w_ref[...], preferred_element_type=jnp.float32)

    # Per-lane partial sums, then a cyclic lane-roll fold so EVERY lane
    # j*cout+c ends up holding the per-channel total over all M positions.
    s1 = jnp.sum(y, axis=0, keepdims=True)          # (1, 128)
    s2 = jnp.sum(y * y, axis=0, keepdims=True)      # (1, 128)
    shift = cout
    while shift < 128:                              # log2(128/cout) XLU rolls
        s1 = s1 + pltpu.roll(s1, shift, axis=1)
        s2 = s2 + pltpu.roll(s2, shift, axis=1)
        shift *= 2

    mean = s1 * inv_m
    var = jnp.maximum(s2 * inv_m - mean * mean, 0.0)    # biased var (train BN)
    scale = g_ref[...] * jax.lax.rsqrt(var + BN_EPS)    # EUP rsqrt
    off = b_ref[...] - mean * scale
    v = y * scale + off
    o_ref[...] = jnp.where(v >= 0.0, v, NEG_SLOPE * v).astype(o_ref.dtype)


def fused_conv_bn_lrelu(cols_g, w_blk, gamma128, beta128, cout, m_total):
    mr, rk = cols_g.shape
    kern = functools.partial(_conv_bn_lrelu_kernel, cout=cout, inv_m=1.0 / m_total)
    return pl.pallas_call(
        kern,
        grid=(1,),                                   # whole layer in one step
        in_specs=[
            pl.BlockSpec((mr, rk), lambda i: (0, 0)),
            pl.BlockSpec((rk, 128), lambda i: (0, 0)),
            pl.BlockSpec((1, 128), lambda i: (0, 0)),
            pl.BlockSpec((1, 128), lambda i: (0, 0)),
        ],
        out_specs=pl.BlockSpec((mr, 128), lambda i: (0, 0)),
        out_shape=jax.ShapeDtypeStruct((mr, 128), jnp.bfloat16),
        compiler_params=pltpu.CompilerParams(
            dimension_semantics=("arbitrary",),
            vmem_limit_bytes=VMEM_LIMIT,
        ),
    )(cols_g, w_blk, gamma128, beta128)


# --------------------------- im2col (XLA glue) --------------------------------
def im2col_k3s2p1_grouped(x_nhwc, r):
    """3x3 stride-2 pad-1 patches, taps ordered (kh, kw, cin); r consecutive
    output positions are grouped into one lane-dense row of width r*9*Cin
    (free contiguous reshape — matches the block-diagonal weight)."""
    n, h, w, c = x_nhwc.shape
    ho, wo = h // 2, w // 2
    xp = jnp.pad(x_nhwc, ((0, 0), (1, 1), (1, 1), (0, 0)))
    taps = [xp[:, kh:kh + 2 * ho:2, kw:kw + 2 * wo:2, :]
            for kh in range(3) for kw in range(3)]
    cols = jnp.concatenate(taps, axis=-1)            # (n, ho, wo, 9c)
    m = n * ho * wo
    return cols.reshape(m // r, r * 9 * c), m, (n, ho, wo)


def conv_bn_lrelu(x_nhwc, layer_prep, cout):
    r = 128 // cout
    cols_g, m, (n, ho, wo) = im2col_k3s2p1_grouped(x_nhwc, r)
    out_ld = fused_conv_bn_lrelu(cols_g, layer_prep["w_blk"],
                                 layer_prep["gamma128"], layer_prep["beta128"],
                                 cout, m)
    return out_ld.reshape(n, ho, wo, cout)           # contiguous, free


# --------------- fused MLP head: fc1 + LeakyReLU + fc2 + Sigmoid -------------
def _head_kernel(x_ref, w1_ref, b1_ref, w2_ref, b2_ref, o_ref):
    h = jnp.dot(x_ref[...], w1_ref[...], preferred_element_type=jnp.float32)
    h = h + b1_ref[...]
    h = jnp.where(h >= 0.0, h, NEG_SLOPE * h)
    # fc2 (64 -> 1) as a VPU multiply + lane reduction (no 1-lane MXU pass).
    y = jnp.sum(h * w2_ref[...], axis=1, keepdims=True) + b2_ref[...]
    o_ref[...] = 0.5 * (jnp.tanh(0.5 * y) + 1.0)     # numerically stable sigmoid


def mlp_head(feats, w1, b1, w2row, b2):
    n, k = feats.shape
    hdim = w1.shape[1]
    return pl.pallas_call(
        _head_kernel,
        grid=(1,),
        in_specs=[
            pl.BlockSpec((n, k), lambda i: (0, 0)),
            pl.BlockSpec((k, hdim), lambda i: (0, 0)),
            pl.BlockSpec((1, hdim), lambda i: (0, 0)),
            pl.BlockSpec((1, hdim), lambda i: (0, 0)),
            pl.BlockSpec((1, 1), lambda i: (0, 0)),
        ],
        out_specs=pl.BlockSpec((n, 1), lambda i: (0, 0)),
        out_shape=jax.ShapeDtypeStruct((n, 1), jnp.float32),
        compiler_params=pltpu.CompilerParams(
            dimension_semantics=("arbitrary",),
            vmem_limit_bytes=VMEM_LIMIT,
        ),
    )(feats, w1, b1, w2row, b2)


# ------------------------------- parameters ----------------------------------
def init_params(key):
    """Parameters in native PyTorch layouts (OIHW convs, (out,in) linears)."""
    params = {}
    keys = jax.random.split(key, 6)
    chans = (1, 8, 16, 32, 64)
    for i in range(4):
        k1, k2, k3, k4 = jax.random.split(keys[i], 4)
        cin, cout = chans[i], chans[i + 1]
        params[f"conv{i}"] = dict(
            weight=jax.random.normal(k1, (cout, cin, 3, 3), jnp.float32) * 0.1,
            bias=jax.random.normal(k2, (cout,), jnp.float32) * 0.1,
            gamma=1.0 + 0.1 * jax.random.normal(k3, (cout,), jnp.float32),
            beta=0.1 * jax.random.normal(k4, (cout,), jnp.float32),
        )
    k1, k2 = jax.random.split(keys[4])
    params["fc1"] = dict(
        weight=jax.random.normal(k1, (64, 8 * 8 * 64), jnp.float32) * 0.02,
        bias=jax.random.normal(k2, (64,), jnp.float32) * 0.02,
    )
    k1, k2 = jax.random.split(keys[5])
    params["fc2"] = dict(
        weight=jax.random.normal(k1, (1, 64), jnp.float32) * 0.1,
        bias=jax.random.normal(k2, (1,), jnp.float32) * 0.1,
    )
    return params


def prepare_params(params):
    """One-time conversion from PyTorch layouts to kernel-friendly layouts."""
    prep = {}
    for i in range(4):
        p = params[f"conv{i}"]
        w = p["weight"]                               # (Cout, Cin, 3, 3) OIHW
        cout = w.shape[0]
        r = 128 // cout
        # (kh, kw, cin) row order matches the im2col tap concatenation order.
        wk = jnp.transpose(w, (2, 3, 1, 0)).reshape(-1, cout)       # (9*Cin, Cout)
        # Block-diagonal expansion -> lane-dense (r*cout == 128) conv output.
        w_blk = jnp.kron(jnp.eye(r, dtype=jnp.float32), wk).astype(jnp.bfloat16)
        # Conv bias intentionally dropped: with batch-statistics BatchNorm the
        # per-channel bias cancels exactly in (y - mean(y)); zero numeric change.
        prep[f"conv{i}"] = dict(
            w_blk=w_blk,
            gamma128=jnp.tile(p["gamma"].astype(jnp.float32), r).reshape(1, 128),
            beta128=jnp.tile(p["beta"].astype(jnp.float32), r).reshape(1, 128),
        )
    # fc1: PyTorch in-index order is (c, h, w); internal activations are NHWC,
    # so permute the WEIGHT rows once to (h, w, c) instead of transposing the
    # activation every forward.
    w1 = params["fc1"]["weight"]                      # (64, 4096)
    w1k = jnp.transpose(w1.reshape(64, 64, 8, 8), (2, 3, 1, 0)).reshape(4096, 64)
    prep["fc1"] = dict(weight=w1k.astype(jnp.bfloat16),
                       bias=params["fc1"]["bias"].astype(jnp.float32).reshape(1, 64))
    prep["fc2"] = dict(weight=params["fc2"]["weight"].astype(jnp.float32).reshape(1, 64),
                       bias=params["fc2"]["bias"].astype(jnp.float32).reshape(1, 1))
    return prep


# --------------------------------- forward -----------------------------------
def discriminator_forward(prep, x_nchw):
    # External interface NCHW (PyTorch); internal layout NHWC, bf16 activations.
    x = jnp.transpose(x_nchw, (0, 2, 3, 1)).astype(jnp.bfloat16)
    for i, cout in enumerate(_CONV_COUT):
        x = conv_bn_lrelu(x, prep[f"conv{i}"], cout)
    n = x.shape[0]
    feats = x.reshape(n, -1)      # (N, 4096) in (h, w, c) order; fc1 rows match
    return mlp_head(feats, prep["fc1"]["weight"], prep["fc1"]["bias"],
                    prep["fc2"]["weight"], prep["fc2"]["bias"])


if __name__ == "__main__":
    key = jax.random.PRNGKey(0)
    pkey, xkey = jax.random.split(key)
    params = init_params(pkey)
    prep = prepare_params(params)
    # Spatial must be 128x128 so the flattened size matches Linear(8*8*64, 64).
    x = jax.random.normal(xkey, (2, 1, 128, 128), jnp.float32)
    fwd = jax.jit(discriminator_forward)
    out = jax.block_until_ready(fwd(prep, x))
    assert out.shape == (2, 1)
    assert bool(jnp.all((out >= 0.0) & (out <= 1.0)))
    print("KERNEL_OK")
</pallas_src>

<mosaic_0001>
module attributes {stable_mosaic.version = 11 : i64} {
  func.func @_conv_bn_lrelu_kernel(%arg0: i32, %arg1: memref<512x144xbf16, #tpu.memory_space<vmem>>, %arg2: memref<144x128xbf16, #tpu.memory_space<vmem>>, %arg3: memref<1x128xf32, #tpu.memory_space<vmem>>, %arg4: memref<1x128xf32, #tpu.memory_space<vmem>>, %arg5: memref<512x128xbf16, #tpu.memory_space<vmem>>) attributes {dimension_semantics = [#tpu.dimension_semantics<arbitrary>], iteration_bounds = array<i64: 1>, scalar_prefetch = 0 : i64, scratch_operands = 0 : i64, tpu.core_type = #tpu.core_type<tc>, window_params = [{pipeline_mode = #tpu.pipeline_mode<synchronous>, transform_indices = @transform_0, window_bounds = array<i64: 512, 144>}, {pipeline_mode = #tpu.pipeline_mode<synchronous>, transform_indices = @transform_1, window_bounds = array<i64: 144, 128>}, {pipeline_mode = #tpu.pipeline_mode<synchronous>, transform_indices = @transform_2, window_bounds = array<i64: 1, 128>}, {pipeline_mode = #tpu.pipeline_mode<synchronous>, transform_indices = @transform_3, window_bounds = array<i64: 1, 128>}, {pipeline_mode = #tpu.pipeline_mode<synchronous>, transform_indices = @transform_4, window_bounds = array<i64: 512, 128>}]} {
    %c0 = arith.constant 0 : index
    %c0_0 = arith.constant 0 : index
    %0 = vector.load %arg1[%c0, %c0_0] : memref<512x144xbf16, #tpu.memory_space<vmem>>, vector<512x144xbf16>
    %c0_1 = arith.constant 0 : index
    %c0_2 = arith.constant 0 : index
    %1 = vector.load %arg2[%c0_1, %c0_2] : memref<144x128xbf16, #tpu.memory_space<vmem>>, vector<144x128xbf16>
    %cst = arith.constant dense<0.000000e+00> : vector<512x128xf32>
    %2 = tpu.matmul %0, %1, %cst {dimension_numbers = #tpu.dot_dimension_numbers<[1], [0], [0], [1], [0, 0, 1, 1], [], []>} : vector<512x144xbf16>, vector<144x128xbf16>, vector<512x128xf32> -> vector<512x128xf32>
    %cst_3 = arith.constant dense<0.000000e+00> : vector<128xf32>
    %3 = vector.multi_reduction <add>, %2, %cst_3 [0] : vector<512x128xf32> to vector<128xf32>
    %4 = vector.shape_cast %3 : vector<128xf32> to vector<1x128xf32>
    %5 = arith.mulf %2, %2 : vector<512x128xf32>
    %cst_4 = arith.constant dense<0.000000e+00> : vector<128xf32>
    %6 = vector.multi_reduction <add>, %5, %cst_4 [0] : vector<512x128xf32> to vector<128xf32>
    %7 = vector.shape_cast %6 : vector<128xf32> to vector<1x128xf32>
    %c8_i32 = arith.constant 8 : i32
    %8 = tpu.dynamic_rotate %4 by %c8_i32 dim 1 : vector<1x128xf32>, i32 -> vector<1x128xf32>
    %9 = arith.addf %4, %8 : vector<1x128xf32>
    %c8_i32_5 = arith.constant 8 : i32
    %10 = tpu.dynamic_rotate %7 by %c8_i32_5 dim 1 : vector<1x128xf32>, i32 -> vector<1x128xf32>
    %11 = arith.addf %7, %10 : vector<1x128xf32>
    %c16_i32 = arith.constant 16 : i32
    %12 = tpu.dynamic_rotate %9 by %c16_i32 dim 1 : vector<1x128xf32>, i32 -> vector<1x128xf32>
    %13 = arith.addf %9, %12 : vector<1x128xf32>
    %c16_i32_6 = arith.constant 16 : i32
    %14 = tpu.dynamic_rotate %11 by %c16_i32_6 dim 1 : vector<1x128xf32>, i32 -> vector<1x128xf32>
    %15 = arith.addf %11, %14 : vector<1x128xf32>
    %c32_i32 = arith.constant 32 : i32
    %16 = tpu.dynamic_rotate %13 by %c32_i32 dim 1 : vector<1x128xf32>, i32 -> vector<1x128xf32>
    %17 = arith.addf %13, %16 : vector<1x128xf32>
    %c32_i32_7 = arith.constant 32 : i32
    %18 = tpu.dynamic_rotate %15 by %c32_i32_7 dim 1 : vector<1x128xf32>, i32 -> vector<1x128xf32>
    %19 = arith.addf %15, %18 : vector<1x128xf32>
    %c64_i32 = arith.constant 64 : i32
    %20 = tpu.dynamic_rotate %17 by %c64_i32 dim 1 : vector<1x128xf32>, i32 -> vector<1x128xf32>
    %21 = arith.addf %17, %20 : vector<1x128xf32>
    %c64_i32_8 = arith.constant 64 : i32
    %22 = tpu.dynamic_rotate %19 by %c64_i32_8 dim 1 : vector<1x128xf32>, i32 -> vector<1x128xf32>
    %23 = arith.addf %19, %22 : vector<1x128xf32>
    %cst_9 = arith.constant 1.22070313E-4 : f32
    %24 = vector.broadcast %cst_9 : f32 to vector<1x128xf32>
    %25 = arith.mulf %21, %24 : vector<1x128xf32>
    %cst_10 = arith.constant 1.22070313E-4 : f32
    %26 = vector.broadcast %cst_10 : f32 to vector<1x128xf32>
    %27 = arith.mulf %23, %26 : vector<1x128xf32>
    %28 = arith.mulf %25, %25 : vector<1x128xf32>
    %29 = arith.subf %27, %28 : vector<1x128xf32>
    %cst_11 = arith.constant 0.000000e+00 : f32
    %30 = vector.broadcast %cst_11 : f32 to vector<1x128xf32>
    %31 = arith.maximumf %29, %30 : vector<1x128xf32>
    %c0_12 = arith.constant 0 : index
    %c0_13 = arith.constant 0 : index
    %32 = vector.load %arg3[%c0_12, %c0_13] : memref<1x128xf32, #tpu.memory_space<vmem>>, vector<1x128xf32>
    %cst_14 = arith.constant 9.99999974E-6 : f32
    %33 = vector.broadcast %cst_14 : f32 to vector<1x128xf32>
    %34 = arith.addf %31, %33 : vector<1x128xf32>
    %35 = math.rsqrt %34 : vector<1x128xf32>
    %36 = arith.mulf %32, %35 : vector<1x128xf32>
    %c0_15 = arith.constant 0 : index
    %c0_16 = arith.constant 0 : index
    %37 = vector.load %arg4[%c0_15, %c0_16] : memref<1x128xf32, #tpu.memory_space<vmem>>, vector<1x128xf32>
    %38 = arith.mulf %25, %36 : vector<1x128xf32>
    %39 = arith.subf %37, %38 : vector<1x128xf32>
    %40 = vector.broadcast %36 : vector<1x128xf32> to vector<512x128xf32>
    %41 = arith.mulf %2, %40 : vector<512x128xf32>
    %42 = vector.broadcast %39 : vector<1x128xf32> to vector<512x128xf32>
    %43 = arith.addf %41, %42 : vector<512x128xf32>
    %cst_17 = arith.constant 0.000000e+00 : f32
    %44 = vector.broadcast %cst_17 : f32 to vector<512x128xf32>
    %45 = arith.cmpf oge, %43, %44 : vector<512x128xf32>
    %cst_18 = arith.constant 0.00999999977 : f32
    %46 = vector.broadcast %cst_18 : f32 to vector<512x128xf32>
    %47 = arith.mulf %46, %43 : vector<512x128xf32>
    %48 = arith.select %45, %43, %47 : vector<512x128xi1>, vector<512x128xf32>
    %49 = arith.truncf %48 : vector<512x128xf32> to vector<512x128xbf16>
    %c0_19 = arith.constant 0 : index
    %c0_20 = arith.constant 0 : index
    %50 = vector.load %arg5[%c0_19, %c0_20] : memref<512x128xbf16, #tpu.memory_space<vmem>>, vector<512x128xbf16>
    tpu.vector_store %arg5[%c0_19, %c0_20], %49 {strides = array<i32>} : memref<512x128xbf16, #tpu.memory_space<vmem>>, vector<512x128xbf16>,
    return
  }
  func.func @transform_0(%arg0: i32) -> (i32, i32) {
    %c0_i32 = arith.constant 0 : i32
    %c0_i32_0 = arith.constant 0 : i32
    %c0_i32_1 = arith.constant 0 : i32
    return %c0_i32, %c0_i32_0 : i32, i32
  }
  func.func @transform_1(%arg0: i32) -> (i32, i32) {
    %c0_i32 = arith.constant 0 : i32
    %c0_i32_0 = arith.constant 0 : i32
    %c0_i32_1 = arith.constant 0 : i32
    return %c0_i32, %c0_i32_0 : i32, i32
  }
  func.func @transform_2(%arg0: i32) -> (i32, i32) {
    %c0_i32 = arith.constant 0 : i32
    %c0_i32_0 = arith.constant 0 : i32
    %c0_i32_1 = arith.constant 0 : i32
    return %c0_i32, %c0_i32_0 : i32, i32
  }
  func.func @transform_3(%arg0: i32) -> (i32, i32) {
    %c0_i32 = arith.constant 0 : i32
    %c0_i32_0 = arith.constant 0 : i32
    %c0_i32_1 = arith.constant 0 : i32
    return %c0_i32, %c0_i32_0 : i32, i32
  }
  func.func @transform_4(%arg0: i32) -> (i32, i32) {
    %c0_i32 = arith.constant 0 : i32
    %c0_i32_0 = arith.constant 0 : i32
    %c0_i32_1 = arith.constant 0 : i32
    return %c0_i32, %c0_i32_0 : i32, i32
  }
}

module attributes {stable_mosaic.version = 11 : i64} {
  func.func @_conv_bn_lrelu_kernel(%arg0: i32, %arg1: memref<256x576xbf16, #tpu.memory_space<vmem>>, %arg2: memref<576x128xbf16, #tpu.memory_space<vmem>>, %arg3: memref<1x128xf32, #tpu.memory_space<vmem>>, %arg4: memref<1x128xf32, #tpu.memory_space<vmem>>, %arg5: memref<256x128xbf16, #tpu.memory_space<vmem>>) attributes {dimension_semantics = [#tpu.dimension_semantics<arbitrary>], iteration_bounds = array<i64: 1>, scalar_prefetch = 0 : i64, scratch_operands = 0 : i64, tpu.core_type = #tpu.core_type<tc>, window_params = [{pipeline_mode = #tpu.pipeline_mode<synchronous>, transform_indices = @transform_0, window_bounds = array<i64: 256, 576>}, {pipeline_mode = #tpu.pipeline_mode<synchronous>, transform_indices = @transform_1, window_bounds = array<i64: 576, 128>}, {pipeline_mode = #tpu.pipeline_mode<synchronous>, transform_indices = @transform_2, window_bounds = array<i64: 1, 128>}, {pipeline_mode = #tpu.pipeline_mode<synchronous>, transform_indices = @transform_3, window_bounds = array<i64: 1, 128>}, {pipeline_mode = #tpu.pipeline_mode<synchronous>, transform_indices = @transform_4, window_bounds = array<i64: 256, 128>}]} {
    %c0 = arith.constant 0 : index
    %c0_0 = arith.constant 0 : index
    %0 = vector.load %arg1[%c0, %c0_0] : memref<256x576xbf16, #tpu.memory_space<vmem>>, vector<256x576xbf16>
    %c0_1 = arith.constant 0 : index
    %c0_2 = arith.constant 0 : index
    %1 = vector.load %arg2[%c0_1, %c0_2] : memref<576x128xbf16, #tpu.memory_space<vmem>>, vector<576x128xbf16>
    %cst = arith.constant dense<0.000000e+00> : vector<256x128xf32>
    %2 = tpu.matmul %0, %1, %cst {dimension_numbers = #tpu.dot_dimension_numbers<[1], [0], [0], [1], [0, 0, 1, 1], [], []>} : vector<256x576xbf16>, vector<576x128xbf16>, vector<256x128xf32> -> vector<256x128xf32>
    %cst_3 = arith.constant dense<0.000000e+00> : vector<128xf32>
    %3 = vector.multi_reduction <add>, %2, %cst_3 [0] : vector<256x128xf32> to vector<128xf32>
    %4 = vector.shape_cast %3 : vector<128xf32> to vector<1x128xf32>
    %5 = arith.mulf %2, %2 : vector<256x128xf32>
    %cst_4 = arith.constant dense<0.000000e+00> : vector<128xf32>
    %6 = vector.multi_reduction <add>, %5, %cst_4 [0] : vector<256x128xf32> to vector<128xf32>
    %7 = vector.shape_cast %6 : vector<128xf32> to vector<1x128xf32>
    %c16_i32 = arith.constant 16 : i32
    %8 = tpu.dynamic_rotate %4 by %c16_i32 dim 1 : vector<1x128xf32>, i32 -> vector<1x128xf32>
    %9 = arith.addf %4, %8 : vector<1x128xf32>
    %c16_i32_5 = arith.constant 16 : i32
    %10 = tpu.dynamic_rotate %7 by %c16_i32_5 dim 1 : vector<1x128xf32>, i32 -> vector<1x128xf32>
    %11 = arith.addf %7, %10 : vector<1x128xf32>
    %c32_i32 = arith.constant 32 : i32
    %12 = tpu.dynamic_rotate %9 by %c32_i32 dim 1 : vector<1x128xf32>, i32 -> vector<1x128xf32>
    %13 = arith.addf %9, %12 : vector<1x128xf32>
    %c32_i32_6 = arith.constant 32 : i32
    %14 = tpu.dynamic_rotate %11 by %c32_i32_6 dim 1 : vector<1x128xf32>, i32 -> vector<1x128xf32>
    %15 = arith.addf %11, %14 : vector<1x128xf32>
    %c64_i32 = arith.constant 64 : i32
    %16 = tpu.dynamic_rotate %13 by %c64_i32 dim 1 : vector<1x128xf32>, i32 -> vector<1x128xf32>
    %17 = arith.addf %13, %16 : vector<1x128xf32>
    %c64_i32_7 = arith.constant 64 : i32
    %18 = tpu.dynamic_rotate %15 by %c64_i32_7 dim 1 : vector<1x128xf32>, i32 -> vector<1x128xf32>
    %19 = arith.addf %15, %18 : vector<1x128xf32>
    %cst_8 = arith.constant 4.8828125E-4 : f32
    %20 = vector.broadcast %cst_8 : f32 to vector<1x128xf32>
    %21 = arith.mulf %17, %20 : vector<1x128xf32>
    %cst_9 = arith.constant 4.8828125E-4 : f32
    %22 = vector.broadcast %cst_9 : f32 to vector<1x128xf32>
    %23 = arith.mulf %19, %22 : vector<1x128xf32>
    %24 = arith.mulf %21, %21 : vector<1x128xf32>
    %25 = arith.subf %23, %24 : vector<1x128xf32>
    %cst_10 = arith.constant 0.000000e+00 : f32
    %26 = vector.broadcast %cst_10 : f32 to vector<1x128xf32>
    %27 = arith.maximumf %25, %26 : vector<1x128xf32>
    %c0_11 = arith.constant 0 : index
    %c0_12 = arith.constant 0 : index
    %28 = vector.load %arg3[%c0_11, %c0_12] : memref<1x128xf32, #tpu.memory_space<vmem>>, vector<1x128xf32>
    %cst_13 = arith.constant 9.99999974E-6 : f32
    %29 = vector.broadcast %cst_13 : f32 to vector<1x128xf32>
    %30 = arith.addf %27, %29 : vector<1x128xf32>
    %31 = math.rsqrt %30 : vector<1x128xf32>
    %32 = arith.mulf %28, %31 : vector<1x128xf32>
    %c0_14 = arith.constant 0 : index
    %c0_15 = arith.constant 0 : index
    %33 = vector.load %arg4[%c0_14, %c0_15] : memref<1x128xf32, #tpu.memory_space<vmem>>, vector<1x128xf32>
    %34 = arith.mulf %21, %32 : vector<1x128xf32>
    %35 = arith.subf %33, %34 : vector<1x128xf32>
    %36 = vector.broadcast %32 : vector<1x128xf32> to vector<256x128xf32>
    %37 = arith.mulf %2, %36 : vector<256x128xf32>
    %38 = vector.broadcast %35 : vector<1x128xf32> to vector<256x128xf32>
    %39 = arith.addf %37, %38 : vector<256x128xf32>
    %cst_16 = arith.constant 0.000000e+00 : f32
    %40 = vector.broadcast %cst_16 : f32 to vector<256x128xf32>
    %41 = arith.cmpf oge, %39, %40 : vector<256x128xf32>
    %cst_17 = arith.constant 0.00999999977 : f32
    %42 = vector.broadcast %cst_17 : f32 to vector<256x128xf32>
    %43 = arith.mulf %42, %39 : vector<256x128xf32>
    %44 = arith.select %41, %39, %43 : vector<256x128xi1>, vector<256x128xf32>
    %45 = arith.truncf %44 : vector<256x128xf32> to vector<256x128xbf16>
    %c0_18 = arith.constant 0 : index
    %c0_19 = arith.constant 0 : index
    %46 = vector.load %arg5[%c0_18, %c0_19] : memref<256x128xbf16, #tpu.memory_space<vmem>>, vector<256x128xbf16>
    tpu.vector_store %arg5[%c0_18, %c0_19], %45 {strides = array<i32>} : memref<256x128xbf16, #tpu.memory_space<vmem>>, vector<256x128xbf16>,
    return
  }
  func.func @transform_0(%arg0: i32) -> (i32, i32) {
    %c0_i32 = arith.constant 0 : i32
    %c0_i32_0 = arith.constant 0 : i32
    %c0_i32_1 = arith.constant 0 : i32
    return %c0_i32, %c0_i32_0 : i32, i32
  }
  func.func @transform_1(%arg0: i32) -> (i32, i32) {
    %c0_i32 = arith.constant 0 : i32
    %c0_i32_0 = arith.constant 0 : i32
    %c0_i32_1 = arith.constant 0 : i32
    return %c0_i32, %c0_i32_0 : i32, i32
  }
  func.func @transform_2(%arg0: i32) -> (i32, i32) {
    %c0_i32 = arith.constant 0 : i32
    %c0_i32_0 = arith.constant 0 : i32
    %c0_i32_1 = arith.constant 0 : i32
    return %c0_i32, %c0_i32_0 : i32, i32
  }
  func.func @transform_3(%arg0: i32) -> (i32, i32) {
    %c0_i32 = arith.constant 0 : i32
    %c0_i32_0 = arith.constant 0 : i32
    %c0_i32_1 = arith.constant 0 : i32
    return %c0_i32, %c0_i32_0 : i32, i32
  }
  func.func @transform_4(%arg0: i32) -> (i32, i32) {
    %c0_i32 = arith.constant 0 : i32
    %c0_i32_0 = arith.constant 0 : i32
    %c0_i32_1 = arith.constant 0 : i32
    return %c0_i32, %c0_i32_0 : i32, i32
  }
}

module attributes {stable_mosaic.version = 11 : i64} {
  func.func @_conv_bn_lrelu_kernel(%arg0: i32, %arg1: memref<128x576xbf16, #tpu.memory_space<vmem>>, %arg2: memref<576x128xbf16, #tpu.memory_space<vmem>>, %arg3: memref<1x128xf32, #tpu.memory_space<vmem>>, %arg4: memref<1x128xf32, #tpu.memory_space<vmem>>, %arg5: memref<128x128xbf16, #tpu.memory_space<vmem>>) attributes {dimension_semantics = [#tpu.dimension_semantics<arbitrary>], iteration_bounds = array<i64: 1>, scalar_prefetch = 0 : i64, scratch_operands = 0 : i64, tpu.core_type = #tpu.core_type<tc>, window_params = [{pipeline_mode = #tpu.pipeline_mode<synchronous>, transform_indices = @transform_0, window_bounds = array<i64: 128, 576>}, {pipeline_mode = #tpu.pipeline_mode<synchronous>, transform_indices = @transform_1, window_bounds = array<i64: 576, 128>}, {pipeline_mode = #tpu.pipeline_mode<synchronous>, transform_indices = @transform_2, window_bounds = array<i64: 1, 128>}, {pipeline_mode = #tpu.pipeline_mode<synchronous>, transform_indices = @transform_3, window_bounds = array<i64: 1, 128>}, {pipeline_mode = #tpu.pipeline_mode<synchronous>, transform_indices = @transform_4, window_bounds = array<i64: 128, 128>}]} {
    %c0 = arith.constant 0 : index
    %c0_0 = arith.constant 0 : index
    %0 = vector.load %arg1[%c0, %c0_0] : memref<128x576xbf16, #tpu.memory_space<vmem>>, vector<128x576xbf16>
    %c0_1 = arith.constant 0 : index
    %c0_2 = arith.constant 0 : index
    %1 = vector.load %arg2[%c0_1, %c0_2] : memref<576x128xbf16, #tpu.memory_space<vmem>>, vector<576x128xbf16>
    %cst = arith.constant dense<0.000000e+00> : vector<128x128xf32>
    %2 = tpu.matmul %0, %1, %cst {dimension_numbers = #tpu.dot_dimension_numbers<[1], [0], [0], [1], [0, 0, 1, 1], [], []>} : vector<128x576xbf16>, vector<576x128xbf16>, vector<128x128xf32> -> vector<128x128xf32>
    %cst_3 = arith.constant dense<0.000000e+00> : vector<128xf32>
    %3 = vector.multi_reduction <add>, %2, %cst_3 [0] : vector<128x128xf32> to vector<128xf32>
    %4 = vector.shape_cast %3 : vector<128xf32> to vector<1x128xf32>
    %5 = arith.mulf %2, %2 : vector<128x128xf32>
    %cst_4 = arith.constant dense<0.000000e+00> : vector<128xf32>
    %6 = vector.multi_reduction <add>, %5, %cst_4 [0] : vector<128x128xf32> to vector<128xf32>
    %7 = vector.shape_cast %6 : vector<128xf32> to vector<1x128xf32>
    %c32_i32 = arith.constant 32 : i32
    %8 = tpu.dynamic_rotate %4 by %c32_i32 dim 1 : vector<1x128xf32>, i32 -> vector<1x128xf32>
    %9 = arith.addf %4, %8 : vector<1x128xf32>
    %c32_i32_5 = arith.constant 32 : i32
    %10 = tpu.dynamic_rotate %7 by %c32_i32_5 dim 1 : vector<1x128xf32>, i32 -> vector<1x128xf32>
    %11 = arith.addf %7, %10 : vector<1x128xf32>
    %c64_i32 = arith.constant 64 : i32
    %12 = tpu.dynamic_rotate %9 by %c64_i32 dim 1 : vector<1x128xf32>, i32 -> vector<1x128xf32>
    %13 = arith.addf %9, %12 : vector<1x128xf32>
    %c64_i32_6 = arith.constant 64 : i32
    %14 = tpu.dynamic_rotate %11 by %c64_i32_6 dim 1 : vector<1x128xf32>, i32 -> vector<1x128xf32>
    %15 = arith.addf %11, %14 : vector<1x128xf32>
    %cst_7 = arith.constant 0.001953125 : f32
    %16 = vector.broadcast %cst_7 : f32 to vector<1x128xf32>
    %17 = arith.mulf %13, %16 : vector<1x128xf32>
    %cst_8 = arith.constant 0.001953125 : f32
    %18 = vector.broadcast %cst_8 : f32 to vector<1x128xf32>
    %19 = arith.mulf %15, %18 : vector<1x128xf32>
    %20 = arith.mulf %17, %17 : vector<1x128xf32>
    %21 = arith.subf %19, %20 : vector<1x128xf32>
    %cst_9 = arith.constant 0.000000e+00 : f32
    %22 = vector.broadcast %cst_9 : f32 to vector<1x128xf32>
    %23 = arith.maximumf %21, %22 : vector<1x128xf32>
    %c0_10 = arith.constant 0 : index
    %c0_11 = arith.constant 0 : index
    %24 = vector.load %arg3[%c0_10, %c0_11] : memref<1x128xf32, #tpu.memory_space<vmem>>, vector<1x128xf32>
    %cst_12 = arith.constant 9.99999974E-6 : f32
    %25 = vector.broadcast %cst_12 : f32 to vector<1x128xf32>
    %26 = arith.addf %23, %25 : vector<1x128xf32>
    %27 = math.rsqrt %26 : vector<1x128xf32>
    %28 = arith.mulf %24, %27 : vector<1x128xf32>
    %c0_13 = arith.constant 0 : index
    %c0_14 = arith.constant 0 : index
    %29 = vector.load %arg4[%c0_13, %c0_14] : memref<1x128xf32, #tpu.memory_space<vmem>>, vector<1x128xf32>
    %30 = arith.mulf %17, %28 : vector<1x128xf32>
    %31 = arith.subf %29, %30 : vector<1x128xf32>
    %32 = vector.broadcast %28 : vector<1x128xf32> to vector<128x128xf32>
    %33 = arith.mulf %2, %32 : vector<128x128xf32>
    %34 = vector.broadcast %31 : vector<1x128xf32> to vector<128x128xf32>
    %35 = arith.addf %33, %34 : vector<128x128xf32>
    %cst_15 = arith.constant 0.000000e+00 : f32
    %36 = vector.broadcast %cst_15 : f32 to vector<128x128xf32>
    %37 = arith.cmpf oge, %35, %36 : vector<128x128xf32>
    %cst_16 = arith.constant 0.00999999977 : f32
    %38 = vector.broadcast %cst_16 : f32 to vector<128x128xf32>
    %39 = arith.mulf %38, %35 : vector<128x128xf32>
    %40 = arith.select %37, %35, %39 : vector<128x128xi1>, vector<128x128xf32>
    %41 = arith.truncf %40 : vector<128x128xf32> to vector<128x128xbf16>
    %c0_17 = arith.constant 0 : index
    %c0_18 = arith.constant 0 : index
    %42 = vector.load %arg5[%c0_17, %c0_18] : memref<128x128xbf16, #tpu.memory_space<vmem>>, vector<128x128xbf16>
    tpu.vector_store %arg5[%c0_17, %c0_18], %41 {strides = array<i32>} : memref<128x128xbf16, #tpu.memory_space<vmem>>, vector<128x128xbf16>,
    return
  }
  func.func @transform_0(%arg0: i32) -> (i32, i32) {
    %c0_i32 = arith.constant 0 : i32
    %c0_i32_0 = arith.constant 0 : i32
    %c0_i32_1 = arith.constant 0 : i32
    return %c0_i32, %c0_i32_0 : i32, i32
  }
  func.func @transform_1(%arg0: i32) -> (i32, i32) {
    %c0_i32 = arith.constant 0 : i32
    %c0_i32_0 = arith.constant 0 : i32
    %c0_i32_1 = arith.constant 0 : i32
    return %c0_i32, %c0_i32_0 : i32, i32
  }
  func.func @transform_2(%arg0: i32) -> (i32, i32) {
    %c0_i32 = arith.constant 0 : i32
    %c0_i32_0 = arith.constant 0 : i32
    %c0_i32_1 = arith.constant 0 : i32
    return %c0_i32, %c0_i32_0 : i32, i32
  }
  func.func @transform_3(%arg0: i32) -> (i32, i32) {
    %c0_i32 = arith.constant 0 : i32
    %c0_i32_0 = arith.constant 0 : i32
    %c0_i32_1 = arith.constant 0 : i32
    return %c0_i32, %c0_i32_0 : i32, i32
  }
  func.func @transform_4(%arg0: i32) -> (i32, i32) {
    %c0_i32 = arith.constant 0 : i32
    %c0_i32_0 = arith.constant 0 : i32
    %c0_i32_1 = arith.constant 0 : i32
    return %c0_i32, %c0_i32_0 : i32, i32
  }
}

module attributes {stable_mosaic.version = 11 : i64} {
  func.func @_head_kernel(%arg0: i32, %arg1: memref<2x4096xbf16, #tpu.memory_space<vmem>>, %arg2: memref<4096x64xbf16, #tpu.memory_space<vmem>>, %arg3: memref<1x64xf32, #tpu.memory_space<vmem>>, %arg4: memref<1x64xf32, #tpu.memory_space<vmem>>, %arg5: memref<1x1xf32, #tpu.memory_space<vmem>>, %arg6: memref<2x1xf32, #tpu.memory_space<vmem>>) attributes {dimension_semantics = [#tpu.dimension_semantics<arbitrary>], iteration_bounds = array<i64: 1>, scalar_prefetch = 0 : i64, scratch_operands = 0 : i64, tpu.core_type = #tpu.core_type<tc>, window_params = [{pipeline_mode = #tpu.pipeline_mode<synchronous>, transform_indices = @transform_0, window_bounds = array<i64: 2, 4096>}, {pipeline_mode = #tpu.pipeline_mode<synchronous>, transform_indices = @transform_1, window_bounds = array<i64: 4096, 64>}, {pipeline_mode = #tpu.pipeline_mode<synchronous>, transform_indices = @transform_2, window_bounds = array<i64: 1, 64>}, {pipeline_mode = #tpu.pipeline_mode<synchronous>, transform_indices = @transform_3, window_bounds = array<i64: 1, 64>}, {pipeline_mode = #tpu.pipeline_mode<synchronous>, transform_indices = @transform_4, window_bounds = array<i64: 1, 1>}, {pipeline_mode = #tpu.pipeline_mode<synchronous>, transform_indices = @transform_5, window_bounds = array<i64: 2, 1>}]} {
    %c0 = arith.constant 0 : index
    %c0_0 = arith.constant 0 : index
    %0 = vector.load %arg1[%c0, %c0_0] : memref<2x4096xbf16, #tpu.memory_space<vmem>>, vector<2x4096xbf16>
    %c0_1 = arith.constant 0 : index
    %c0_2 = arith.constant 0 : index
    %1 = vector.load %arg2[%c0_1, %c0_2] : memref<4096x64xbf16, #tpu.memory_space<vmem>>, vector<4096x64xbf16>
    %cst = arith.constant dense<0.000000e+00> : vector<2x64xf32>
    %2 = tpu.matmul %0, %1, %cst {dimension_numbers = #tpu.dot_dimension_numbers<[1], [0], [0], [1], [0, 0, 1, 1], [], []>} : vector<2x4096xbf16>, vector<4096x64xbf16>, vector<2x64xf32> -> vector<2x64xf32>
    %c0_3 = arith.constant 0 : index
    %c0_4 = arith.constant 0 : index
    %3 = vector.load %arg3[%c0_3, %c0_4] : memref<1x64xf32, #tpu.memory_space<vmem>>, vector<1x64xf32>
    %4 = vector.broadcast %3 : vector<1x64xf32> to vector<2x64xf32>
    %5 = arith.addf %2, %4 : vector<2x64xf32>
    %cst_5 = arith.constant 0.000000e+00 : f32
    %6 = vector.broadcast %cst_5 : f32 to vector<2x64xf32>
    %7 = arith.cmpf oge, %5, %6 : vector<2x64xf32>
    %cst_6 = arith.constant 0.00999999977 : f32
    %8 = vector.broadcast %cst_6 : f32 to vector<2x64xf32>
    %9 = arith.mulf %8, %5 : vector<2x64xf32>
    %10 = arith.select %7, %5, %9 : vector<2x64xi1>, vector<2x64xf32>
    %c0_7 = arith.constant 0 : index
    %c0_8 = arith.constant 0 : index
    %11 = vector.load %arg4[%c0_7, %c0_8] : memref<1x64xf32, #tpu.memory_space<vmem>>, vector<1x64xf32>
    %12 = vector.broadcast %11 : vector<1x64xf32> to vector<2x64xf32>
    %13 = arith.mulf %10, %12 : vector<2x64xf32>
    %cst_9 = arith.constant dense<0.000000e+00> : vector<2xf32>
    %14 = vector.multi_reduction <add>, %13, %cst_9 [1] : vector<2x64xf32> to vector<2xf32>
    %15 = vector.shape_cast %14 : vector<2xf32> to vector<2x1xf32>
    %c0_10 = arith.constant 0 : index
    %c0_11 = arith.constant 0 : index
    %16 = vector.load %arg5[%c0_10, %c0_11] : memref<1x1xf32, #tpu.memory_space<vmem>>, vector<1x1xf32>
    %17 = vector.broadcast %16 : vector<1x1xf32> to vector<2x1xf32>
    %18 = arith.addf %15, %17 : vector<2x1xf32>
    %cst_12 = arith.constant 5.000000e-01 : f32
    %19 = vector.broadcast %cst_12 : f32 to vector<2x1xf32>
    %20 = arith.mulf %19, %18 : vector<2x1xf32>
    %21 = math.tanh %20 : vector<2x1xf32>
    %cst_13 = arith.constant 1.000000e+00 : f32
    %22 = vector.broadcast %cst_13 : f32 to vector<2x1xf32>
    %23 = arith.addf %21, %22 : vector<2x1xf32>
    %cst_14 = arith.constant 5.000000e-01 : f32
    %24 = vector.broadcast %cst_14 : f32 to vector<2x1xf32>
    %25 = arith.mulf %24, %23 : vector<2x1xf32>
    %c0_15 = arith.constant 0 : index
    %c0_16 = arith.constant 0 : index
    %26 = vector.load %arg6[%c0_15, %c0_16] : memref<2x1xf32, #tpu.memory_space<vmem>>, vector<2x1xf32>
    tpu.vector_store %arg6[%c0_15, %c0_16], %25 {strides = array<i32>} : memref<2x1xf32, #tpu.memory_space<vmem>>, vector<2x1xf32>,
    return
  }
  func.func @transform_0(%arg0: i32) -> (i32, i32) {
    %c0_i32 = arith.constant 0 : i32
    %c0_i32_0 = arith.constant 0 : i32
    %c0_i32_1 = arith.constant 0 : i32
    return %c0_i32, %c0_i32_0 : i32, i32
  }
  func.func @transform_1(%arg0: i32) -> (i32, i32) {
    %c0_i32 = arith.constant 0 : i32
    %c0_i32_0 = arith.constant 0 : i32
    %c0_i32_1 = arith.constant 0 : i32
    return %c0_i32, %c0_i32_0 : i32, i32
  }
  func.func @transform_2(%arg0: i32) -> (i32, i32) {
    %c0_i32 = arith.constant 0 : i32
    %c0_i32_0 = arith.constant 0 : i32
    %c0_i32_1 = arith.constant 0 : i32
    return %c0_i32, %c0_i32_0 : i32, i32
  }
  func.func @transform_3(%arg0: i32) -> (i32, i32) {
    %c0_i32 = arith.constant 0 : i32
    %c0_i32_0 = arith.constant 0 : i32
    %c0_i32_1 = arith.constant 0 : i32
    return %c0_i32, %c0_i32_0 : i32, i32
  }
  func.func @transform_4(%arg0: i32) -> (i32, i32) {
    %c0_i32 = arith.constant 0 : i32
    %c0_i32_0 = arith.constant 0 : i32
    %c0_i32_1 = arith.constant 0 : i32
    return %c0_i32, %c0_i32_0 : i32, i32
  }
  func.func @transform_5(%arg0: i32) -> (i32, i32) {
    %c0_i32 = arith.constant 0 : i32
    %c0_i32_0 = arith.constant 0 : i32
    %c0_i32_1 = arith.constant 0 : i32
    return %c0_i32, %c0_i32_0 : i32, i32
  }
}

module attributes {stable_mosaic.version = 11 : i64} {
  func.func @_conv_bn_lrelu_kernel(%arg0: i32, %arg1: memref<64x576xbf16, #tpu.memory_space<vmem>>, %arg2: memref<576x128xbf16, #tpu.memory_space<vmem>>, %arg3: memref<1x128xf32, #tpu.memory_space<vmem>>, %arg4: memref<1x128xf32, #tpu.memory_space<vmem>>, %arg5: memref<64x128xbf16, #tpu.memory_space<vmem>>) attributes {dimension_semantics = [#tpu.dimension_semantics<arbitrary>], iteration_bounds = array<i64: 1>, scalar_prefetch = 0 : i64, scratch_operands = 0 : i64, tpu.core_type = #tpu.core_type<tc>, window_params = [{pipeline_mode = #tpu.pipeline_mode<synchronous>, transform_indices = @transform_0, window_bounds = array<i64: 64, 576>}, {pipeline_mode = #tpu.pipeline_mode<synchronous>, transform_indices = @transform_1, window_bounds = array<i64: 576, 128>}, {pipeline_mode = #tpu.pipeline_mode<synchronous>, transform_indices = @transform_2, window_bounds = array<i64: 1, 128>}, {pipeline_mode = #tpu.pipeline_mode<synchronous>, transform_indices = @transform_3, window_bounds = array<i64: 1, 128>}, {pipeline_mode = #tpu.pipeline_mode<synchronous>, transform_indices = @transform_4, window_bounds = array<i64: 64, 128>}]} {
    %c0 = arith.constant 0 : index
    %c0_0 = arith.constant 0 : index
    %0 = vector.load %arg1[%c0, %c0_0] : memref<64x576xbf16, #tpu.memory_space<vmem>>, vector<64x576xbf16>
    %c0_1 = arith.constant 0 : index
    %c0_2 = arith.constant 0 : index
    %1 = vector.load %arg2[%c0_1, %c0_2] : memref<576x128xbf16, #tpu.memory_space<vmem>>, vector<576x128xbf16>
    %cst = arith.constant dense<0.000000e+00> : vector<64x128xf32>
    %2 = tpu.matmul %0, %1, %cst {dimension_numbers = #tpu.dot_dimension_numbers<[1], [0], [0], [1], [0, 0, 1, 1], [], []>} : vector<64x576xbf16>, vector<576x128xbf16>, vector<64x128xf32> -> vector<64x128xf32>
    %cst_3 = arith.constant dense<0.000000e+00> : vector<128xf32>
    %3 = vector.multi_reduction <add>, %2, %cst_3 [0] : vector<64x128xf32> to vector<128xf32>
    %4 = vector.shape_cast %3 : vector<128xf32> to vector<1x128xf32>
    %5 = arith.mulf %2, %2 : vector<64x128xf32>
    %cst_4 = arith.constant dense<0.000000e+00> : vector<128xf32>
    %6 = vector.multi_reduction <add>, %5, %cst_4 [0] : vector<64x128xf32> to vector<128xf32>
    %7 = vector.shape_cast %6 : vector<128xf32> to vector<1x128xf32>
    %c64_i32 = arith.constant 64 : i32
    %8 = tpu.dynamic_rotate %4 by %c64_i32 dim 1 : vector<1x128xf32>, i32 -> vector<1x128xf32>
    %9 = arith.addf %4, %8 : vector<1x128xf32>
    %c64_i32_5 = arith.constant 64 : i32
    %10 = tpu.dynamic_rotate %7 by %c64_i32_5 dim 1 : vector<1x128xf32>, i32 -> vector<1x128xf32>
    %11 = arith.addf %7, %10 : vector<1x128xf32>
    %cst_6 = arith.constant 7.812500e-03 : f32
    %12 = vector.broadcast %cst_6 : f32 to vector<1x128xf32>
    %13 = arith.mulf %9, %12 : vector<1x128xf32>
    %cst_7 = arith.constant 7.812500e-03 : f32
    %14 = vector.broadcast %cst_7 : f32 to vector<1x128xf32>
    %15 = arith.mulf %11, %14 : vector<1x128xf32>
    %16 = arith.mulf %13, %13 : vector<1x128xf32>
    %17 = arith.subf %15, %16 : vector<1x128xf32>
    %cst_8 = arith.constant 0.000000e+00 : f32
    %18 = vector.broadcast %cst_8 : f32 to vector<1x128xf32>
    %19 = arith.maximumf %17, %18 : vector<1x128xf32>
    %c0_9 = arith.constant 0 : index
    %c0_10 = arith.constant 0 : index
    %20 = vector.load %arg3[%c0_9, %c0_10] : memref<1x128xf32, #tpu.memory_space<vmem>>, vector<1x128xf32>
    %cst_11 = arith.constant 9.99999974E-6 : f32
    %21 = vector.broadcast %cst_11 : f32 to vector<1x128xf32>
    %22 = arith.addf %19, %21 : vector<1x128xf32>
    %23 = math.rsqrt %22 : vector<1x128xf32>
    %24 = arith.mulf %20, %23 : vector<1x128xf32>
    %c0_12 = arith.constant 0 : index
    %c0_13 = arith.constant 0 : index
    %25 = vector.load %arg4[%c0_12, %c0_13] : memref<1x128xf32, #tpu.memory_space<vmem>>, vector<1x128xf32>
    %26 = arith.mulf %13, %24 : vector<1x128xf32>
    %27 = arith.subf %25, %26 : vector<1x128xf32>
    %28 = vector.broadcast %24 : vector<1x128xf32> to vector<64x128xf32>
    %29 = arith.mulf %2, %28 : vector<64x128xf32>
    %30 = vector.broadcast %27 : vector<1x128xf32> to vector<64x128xf32>
    %31 = arith.addf %29, %30 : vector<64x128xf32>
    %cst_14 = arith.constant 0.000000e+00 : f32
    %32 = vector.broadcast %cst_14 : f32 to vector<64x128xf32>
    %33 = arith.cmpf oge, %31, %32 : vector<64x128xf32>
    %cst_15 = arith.constant 0.00999999977 : f32
    %34 = vector.broadcast %cst_15 : f32 to vector<64x128xf32>
    %35 = arith.mulf %34, %31 : vector<64x128xf32>
    %36 = arith.select %33, %31, %35 : vector<64x128xi1>, vector<64x128xf32>
    %37 = arith.truncf %36 : vector<64x128xf32> to vector<64x128xbf16>
    %c0_16 = arith.constant 0 : index
    %c0_17 = arith.constant 0 : index
    %38 = vector.load %arg5[%c0_16, %c0_17] : memref<64x128xbf16, #tpu.memory_space<vmem>>, vector<64x128xbf16>
    tpu.vector_store %arg5[%c0_16, %c0_17], %37 {strides = array<i32>} : memref<64x128xbf16, #tpu.memory_space<vmem>>, vector<64x128xbf16>,
    return
  }
  func.func @transform_0(%arg0: i32) -> (i32, i32) {
    %c0_i32 = arith.constant 0 : i32
    %c0_i32_0 = arith.constant 0 : i32
    %c0_i32_1 = arith.constant 0 : i32
    return %c0_i32, %c0_i32_0 : i32, i32
  }
  func.func @transform_1(%arg0: i32) -> (i32, i32) {
    %c0_i32 = arith.constant 0 : i32
    %c0_i32_0 = arith.constant 0 : i32
    %c0_i32_1 = arith.constant 0 : i32
    return %c0_i32, %c0_i32_0 : i32, i32
  }
  func.func @transform_2(%arg0: i32) -> (i32, i32) {
    %c0_i32 = arith.constant 0 : i32
    %c0_i32_0 = arith.constant 0 : i32
    %c0_i32_1 = arith.constant 0 : i32
    return %c0_i32, %c0_i32_0 : i32, i32
  }
  func.func @transform_3(%arg0: i32) -> (i32, i32) {
    %c0_i32 = arith.constant 0 : i32
    %c0_i32_0 = arith.constant 0 : i32
    %c0_i32_1 = arith.constant 0 : i32
    return %c0_i32, %c0_i32_0 : i32, i32
  }
  func.func @transform_4(%arg0: i32) -> (i32, i32) {
    %c0_i32 = arith.constant 0 : i32
    %c0_i32_0 = arith.constant 0 : i32
    %c0_i32_1 = arith.constant 0 : i32
    return %c0_i32, %c0_i32_0 : i32, i32
  }
}

</mosaic_0001>

<llo_original>
// kernel: discriminator_forward.5
$region0: #{discriminator_forward.5}
  #allocation0 [shape = 'u32[]', space=smem, size = 0x4, offset = 0x4, fixed_abs, tag = 'smem constant byte address 0x4 - core index']
  #allocation1 [shape = 'u32[144,128]{1,0:T(1,128)}', space=vmem, size = 0x12000, scoped, tag = 'internal scratch']
  %s0 = inlined_call_operand.vmem [shape: bf16[512,144], index: 0, kind: input, shape index: {}]
  %s1 = inlined_call_operand.vmem [shape: bf16[144,128], index: 1, kind: input, shape index: {}]
  %s2 = inlined_call_operand.vmem [shape: f32[1,128], index: 2, kind: input, shape index: {}]
  %s3 = inlined_call_operand.vmem [shape: f32[1,128], index: 3, kind: input, shape index: {}]
  %s4 = inlined_call_operand.vmem [shape: bf16[512,128], index: 4, kind: output, shape index: {}]
  %s5 = sld [smem:[#allocation0]]
  $region26: #{discriminator_forward.5} parent=0
    _
  %s7 = ssub.s32 1, %s5
  %s8 = scalar_select 0, %s7, %s5
  // Predicated region
  $region2: #{discriminator_forward.5} parent=0 // pred_check
    _
  $region3: #{discriminator_forward.5} parent=0 // pred_check_branch
    %10 = sbr.rel (0) target = $region5
  $region4: #{discriminator_forward.5} parent=0 // pred_region
    _
  $region5: #{discriminator_forward.5} parent=0 // pred_fallthru
    _
  // Predicated region
  $region6: #{discriminator_forward.5} parent=0 // pred_check
    _
  $region7: #{discriminator_forward.5} parent=0 // pred_check_branch
    %12 = sbr.rel (0) target = $region9
  $region8: #{discriminator_forward.5} parent=0 // pred_region
    _
  $region9: #{discriminator_forward.5} parent=0 // pred_fallthru
    _
  // Predicated region
  $region10: #{discriminator_forward.5} parent=0 // pred_check
    _
  $region11: #{discriminator_forward.5} parent=0 // pred_check_branch
    %14 = sbr.rel (0) target = $region13
  $region12: #{discriminator_forward.5} parent=0 // pred_region
    _
  $region13: #{discriminator_forward.5} parent=0 // pred_fallthru
    _
  // Predicated region
  $region14: #{discriminator_forward.5} parent=0 // pred_check
    _
  $region15: #{discriminator_forward.5} parent=0 // pred_check_branch
    %16 = sbr.rel (0) target = $region17
  $region16: #{discriminator_forward.5} parent=0 // pred_region
    _
  $region17: #{discriminator_forward.5} parent=0 // pred_fallthru
    _
  %v18 = vld [vmem:[%s0] sm:$0xff]
  %v19 = vld [vmem:[%s0 + $0x8] sm:$0xff]
  %v20 = vld [vmem:[%s0 + $0x10] sm:$0xff]
  %v21 = vld [vmem:[%s0 + $0x18] sm:$0xff]
  %v22 = vld [vmem:[%s0 + $0x20] sm:$0xff]
  %v23 = vld [vmem:[%s0 + $0x28] sm:$0xff]
  %v24 = vld [vmem:[%s0 + $0x30] sm:$0xff]
  %v25 = vld [vmem:[%s0 + $0x38] sm:$0xff]
  %v26 = vld [vmem:[%s0 + $0x40] sm:$0xff]
  %v27 = vld [vmem:[%s0 + $0x48] sm:$0xff]
  %v28 = vld [vmem:[%s0 + $0x50] sm:$0xff]
  %v29 = vld [vmem:[%s0 + $0x58] sm:$0xff]
  %v30 = vld [vmem:[%s0 + $0x60] sm:$0xff]
  %v31 = vld [vmem:[%s0 + $0x68] sm:$0xff]
  %v32 = vld [vmem:[%s0 + $0x70] sm:$0xff]
  %v33 = vld [vmem:[%s0 + $0x78] sm:$0xff]
  %v34 = vld [vmem:[%s0 + $0x80] sm:$0xff]
  %v35 = vld [vmem:[%s0 + $0x88] sm:$0xff]
  %v36 = vld [vmem:[%s0 + $0x90] sm:$0xff]
  %v37 = vld [vmem:[%s0 + $0x98] sm:$0xff]
  %v38 = vld [vmem:[%s0 + $0xa0] sm:$0xff]
  %v39 = vld [vmem:[%s0 + $0xa8] sm:$0xff]
  %v40 = vld [vmem:[%s0 + $0xb0] sm:$0xff]
  %v41 = vld [vmem:[%s0 + $0xb8] sm:$0xff]
  %v42 = vld [vmem:[%s0 + $0xc0] sm:$0xff]
  %v43 = vld [vmem:[%s0 + $0xc8] sm:$0xff]
  %v44 = vld [vmem:[%s0 + $0xd0] sm:$0xff]
  %v45 = vld [vmem:[%s0 + $0xd8] sm:$0xff]
  %v46 = vld [vmem:[%s0 + $0xe0] sm:$0xff]
  %v47 = vld [vmem:[%s0 + $0xe8] sm:$0xff]
  %v48 = vld [vmem:[%s0 + $0xf0] sm:$0xff]
  %v49 = vld [vmem:[%s0 + $0xf8] sm:$0xff]
  %v50 = vld [vmem:[%s0 + $0x100] sm:$0xff]
  %v51 = vld [vmem:[%s0 + $0x108] sm:$0xff]
  %v52 = vld [vmem:[%s0 + $0x110] sm:$0xff]
  %v53 = vld [vmem:[%s0 + $0x118] sm:$0xff]
  %v54 = vld [vmem:[%s0 + $0x120] sm:$0xff]
  %v55 = vld [vmem:[%s0 + $0x128] sm:$0xff]
  %v56 = vld [vmem:[%s0 + $0x130] sm:$0xff]
  %v57 = vld [vmem:[%s0 + $0x138] sm:$0xff]
  %v58 = vld [vmem:[%s0 + $0x140] sm:$0xff]
  %v59 = vld [vmem:[%s0 + $0x148] sm:$0xff]
  %v60 = vld [vmem:[%s0 + $0x150] sm:$0xff]
  %v61 = vld [vmem:[%s0 + $0x158] sm:$0xff]
  %v62 = vld [vmem:[%s0 + $0x160] sm:$0xff]
  %v63 = vld [vmem:[%s0 + $0x168] sm:$0xff]
  %v64 = vld [vmem:[%s0 + $0x170] sm:$0xff]
  %v65 = vld [vmem:[%s0 + $0x178] sm:$0xff]
  %v66 = vld [vmem:[%s0 + $0x180] sm:$0xff]
  %v67 = vld [vmem:[%s0 + $0x188] sm:$0xff]
  %v68 = vld [vmem:[%s0 + $0x190] sm:$0xff]
  %v69 = vld [vmem:[%s0 + $0x198] sm:$0xff]
  %v70 = vld [vmem:[%s0 + $0x1a0] sm:$0xff]
  %v71 = vld [vmem:[%s0 + $0x1a8] sm:$0xff]
  %v72 = vld [vmem:[%s0 + $0x1b0] sm:$0xff]
  %v73 = vld [vmem:[%s0 + $0x1b8] sm:$0xff]
  %v74 = vld [vmem:[%s0 + $0x1c0] sm:$0xff]
  %v75 = vld [vmem:[%s0 + $0x1c8] sm:$0xff]
  %v76 = vld [vmem:[%s0 + $0x1d0] sm:$0xff]
  %v77 = vld [vmem:[%s0 + $0x1d8] sm:$0xff]
  %v78 = vld [vmem:[%s0 + $0x1e0] sm:$0xff]
  %v79 = vld [vmem:[%s0 + $0x1e8] sm:$0xff]
  %v80 = vld [vmem:[%s0 + $0x1f0] sm:$0xff]
  %v81 = vld [vmem:[%s0 + $0x1f8] sm:$0xff]
  %v82 = vld [vmem:[%s1] sm:$0xf]
  %v83 = vld [vmem:[%s1 + $0x4] sm:$0xf]
  %v84 = vld [vmem:[%s1 + $0x8] sm:$0xf]
  %v85 = vld [vmem:[%s1 + $0xc] sm:$0xf]
  %v86 = vld [vmem:[%s1 + $0x10] sm:$0xf]
  %v87 = vld [vmem:[%s1 + $0x14] sm:$0xf]
  %v88 = vld [vmem:[%s1 + $0x18] sm:$0xf]
  %v89 = vld [vmem:[%s1 + $0x1c] sm:$0xf]
  %v90 = vld [vmem:[%s1 + $0x20] sm:$0xf]
  %v91 = vld [vmem:[%s1 + $0x24] sm:$0xf]
  %v92 = vld [vmem:[%s1 + $0x28] sm:$0xf]
  %v93 = vld [vmem:[%s1 + $0x2c] sm:$0xf]
  %v94 = vld [vmem:[%s1 + $0x30] sm:$0xf]
  %v95 = vld [vmem:[%s1 + $0x34] sm:$0xf]
  %v96 = vld [vmem:[%s1 + $0x38] sm:$0xf]
  %v97 = vld [vmem:[%s1 + $0x3c] sm:$0xf]
  %v98 = vld [vmem:[%s1 + $0x40] sm:$0xf]
  %v99 = vld [vmem:[%s1 + $0x44] sm:$0xf]
  %v164 = vunpack.c.l.b16 %v18
  %v165 = vunpack.c.h.b16 %v18
  %v166 = vunpack.c.l.b16 %v19
  %v167 = vunpack.c.h.b16 %v19
  %v168 = vunpack.c.l.b16 %v20
  %v169 = vunpack.c.h.b16 %v20
  %v170 = vunpack.c.l.b16 %v21
  %v171 = vunpack.c.h.b16 %v21
  %v172 = vunpack.c.l.b16 %v22
  %v173 = vunpack.c.h.b16 %v22
  %v174 = vunpack.c.l.b16 %v23
  %v175 = vunpack.c.h.b16 %v23
  %v176 = vunpack.c.l.b16 %v24
  %v177 = vunpack.c.h.b16 %v24
  %v178 = vunpack.c.l.b16 %v25
  %v179 = vunpack.c.h.b16 %v25
  %v180 = vunpack.c.l.b16 %v26
  %v181 = vunpack.c.h.b16 %v26
  %v182 = vunpack.c.l.b16 %v27
  %v183 = vunpack.c.h.b16 %v27
  %v184 = vunpack.c.l.b16 %v28
  %v185 = vunpack.c.h.b16 %v28
  %v186 = vunpack.c.l.b16 %v29
  %v187 = vunpack.c.h.b16 %v29
  %v188 = vunpack.c.l.b16 %v30
  %v189 = vunpack.c.h.b16 %v30
  %v190 = vunpack.c.l.b16 %v31
  %v191 = vunpack.c.h.b16 %v31
  %v192 = vunpack.c.l.b16 %v32
  %v193 = vunpack.c.h.b16 %v32
  %v194 = vunpack.c.l.b16 %v33
  %v195 = vunpack.c.h.b16 %v33
  %v196 = vunpack.c.l.b16 %v34
  %v197 = vunpack.c.h.b16 %v34
  %v198 = vunpack.c.l.b16 %v35
  %v199 = vunpack.c.h.b16 %v35
  %v200 = vunpack.c.l.b16 %v36
  %v201 = vunpack.c.h.b16 %v36
  %v202 = vunpack.c.l.b16 %v37
  %v203 = vunpack.c.h.b16 %v37
  %v204 = vunpack.c.l.b16 %v38
  %v205 = vunpack.c.h.b16 %v38
  %v206 = vunpack.c.l.b16 %v39
  %v207 = vunpack.c.h.b16 %v39
  %v208 = vunpack.c.l.b16 %v40
  %v209 = vunpack.c.h.b16 %v40
  %v210 = vunpack.c.l.b16 %v41
  %v211 = vunpack.c.h.b16 %v41
  %v212 = vunpack.c.l.b16 %v42
  %v213 = vunpack.c.h.b16 %v42
  %v214 = vunpack.c.l.b16 %v43
  %v215 = vunpack.c.h.b16 %v43
  %v216 = vunpack.c.l.b16 %v44
  %v217 = vunpack.c.h.b16 %v44
  %v218 = vunpack.c.l.b16 %v45
  %v219 = vunpack.c.h.b16 %v45
  %v220 = vunpack.c.l.b16 %v46
  %v221 = vunpack.c.h.b16 %v46
  %v222 = vunpack.c.l.b16 %v47
  %v223 = vunpack.c.h.b16 %v47
  %v224 = vunpack.c.l.b16 %v48
  %v225 = vunpack.c.h.b16 %v48
  %v226 = vunpack.c.l.b16 %v49
  %v227 = vunpack.c.h.b16 %v49
  %v228 = vunpack.c.l.b16 %v50
  %v229 = vunpack.c.h.b16 %v50
  %v230 = vunpack.c.l.b16 %v51
  %v231 = vunpack.c.h.b16 %v51
  %v232 = vunpack.c.l.b16 %v52
  %v233 = vunpack.c.h.b16 %v52
  %v234 = vunpack.c.l.b16 %v53
  %v235 = vunpack.c.h.b16 %v53
  %v236 = vunpack.c.l.b16 %v54
  %v237 = vunpack.c.h.b16 %v54
  %v238 = vunpack.c.l.b16 %v55
  %v239 = vunpack.c.h.b16 %v55
  %v240 = vunpack.c.l.b16 %v56
  %v241 = vunpack.c.h.b16 %v56
  %v242 = vunpack.c.l.b16 %v57
  %v243 = vunpack.c.h.b16 %v57
  %v244 = vunpack.c.l.b16 %v58
  %v245 = vunpack.c.h.b16 %v58
  %v246 = vunpack.c.l.b16 %v59
  %v247 = vunpack.c.h.b16 %v59
  %v248 = vunpack.c.l.b16 %v60
  %v249 = vunpack.c.h.b16 %v60
  %v250 = vunpack.c.l.b16 %v61
  %v251 = vunpack.c.h.b16 %v61
  %v252 = vunpack.c.l.b16 %v62
  %v253 = vunpack.c.h.b16 %v62
  %v254 = vunpack.c.l.b16 %v63
  %v255 = vunpack.c.h.b16 %v63
  %v256 = vunpack.c.l.b16 %v64
  %v257 = vunpack.c.h.b16 %v64
  %v258 = vunpack.c.l.b16 %v65
  %v259 = vunpack.c.h.b16 %v65
  %v260 = vunpack.c.l.b16 %v66
  %v261 = vunpack.c.h.b16 %v66
  %v262 = vunpack.c.l.b16 %v67
  %v263 = vunpack.c.h.b16 %v67
  %v264 = vunpack.c.l.b16 %v68
  %v265 = vunpack.c.h.b16 %v68
  %v266 = vunpack.c.l.b16 %v69
  %v267 = vunpack.c.h.b16 %v69
  %v268 = vunpack.c.l.b16 %v70
  %v269 = vunpack.c.h.b16 %v70
  %v270 = vunpack.c.l.b16 %v71
  %v271 = vunpack.c.h.b16 %v71
  %v272 = vunpack.c.l.b16 %v72
  %v273 = vunpack.c.h.b16 %v72
  %v274 = vunpack.c.l.b16 %v73
  %v275 = vunpack.c.h.b16 %v73
  %v276 = vunpack.c.l.b16 %v74
  %v277 = vunpack.c.h.b16 %v74
  %v278 = vunpack.c.l.b16 %v75
  %v279 = vunpack.c.h.b16 %v75
  %v280 = vunpack.c.l.b16 %v76
  %v281 = vunpack.c.h.b16 %v76
  %v282 = vunpack.c.l.b16 %v77
  %v283 = vunpack.c.h.b16 %v77
  %v284 = vunpack.c.l.b16 %v78
  %v285 = vunpack.c.h.b16 %v78
  %v286 = vunpack.c.l.b16 %v79
  %v287 = vunpack.c.h.b16 %v79
  %v288 = vunpack.c.l.b16 %v80
  %v289 = vunpack.c.h.b16 %v80
  %v290 = vunpack.c.l.b16 %v81
  %v291 = vunpack.c.h.b16 %v81
  %v292 = vpack.c.b16 %v166, %v164
  %v293 = vpack.c.b16 %v167, %v165
  %v294 = vpack.c.b16 %v170, %v168
  %v295 = vpack.c.b16 %v171, %v169
  %v296 = vpack.c.b16 %v174, %v172
  %v297 = vpack.c.b16 %v175, %v173
  %v298 = vpack.c.b16 %v178, %v176
  %v299 = vpack.c.b16 %v179, %v177
  %v300 = vpack.c.b16 %v182, %v180
  %v301 = vpack.c.b16 %v183, %v181
  %v302 = vpack.c.b16 %v186, %v184
  %v303 = vpack.c.b16 %v187, %v185
  %v304 = vpack.c.b16 %v190, %v188
  %v305 = vpack.c.b16 %v191, %v189
  %v306 = vpack.c.b16 %v194, %v192
  %v307 = vpack.c.b16 %v195, %v193
  %v308 = vpack.c.b16 %v198, %v196
  %v309 = vpack.c.b16 %v199, %v197
  %v310 = vpack.c.b16 %v202, %v200
  %v311 = vpack.c.b16 %v203, %v201
  %v312 = vpack.c.b16 %v206, %v204
  %v313 = vpack.c.b16 %v207, %v205
  %v314 = vpack.c.b16 %v210, %v208
  %v315 = vpack.c.b16 %v211, %v209
  %v316 = vpack.c.b16 %v214, %v212
  %v317 = vpack.c.b16 %v215, %v213
  %v318 = vpack.c.b16 %v218, %v216
  %v319 = vpack.c.b16 %v219, %v217
  %v320 = vpack.c.b16 %v222, %v220
  %v321 = vpack.c.b16 %v223, %v221
  %v322 = vpack.c.b16 %v226, %v224
  %v323 = vpack.c.b16 %v227, %v225
  %v324 = vpack.c.b16 %v230, %v228
  %v325 = vpack.c.b16 %v231, %v229
  %v326 = vpack.c.b16 %v234, %v232
  %v327 = vpack.c.b16 %v235, %v233
  %v328 = vpack.c.b16 %v238, %v236
  %v329 = vpack.c.b16 %v239, %v237
  %v330 = vpack.c.b16 %v242, %v240
  %v331 = vpack.c.b16 %v243, %v241
  %v332 = vpack.c.b16 %v246, %v244
  %v333 = vpack.c.b16 %v247, %v245
  %v334 = vpack.c.b16 %v250, %v248
  %v335 = vpack.c.b16 %v251, %v249
  %v336 = vpack.c.b16 %v254, %v252
  %v337 = vpack.c.b16 %v255, %v253
  %v338 = vpack.c.b16 %v258, %v256
  %v339 = vpack.c.b16 %v259, %v257
  %v340 = vpack.c.b16 %v262, %v260
  %v341 = vpack.c.b16 %v263, %v261
  %v342 = vpack.c.b16 %v266, %v264
  %v343 = vpack.c.b16 %v267, %v265
  %v344 = vpack.c.b16 %v270, %v268
  %v345 = vpack.c.b16 %v271, %v269
  %v346 = vpack.c.b16 %v274, %v272
  %v347 = vpack.c.b16 %v275, %v273
  %v348 = vpack.c.b16 %v278, %v276
  %v349 = vpack.c.b16 %v279, %v277
  %v350 = vpack.c.b16 %v282, %v280
  %v351 = vpack.c.b16 %v283, %v281
  %v352 = vpack.c.b16 %v286, %v284
  %v353 = vpack.c.b16 %v287, %v285
  %v354 = vpack.c.b16 %v290, %v288
  %v355 = vpack.c.b16 %v291, %v289
  %v406 = vunpack.c.l.b16 %v82
  %v407 = vunpack.c.l.b16 %v83
  %v408 = vunpack.c.l.b16 %v84
  %v409 = vunpack.c.l.b16 %v85
  %v410 = vunpack.c.l.b16 %v86
  %v411 = vunpack.c.l.b16 %v87
  %v412 = vunpack.c.l.b16 %v88
  %v413 = vunpack.c.l.b16 %v89
  %v414 = vunpack.c.l.b16 %v90
  %v415 = vunpack.c.l.b16 %v91
  %v416 = vunpack.c.l.b16 %v92
  %v417 = vunpack.c.l.b16 %v93
  %v418 = vunpack.c.l.b16 %v94
  %v419 = vunpack.c.l.b16 %v95
  %v420 = vunpack.c.l.b16 %v96
  %v421 = vunpack.c.l.b16 %v97
  %v422 = vunpack.c.l.b16 %v98
  %v423 = vunpack.c.l.b16 %v99
  %v424 = vpack.c.b16 %v407, %v406
  %v425 = vpack.c.b16 %v409, %v408
  %v426 = vpack.c.b16 %v411, %v410
  %v427 = vpack.c.b16 %v413, %v412
  %v428 = vpack.c.b16 %v415, %v414
  %v429 = vpack.c.b16 %v417, %v416
  %v430 = vpack.c.b16 %v419, %v418
  %v431 = vpack.c.b16 %v421, %v420
  %v432 = vpack.c.b16 %v423, %v422
  %vm442 = vcmask 130048
  %v444 = vsel %vm442, %v293, 0
  %v447 = vsel %vm442, %v295, 0
  %v450 = vsel %vm442, %v297, 0
  %v453 = vsel %vm442, %v299, 0
  %v456 = vsel %vm442, %v301, 0
  %v459 = vsel %vm442, %v303, 0
  %v462 = vsel %vm442, %v305, 0
  %v465 = vsel %vm442, %v307, 0
  %v468 = vsel %vm442, %v309, 0
  %v471 = vsel %vm442, %v311, 0
  %v474 = vsel %vm442, %v313, 0
  %v477 = vsel %vm442, %v315, 0
  %v480 = vsel %vm442, %v317, 0
  %v483 = vsel %vm442, %v319, 0
  %v486 = vsel %vm442, %v321, 0
  %v489 = vsel %vm442, %v323, 0
  %v492 = vsel %vm442, %v325, 0
  %v495 = vsel %vm442, %v327, 0
  %v498 = vsel %vm442, %v329, 0
  %v501 = vsel %vm442, %v331, 0
  %v504 = vsel %vm442, %v333, 0
  %v507 = vsel %vm442, %v335, 0
  %v510 = vsel %vm442, %v337, 0
  %v513 = vsel %vm442, %v339, 0
  %v516 = vsel %vm442, %v341, 0
  %v519 = vsel %vm442, %v343, 0
  %v522 = vsel %vm442, %v345, 0
  %v525 = vsel %vm442, %v347, 0
  %v528 = vsel %vm442, %v349, 0
  %v531 = vsel %vm442, %v351, 0
  %v534 = vsel %vm442, %v353, 0
  %v537 = vsel %vm442, %v355, 0
  %539 = vmatprep.subr.bf16.mxu0 0
  %540 = vmatpush1.bf16.msra.mxu0 %v424
  %541 = vmatprep.subr.bf16.mxu0 0
  %542 = vmatpush1.bf16.msra.mxu0 %v425
  %543 = vmatprep.subr.bf16.mxu0 0
  %544 = vmatpush1.bf16.msra.mxu0 %v426
  %545 = vmatprep.subr.bf16.mxu0 0
  %546 = vmatpush1.bf16.msra.mxu0 %v427
  %547 = vmatprep.subr.bf16.mxu0 0
  %548 = vmatpush1.bf16.msra.mxu0 %v428
  %549 = vmatprep.subr.bf16.mxu0 0
  %550 = vmatpush1.bf16.msra.mxu0 %v429
  %551 = vmatprep.subr.bf16.mxu0 0
  %552 = vmatpush1.bf16.msra.mxu0 %v430
  %553 = vmatprep.subr.bf16.mxu0 0
  %554 = vmatpush1.bf16.msra.mxu0 %v431
  %555 = vmatprep.subr.bf16.mxu0 0
  %556 = vmatpush1.bf16.msra.mxu0 %v432
  %557 = vmatprep.subr.bf16.mxu0 0
  %558 = vmatpush1.bf16.msra.mxu0 0
  %559 = vmatprep.subr.bf16.mxu0 0
  %560 = vmatpush1.bf16.msra.mxu0 0
  %561 = vmatprep.subr.bf16.mxu0 0
  %562 = vmatpush1.bf16.msra.mxu0 0
  %563 = vmatprep.subr.bf16.mxu0 0
  %564 = vmatpush1.bf16.msra.mxu0 0
  %565 = vmatprep.subr.bf16.mxu0 0
  %566 = vmatpush1.bf16.msra.mxu0 0
  %567 = vmatprep.subr.bf16.mxu0 0
  %568 = vmatpush1.bf16.msra.mxu0 0
  %569 = vmatprep.subr.bf16.mxu0 0
  %570 = vmatpush1.bf16.msra.mxu0 0
  %571 = vmatprep.mubr.bf16.mxu0 %v444
  %572 = vmatmul.mubr.bf16.gmra.mrb[0].mxu0 %v292
  %v573 = vpop.f32.mrb[0].mxu0
  %v574 = vadd.f32 0.0, %v573
  %v575 = vpop.f32.mrb[0].mxu0
  %v576 = vpop.f32.mrb[0].mxu0
  %v577 = vadd.f32 0.0, %v576
  %v578 = vpop.f32.mrb[0].mxu0
  %579 = vmatprep.mubr.bf16.mxu0 %v447
  %580 = vmatmul.mubr.bf16.gmra.mrb[0].mxu0 %v294
  %v581 = vpop.f32.mrb[0].mxu0
  %v582 = vadd.f32 0.0, %v581
  %v583 = vpop.f32.mrb[0].mxu0
  %v584 = vpop.f32.mrb[0].mxu0
  %v585 = vadd.f32 0.0, %v584
  %v586 = vpop.f32.mrb[0].mxu0
  %587 = vmatprep.mubr.bf16.mxu0 %v450
  %588 = vmatmul.mubr.bf16.gmra.mrb[0].mxu0 %v296
  %v589 = vpop.f32.mrb[0].mxu0
  %v590 = vadd.f32 0.0, %v589
  %v591 = vpop.f32.mrb[0].mxu0
  %v592 = vpop.f32.mrb[0].mxu0
  %v593 = vadd.f32 0.0, %v592
  %v594 = vpop.f32.mrb[0].mxu0
  %595 = vmatprep.mubr.bf16.mxu0 %v453
  %596 = vmatmul.mubr.bf16.gmra.mrb[0].mxu0 %v298
  %v597 = vpop.f32.mrb[0].mxu0
  %v598 = vadd.f32 0.0, %v597
  %v599 = vpop.f32.mrb[0].mxu0
  %v600 = vpop.f32.mrb[0].mxu0
  %v601 = vadd.f32 0.0, %v600
  %v602 = vpop.f32.mrb[0].mxu0
  %603 = vmatprep.mubr.bf16.mxu0 %v456
  %604 = vmatmul.mubr.bf16.gmra.mrb[0].mxu0 %v300
  %v605 = vpop.f32.mrb[0].mxu0
  %v606 = vadd.f32 0.0, %v605
  %v607 = vpop.f32.mrb[0].mxu0
  %v608 = vpop.f32.mrb[0].mxu0
  %v609 = vadd.f32 0.0, %v608
  %v610 = vpop.f32.mrb[0].mxu0
  %611 = vmatprep.mubr.bf16.mxu0 %v459
  %612 = vmatmul.mubr.bf16.gmra.mrb[0].mxu0 %v302
  %v613 = vpop.f32.mrb[0].mxu0
  %v614 = vadd.f32 0.0, %v613
  %v615 = vpop.f32.mrb[0].mxu0
  %v616 = vpop.f32.mrb[0].mxu0
  %v617 = vadd.f32 0.0, %v616
  %v618 = vpop.f32.mrb[0].mxu0
  %619 = vmatprep.mubr.bf16.mxu0 %v462
  %620 = vmatmul.mubr.bf16.gmra.mrb[0].mxu0 %v304
  %v621 = vpop.f32.mrb[0].mxu0
  %v622 = vadd.f32 0.0, %v621
  %v623 = vpop.f32.mrb[0].mxu0
  %v624 = vpop.f32.mrb[0].mxu0
  %v625 = vadd.f32 0.0, %v624
  %v626 = vpop.f32.mrb[0].mxu0
  %627 = vmatprep.mubr.bf16.mxu0 %v465
  %628 = vmatmul.mubr.bf16.gmra.mrb[0].mxu0 %v306
  %v629 = vpop.f32.mrb[0].mxu0
  %v630 = vadd.f32 0.0, %v629
  %v631 = vpop.f32.mrb[0].mxu0
  %v632 = vpop.f32.mrb[0].mxu0
  %v633 = vadd.f32 0.0, %v632
  %v634 = vpop.f32.mrb[0].mxu0
  %635 = vmatprep.mubr.bf16.mxu0 %v468
  %636 = vmatmul.mubr.bf16.gmra.mrb[0].mxu0 %v308
  %v637 = vpop.f32.mrb[0].mxu0
  %v638 = vadd.f32 0.0, %v637
  %v639 = vpop.f32.mrb[0].mxu0
  %v640 = vpop.f32.mrb[0].mxu0
  %v641 = vadd.f32 0.0, %v640
  %v642 = vpop.f32.mrb[0].mxu0
  %643 = vmatprep.mubr.bf16.mxu0 %v471
  %644 = vmatmul.mubr.bf16.gmra.mrb[0].mxu0 %v310
  %v645 = vpop.f32.mrb[0].mxu0
  %v646 = vadd.f32 0.0, %v645
  %v647 = vpop.f32.mrb[0].mxu0
  %v648 = vpop.f32.mrb[0].mxu0
  %v649 = vadd.f32 0.0, %v648
  %v650 = vpop.f32.mrb[0].mxu0
  %651 = vmatprep.mubr.bf16.mxu0 %v474
  %652 = vmatmul.mubr.bf16.gmra.mrb[0].mxu0 %v312
  %v653 = vpop.f32.mrb[0].mxu0
  %v654 = vadd.f32 0.0, %v653
  %v655 = vpop.f32.mrb[0].mxu0
  %v656 = vpop.f32.mrb[0].mxu0
  %v657 = vadd.f32 0.0, %v656
  %v658 = vpop.f32.mrb[0].mxu0
  %659 = vmatprep.mubr.bf16.mxu0 %v477
  %660 = vmatmul.mubr.bf16.gmra.mrb[0].mxu0 %v314
  %v661 = vpop.f32.mrb[0].mxu0
  %v662 = vadd.f32 0.0, %v661
  %v663 = vpop.f32.mrb[0].mxu0
  %v664 = vpop.f32.mrb[0].mxu0
  %v665 = vadd.f32 0.0, %v664
  %v666 = vpop.f32.mrb[0].mxu0
  %667 = vmatprep.mubr.bf16.mxu0 %v480
  %668 = vmatmul.mubr.bf16.gmra.mrb[0].mxu0 %v316
  %v669 = vpop.f32.mrb[0].mxu0
  %v670 = vadd.f32 0.0, %v669
  %v671 = vpop.f32.mrb[0].mxu0
  %v672 = vpop.f32.mrb[0].mxu0
  %v673 = vadd.f32 0.0, %v672
  %v674 = vpop.f32.mrb[0].mxu0
  %675 = vmatprep.mubr.bf16.mxu0 %v483
  %676 = vmatmul.mubr.bf16.gmra.mrb[0].mxu0 %v318
  %v677 = vpop.f32.mrb[0].mxu0
  %v678 = vadd.f32 0.0, %v677
  %v679 = vpop.f32.mrb[0].mxu0
  %v680 = vpop.f32.mrb[0].mxu0
  %v681 = vadd.f32 0.0, %v680
  %v682 = vpop.f32.mrb[0].mxu0
  %683 = vmatprep.mubr.bf16.mxu0 %v486
  %684 = vmatmul.mubr.bf16.gmra.mrb[0].mxu0 %v320
  %v685 = vpop.f32.mrb[0].mxu0
  %v686 = vadd.f32 0.0, %v685
  %v687 = vpop.f32.mrb[0].mxu0
  %v688 = vpop.f32.mrb[0].mxu0
  %v689 = vadd.f32 0.0, %v688
  %v690 = vpop.f32.mrb[0].mxu0
  %691 = vmatprep.mubr.bf16.mxu0 %v489
  %692 = vmatmul.mubr.bf16.gmra.mrb[0].mxu0 %v322
  %v693 = vpop.f32.mrb[0].mxu0
  %v694 = vadd.f32 0.0, %v693
  %v695 = vpop.f32.mrb[0].mxu0
  %v696 = vpop.f32.mrb[0].mxu0
  %v697 = vadd.f32 0.0, %v696
  %v698 = vpop.f32.mrb[0].mxu0
  %699 = vmatprep.mubr.bf16.mxu0 %v492
  %700 = vmatmul.mubr.bf16.gmra.mrb[0].mxu0 %v324
  %v701 = vpop.f32.mrb[0].mxu0
  %v702 = vadd.f32 0.0, %v701
  %v703 = vpop.f32.mrb[0].mxu0
  %v704 = vpop.f32.mrb[0].mxu0
  %v705 = vadd.f32 0.0, %v704
  %v706 = vpop.f32.mrb[0].mxu0
  %707 = vmatprep.mubr.bf16.mxu0 %v495
  %708 = vmatmul.mubr.bf16.gmra.mrb[0].mxu0 %v326
  %v709 = vpop.f32.mrb[0].mxu0
  %v710 = vadd.f32 0.0, %v709
  %v711 = vpop.f32.mrb[0].mxu0
  %v712 = vpop.f32.mrb[0].mxu0
  %v713 = vadd.f32 0.0, %v712
  %v714 = vpop.f32.mrb[0].mxu0
  %715 = vmatprep.mubr.bf16.mxu0 %v498
  %716 = vmatmul.mubr.bf16.gmra.mrb[0].mxu0 %v328
  %v717 = vpop.f32.mrb[0].mxu0
  %v718 = vadd.f32 0.0, %v717
  %v719 = vpop.f32.mrb[0].mxu0
  %v720 = vpop.f32.mrb[0].mxu0
  %v721 = vadd.f32 0.0, %v720
  %v722 = vpop.f32.mrb[0].mxu0
  %723 = vmatprep.mubr.bf16.mxu0 %v501
  %724 = vmatmul.mubr.bf16.gmra.mrb[0].mxu0 %v330
  %v725 = vpop.f32.mrb[0].mxu0
  %v726 = vadd.f32 0.0, %v725
  %v727 = vpop.f32.mrb[0].mxu0
  %v728 = vpop.f32.mrb[0].mxu0
  %v729 = vadd.f32 0.0, %v728
  %v730 = vpop.f32.mrb[0].mxu0
  %731 = vmatprep.mubr.bf16.mxu0 %v504
  %732 = vmatmul.mubr.bf16.gmra.mrb[0].mxu0 %v332
  %v733 = vpop.f32.mrb[0].mxu0
  %v734 = vadd.f32 0.0, %v733
  %v735 = vpop.f32.mrb[0].mxu0
  %v736 = vpop.f32.mrb[0].mxu0
  %v737 = vadd.f32 0.0, %v736
  %v738 = vpop.f32.mrb[0].mxu0
  %739 = vmatprep.mubr.bf16.mxu0 %v507
  %740 = vmatmul.mubr.bf16.gmra.mrb[0].mxu0 %v334
  %v741 = vpop.f32.mrb[0].mxu0
  %v742 = vadd.f32 0.0, %v741
  %v743 = vpop.f32.mrb[0].mxu0
  %v744 = vpop.f32.mrb[0].mxu0
  %v745 = vadd.f32 0.0, %v744
  %v746 = vpop.f32.mrb[0].mxu0
  %747 = vmatprep.mubr.bf16.mxu0 %v510
  %748 = vmatmul.mubr.bf16.gmra.mrb[0].mxu0 %v336
  %v749 = vpop.f32.mrb[0].mxu0
  %v750 = vadd.f32 0.0, %v749
  %v751 = vpop.f32.mrb[0].mxu0
  %v752 = vpop.f32.mrb[0].mxu0
  %v753 = vadd.f32 0.0, %v752
  %v754 = vpop.f32.mrb[0].mxu0
  %755 = vmatprep.mubr.bf16.mxu0 %v513
  %756 = vmatmul.mubr.bf16.gmra.mrb[0].mxu0 %v338
  %v757 = vpop.f32.mrb[0].mxu0
  %v758 = vadd.f32 0.0, %v757
  %v759 = vpop.f32.mrb[0].mxu0
  %v760 = vpop.f32.mrb[0].mxu0
  %v761 = vadd.f32 0.0, %v760
  %v762 = vpop.f32.mrb[0].mxu0
  %763 = vmatprep.mubr.bf16.mxu0 %v516
  %764 = vmatmul.mubr.bf16.gmra.mrb[0].mxu0 %v340
  %v765 = vpop.f32.mrb[0].mxu0
  %v766 = vadd.f32 0.0, %v765
  %v767 = vpop.f32.mrb[0].mxu0
  %v768 = vpop.f32.mrb[0].mxu0
  %v769 = vadd.f32 0.0, %v768
  %v770 = vpop.f32.mrb[0].mxu0
  %771 = vmatprep.mubr.bf16.mxu0 %v519
  %772 = vmatmul.mubr.bf16.gmra.mrb[0].mxu0 %v342
  %v773 = vpop.f32.mrb[0].mxu0
  %v774 = vadd.f32 0.0, %v773
  %v775 = vpop.f32.mrb[0].mxu0
  %v776 = vpop.f32.mrb[0].mxu0
  %v777 = vadd.f32 0.0, %v776
  %v778 = vpop.f32.mrb[0].mxu0
  %779 = vmatprep.mubr.bf16.mxu0 %v522
  %780 = vmatmul.mubr.bf16.gmra.mrb[0].mxu0 %v344
  %v781 = vpop.f32.mrb[0].mxu0
  %v782 = vadd.f32 0.0, %v781
  %v783 = vpop.f32.mrb[0].mxu0
  %v784 = vpop.f32.mrb[0].mxu0
  %v785 = vadd.f32 0.0, %v784
  %v786 = vpop.f32.mrb[0].mxu0
  %787 = vmatprep.mubr.bf16.mxu0 %v525
  %788 = vmatmul.mubr.bf16.gmra.mrb[0].mxu0 %v346
  %v789 = vpop.f32.mrb[0].mxu0
  %v790 = vadd.f32 0.0, %v789
  %v791 = vpop.f32.mrb[0].mxu0
  %v792 = vpop.f32.mrb[0].mxu0
  %v793 = vadd.f32 0.0, %v792
  %v794 = vpop.f32.mrb[0].mxu0
  %795 = vmatprep.mubr.bf16.mxu0 %v528
  %796 = vmatmul.mubr.bf16.gmra.mrb[0].mxu0 %v348
  %v797 = vpop.f32.mrb[0].mxu0
  %v798 = vadd.f32 0.0, %v797
  %v799 = vpop.f32.mrb[0].mxu0
  %v800 = vpop.f32.mrb[0].mxu0
  %v801 = vadd.f32 0.0, %v800
  %v802 = vpop.f32.mrb[0].mxu0
  %803 = vmatprep.mubr.bf16.mxu0 %v531
  %804 = vmatmul.mubr.bf16.gmra.mrb[0].mxu0 %v350
  %v805 = vpop.f32.mrb[0].mxu0
  %v806 = vadd.f32 0.0, %v805
  %v807 = vpop.f32.mrb[0].mxu0
  %v808 = vpop.f32.mrb[0].mxu0
  %v809 = vadd.f32 0.0, %v808
  %v810 = vpop.f32.mrb[0].mxu0
  %811 = vmatprep.mubr.bf16.mxu0 %v534
  %812 = vmatmul.mubr.bf16.gmra.mrb[0].mxu0 %v352
  %v813 = vpop.f32.mrb[0].mxu0
  %v814 = vadd.f32 0.0, %v813
  %v815 = vpop.f32.mrb[0].mxu0
  %v816 = vpop.f32.mrb[0].mxu0
  %v817 = vadd.f32 0.0, %v816
  %v818 = vpop.f32.mrb[0].mxu0
  %819 = vmatprep.mubr.bf16.mxu0 %v537
  %820 = vmatmul.mubr.bf16.gmra.mrb[0].mxu0 %v354
  %v821 = vpop.f32.mrb[0].mxu0
  %v822 = vadd.f32 0.0, %v821
  %v823 = vpop.f32.mrb[0].mxu0
  %v824 = vpop.f32.mrb[0].mxu0
  %v825 = vadd.f32 0.0, %v824
  %v826 = vpop.f32.mrb[0].mxu0
  %827 = vdwg.mxu0
  %v828 = vadd.f32 %v574, %v577
  %v829 = vadd.f32 %v828, %v582
  %v830 = vadd.f32 %v829, %v585
  %v831 = vadd.f32 %v830, %v590
  %v832 = vadd.f32 %v831, %v593
  %v833 = vadd.f32 %v832, %v598
  %v834 = vadd.f32 %v833, %v601
  %v835 = vadd.f32 %v834, %v606
  %v836 = vadd.f32 %v835, %v609
  %v837 = vadd.f32 %v836, %v614
  %v838 = vadd.f32 %v837, %v617
  %v839 = vadd.f32 %v838, %v622
  %v840 = vadd.f32 %v839, %v625
  %v841 = vadd.f32 %v840, %v630
  %v842 = vadd.f32 %v841, %v633
  %v843 = vadd.f32 %v842, %v638
  %v844 = vadd.f32 %v843, %v641
  %v845 = vadd.f32 %v844, %v646
  %v846 = vadd.f32 %v845, %v649
  %v847 = vadd.f32 %v846, %v654
  %v848 = vadd.f32 %v847, %v657
  %v849 = vadd.f32 %v848, %v662
  %v850 = vadd.f32 %v849, %v665
  %v851 = vadd.f32 %v850, %v670
  %v852 = vadd.f32 %v851, %v673
  %v853 = vadd.f32 %v852, %v678
  %v854 = vadd.f32 %v853, %v681
  %v855 = vadd.f32 %v854, %v686
  %v856 = vadd.f32 %v855, %v689
  %v857 = vadd.f32 %v856, %v694
  %v858 = vadd.f32 %v857, %v697
  %v859 = vadd.f32 %v858, %v702
  %v860 = vadd.f32 %v859, %v705
  %v861 = vadd.f32 %v860, %v710
  %v862 = vadd.f32 %v861, %v713
  %v863 = vadd.f32 %v862, %v718
  %v864 = vadd.f32 %v863, %v721
  %v865 = vadd.f32 %v864, %v726
  %v866 = vadd.f32 %v865, %v729
  %v867 = vadd.f32 %v866, %v734
  %v868 = vadd.f32 %v867, %v737
  %v869 = vadd.f32 %v868, %v742
  %v870 = vadd.f32 %v869, %v745
  %v871 = vadd.f32 %v870, %v750
  %v872 = vadd.f32 %v871, %v753
  %v873 = vadd.f32 %v872, %v758
  %v874 = vadd.f32 %v873, %v761
  %v875 = vadd.f32 %v874, %v766
  %v876 = vadd.f32 %v875, %v769
  %v877 = vadd.f32 %v876, %v774
  %v878 = vadd.f32 %v877, %v777
  %v879 = vadd.f32 %v878, %v782
  %v880 = vadd.f32 %v879, %v785
  %v881 = vadd.f32 %v880, %v790
  %v882 = vadd.f32 %v881, %v793
  %v883 = vadd.f32 %v882, %v798
  %v884 = vadd.f32 %v883, %v801
  %v885 = vadd.f32 %v884, %v806
  %v886 = vadd.f32 %v885, %v809
  %v887 = vadd.f32 %v886, %v814
  %v888 = vadd.f32 %v887, %v817
  %v889 = vadd.f32 %v888, %v822
  %v890 = vadd.f32 %v889, %v825
  %v891 = vrot.slane %v890, 4
  %v892 = vadd.f32 %v890, %v891
  %v893 = vrot.slane %v892, 2
  %v894 = vadd.f32 %v892, %v893
  %v895 = vrot.slane %v894, 1
  %v896 = vadd.f32 %v894, %v895
  %v897 = vmul.f32 %v574, %v574
  %v898 = vmul.f32 %v577, %v577
  %v899 = vmul.f32 %v582, %v582
  %v900 = vmul.f32 %v585, %v585
  %v901 = vmul.f32 %v590, %v590
  %v902 = vmul.f32 %v593, %v593
  %v903 = vmul.f32 %v598, %v598
  %v904 = vmul.f32 %v601, %v601
  %v905 = vmul.f32 %v606, %v606
  %v906 = vmul.f32 %v609, %v609
  %v907 = vmul.f32 %v614, %v614
  %v908 = vmul.f32 %v617, %v617
  %v909 = vmul.f32 %v622, %v622
  %v910 = vmul.f32 %v625, %v625
  %v911 = vmul.f32 %v630, %v630
  %v912 = vmul.f32 %v633, %v633
  %v913 = vmul.f32 %v638, %v638
  %v914 = vmul.f32 %v641, %v641
  %v915 = vmul.f32 %v646, %v646
  %v916 = vmul.f32 %v649, %v649
  %v917 = vmul.f32 %v654, %v654
  %v918 = vmul.f32 %v657, %v657
  %v919 = vmul.f32 %v662, %v662
  %v920 = vmul.f32 %v665, %v665
  %v921 = vmul.f32 %v670, %v670
  %v922 = vmul.f32 %v673, %v673
  %v923 = vmul.f32 %v678, %v678
  %v924 = vmul.f32 %v681, %v681
  %v925 = vmul.f32 %v686, %v686
  %v926 = vmul.f32 %v689, %v689
  %v927 = vmul.f32 %v694, %v694
  %v928 = vmul.f32 %v697, %v697
  %v929 = vmul.f32 %v702, %v702
  %v930 = vmul.f32 %v705, %v705
  %v931 = vmul.f32 %v710, %v710
  %v932 = vmul.f32 %v713, %v713
  %v933 = vmul.f32 %v718, %v718
  %v934 = vmul.f32 %v721, %v721
  %v935 = vmul.f32 %v726, %v726
  %v936 = vmul.f32 %v729, %v729
  %v937 = vmul.f32 %v734, %v734
  %v938 = vmul.f32 %v737, %v737
  %v939 = vmul.f32 %v742, %v742
  %v940 = vmul.f32 %v745, %v745
  %v941 = vmul.f32 %v750, %v750
  %v942 = vmul.f32 %v753, %v753
  %v943 = vmul.f32 %v758, %v758
  %v944 = vmul.f32 %v761, %v761
  %v945 = vmul.f32 %v766, %v766
  %v946 = vmul.f32 %v769, %v769
  %v947 = vmul.f32 %v774, %v774
  %v948 = vmul.f32 %v777, %v777
  %v949 = vmul.f32 %v782, %v782
  %v950 = vmul.f32 %v785, %v785
  %v951 = vmul.f32 %v790, %v790
  %v952 = vmul.f32 %v793, %v793
  %v953 = vmul.f32 %v798, %v798
  %v954 = vmul.f32 %v801, %v801
  %v955 = vmul.f32 %v806, %v806
  %v956 = vmul.f32 %v809, %v809
  %v957 = vmul.f32 %v814, %v814
  %v958 = vmul.f32 %v817, %v817
  %v959 = vmul.f32 %v822, %v822
  %v960 = vmul.f32 %v825, %v825
  %v961 = vadd.f32 %v897, %v898
  %v962 = vadd.f32 %v961, %v899
  %v963 = vadd.f32 %v962, %v900
  %v964 = vadd.f32 %v963, %v901
  %v965 = vadd.f32 %v964, %v902
  %v966 = vadd.f32 %v965, %v903
  %v967 = vadd.f32 %v966, %v904
  %v968 = vadd.f32 %v967, %v905
  %v969 = vadd.f32 %v968, %v906
  %v970 = vadd.f32 %v969, %v907
  %v971 = vadd.f32 %v970, %v908
  %v972 = vadd.f32 %v971, %v909
  %v973 = vadd.f32 %v972, %v910
  %v974 = vadd.f32 %v973, %v911
  %v975 = vadd.f32 %v974, %v912
  %v976 = vadd.f32 %v975, %v913
  %v977 = vadd.f32 %v976, %v914
  %v978 = vadd.f32 %v977, %v915
  %v979 = vadd.f32 %v978, %v916
  %v980 = vadd.f32 %v979, %v917
  %v981 = vadd.f32 %v980, %v918
  %v982 = vadd.f32 %v981, %v919
  %v983 = vadd.f32 %v982, %v920
  %v984 = vadd.f32 %v983, %v921
  %v985 = vadd.f32 %v984, %v922
  %v986 = vadd.f32 %v985, %v923
  %v987 = vadd.f32 %v986, %v924
  %v988 = vadd.f32 %v987, %v925
  %v989 = vadd.f32 %v988, %v926
  %v990 = vadd.f32 %v989, %v927
  %v991 = vadd.f32 %v990, %v928
  %v992 = vadd.f32 %v991, %v929
  %v993 = vadd.f32 %v992, %v930
  %v994 = vadd.f32 %v993, %v931
  %v995 = vadd.f32 %v994, %v932
  %v996 = vadd.f32 %v995, %v933
  %v997 = vadd.f32 %v996, %v934
  %v998 = vadd.f32 %v997, %v935
  %v999 = vadd.f32 %v998, %v936
  %v1000 = vadd.f32 %v999, %v937
  %v1001 = vadd.f32 %v1000, %v938
  %v1002 = vadd.f32 %v1001, %v939
  %v1003 = vadd.f32 %v1002, %v940
  %v1004 = vadd.f32 %v1003, %v941
  %v1005 = vadd.f32 %v1004, %v942
  %v1006 = vadd.f32 %v1005, %v943
  %v1007 = vadd.f32 %v1006, %v944
  %v1008 = vadd.f32 %v1007, %v945
  %v1009 = vadd.f32 %v1008, %v946
  %v1010 = vadd.f32 %v1009, %v947
  %v1011 = vadd.f32 %v1010, %v948
  %v1012 = vadd.f32 %v1011, %v949
  %v1013 = vadd.f32 %v1012, %v950
  %v1014 = vadd.f32 %v1013, %v951
  %v1015 = vadd.f32 %v1014, %v952
  %v1016 = vadd.f32 %v1015, %v953
  %v1017 = vadd.f32 %v1016, %v954
  %v1018 = vadd.f32 %v1017, %v955
  %v1019 = vadd.f32 %v1018, %v956
  %v1020 = vadd.f32 %v1019, %v957
  %v1021 = vadd.f32 %v1020, %v958
  %v1022 = vadd.f32 %v1021, %v959
  %v1023 = vadd.f32 %v1022, %v960
  %v1024 = vrot.slane %v1023, 4
  %v1025 = vadd.f32 %v1023, %v1024
  %v1026 = vrot.slane %v1025, 2
  %v1027 = vadd.f32 %v1025, %v1026
  %v1028 = vrot.slane %v1027, 1
  %v1029 = vadd.f32 %v1027, %v1028
  %1030 = vrot.lane.b32.xlu0 %v896, 8
  %v1031 = vpop.permute.xlu0 %1030
  %v1032 = vadd.f32 %v896, %v1031
  %1033 = vrot.lane.b32.xlu0 %v1029, 8
  %v1034 = vpop.permute.xlu0 %1033
  %v1035 = vadd.f32 %v1029, %v1034
  %1036 = vrot.lane.b32.xlu0 %v1032, 16
  %v1037 = vpop.permute.xlu0 %1036
  %v1038 = vadd.f32 %v1032, %v1037
  %1039 = vrot.lane.b32.xlu0 %v1035, 16
  %v1040 = vpop.permute.xlu0 %1039
  %v1041 = vadd.f32 %v1035, %v1040
  %1042 = vrot.lane.b32.xlu0 %v1038, 32
  %v1043 = vpop.permute.xlu0 %1042
  %v1044 = vadd.f32 %v1038, %v1043
  %1045 = vrot.lane.b32.xlu0 %v1041, 32
  %v1046 = vpop.permute.xlu0 %1045
  %v1047 = vadd.f32 %v1041, %v1046
  %1048 = vrot.lane.b32.xlu0 %v1044, 64
  %v1049 = vpop.permute.xlu0 %1048
  %v1050 = vadd.f32 %v1044, %v1049
  %1051 = vrot.lane.b32.xlu0 %v1047, 64
  %v1052 = vpop.permute.xlu0 %1051
  %v1053 = vadd.f32 %v1047, %v1052
  %v1054 = vmul.f32 %v1050, 0.00012207031
  %v1055 = vmul.f32 %v1053, 0.00012207031
  %v1056 = vmul.f32 %v1054, %v1054
  %v1057 = vsub.f32 %v1055, %v1056
  %v1058 = vmax.f32 %v1057, 0.0
  %v1059 = vld [vmem:[%s2] sm:$0x1]
  %v1060 = vadd.f32 %v1058, 1e-05
  %v1061 = vrsqrt.pop %v1060
  %v1062 = vmul.f32 %v1059, %v1061
  %v1063 = vld [vmem:[%s3] sm:$0x1]
  %v1064 = vmul.f32 %v1054, %v1062
  %v1065 = vsub.f32 %v1063, %v1064
  %v1067 = vlaneseq
  %v1068 = vshrl.u32 %v1067, 7
  %v1069 = vsub.s32 0, %v1068
  %v1070 = vrot.slane %v1062, %v1069
  %v1072 = vmul.f32 %v574, %v1070
  %v1073 = vmul.f32 %v577, %v1070
  %v1074 = vmul.f32 %v582, %v1070
  %v1075 = vmul.f32 %v585, %v1070
  %v1076 = vmul.f32 %v590, %v1070
  %v1077 = vmul.f32 %v593, %v1070
  %v1078 = vmul.f32 %v598, %v1070
  %v1079 = vmul.f32 %v601, %v1070
  %v1080 = vmul.f32 %v606, %v1070
  %v1081 = vmul.f32 %v609, %v1070
  %v1082 = vmul.f32 %v614, %v1070
  %v1083 = vmul.f32 %v617, %v1070
  %v1084 = vmul.f32 %v622, %v1070
  %v1085 = vmul.f32 %v625, %v1070
  %v1086 = vmul.f32 %v630, %v1070
  %v1087 = vmul.f32 %v633, %v1070
  %v1088 = vmul.f32 %v638, %v1070
  %v1089 = vmul.f32 %v641, %v1070
  %v1090 = vmul.f32 %v646, %v1070
  %v1091 = vmul.f32 %v649, %v1070
  %v1092 = vmul.f32 %v654, %v1070
  %v1093 = vmul.f32 %v657, %v1070
  %v1094 = vmul.f32 %v662, %v1070
  %v1095 = vmul.f32 %v665, %v1070
  %v1096 = vmul.f32 %v670, %v1070
  %v1097 = vmul.f32 %v673, %v1070
  %v1098 = vmul.f32 %v678, %v1070
  %v1099 = vmul.f32 %v681, %v1070
  %v1100 = vmul.f32 %v686, %v1070
  %v1101 = vmul.f32 %v689, %v1070
  %v1102 = vmul.f32 %v694, %v1070
  %v1103 = vmul.f32 %v697, %v1070
  %v1104 = vmul.f32 %v702, %v1070
  %v1105 = vmul.f32 %v705, %v1070
  %v1106 = vmul.f32 %v710, %v1070
  %v1107 = vmul.f32 %v713, %v1070
  %v1108 = vmul.f32 %v718, %v1070
  %v1109 = vmul.f32 %v721, %v1070
  %v1110 = vmul.f32 %v726, %v1070
  %v1111 = vmul.f32 %v729, %v1070
  %v1112 = vmul.f32 %v734, %v1070
  %v1113 = vmul.f32 %v737, %v1070
  %v1114 = vmul.f32 %v742, %v1070
  %v1115 = vmul.f32 %v745, %v1070
  %v1116 = vmul.f32 %v750, %v1070
  %v1117 = vmul.f32 %v753, %v1070
  %v1118 = vmul.f32 %v758, %v1070
  %v1119 = vmul.f32 %v761, %v1070
  %v1120 = vmul.f32 %v766, %v1070
  %v1121 = vmul.f32 %v769, %v1070
  %v1122 = vmul.f32 %v774, %v1070
  %v1123 = vmul.f32 %v777, %v1070
  %v1124 = vmul.f32 %v782, %v1070
  %v1125 = vmul.f32 %v785, %v1070
  %v1126 = vmul.f32 %v790, %v1070
  %v1127 = vmul.f32 %v793, %v1070
  %v1128 = vmul.f32 %v798, %v1070
  %v1129 = vmul.f32 %v801, %v1070
  %v1130 = vmul.f32 %v806, %v1070
  %v1131 = vmul.f32 %v809, %v1070
  %v1132 = vmul.f32 %v814, %v1070
  %v1133 = vmul.f32 %v817, %v1070
  %v1134 = vmul.f32 %v822, %v1070
  %v1135 = vmul.f32 %v825, %v1070
  %v1137 = vlaneseq
  %v1138 = vshrl.u32 %v1137, 7
  %v1139 = vsub.s32 0, %v1138
  %v1140 = vrot.slane %v1065, %v1139
  %v1142 = vadd.f32 %v1072, %v1140
  %v1143 = vadd.f32 %v1073, %v1140
  %v1144 = vadd.f32 %v1074, %v1140
  %v1145 = vadd.f32 %v1075, %v1140
  %v1146 = vadd.f32 %v1076, %v1140
  %v1147 = vadd.f32 %v1077, %v1140
  %v1148 = vadd.f32 %v1078, %v1140
  %v1149 = vadd.f32 %v1079, %v1140
  %v1150 = vadd.f32 %v1080, %v1140
  %v1151 = vadd.f32 %v1081, %v1140
  %v1152 = vadd.f32 %v1082, %v1140
  %v1153 = vadd.f32 %v1083, %v1140
  %v1154 = vadd.f32 %v1084, %v1140
  %v1155 = vadd.f32 %v1085, %v1140
  %v1156 = vadd.f32 %v1086, %v1140
  %v1157 = vadd.f32 %v1087, %v1140
  %v1158 = vadd.f32 %v1088, %v1140
  %v1159 = vadd.f32 %v1089, %v1140
  %v1160 = vadd.f32 %v1090, %v1140
  %v1161 = vadd.f32 %v1091, %v1140
  %v1162 = vadd.f32 %v1092, %v1140
  %v1163 = vadd.f32 %v1093, %v1140
  %v1164 = vadd.f32 %v1094, %v1140
  %v1165 = vadd.f32 %v1095, %v1140
  %v1166 = vadd.f32 %v1096, %v1140
  %v1167 = vadd.f32 %v1097, %v1140
  %v1168 = vadd.f32 %v1098, %v1140
  %v1169 = vadd.f32 %v1099, %v1140
  %v1170 = vadd.f32 %v1100, %v1140
  %v1171 = vadd.f32 %v1101, %v1140
  %v1172 = vadd.f32 %v1102, %v1140
  %v1173 = vadd.f32 %v1103, %v1140
  %v1174 = vadd.f32 %v1104, %v1140
  %v1175 = vadd.f32 %v1105, %v1140
  %v1176 = vadd.f32 %v1106, %v1140
  %v1177 = vadd.f32 %v1107, %v1140
  %v1178 = vadd.f32 %v1108, %v1140
  %v1179 = vadd.f32 %v1109, %v1140
  %v1180 = vadd.f32 %v1110, %v1140
  %v1181 = vadd.f32 %v1111, %v1140
  %v1182 = vadd.f32 %v1112, %v1140
  %v1183 = vadd.f32 %v1113, %v1140
  %v1184 = vadd.f32 %v1114, %v1140
  %v1185 = vadd.f32 %v1115, %v1140
  %v1186 = vadd.f32 %v1116, %v1140
  %v1187 = vadd.f32 %v1117, %v1140
  %v1188 = vadd.f32 %v1118, %v1140
  %v1189 = vadd.f32 %v1119, %v1140
  %v1190 = vadd.f32 %v1120, %v1140
  %v1191 = vadd.f32 %v1121, %v1140
  %v1192 = vadd.f32 %v1122, %v1140
  %v1193 = vadd.f32 %v1123, %v1140
  %v1194 = vadd.f32 %v1124, %v1140
  %v1195 = vadd.f32 %v1125, %v1140
  %v1196 = vadd.f32 %v1126, %v1140
  %v1197 = vadd.f32 %v1127, %v1140
  %v1198 = vadd.f32 %v1128, %v1140
  %v1199 = vadd.f32 %v1129, %v1140
  %v1200 = vadd.f32 %v1130, %v1140
  %v1201 = vadd.f32 %v1131, %v1140
  %v1202 = vadd.f32 %v1132, %v1140
  %v1203 = vadd.f32 %v1133, %v1140
  %v1204 = vadd.f32 %v1134, %v1140
  %v1205 = vadd.f32 %v1135, %v1140
  %vm1206 = vcmp.ge.f32.partialorder %v1142, 0.0
  %vm1207 = vcmp.ge.f32.partialorder %v1143, 0.0
  %vm1208 = vcmp.ge.f32.partialorder %v1144, 0.0
  %vm1209 = vcmp.ge.f32.partialorder %v1145, 0.0
  %vm1210 = vcmp.ge.f32.partialorder %v1146, 0.0
  %vm1211 = vcmp.ge.f32.partialorder %v1147, 0.0
  %vm1212 = vcmp.ge.f32.partialorder %v1148, 0.0
  %vm1213 = vcmp.ge.f32.partialorder %v1149, 0.0
  %vm1214 = vcmp.ge.f32.partialorder %v1150, 0.0
  %vm1215 = vcmp.ge.f32.partialorder %v1151, 0.0
  %vm1216 = vcmp.ge.f32.partialorder %v1152, 0.0
  %vm1217 = vcmp.ge.f32.partialorder %v1153, 0.0
  %vm1218 = vcmp.ge.f32.partialorder %v1154, 0.0
  %vm1219 = vcmp.ge.f32.partialorder %v1155, 0.0
  %vm1220 = vcmp.ge.f32.partialorder %v1156, 0.0
  %vm1221 = vcmp.ge.f32.partialorder %v1157, 0.0
  %vm1222 = vcmp.ge.f32.partialorder %v1158, 0.0
  %vm1223 = vcmp.ge.f32.partialorder %v1159, 0.0
  %vm1224 = vcmp.ge.f32.partialorder %v1160, 0.0
  %vm1225 = vcmp.ge.f32.partialorder %v1161, 0.0
  %vm1226 = vcmp.ge.f32.partialorder %v1162, 0.0
  %vm1227 = vcmp.ge.f32.partialorder %v1163, 0.0
  %vm1228 = vcmp.ge.f32.partialorder %v1164, 0.0
  %vm1229 = vcmp.ge.f32.partialorder %v1165, 0.0
  %vm1230 = vcmp.ge.f32.partialorder %v1166, 0.0
  %vm1231 = vcmp.ge.f32.partialorder %v1167, 0.0
  %vm1232 = vcmp.ge.f32.partialorder %v1168, 0.0
  %vm1233 = vcmp.ge.f32.partialorder %v1169, 0.0
  %vm1234 = vcmp.ge.f32.partialorder %v1170, 0.0
  %vm1235 = vcmp.ge.f32.partialorder %v1171, 0.0
  %vm1236 = vcmp.ge.f32.partialorder %v1172, 0.0
  %vm1237 = vcmp.ge.f32.partialorder %v1173, 0.0
  %vm1238 = vcmp.ge.f32.partialorder %v1174, 0.0
  %vm1239 = vcmp.ge.f32.partialorder %v1175, 0.0
  %vm1240 = vcmp.ge.f32.partialorder %v1176, 0.0
  %vm1241 = vcmp.ge.f32.partialorder %v1177, 0.0
  %vm1242 = vcmp.ge.f32.partialorder %v1178, 0.0
  %vm1243 = vcmp.ge.f32.partialorder %v1179, 0.0
  %vm1244 = vcmp.ge.f32.partialorder %v1180, 0.0
  %vm1245 = vcmp.ge.f32.partialorder %v1181, 0.0
  %vm1246 = vcmp.ge.f32.partialorder %v1182, 0.0
  %vm1247 = vcmp.ge.f32.partialorder %v1183, 0.0
  %vm1248 = vcmp.ge.f32.partialorder %v1184, 0.0
  %vm1249 = vcmp.ge.f32.partialorder %v1185, 0.0
  %vm1250 = vcmp.ge.f32.partialorder %v1186, 0.0
  %vm1251 = vcmp.ge.f32.partialorder %v1187, 0.0
  %vm1252 = vcmp.ge.f32.partialorder %v1188, 0.0
  %vm1253 = vcmp.ge.f32.partialorder %v1189, 0.0
  %vm1254 = vcmp.ge.f32.partialorder %v1190, 0.0
  %vm1255 = vcmp.ge.f32.partialorder %v1191, 0.0
  %vm1256 = vcmp.ge.f32.partialorder %v1192, 0.0
  %vm1257 = vcmp.ge.f32.partialorder %v1193, 0.0
  %vm1258 = vcmp.ge.f32.partialorder %v1194, 0.0
  %vm1259 = vcmp.ge.f32.partialorder %v1195, 0.0
  %vm1260 = vcmp.ge.f32.partialorder %v1196, 0.0
  %vm1261 = vcmp.ge.f32.partialorder %v1197, 0.0
  %vm1262 = vcmp.ge.f32.partialorder %v1198, 0.0
  %vm1263 = vcmp.ge.f32.partialorder %v1199, 0.0
  %vm1264 = vcmp.ge.f32.partialorder %v1200, 0.0
  %vm1265 = vcmp.ge.f32.partialorder %v1201, 0.0
  %vm1266 = vcmp.ge.f32.partialorder %v1202, 0.0
  %vm1267 = vcmp.ge.f32.partialorder %v1203, 0.0
  %vm1268 = vcmp.ge.f32.partialorder %v1204, 0.0
  %vm1269 = vcmp.ge.f32.partialorder %v1205, 0.0
  %v1270 = vmul.f32 %v1142, 0.01
  %v1271 = vmul.f32 %v1143, 0.01
  %v1272 = vmul.f32 %v1144, 0.01
  %v1273 = vmul.f32 %v1145, 0.01
  %v1274 = vmul.f32 %v1146, 0.01
  %v1275 = vmul.f32 %v1147, 0.01
  %v1276 = vmul.f32 %v1148, 0.01
  %v1277 = vmul.f32 %v1149, 0.01
  %v1278 = vmul.f32 %v1150, 0.01
  %v1279 = vmul.f32 %v1151, 0.01
  %v1280 = vmul.f32 %v1152, 0.01
  %v1281 = vmul.f32 %v1153, 0.01
  %v1282 = vmul.f32 %v1154, 0.01
  %v1283 = vmul.f32 %v1155, 0.01
  %v1284 = vmul.f32 %v1156, 0.01
  %v1285 = vmul.f32 %v1157, 0.01
  %v1286 = vmul.f32 %v1158, 0.01
  %v1287 = vmul.f32 %v1159, 0.01
  %v1288 = vmul.f32 %v1160, 0.01
  %v1289 = vmul.f32 %v1161, 0.01
  %v1290 = vmul.f32 %v1162, 0.01
  %v1291 = vmul.f32 %v1163, 0.01
  %v1292 = vmul.f32 %v1164, 0.01
  %v1293 = vmul.f32 %v1165, 0.01
  %v1294 = vmul.f32 %v1166, 0.01
  %v1295 = vmul.f32 %v1167, 0.01
  %v1296 = vmul.f32 %v1168, 0.01
  %v1297 = vmul.f32 %v1169, 0.01
  %v1298 = vmul.f32 %v1170, 0.01
  %v1299 = vmul.f32 %v1171, 0.01
  %v1300 = vmul.f32 %v1172, 0.01
  %v1301 = vmul.f32 %v1173, 0.01
  %v1302 = vmul.f32 %v1174, 0.01
  %v1303 = vmul.f32 %v1175, 0.01
  %v1304 = vmul.f32 %v1176, 0.01
  %v1305 = vmul.f32 %v1177, 0.01
  %v1306 = vmul.f32 %v1178, 0.01
  %v1307 = vmul.f32 %v1179, 0.01
  %v1308 = vmul.f32 %v1180, 0.01
  %v1309 = vmul.f32 %v1181, 0.01
  %v1310 = vmul.f32 %v1182, 0.01
  %v1311 = vmul.f32 %v1183, 0.01
  %v1312 = vmul.f32 %v1184, 0.01
  %v1313 = vmul.f32 %v1185, 0.01
  %v1314 = vmul.f32 %v1186, 0.01
  %v1315 = vmul.f32 %v1187, 0.01
  %v1316 = vmul.f32 %v1188, 0.01
  %v1317 = vmul.f32 %v1189, 0.01
  %v1318 = vmul.f32 %v1190, 0.01
  %v1319 = vmul.f32 %v1191, 0.01
  %v1320 = vmul.f32 %v1192, 0.01
  %v1321 = vmul.f32 %v1193, 0.01
  %v1322 = vmul.f32 %v1194, 0.01
  %v1323 = vmul.f32 %v1195, 0.01
  %v1324 = vmul.f32 %v1196, 0.01
  %v1325 = vmul.f32 %v1197, 0.01
  %v1326 = vmul.f32 %v1198, 0.01
  %v1327 = vmul.f32 %v1199, 0.01
  %v1328 = vmul.f32 %v1200, 0.01
  %v1329 = vmul.f32 %v1201, 0.01
  %v1330 = vmul.f32 %v1202, 0.01
  %v1331 = vmul.f32 %v1203, 0.01
  %v1332 = vmul.f32 %v1204, 0.01
  %v1333 = vmul.f32 %v1205, 0.01
  %v1334 = vsel %vm1206, %v1142, %v1270
  %v1335 = vsel %vm1207, %v1143, %v1271
  %v1336 = vsel %vm1208, %v1144, %v1272
  %v1337 = vsel %vm1209, %v1145, %v1273
  %v1338 = vsel %vm1210, %v1146, %v1274
  %v1339 = vsel %vm1211, %v1147, %v1275
  %v1340 = vsel %vm1212, %v1148, %v1276
  %v1341 = vsel %vm1213, %v1149, %v1277
  %v1342 = vsel %vm1214, %v1150, %v1278
  %v1343 = vsel %vm1215, %v1151, %v1279
  %v1344 = vsel %vm1216, %v1152, %v1280
  %v1345 = vsel %vm1217, %v1153, %v1281
  %v1346 = vsel %vm1218, %v1154, %v1282
  %v1347 = vsel %vm1219, %v1155, %v1283
  %v1348 = vsel %vm1220, %v1156, %v1284
  %v1349 = vsel %vm1221, %v1157, %v1285
  %v1350 = vsel %vm1222, %v1158, %v1286
  %v1351 = vsel %vm1223, %v1159, %v1287
  %v1352 = vsel %vm1224, %v1160, %v1288
  %v1353 = vsel %vm1225, %v1161, %v1289
  %v1354 = vsel %vm1226, %v1162, %v1290
  %v1355 = vsel %vm1227, %v1163, %v1291
  %v1356 = vsel %vm1228, %v1164, %v1292
  %v1357 = vsel %vm1229, %v1165, %v1293
  %v1358 = vsel %vm1230, %v1166, %v1294
  %v1359 = vsel %vm1231, %v1167, %v1295
  %v1360 = vsel %vm1232, %v1168, %v1296
  %v1361 = vsel %vm1233, %v1169, %v1297
  %v1362 = vsel %vm1234, %v1170, %v1298
  %v1363 = vsel %vm1235, %v1171, %v1299
  %v1364 = vsel %vm1236, %v1172, %v1300
  %v1365 = vsel %vm1237, %v1173, %v1301
  %v1366 = vsel %vm1238, %v1174, %v1302
  %v1367 = vsel %vm1239, %v1175, %v1303
  %v1368 = vsel %vm1240, %v1176, %v1304
  %v1369 = vsel %vm1241, %v1177, %v1305
  %v1370 = vsel %vm1242, %v1178, %v1306
  %v1371 = vsel %vm1243, %v1179, %v1307
  %v1372 = vsel %vm1244, %v1180, %v1308
  %v1373 = vsel %vm1245, %v1181, %v1309
  %v1374 = vsel %vm1246, %v1182, %v1310
  %v1375 = vsel %vm1247, %v1183, %v1311
  %v1376 = vsel %vm1248, %v1184, %v1312
  %v1377 = vsel %vm1249, %v1185, %v1313
  %v1378 = vsel %vm1250, %v1186, %v1314
  %v1379 = vsel %vm1251, %v1187, %v1315
  %v1380 = vsel %vm1252, %v1188, %v1316
  %v1381 = vsel %vm1253, %v1189, %v1317
  %v1382 = vsel %vm1254, %v1190, %v1318
  %v1383 = vsel %vm1255, %v1191, %v1319
  %v1384 = vsel %vm1256, %v1192, %v1320
  %v1385 = vsel %vm1257, %v1193, %v1321
  %v1386 = vsel %vm1258, %v1194, %v1322
  %v1387 = vsel %vm1259, %v1195, %v1323
  %v1388 = vsel %vm1260, %v1196, %v1324
  %v1389 = vsel %vm1261, %v1197, %v1325
  %v1390 = vsel %vm1262, %v1198, %v1326
  %v1391 = vsel %vm1263, %v1199, %v1327
  %v1392 = vsel %vm1264, %v1200, %v1328
  %v1393 = vsel %vm1265, %v1201, %v1329
  %v1394 = vsel %vm1266, %v1202, %v1330
  %v1395 = vsel %vm1267, %v1203, %v1331
  %v1396 = vsel %vm1268, %v1204, %v1332
  %v1397 = vsel %vm1269, %v1205, %v1333
  %v1398 = vpack.c.bf16 %v1335, %v1334
  %v1399 = vpack.c.bf16 %v1337, %v1336
  %v1400 = vpack.c.bf16 %v1339, %v1338
  %v1401 = vpack.c.bf16 %v1341, %v1340
  %v1402 = vpack.c.bf16 %v1343, %v1342
  %v1403 = vpack.c.bf16 %v1345, %v1344
  %v1404 = vpack.c.bf16 %v1347, %v1346
  %v1405 = vpack.c.bf16 %v1349, %v1348
  %v1406 = vpack.c.bf16 %v1351, %v1350
  %v1407 = vpack.c.bf16 %v1353, %v1352
  %v1408 = vpack.c.bf16 %v1355, %v1354
  %v1409 = vpack.c.bf16 %v1357, %v1356
  %v1410 = vpack.c.bf16 %v1359, %v1358
  %v1411 = vpack.c.bf16 %v1361, %v1360
  %v1412 = vpack.c.bf16 %v1363, %v1362
  %v1413 = vpack.c.bf16 %v1365, %v1364
  %v1414 = vpack.c.bf16 %v1367, %v1366
  %v1415 = vpack.c.bf16 %v1369, %v1368
  %v1416 = vpack.c.bf16 %v1371, %v1370
  %v1417 = vpack.c.bf16 %v1373, %v1372
  %v1418 = vpack.c.bf16 %v1375, %v1374
  %v1419 = vpack.c.bf16 %v1377, %v1376
  %v1420 = vpack.c.bf16 %v1379, %v1378
  %v1421 = vpack.c.bf16 %v1381, %v1380
  %v1422 = vpack.c.bf16 %v1383, %v1382
  %v1423 = vpack.c.bf16 %v1385, %v1384
  %v1424 = vpack.c.bf16 %v1387, %v1386
  %v1425 = vpack.c.bf16 %v1389, %v1388
  %v1426 = vpack.c.bf16 %v1391, %v1390
  %v1427 = vpack.c.bf16 %v1393, %v1392
  %v1428 = vpack.c.bf16 %v1395, %v1394
  %v1429 = vpack.c.bf16 %v1397, %v1396
  %v1462 = vunpack.c.l.b16 %v1398
  %v1463 = vunpack.c.h.b16 %v1398
  %v1464 = vunpack.c.l.b16 %v1399
  %v1465 = vunpack.c.h.b16 %v1399
  %v1466 = vunpack.c.l.b16 %v1400
  %v1467 = vunpack.c.h.b16 %v1400
  %v1468 = vunpack.c.l.b16 %v1401
  %v1469 = vunpack.c.h.b16 %v1401
  %v1470 = vunpack.c.l.b16 %v1402
  %v1471 = vunpack.c.h.b16 %v1402
  %v1472 = vunpack.c.l.b16 %v1403
  %v1473 = vunpack.c.h.b16 %v1403
  %v1474 = vunpack.c.l.b16 %v1404
  %v1475 = vunpack.c.h.b16 %v1404
  %v1476 = vunpack.c.l.b16 %v1405
  %v1477 = vunpack.c.h.b16 %v1405
  %v1478 = vunpack.c.l.b16 %v1406
  %v1479 = vunpack.c.h.b16 %v1406
  %v1480 = vunpack.c.l.b16 %v1407
  %v1481 = vunpack.c.h.b16 %v1407
  %v1482 = vunpack.c.l.b16 %v1408
  %v1483 = vunpack.c.h.b16 %v1408
  %v1484 = vunpack.c.l.b16 %v1409
  %v1485 = vunpack.c.h.b16 %v1409
  %v1486 = vunpack.c.l.b16 %v1410
  %v1487 = vunpack.c.h.b16 %v1410
  %v1488 = vunpack.c.l.b16 %v1411
  %v1489 = vunpack.c.h.b16 %v1411
  %v1490 = vunpack.c.l.b16 %v1412
  %v1491 = vunpack.c.h.b16 %v1412
  %v1492 = vunpack.c.l.b16 %v1413
  %v1493 = vunpack.c.h.b16 %v1413
  %v1494 = vunpack.c.l.b16 %v1414
  %v1495 = vunpack.c.h.b16 %v1414
  %v1496 = vunpack.c.l.b16 %v1415
  %v1497 = vunpack.c.h.b16 %v1415
  %v1498 = vunpack.c.l.b16 %v1416
  %v1499 = vunpack.c.h.b16 %v1416
  %v1500 = vunpack.c.l.b16 %v1417
  %v1501 = vunpack.c.h.b16 %v1417
  %v1502 = vunpack.c.l.b16 %v1418
  %v1503 = vunpack.c.h.b16 %v1418
  %v1504 = vunpack.c.l.b16 %v1419
  %v1505 = vunpack.c.h.b16 %v1419
  %v1506 = vunpack.c.l.b16 %v1420
  %v1507 = vunpack.c.h.b16 %v1420
  %v1508 = vunpack.c.l.b16 %v1421
  %v1509 = vunpack.c.h.b16 %v1421
  %v1510 = vunpack.c.l.b16 %v1422
  %v1511 = vunpack.c.h.b16 %v1422
  %v1512 = vunpack.c.l.b16 %v1423
  %v1513 = vunpack.c.h.b16 %v1423
  %v1514 = vunpack.c.l.b16 %v1424
  %v1515 = vunpack.c.h.b16 %v1424
  %v1516 = vunpack.c.l.b16 %v1425
  %v1517 = vunpack.c.h.b16 %v1425
  %v1518 = vunpack.c.l.b16 %v1426
  %v1519 = vunpack.c.h.b16 %v1426
  %v1520 = vunpack.c.l.b16 %v1427
  %v1521 = vunpack.c.h.b16 %v1427
  %v1522 = vunpack.c.l.b16 %v1428
  %v1523 = vunpack.c.h.b16 %v1428
  %v1524 = vunpack.c.l.b16 %v1429
  %v1525 = vunpack.c.h.b16 %v1429
  %v1526 = vpack.c.b16 %v1462, %v1462
  %v1527 = vpack.c.b16 %v1463, %v1463
  %v1528 = vpack.c.b16 %v1464, %v1464
  %v1529 = vpack.c.b16 %v1465, %v1465
  %v1530 = vpack.c.b16 %v1466, %v1466
  %v1531 = vpack.c.b16 %v1467, %v1467
  %v1532 = vpack.c.b16 %v1468, %v1468
  %v1533 = vpack.c.b16 %v1469, %v1469
  %v1534 = vpack.c.b16 %v1470, %v1470
  %v1535 = vpack.c.b16 %v1471, %v1471
  %v1536 = vpack.c.b16 %v1472, %v1472
  %v1537 = vpack.c.b16 %v1473, %v1473
  %v1538 = vpack.c.b16 %v1474, %v1474
  %v1539 = vpack.c.b16 %v1475, %v1475
  %v1540 = vpack.c.b16 %v1476, %v1476
  %v1541 = vpack.c.b16 %v1477, %v1477
  %v1542 = vpack.c.b16 %v1478, %v1478
  %v1543 = vpack.c.b16 %v1479, %v1479
  %v1544 = vpack.c.b16 %v1480, %v1480
  %v1545 = vpack.c.b16 %v1481, %v1481
  %v1546 = vpack.c.b16 %v1482, %v1482
  %v1547 = vpack.c.b16 %v1483, %v1483
  %v1548 = vpack.c.b16 %v1484, %v1484
  %v1549 = vpack.c.b16 %v1485, %v1485
  %v1550 = vpack.c.b16 %v1486, %v1486
  %v1551 = vpack.c.b16 %v1487, %v1487
  %v1552 = vpack.c.b16 %v1488, %v1488
  %v1553 = vpack.c.b16 %v1489, %v1489
  %v1554 = vpack.c.b16 %v1490, %v1490
  %v1555 = vpack.c.b16 %v1491, %v1491
  %v1556 = vpack.c.b16 %v1492, %v1492
  %v1557 = vpack.c.b16 %v1493, %v1493
  %v1558 = vpack.c.b16 %v1494, %v1494
  %v1559 = vpack.c.b16 %v1495, %v1495
  %v1560 = vpack.c.b16 %v1496, %v1496
  %v1561 = vpack.c.b16 %v1497, %v1497
  %v1562 = vpack.c.b16 %v1498, %v1498
  %v1563 = vpack.c.b16 %v1499, %v1499
  %v1564 = vpack.c.b16 %v1500, %v1500
  %v1565 = vpack.c.b16 %v1501, %v1501
  %v1566 = vpack.c.b16 %v1502, %v1502
  %v1567 = vpack.c.b16 %v1503, %v1503
  %v1568 = vpack.c.b16 %v1504, %v1504
  %v1569 = vpack.c.b16 %v1505, %v1505
  %v1570 = vpack.c.b16 %v1506, %v1506
  %v1571 = vpack.c.b16 %v1507, %v1507
  %v1572 = vpack.c.b16 %v1508, %v1508
  %v1573 = vpack.c.b16 %v1509, %v1509
  %v1574 = vpack.c.b16 %v1510, %v1510
  %v1575 = vpack.c.b16 %v1511, %v1511
  %v1576 = vpack.c.b16 %v1512, %v1512
  %v1577 = vpack.c.b16 %v1513, %v1513
  %v1578 = vpack.c.b16 %v1514, %v1514
  %v1579 = vpack.c.b16 %v1515, %v1515
  %v1580 = vpack.c.b16 %v1516, %v1516
  %v1581 = vpack.c.b16 %v1517, %v1517
  %v1582 = vpack.c.b16 %v1518, %v1518
  %v1583 = vpack.c.b16 %v1519, %v1519
  %v1584 = vpack.c.b16 %v1520, %v1520
  %v1585 = vpack.c.b16 %v1521, %v1521
  %v1586 = vpack.c.b16 %v1522, %v1522
  %v1587 = vpack.c.b16 %v1523, %v1523
  %v1588 = vpack.c.b16 %v1524, %v1524
  %v1589 = vpack.c.b16 %v1525, %v1525
  %1654 = vst [vmem:[%s4] sm:$0xf] %v1526
  %1655 = vst [vmem:[%s4 + $0x4] sm:$0xf] %v1527
  %1656 = vst [vmem:[%s4 + $0x8] sm:$0xf] %v1528
  %1657 = vst [vmem:[%s4 + $0xc] sm:$0xf] %v1529
  %1658 = vst [vmem:[%s4 + $0x10] sm:$0xf] %v1530
  %1659 = vst [vmem:[%s4 + $0x14] sm:$0xf] %v1531
  %1660 = vst [vmem:[%s4 + $0x18] sm:$0xf] %v1532
  %1661 = vst [vmem:[%s4 + $0x1c] sm:$0xf] %v1533
  %1662 = vst [vmem:[%s4 + $0x20] sm:$0xf] %v1534
  %1663 = vst [vmem:[%s4 + $0x24] sm:$0xf] %v1535
  %1664 = vst [vmem:[%s4 + $0x28] sm:$0xf] %v1536
  %1665 = vst [vmem:[%s4 + $0x2c] sm:$0xf] %v1537
  %1666 = vst [vmem:[%s4 + $0x30] sm:$0xf] %v1538
  %1667 = vst [vmem:[%s4 + $0x34] sm:$0xf] %v1539
  %1668 = vst [vmem:[%s4 + $0x38] sm:$0xf] %v1540
  %1669 = vst [vmem:[%s4 + $0x3c] sm:$0xf] %v1541
  %1670 = vst [vmem:[%s4 + $0x40] sm:$0xf] %v1542
  %1671 = vst [vmem:[%s4 + $0x44] sm:$0xf] %v1543
  %1672 = vst [vmem:[%s4 + $0x48] sm:$0xf] %v1544
  %1673 = vst [vmem:[%s4 + $0x4c] sm:$0xf] %v1545
  %1674 = vst [vmem:[%s4 + $0x50] sm:$0xf] %v1546
  %1675 = vst [vmem:[%s4 + $0x54] sm:$0xf] %v1547
  %1676 = vst [vmem:[%s4 + $0x58] sm:$0xf] %v1548
  %1677 = vst [vmem:[%s4 + $0x5c] sm:$0xf] %v1549
  %1678 = vst [vmem:[%s4 + $0x60] sm:$0xf] %v1550
  %1679 = vst [vmem:[%s4 + $0x64] sm:$0xf] %v1551
  %1680 = vst [vmem:[%s4 + $0x68] sm:$0xf] %v1552
  %1681 = vst [vmem:[%s4 + $0x6c] sm:$0xf] %v1553
  %1682 = vst [vmem:[%s4 + $0x70] sm:$0xf] %v1554
  %1683 = vst [vmem:[%s4 + $0x74] sm:$0xf] %v1555
  %1684 = vst [vmem:[%s4 + $0x78] sm:$0xf] %v1556
  %1685 = vst [vmem:[%s4 + $0x7c] sm:$0xf] %v1557
  %1686 = vst [vmem:[%s4 + $0x80] sm:$0xf] %v1558
  %1687 = vst [vmem:[%s4 + $0x84] sm:$0xf] %v1559
  %1688 = vst [vmem:[%s4 + $0x88] sm:$0xf] %v1560
  %1689 = vst [vmem:[%s4 + $0x8c] sm:$0xf] %v1561
  %1690 = vst [vmem:[%s4 + $0x90] sm:$0xf] %v1562
  %1691 = vst [vmem:[%s4 + $0x94] sm:$0xf] %v1563
  %1692 = vst [vmem:[%s4 + $0x98] sm:$0xf] %v1564
  %1693 = vst [vmem:[%s4 + $0x9c] sm:$0xf] %v1565
  %1694 = vst [vmem:[%s4 + $0xa0] sm:$0xf] %v1566
  %1695 = vst [vmem:[%s4 + $0xa4] sm:$0xf] %v1567
  %1696 = vst [vmem:[%s4 + $0xa8] sm:$0xf] %v1568
  %1697 = vst [vmem:[%s4 + $0xac] sm:$0xf] %v1569
  %1698 = vst [vmem:[%s4 + $0xb0] sm:$0xf] %v1570
  %1699 = vst [vmem:[%s4 + $0xb4] sm:$0xf] %v1571
  %1700 = vst [vmem:[%s4 + $0xb8] sm:$0xf] %v1572
  %1701 = vst [vmem:[%s4 + $0xbc] sm:$0xf] %v1573
  %1702 = vst [vmem:[%s4 + $0xc0] sm:$0xf] %v1574
  %1703 = vst [vmem:[%s4 + $0xc4] sm:$0xf] %v1575
  %1704 = vst [vmem:[%s4 + $0xc8] sm:$0xf] %v1576
  %1705 = vst [vmem:[%s4 + $0xcc] sm:$0xf] %v1577
  %1706 = vst [vmem:[%s4 + $0xd0] sm:$0xf] %v1578
  %1707 = vst [vmem:[%s4 + $0xd4] sm:$0xf] %v1579
  %1708 = vst [vmem:[%s4 + $0xd8] sm:$0xf] %v1580
  %1709 = vst [vmem:[%s4 + $0xdc] sm:$0xf] %v1581
  %1710 = vst [vmem:[%s4 + $0xe0] sm:$0xf] %v1582
  %1711 = vst [vmem:[%s4 + $0xe4] sm:$0xf] %v1583
  %1712 = vst [vmem:[%s4 + $0xe8] sm:$0xf] %v1584
  %1713 = vst [vmem:[%s4 + $0xec] sm:$0xf] %v1585
  %1714 = vst [vmem:[%s4 + $0xf0] sm:$0xf] %v1586
  %1715 = vst [vmem:[%s4 + $0xf4] sm:$0xf] %v1587
  %1716 = vst [vmem:[%s4 + $0xf8] sm:$0xf] %v1588
  %1717 = vst [vmem:[%s4 + $0xfc] sm:$0xf] %v1589
  // Predicated region
  $region18: #{discriminator_forward.5} parent=0 // pred_check
    _
  $region19: #{discriminator_forward.5} parent=0 // pred_check_branch
    %1719 = sbr.rel (0) target = $region21
  $region20: #{discriminator_forward.5} parent=0 // pred_region
    _
  $region21: #{discriminator_forward.5} parent=0 // pred_fallthru
    _
  // Predicated region
  $region22: #{discriminator_forward.5} parent=0 // pred_check
    _
  $region23: #{discriminator_forward.5} parent=0 // pred_check_branch
    %1721 = sbr.rel (0) target = $region25
  $region24: #{discriminator_forward.5} parent=0 // pred_region
    _
  $region25: #{discriminator_forward.5} parent=0 // pred_fallthru
    _

// kernel: discriminator_forward.6
$region0: #{discriminator_forward.6}
  #allocation0 [shape = 'u32[]', space=smem, size = 0x4, offset = 0x4, fixed_abs, tag = 'smem constant byte address 0x4 - core index']
  #allocation1 [shape = 'u32[144,128]{1,0:T(1,128)}', space=vmem, size = 0x12000, scoped, tag = 'internal scratch']
  %s0 = inlined_call_operand.vmem [shape: bf16[256,576], index: 0, kind: input, shape index: {}]
  %s1 = inlined_call_operand.vmem [shape: bf16[576,128], index: 1, kind: input, shape index: {}]
  %s2 = inlined_call_operand.vmem [shape: f32[1,128], index: 2, kind: input, shape index: {}]
  %s3 = inlined_call_operand.vmem [shape: f32[1,128], index: 3, kind: input, shape index: {}]
  %s4 = inlined_call_operand.vmem [shape: bf16[256,128], index: 4, kind: output, shape index: {}]
  %s5 = sld [smem:[#allocation0]]
  $region26: #{discriminator_forward.6} parent=0
    _
  %s7 = ssub.s32 1, %s5
  %s8 = scalar_select 0, %s7, %s5
  // Predicated region
  $region2: #{discriminator_forward.6} parent=0 // pred_check
    _
  $region3: #{discriminator_forward.6} parent=0 // pred_check_branch
    %10 = sbr.rel (0) target = $region5
  $region4: #{discriminator_forward.6} parent=0 // pred_region
    _
  $region5: #{discriminator_forward.6} parent=0 // pred_fallthru
    _
  // Predicated region
  $region6: #{discriminator_forward.6} parent=0 // pred_check
    _
  $region7: #{discriminator_forward.6} parent=0 // pred_check_branch
    %12 = sbr.rel (0) target = $region9
  $region8: #{discriminator_forward.6} parent=0 // pred_region
    _
  $region9: #{discriminator_forward.6} parent=0 // pred_fallthru
    _
  // Predicated region
  $region10: #{discriminator_forward.6} parent=0 // pred_check
    _
  $region11: #{discriminator_forward.6} parent=0 // pred_check_branch
    %14 = sbr.rel (0) target = $region13
  $region12: #{discriminator_forward.6} parent=0 // pred_region
    _
  $region13: #{discriminator_forward.6} parent=0 // pred_fallthru
    _
  // Predicated region
  $region14: #{discriminator_forward.6} parent=0 // pred_check
    _
  $region15: #{discriminator_forward.6} parent=0 // pred_check_branch
    %16 = sbr.rel (0) target = $region17
  $region16: #{discriminator_forward.6} parent=0 // pred_region
    _
  $region17: #{discriminator_forward.6} parent=0 // pred_fallthru
    _
  %v18 = vld [vmem:[%s0] sm:$0xff]
  %v19 = vld [vmem:[%s0 + $0x8] sm:$0xff]
  %v20 = vld [vmem:[%s0 + $0x10] sm:$0xf]
  %v21 = vld [vmem:[%s0 + $0x14] sm:$0xff]
  %v22 = vld [vmem:[%s0 + $0x1c] sm:$0xff]
  %v23 = vld [vmem:[%s0 + $0x24] sm:$0xf]
  %v24 = vld [vmem:[%s0 + $0x28] sm:$0xff]
  %v25 = vld [vmem:[%s0 + $0x30] sm:$0xff]
  %v26 = vld [vmem:[%s0 + $0x38] sm:$0xf]
  %v27 = vld [vmem:[%s0 + $0x3c] sm:$0xff]
  %v28 = vld [vmem:[%s0 + $0x44] sm:$0xff]
  %v29 = vld [vmem:[%s0 + $0x4c] sm:$0xf]
  %v30 = vld [vmem:[%s0 + $0x50] sm:$0xff]
  %v31 = vld [vmem:[%s0 + $0x58] sm:$0xff]
  %v32 = vld [vmem:[%s0 + $0x60] sm:$0xf]
  %v33 = vld [vmem:[%s0 + $0x64] sm:$0xff]
  %v34 = vld [vmem:[%s0 + $0x6c] sm:$0xff]
  %v35 = vld [vmem:[%s0 + $0x74] sm:$0xf]
  %v36 = vld [vmem:[%s0 + $0x78] sm:$0xff]
  %v37 = vld [vmem:[%s0 + $0x80] sm:$0xff]
  %v38 = vld [vmem:[%s0 + $0x88] sm:$0xf]
  %v39 = vld [vmem:[%s0 + $0x8c] sm:$0xff]
  %v40 = vld [vmem:[%s0 + $0x94] sm:$0xff]
  %v41 = vld [vmem:[%s0 + $0x9c] sm:$0xf]
  %v42 = vld [vmem:[%s0 + $0xa0] sm:$0xff]
  %v43 = vld [vmem:[%s0 + $0xa8] sm:$0xff]
  %v44 = vld [vmem:[%s0 + $0xb0] sm:$0xf]
  %v45 = vld [vmem:[%s0 + $0xb4] sm:$0xff]
  %v46 = vld [vmem:[%s0 + $0xbc] sm:$0xff]
  %v47 = vld [vmem:[%s0 + $0xc4] sm:$0xf]
  %v48 = vld [vmem:[%s0 + $0xc8] sm:$0xff]
  %v49 = vld [vmem:[%s0 + $0xd0] sm:$0xff]
  %v50 = vld [vmem:[%s0 + $0xd8] sm:$0xf]
  %v51 = vld [vmem:[%s0 + $0xdc] sm:$0xff]
  %v52 = vld [vmem:[%s0 + $0xe4] sm:$0xff]
  %v53 = vld [vmem:[%s0 + $0xec] sm:$0xf]
  %v54 = vld [vmem:[%s0 + $0xf0] sm:$0xff]
  %v55 = vld [vmem:[%s0 + $0xf8] sm:$0xff]
  %v56 = vld [vmem:[%s0 + $0x100] sm:$0xf]
  %v57 = vld [vmem:[%s0 + $0x104] sm:$0xff]
  %v58 = vld [vmem:[%s0 + $0x10c] sm:$0xff]
  %v59 = vld [vmem:[%s0 + $0x114] sm:$0xf]
  %v60 = vld [vmem:[%s0 + $0x118] sm:$0xff]
  %v61 = vld [vmem:[%s0 + $0x120] sm:$0xff]
  %v62 = vld [vmem:[%s0 + $0x128] sm:$0xf]
  %v63 = vld [vmem:[%s0 + $0x12c] sm:$0xff]
  %v64 = vld [vmem:[%s0 + $0x134] sm:$0xff]
  %v65 = vld [vmem:[%s0 + $0x13c] sm:$0xf]
  %v66 = vld [vmem:[%s0 + $0x140] sm:$0xff]
  %v67 = vld [vmem:[%s0 + $0x148] sm:$0xff]
  %v68 = vld [vmem:[%s0 + $0x150] sm:$0xf]
  %v69 = vld [vmem:[%s0 + $0x154] sm:$0xff]
  %v70 = vld [vmem:[%s0 + $0x15c] sm:$0xff]
  %v71 = vld [vmem:[%s0 + $0x164] sm:$0xf]
  %v72 = vld [vmem:[%s0 + $0x168] sm:$0xff]
  %v73 = vld [vmem:[%s0 + $0x170] sm:$0xff]
  %v74 = vld [vmem:[%s0 + $0x178] sm:$0xf]
  %v75 = vld [vmem:[%s0 + $0x17c] sm:$0xff]
  %v76 = vld [vmem:[%s0 + $0x184] sm:$0xff]
  %v77 = vld [vmem:[%s0 + $0x18c] sm:$0xf]
  %v78 = vld [vmem:[%s0 + $0x190] sm:$0xff]
  %v79 = vld [vmem:[%s0 + $0x198] sm:$0xff]
  %v80 = vld [vmem:[%s0 + $0x1a0] sm:$0xf]
  %v81 = vld [vmem:[%s0 + $0x1a4] sm:$0xff]
  %v82 = vld [vmem:[%s0 + $0x1ac] sm:$0xff]
  %v83 = vld [vmem:[%s0 + $0x1b4] sm:$0xf]
  %v84 = vld [vmem:[%s0 + $0x1b8] sm:$0xff]
  %v85 = vld [vmem:[%s0 + $0x1c0] sm:$0xff]
  %v86 = vld [vmem:[%s0 + $0x1c8] sm:$0xf]
  %v87 = vld [vmem:[%s0 + $0x1cc] sm:$0xff]
  %v88 = vld [vmem:[%s0 + $0x1d4] sm:$0xff]
  %v89 = vld [vmem:[%s0 + $0x1dc] sm:$0xf]
  %v90 = vld [vmem:[%s0 + $0x1e0] sm:$0xff]
  %v91 = vld [vmem:[%s0 + $0x1e8] sm:$0xff]
  %v92 = vld [vmem:[%s0 + $0x1f0] sm:$0xf]
  %v93 = vld [vmem:[%s0 + $0x1f4] sm:$0xff]
  %v94 = vld [vmem:[%s0 + $0x1fc] sm:$0xff]
  %v95 = vld [vmem:[%s0 + $0x204] sm:$0xf]
  %v96 = vld [vmem:[%s0 + $0x208] sm:$0xff]
  %v97 = vld [vmem:[%s0 + $0x210] sm:$0xff]
  %v98 = vld [vmem:[%s0 + $0x218] sm:$0xf]
  %v99 = vld [vmem:[%s0 + $0x21c] sm:$0xff]
  %v100 = vld [vmem:[%s0 + $0x224] sm:$0xff]
  %v101 = vld [vmem:[%s0 + $0x22c] sm:$0xf]
  %v102 = vld [vmem:[%s0 + $0x230] sm:$0xff]
  %v103 = vld [vmem:[%s0 + $0x238] sm:$0xff]
  %v104 = vld [vmem:[%s0 + $0x240] sm:$0xf]
  %v105 = vld [vmem:[%s0 + $0x244] sm:$0xff]
  %v106 = vld [vmem:[%s0 + $0x24c] sm:$0xff]
  %v107 = vld [vmem:[%s0 + $0x254] sm:$0xf]
  %v108 = vld [vmem:[%s0 + $0x258] sm:$0xff]
  %v109 = vld [vmem:[%s0 + $0x260] sm:$0xff]
  %v110 = vld [vmem:[%s0 + $0x268] sm:$0xf]
  %v111 = vld [vmem:[%s0 + $0x26c] sm:$0xff]
  %v112 = vld [vmem:[%s0 + $0x274] sm:$0xff]
  %v113 = vld [vmem:[%s0 + $0x27c] sm:$0xf]
  %v114 = vld [vmem:[%s1] sm:$0xf]
  %v115 = vld [vmem:[%s1 + $0x4] sm:$0xf]
  %v116 = vld [vmem:[%s1 + $0x8] sm:$0xf]
  %v117 = vld [vmem:[%s1 + $0xc] sm:$0xf]
  %v118 = vld [vmem:[%s1 + $0x10] sm:$0xf]
  %v119 = vld [vmem:[%s1 + $0x14] sm:$0xf]
  %v120 = vld [vmem:[%s1 + $0x18] sm:$0xf]
  %v121 = vld [vmem:[%s1 + $0x1c] sm:$0xf]
  %v122 = vld [vmem:[%s1 + $0x20] sm:$0xf]
  %v123 = vld [vmem:[%s1 + $0x24] sm:$0xf]
  %v124 = vld [vmem:[%s1 + $0x28] sm:$0xf]
  %v125 = vld [vmem:[%s1 + $0x2c] sm:$0xf]
  %v126 = vld [vmem:[%s1 + $0x30] sm:$0xf]
  %v127 = vld [vmem:[%s1 + $0x34] sm:$0xf]
  %v128 = vld [vmem:[%s1 + $0x38] sm:$0xf]
  %v129 = vld [vmem:[%s1 + $0x3c] sm:$0xf]
  %v130 = vld [vmem:[%s1 + $0x40] sm:$0xf]
  %v131 = vld [vmem:[%s1 + $0x44] sm:$0xf]
  %v132 = vld [vmem:[%s1 + $0x48] sm:$0xf]
  %v133 = vld [vmem:[%s1 + $0x4c] sm:$0xf]
  %v134 = vld [vmem:[%s1 + $0x50] sm:$0xf]
  %v135 = vld [vmem:[%s1 + $0x54] sm:$0xf]
  %v136 = vld [vmem:[%s1 + $0x58] sm:$0xf]
  %v137 = vld [vmem:[%s1 + $0x5c] sm:$0xf]
  %v138 = vld [vmem:[%s1 + $0x60] sm:$0xf]
  %v139 = vld [vmem:[%s1 + $0x64] sm:$0xf]
  %v140 = vld [vmem:[%s1 + $0x68] sm:$0xf]
  %v141 = vld [vmem:[%s1 + $0x6c] sm:$0xf]
  %v142 = vld [vmem:[%s1 + $0x70] sm:$0xf]
  %v143 = vld [vmem:[%s1 + $0x74] sm:$0xf]
  %v144 = vld [vmem:[%s1 + $0x78] sm:$0xf]
  %v145 = vld [vmem:[%s1 + $0x7c] sm:$0xf]
  %v146 = vld [vmem:[%s1 + $0x80] sm:$0xf]
  %v147 = vld [vmem:[%s1 + $0x84] sm:$0xf]
  %v148 = vld [vmem:[%s1 + $0x88] sm:$0xf]
  %v149 = vld [vmem:[%s1 + $0x8c] sm:$0xf]
  %v150 = vld [vmem:[%s1 + $0x90] sm:$0xf]
  %v151 = vld [vmem:[%s1 + $0x94] sm:$0xf]
  %v152 = vld [vmem:[%s1 + $0x98] sm:$0xf]
  %v153 = vld [vmem:[%s1 + $0x9c] sm:$0xf]
  %v154 = vld [vmem:[%s1 + $0xa0] sm:$0xf]
  %v155 = vld [vmem:[%s1 + $0xa4] sm:$0xf]
  %v156 = vld [vmem:[%s1 + $0xa8] sm:$0xf]
  %v157 = vld [vmem:[%s1 + $0xac] sm:$0xf]
  %v158 = vld [vmem:[%s1 + $0xb0] sm:$0xf]
  %v159 = vld [vmem:[%s1 + $0xb4] sm:$0xf]
  %v160 = vld [vmem:[%s1 + $0xb8] sm:$0xf]
  %v161 = vld [vmem:[%s1 + $0xbc] sm:$0xf]
  %v162 = vld [vmem:[%s1 + $0xc0] sm:$0xf]
  %v163 = vld [vmem:[%s1 + $0xc4] sm:$0xf]
  %v164 = vld [vmem:[%s1 + $0xc8] sm:$0xf]
  %v165 = vld [vmem:[%s1 + $0xcc] sm:$0xf]
  %v166 = vld [vmem:[%s1 + $0xd0] sm:$0xf]
  %v167 = vld [vmem:[%s1 + $0xd4] sm:$0xf]
  %v168 = vld [vmem:[%s1 + $0xd8] sm:$0xf]
  %v169 = vld [vmem:[%s1 + $0xdc] sm:$0xf]
  %v170 = vld [vmem:[%s1 + $0xe0] sm:$0xf]
  %v171 = vld [vmem:[%s1 + $0xe4] sm:$0xf]
  %v172 = vld [vmem:[%s1 + $0xe8] sm:$0xf]
  %v173 = vld [vmem:[%s1 + $0xec] sm:$0xf]
  %v174 = vld [vmem:[%s1 + $0xf0] sm:$0xf]
  %v175 = vld [vmem:[%s1 + $0xf4] sm:$0xf]
  %v176 = vld [vmem:[%s1 + $0xf8] sm:$0xf]
  %v177 = vld [vmem:[%s1 + $0xfc] sm:$0xf]
  %v178 = vld [vmem:[%s1 + $0x100] sm:$0xf]
  %v179 = vld [vmem:[%s1 + $0x104] sm:$0xf]
  %v180 = vld [vmem:[%s1 + $0x108] sm:$0xf]
  %v181 = vld [vmem:[%s1 + $0x10c] sm:$0xf]
  %v182 = vld [vmem:[%s1 + $0x110] sm:$0xf]
  %v183 = vld [vmem:[%s1 + $0x114] sm:$0xf]
  %v184 = vld [vmem:[%s1 + $0x118] sm:$0xf]
  %v185 = vld [vmem:[%s1 + $0x11c] sm:$0xf]
  %v282 = vunpack.c.l.b16 %v18
  %v283 = vunpack.c.h.b16 %v18
  %v284 = vunpack.c.l.b16 %v19
  %v285 = vunpack.c.h.b16 %v19
  %v286 = vunpack.c.l.b16 %v20
  %v287 = vunpack.c.l.b16 %v21
  %v288 = vunpack.c.h.b16 %v21
  %v289 = vunpack.c.l.b16 %v22
  %v290 = vunpack.c.h.b16 %v22
  %v291 = vunpack.c.l.b16 %v23
  %v292 = vunpack.c.l.b16 %v24
  %v293 = vunpack.c.h.b16 %v24
  %v294 = vunpack.c.l.b16 %v25
  %v295 = vunpack.c.h.b16 %v25
  %v296 = vunpack.c.l.b16 %v26
  %v297 = vunpack.c.l.b16 %v27
  %v298 = vunpack.c.h.b16 %v27
  %v299 = vunpack.c.l.b16 %v28
  %v300 = vunpack.c.h.b16 %v28
  %v301 = vunpack.c.l.b16 %v29
  %v302 = vunpack.c.l.b16 %v30
  %v303 = vunpack.c.h.b16 %v30
  %v304 = vunpack.c.l.b16 %v31
  %v305 = vunpack.c.h.b16 %v31
  %v306 = vunpack.c.l.b16 %v32
  %v307 = vunpack.c.l.b16 %v33
  %v308 = vunpack.c.h.b16 %v33
  %v309 = vunpack.c.l.b16 %v34
  %v310 = vunpack.c.h.b16 %v34
  %v311 = vunpack.c.l.b16 %v35
  %v312 = vunpack.c.l.b16 %v36
  %v313 = vunpack.c.h.b16 %v36
  %v314 = vunpack.c.l.b16 %v37
  %v315 = vunpack.c.h.b16 %v37
  %v316 = vunpack.c.l.b16 %v38
  %v317 = vunpack.c.l.b16 %v39
  %v318 = vunpack.c.h.b16 %v39
  %v319 = vunpack.c.l.b16 %v40
  %v320 = vunpack.c.h.b16 %v40
  %v321 = vunpack.c.l.b16 %v41
  %v322 = vunpack.c.l.b16 %v42
  %v323 = vunpack.c.h.b16 %v42
  %v324 = vunpack.c.l.b16 %v43
  %v325 = vunpack.c.h.b16 %v43
  %v326 = vunpack.c.l.b16 %v44
  %v327 = vunpack.c.l.b16 %v45
  %v328 = vunpack.c.h.b16 %v45
  %v329 = vunpack.c.l.b16 %v46
  %v330 = vunpack.c.h.b16 %v46
  %v331 = vunpack.c.l.b16 %v47
  %v332 = vunpack.c.l.b16 %v48
  %v333 = vunpack.c.h.b16 %v48
  %v334 = vunpack.c.l.b16 %v49
  %v335 = vunpack.c.h.b16 %v49
  %v336 = vunpack.c.l.b16 %v50
  %v337 = vunpack.c.l.b16 %v51
  %v338 = vunpack.c.h.b16 %v51
  %v339 = vunpack.c.l.b16 %v52
  %v340 = vunpack.c.h.b16 %v52
  %v341 = vunpack.c.l.b16 %v53
  %v342 = vunpack.c.l.b16 %v54
  %v343 = vunpack.c.h.b16 %v54
  %v344 = vunpack.c.l.b16 %v55
  %v345 = vunpack.c.h.b16 %v55
  %v346 = vunpack.c.l.b16 %v56
  %v347 = vunpack.c.l.b16 %v57
  %v348 = vunpack.c.h.b16 %v57
  %v349 = vunpack.c.l.b16 %v58
  %v350 = vunpack.c.h.b16 %v58
  %v351 = vunpack.c.l.b16 %v59
  %v352 = vunpack.c.l.b16 %v60
  %v353 = vunpack.c.h.b16 %v60
  %v354 = vunpack.c.l.b16 %v61
  %v355 = vunpack.c.h.b16 %v61
  %v356 = vunpack.c.l.b16 %v62
  %v357 = vunpack.c.l.b16 %v63
  %v358 = vunpack.c.h.b16 %v63
  %v359 = vunpack.c.l.b16 %v64
  %v360 = vunpack.c.h.b16 %v64
  %v361 = vunpack.c.l.b16 %v65
  %v362 = vunpack.c.l.b16 %v66
  %v363 = vunpack.c.h.b16 %v66
  %v364 = vunpack.c.l.b16 %v67
  %v365 = vunpack.c.h.b16 %v67
  %v366 = vunpack.c.l.b16 %v68
  %v367 = vunpack.c.l.b16 %v69
  %v368 = vunpack.c.h.b16 %v69
  %v369 = vunpack.c.l.b16 %v70
  %v370 = vunpack.c.h.b16 %v70
  %v371 = vunpack.c.l.b16 %v71
  %v372 = vunpack.c.l.b16 %v72
  %v373 = vunpack.c.h.b16 %v72
  %v374 = vunpack.c.l.b16 %v73
  %v375 = vunpack.c.h.b16 %v73
  %v376 = vunpack.c.l.b16 %v74
  %v377 = vunpack.c.l.b16 %v75
  %v378 = vunpack.c.h.b16 %v75
  %v379 = vunpack.c.l.b16 %v76
  %v380 = vunpack.c.h.b16 %v76
  %v381 = vunpack.c.l.b16 %v77
  %v382 = vunpack.c.l.b16 %v78
  %v383 = vunpack.c.h.b16 %v78
  %v384 = vunpack.c.l.b16 %v79
  %v385 = vunpack.c.h.b16 %v79
  %v386 = vunpack.c.l.b16 %v80
  %v387 = vunpack.c.l.b16 %v81
  %v388 = vunpack.c.h.b16 %v81
  %v389 = vunpack.c.l.b16 %v82
  %v390 = vunpack.c.h.b16 %v82
  %v391 = vunpack.c.l.b16 %v83
  %v392 = vunpack.c.l.b16 %v84
  %v393 = vunpack.c.h.b16 %v84
  %v394 = vunpack.c.l.b16 %v85
  %v395 = vunpack.c.h.b16 %v85
  %v396 = vunpack.c.l.b16 %v86
  %v397 = vunpack.c.l.b16 %v87
  %v398 = vunpack.c.h.b16 %v87
  %v399 = vunpack.c.l.b16 %v88
  %v400 = vunpack.c.h.b16 %v88
  %v401 = vunpack.c.l.b16 %v89
  %v402 = vunpack.c.l.b16 %v90
  %v403 = vunpack.c.h.b16 %v90
  %v404 = vunpack.c.l.b16 %v91
  %v405 = vunpack.c.h.b16 %v91
  %v406 = vunpack.c.l.b16 %v92
  %v407 = vunpack.c.l.b16 %v93
  %v408 = vunpack.c.h.b16 %v93
  %v409 = vunpack.c.l.b16 %v94
  %v410 = vunpack.c.h.b16 %v94
  %v411 = vunpack.c.l.b16 %v95
  %v412 = vunpack.c.l.b16 %v96
  %v413 = vunpack.c.h.b16 %v96
  %v414 = vunpack.c.l.b16 %v97
  %v415 = vunpack.c.h.b16 %v97
  %v416 = vunpack.c.l.b16 %v98
  %v417 = vunpack.c.l.b16 %v99
  %v418 = vunpack.c.h.b16 %v99
  %v419 = vunpack.c.l.b16 %v100
  %v420 = vunpack.c.h.b16 %v100
  %v421 = vunpack.c.l.b16 %v101
  %v422 = vunpack.c.l.b16 %v102
  %v423 = vunpack.c.h.b16 %v102
  %v424 = vunpack.c.l.b16 %v103
  %v425 = vunpack.c.h.b16 %v103
  %v426 = vunpack.c.l.b16 %v104
  %v427 = vunpack.c.l.b16 %v105
  %v428 = vunpack.c.h.b16 %v105
  %v429 = vunpack.c.l.b16 %v106
  %v430 = vunpack.c.h.b16 %v106
  %v431 = vunpack.c.l.b16 %v107
  %v432 = vunpack.c.l.b16 %v108
  %v433 = vunpack.c.h.b16 %v108
  %v434 = vunpack.c.l.b16 %v109
  %v435 = vunpack.c.h.b16 %v109
  %v436 = vunpack.c.l.b16 %v110
  %v437 = vunpack.c.l.b16 %v111
  %v438 = vunpack.c.h.b16 %v111
  %v439 = vunpack.c.l.b16 %v112
  %v440 = vunpack.c.h.b16 %v112
  %v441 = vunpack.c.l.b16 %v113
  %v442 = vpack.c.b16 %v287, %v282
  %v443 = vpack.c.b16 %v288, %v283
  %v444 = vpack.c.b16 %v289, %v284
  %v445 = vpack.c.b16 %v290, %v285
  %v446 = vpack.c.b16 %v291, %v286
  %v447 = vpack.c.b16 %v297, %v292
  %v448 = vpack.c.b16 %v298, %v293
  %v449 = vpack.c.b16 %v299, %v294
  %v450 = vpack.c.b16 %v300, %v295
  %v451 = vpack.c.b16 %v301, %v296
  %v452 = vpack.c.b16 %v307, %v302
  %v453 = vpack.c.b16 %v308, %v303
  %v454 = vpack.c.b16 %v309, %v304
  %v455 = vpack.c.b16 %v310, %v305
  %v456 = vpack.c.b16 %v311, %v306
  %v457 = vpack.c.b16 %v317, %v312
  %v458 = vpack.c.b16 %v318, %v313
  %v459 = vpack.c.b16 %v319, %v314
  %v460 = vpack.c.b16 %v320, %v315
  %v461 = vpack.c.b16 %v321, %v316
  %v462 = vpack.c.b16 %v327, %v322
  %v463 = vpack.c.b16 %v328, %v323
  %v464 = vpack.c.b16 %v329, %v324
  %v465 = vpack.c.b16 %v330, %v325
  %v466 = vpack.c.b16 %v331, %v326
  %v467 = vpack.c.b16 %v337, %v332
  %v468 = vpack.c.b16 %v338, %v333
  %v469 = vpack.c.b16 %v339, %v334
  %v470 = vpack.c.b16 %v340, %v335
  %v471 = vpack.c.b16 %v341, %v336
  %v472 = vpack.c.b16 %v347, %v342
  %v473 = vpack.c.b16 %v348, %v343
  %v474 = vpack.c.b16 %v349, %v344
  %v475 = vpack.c.b16 %v350, %v345
  %v476 = vpack.c.b16 %v351, %v346
  %v477 = vpack.c.b16 %v357, %v352
  %v478 = vpack.c.b16 %v358, %v353
  %v479 = vpack.c.b16 %v359, %v354
  %v480 = vpack.c.b16 %v360, %v355
  %v481 = vpack.c.b16 %v361, %v356
  %v482 = vpack.c.b16 %v367, %v362
  %v483 = vpack.c.b16 %v368, %v363
  %v484 = vpack.c.b16 %v369, %v364
  %v485 = vpack.c.b16 %v370, %v365
  %v486 = vpack.c.b16 %v371, %v366
  %v487 = vpack.c.b16 %v377, %v372
  %v488 = vpack.c.b16 %v378, %v373
  %v489 = vpack.c.b16 %v379, %v374
  %v490 = vpack.c.b16 %v380, %v375
  %v491 = vpack.c.b16 %v381, %v376
  %v492 = vpack.c.b16 %v387, %v382
  %v493 = vpack.c.b16 %v388, %v383
  %v494 = vpack.c.b16 %v389, %v384
  %v495 = vpack.c.b16 %v390, %v385
  %v496 = vpack.c.b16 %v391, %v386
  %v497 = vpack.c.b16 %v397, %v392
  %v498 = vpack.c.b16 %v398, %v393
  %v499 = vpack.c.b16 %v399, %v394
  %v500 = vpack.c.b16 %v400, %v395
  %v501 = vpack.c.b16 %v401, %v396
  %v502 = vpack.c.b16 %v407, %v402
  %v503 = vpack.c.b16 %v408, %v403
  %v504 = vpack.c.b16 %v409, %v404
  %v505 = vpack.c.b16 %v410, %v405
  %v506 = vpack.c.b16 %v411, %v406
  %v507 = vpack.c.b16 %v417, %v412
  %v508 = vpack.c.b16 %v418, %v413
  %v509 = vpack.c.b16 %v419, %v414
  %v510 = vpack.c.b16 %v420, %v415
  %v511 = vpack.c.b16 %v421, %v416
  %v512 = vpack.c.b16 %v427, %v422
  %v513 = vpack.c.b16 %v428, %v423
  %v514 = vpack.c.b16 %v429, %v424
  %v515 = vpack.c.b16 %v430, %v425
  %v516 = vpack.c.b16 %v431, %v426
  %v517 = vpack.c.b16 %v437, %v432
  %v518 = vpack.c.b16 %v438, %v433
  %v519 = vpack.c.b16 %v439, %v434
  %v520 = vpack.c.b16 %v440, %v435
  %v521 = vpack.c.b16 %v441, %v436
  %v658 = vunpack.c.l.b16 %v114
  %v659 = vunpack.c.l.b16 %v115
  %v660 = vunpack.c.l.b16 %v116
  %v661 = vunpack.c.l.b16 %v117
  %v662 = vunpack.c.l.b16 %v118
  %v663 = vunpack.c.l.b16 %v119
  %v664 = vunpack.c.l.b16 %v120
  %v665 = vunpack.c.l.b16 %v121
  %v666 = vunpack.c.l.b16 %v122
  %v667 = vunpack.c.l.b16 %v123
  %v668 = vunpack.c.l.b16 %v124
  %v669 = vunpack.c.l.b16 %v125
  %v670 = vunpack.c.l.b16 %v126
  %v671 = vunpack.c.l.b16 %v127
  %v672 = vunpack.c.l.b16 %v128
  %v673 = vunpack.c.l.b16 %v129
  %v674 = vunpack.c.l.b16 %v130
  %v675 = vunpack.c.l.b16 %v131
  %v676 = vunpack.c.l.b16 %v132
  %v677 = vunpack.c.l.b16 %v133
  %v678 = vunpack.c.l.b16 %v134
  %v679 = vunpack.c.l.b16 %v135
  %v680 = vunpack.c.l.b16 %v136
  %v681 = vunpack.c.l.b16 %v137
  %v682 = vunpack.c.l.b16 %v138
  %v683 = vunpack.c.l.b16 %v139
  %v684 = vunpack.c.l.b16 %v140
  %v685 = vunpack.c.l.b16 %v141
  %v686 = vunpack.c.l.b16 %v142
  %v687 = vunpack.c.l.b16 %v143
  %v688 = vunpack.c.l.b16 %v144
  %v689 = vunpack.c.l.b16 %v145
  %v690 = vunpack.c.l.b16 %v146
  %v691 = vunpack.c.l.b16 %v147
  %v692 = vunpack.c.l.b16 %v148
  %v693 = vunpack.c.l.b16 %v149
  %v694 = vunpack.c.l.b16 %v150
  %v695 = vunpack.c.l.b16 %v151
  %v696 = vunpack.c.l.b16 %v152
  %v697 = vunpack.c.l.b16 %v153
  %v698 = vunpack.c.l.b16 %v154
  %v699 = vunpack.c.l.b16 %v155
  %v700 = vunpack.c.l.b16 %v156
  %v701 = vunpack.c.l.b16 %v157
  %v702 = vunpack.c.l.b16 %v158
  %v703 = vunpack.c.l.b16 %v159
  %v704 = vunpack.c.l.b16 %v160
  %v705 = vunpack.c.l.b16 %v161
  %v706 = vunpack.c.l.b16 %v162
  %v707 = vunpack.c.l.b16 %v163
  %v708 = vunpack.c.l.b16 %v164
  %v709 = vunpack.c.l.b16 %v165
  %v710 = vunpack.c.l.b16 %v166
  %v711 = vunpack.c.l.b16 %v167
  %v712 = vunpack.c.l.b16 %v168
  %v713 = vunpack.c.l.b16 %v169
  %v714 = vunpack.c.l.b16 %v170
  %v715 = vunpack.c.l.b16 %v171
  %v716 = vunpack.c.l.b16 %v172
  %v717 = vunpack.c.l.b16 %v173
  %v718 = vunpack.c.l.b16 %v174
  %v719 = vunpack.c.l.b16 %v175
  %v720 = vunpack.c.l.b16 %v176
  %v721 = vunpack.c.l.b16 %v177
  %v722 = vunpack.c.l.b16 %v178
  %v723 = vunpack.c.l.b16 %v179
  %v724 = vunpack.c.l.b16 %v180
  %v725 = vunpack.c.l.b16 %v181
  %v726 = vunpack.c.l.b16 %v182
  %v727 = vunpack.c.l.b16 %v183
  %v728 = vunpack.c.l.b16 %v184
  %v729 = vunpack.c.l.b16 %v185
  %v730 = vpack.c.b16 %v659, %v658
  %v731 = vpack.c.b16 %v661, %v660
  %v732 = vpack.c.b16 %v663, %v662
  %v733 = vpack.c.b16 %v665, %v664
  %v734 = vpack.c.b16 %v667, %v666
  %v735 = vpack.c.b16 %v669, %v668
  %v736 = vpack.c.b16 %v671, %v670
  %v737 = vpack.c.b16 %v673, %v672
  %v738 = vpack.c.b16 %v675, %v674
  %v739 = vpack.c.b16 %v677, %v676
  %v740 = vpack.c.b16 %v679, %v678
  %v741 = vpack.c.b16 %v681, %v680
  %v742 = vpack.c.b16 %v683, %v682
  %v743 = vpack.c.b16 %v685, %v684
  %v744 = vpack.c.b16 %v687, %v686
  %v745 = vpack.c.b16 %v689, %v688
  %v746 = vpack.c.b16 %v691, %v690
  %v747 = vpack.c.b16 %v693, %v692
  %v748 = vpack.c.b16 %v695, %v694
  %v749 = vpack.c.b16 %v697, %v696
  %v750 = vpack.c.b16 %v699, %v698
  %v751 = vpack.c.b16 %v701, %v700
  %v752 = vpack.c.b16 %v703, %v702
  %v753 = vpack.c.b16 %v705, %v704
  %v754 = vpack.c.b16 %v707, %v706
  %v755 = vpack.c.b16 %v709, %v708
  %v756 = vpack.c.b16 %v711, %v710
  %v757 = vpack.c.b16 %v713, %v712
  %v758 = vpack.c.b16 %v715, %v714
  %v759 = vpack.c.b16 %v717, %v716
  %v760 = vpack.c.b16 %v719, %v718
  %v761 = vpack.c.b16 %v721, %v720
  %v762 = vpack.c.b16 %v723, %v722
  %v763 = vpack.c.b16 %v725, %v724
  %v764 = vpack.c.b16 %v727, %v726
  %v765 = vpack.c.b16 %v729, %v728
  %vm802 = vcmask 523264
  %v804 = vsel %vm802, %v446, 0
  %v807 = vsel %vm802, %v451, 0
  %v810 = vsel %vm802, %v456, 0
  %v813 = vsel %vm802, %v461, 0
  %v816 = vsel %vm802, %v466, 0
  %v819 = vsel %vm802, %v471, 0
  %v822 = vsel %vm802, %v476, 0
  %v825 = vsel %vm802, %v481, 0
  %v828 = vsel %vm802, %v486, 0
  %v831 = vsel %vm802, %v491, 0
  %v834 = vsel %vm802, %v496, 0
  %v837 = vsel %vm802, %v501, 0
  %v840 = vsel %vm802, %v506, 0
  %v843 = vsel %vm802, %v511, 0
  %v846 = vsel %vm802, %v516, 0
  %v849 = vsel %vm802, %v521, 0
  %851 = vmatprep.subr.bf16.mxu0 0
  %852 = vmatpush1.bf16.msra.mxu0 %v730
  %853 = vmatprep.subr.bf16.mxu0 0
  %854 = vmatpush1.bf16.msra.mxu0 %v731
  %855 = vmatprep.subr.bf16.mxu0 0
  %856 = vmatpush1.bf16.msra.mxu0 %v732
  %857 = vmatprep.subr.bf16.mxu0 0
  %858 = vmatpush1.bf16.msra.mxu0 %v733
  %859 = vmatprep.subr.bf16.mxu0 0
  %860 = vmatpush1.bf16.msra.mxu0 %v734
  %861 = vmatprep.subr.bf16.mxu0 0
  %862 = vmatpush1.bf16.msra.mxu0 %v735
  %863 = vmatprep.subr.bf16.mxu0 0
  %864 = vmatpush1.bf16.msra.mxu0 %v736
  %865 = vmatprep.subr.bf16.mxu0 0
  %866 = vmatpush1.bf16.msra.mxu0 %v737
  %867 = vmatprep.subr.bf16.mxu0 0
  %868 = vmatpush1.bf16.msra.mxu0 %v738
  %869 = vmatprep.subr.bf16.mxu0 0
  %870 = vmatpush1.bf16.msra.mxu0 %v739
  %871 = vmatprep.subr.bf16.mxu0 0
  %872 = vmatpush1.bf16.msra.mxu0 %v740
  %873 = vmatprep.subr.bf16.mxu0 0
  %874 = vmatpush1.bf16.msra.mxu0 %v741
  %875 = vmatprep.subr.bf16.mxu0 0
  %876 = vmatpush1.bf16.msra.mxu0 %v742
  %877 = vmatprep.subr.bf16.mxu0 0
  %878 = vmatpush1.bf16.msra.mxu0 %v743
  %879 = vmatprep.subr.bf16.mxu0 0
  %880 = vmatpush1.bf16.msra.mxu0 %v744
  %881 = vmatprep.subr.bf16.mxu0 0
  %882 = vmatpush1.bf16.msra.mxu0 %v745
  %883 = vmatprep.mubr.bf16.mxu0 %v443
  %884 = vmatmul.mubr.bf16.gmra.mrb[0].mxu0 %v442
  %v885 = vpop.f32.mrb[0].mxu0
  %v886 = vadd.f32 0.0, %v885
  %v887 = vpop.f32.mrb[0].mxu0
  %v888 = vpop.f32.mrb[0].mxu0
  %v889 = vadd.f32 0.0, %v888
  %v890 = vpop.f32.mrb[0].mxu0
  %891 = vmatprep.mubr.bf16.mxu0 %v448
  %892 = vmatmul.mubr.bf16.gmra.mrb[0].mxu0 %v447
  %v893 = vpop.f32.mrb[0].mxu0
  %v894 = vadd.f32 0.0, %v893
  %v895 = vpop.f32.mrb[0].mxu0
  %v896 = vpop.f32.mrb[0].mxu0
  %v897 = vadd.f32 0.0, %v896
  %v898 = vpop.f32.mrb[0].mxu0
  %899 = vmatprep.mubr.bf16.mxu0 %v453
  %900 = vmatmul.mubr.bf16.gmra.mrb[0].mxu0 %v452
  %v901 = vpop.f32.mrb[0].mxu0
  %v902 = vadd.f32 0.0, %v901
  %v903 = vpop.f32.mrb[0].mxu0
  %v904 = vpop.f32.mrb[0].mxu0
  %v905 = vadd.f32 0.0, %v904
  %v906 = vpop.f32.mrb[0].mxu0
  %907 = vmatprep.mubr.bf16.mxu0 %v458
  %908 = vmatmul.mubr.bf16.gmra.mrb[0].mxu0 %v457
  %v909 = vpop.f32.mrb[0].mxu0
  %v910 = vadd.f32 0.0, %v909
  %v911 = vpop.f32.mrb[0].mxu0
  %v912 = vpop.f32.mrb[0].mxu0
  %v913 = vadd.f32 0.0, %v912
  %v914 = vpop.f32.mrb[0].mxu0
  %915 = vmatprep.mubr.bf16.mxu0 %v463
  %916 = vmatmul.mubr.bf16.gmra.mrb[0].mxu0 %v462
  %v917 = vpop.f32.mrb[0].mxu0
  %v918 = vadd.f32 0.0, %v917
  %v919 = vpop.f32.mrb[0].mxu0
  %v920 = vpop.f32.mrb[0].mxu0
  %v921 = vadd.f32 0.0, %v920
  %v922 = vpop.f32.mrb[0].mxu0
  %923 = vmatprep.mubr.bf16.mxu0 %v468
  %924 = vmatmul.mubr.bf16.gmra.mrb[0].mxu0 %v467
  %v925 = vpop.f32.mrb[0].mxu0
  %v926 = vadd.f32 0.0, %v925
  %v927 = vpop.f32.mrb[0].mxu0
  %v928 = vpop.f32.mrb[0].mxu0
  %v929 = vadd.f32 0.0, %v928
  %v930 = vpop.f32.mrb[0].mxu0
  %931 = vmatprep.mubr.bf16.mxu0 %v473
  %932 = vmatmul.mubr.bf16.gmra.mrb[0].mxu0 %v472
  %v933 = vpop.f32.mrb[0].mxu0
  %v934 = vadd.f32 0.0, %v933
  %v935 = vpop.f32.mrb[0].mxu0
  %v936 = vpop.f32.mrb[0].mxu0
  %v937 = vadd.f32 0.0, %v936
  %v938 = vpop.f32.mrb[0].mxu0
  %939 = vmatprep.mubr.bf16.mxu0 %v478
  %940 = vmatmul.mubr.bf16.gmra.mrb[0].mxu0 %v477
  %v941 = vpop.f32.mrb[0].mxu0
  %v942 = vadd.f32 0.0, %v941
  %v943 = vpop.f32.mrb[0].mxu0
  %v944 = vpop.f32.mrb[0].mxu0
  %v945 = vadd.f32 0.0, %v944
  %v946 = vpop.f32.mrb[0].mxu0
  %947 = vmatprep.mubr.bf16.mxu0 %v483
  %948 = vmatmul.mubr.bf16.gmra.mrb[0].mxu0 %v482
  %v949 = vpop.f32.mrb[0].mxu0
  %v950 = vadd.f32 0.0, %v949
  %v951 = vpop.f32.mrb[0].mxu0
  %v952 = vpop.f32.mrb[0].mxu0
  %v953 = vadd.f32 0.0, %v952
  %v954 = vpop.f32.mrb[0].mxu0
  %955 = vmatprep.mubr.bf16.mxu0 %v488
  %956 = vmatmul.mubr.bf16.gmra.mrb[0].mxu0 %v487
  %v957 = vpop.f32.mrb[0].mxu0
  %v958 = vadd.f32 0.0, %v957
  %v959 = vpop.f32.mrb[0].mxu0
  %v960 = vpop.f32.mrb[0].mxu0
  %v961 = vadd.f32 0.0, %v960
  %v962 = vpop.f32.mrb[0].mxu0
  %963 = vmatprep.mubr.bf16.mxu0 %v493
  %964 = vmatmul.mubr.bf16.gmra.mrb[0].mxu0 %v492
  %v965 = vpop.f32.mrb[0].mxu0
  %v966 = vadd.f32 0.0, %v965
  %v967 = vpop.f32.mrb[0].mxu0
  %v968 = vpop.f32.mrb[0].mxu0
  %v969 = vadd.f32 0.0, %v968
  %v970 = vpop.f32.mrb[0].mxu0
  %971 = vmatprep.mubr.bf16.mxu0 %v498
  %972 = vmatmul.mubr.bf16.gmra.mrb[0].mxu0 %v497
  %v973 = vpop.f32.mrb[0].mxu0
  %v974 = vadd.f32 0.0, %v973
  %v975 = vpop.f32.mrb[0].mxu0
  %v976 = vpop.f32.mrb[0].mxu0
  %v977 = vadd.f32 0.0, %v976
  %v978 = vpop.f32.mrb[0].mxu0
  %979 = vmatprep.mubr.bf16.mxu0 %v503
  %980 = vmatmul.mubr.bf16.gmra.mrb[0].mxu0 %v502
  %v981 = vpop.f32.mrb[0].mxu0
  %v982 = vadd.f32 0.0, %v981
  %v983 = vpop.f32.mrb[0].mxu0
  %v984 = vpop.f32.mrb[0].mxu0
  %v985 = vadd.f32 0.0, %v984
  %v986 = vpop.f32.mrb[0].mxu0
  %987 = vmatprep.mubr.bf16.mxu0 %v508
  %988 = vmatmul.mubr.bf16.gmra.mrb[0].mxu0 %v507
  %v989 = vpop.f32.mrb[0].mxu0
  %v990 = vadd.f32 0.0, %v989
  %v991 = vpop.f32.mrb[0].mxu0
  %v992 = vpop.f32.mrb[0].mxu0
  %v993 = vadd.f32 0.0, %v992
  %v994 = vpop.f32.mrb[0].mxu0
  %995 = vmatprep.mubr.bf16.mxu0 %v513
  %996 = vmatmul.mubr.bf16.gmra.mrb[0].mxu0 %v512
  %v997 = vpop.f32.mrb[0].mxu0
  %v998 = vadd.f32 0.0, %v997
  %v999 = vpop.f32.mrb[0].mxu0
  %v1000 = vpop.f32.mrb[0].mxu0
  %v1001 = vadd.f32 0.0, %v1000
  %v1002 = vpop.f32.mrb[0].mxu0
  %1003 = vmatprep.mubr.bf16.mxu0 %v518
  %1004 = vmatmul.mubr.bf16.gmra.mrb[0].mxu0 %v517
  %v1005 = vpop.f32.mrb[0].mxu0
  %v1006 = vadd.f32 0.0, %v1005
  %v1007 = vpop.f32.mrb[0].mxu0
  %v1008 = vpop.f32.mrb[0].mxu0
  %v1009 = vadd.f32 0.0, %v1008
  %v1010 = vpop.f32.mrb[0].mxu0
  %1011 = vdwg.mxu0
  %1012 = vmatprep.subr.bf16.mxu0 0
  %1013 = vmatpush1.bf16.msra.mxu0 %v746
  %1014 = vmatprep.subr.bf16.mxu0 0
  %1015 = vmatpush1.bf16.msra.mxu0 %v747
  %1016 = vmatprep.subr.bf16.mxu0 0
  %1017 = vmatpush1.bf16.msra.mxu0 %v748
  %1018 = vmatprep.subr.bf16.mxu0 0
  %1019 = vmatpush1.bf16.msra.mxu0 %v749
  %1020 = vmatprep.subr.bf16.mxu0 0
  %1021 = vmatpush1.bf16.msra.mxu0 %v750
  %1022 = vmatprep.subr.bf16.mxu0 0
  %1023 = vmatpush1.bf16.msra.mxu0 %v751
  %1024 = vmatprep.subr.bf16.mxu0 0
  %1025 = vmatpush1.bf16.msra.mxu0 %v752
  %1026 = vmatprep.subr.bf16.mxu0 0
  %1027 = vmatpush1.bf16.msra.mxu0 %v753
  %1028 = vmatprep.subr.bf16.mxu0 0
  %1029 = vmatpush1.bf16.msra.mxu0 %v754
  %1030 = vmatprep.subr.bf16.mxu0 0
  %1031 = vmatpush1.bf16.msra.mxu0 %v755
  %1032 = vmatprep.subr.bf16.mxu0 0
  %1033 = vmatpush1.bf16.msra.mxu0 %v756
  %1034 = vmatprep.subr.bf16.mxu0 0
  %1035 = vmatpush1.bf16.msra.mxu0 %v757
  %1036 = vmatprep.subr.bf16.mxu0 0
  %1037 = vmatpush1.bf16.msra.mxu0 %v758
  %1038 = vmatprep.subr.bf16.mxu0 0
  %1039 = vmatpush1.bf16.msra.mxu0 %v759
  %1040 = vmatprep.subr.bf16.mxu0 0
  %1041 = vmatpush1.bf16.msra.mxu0 %v760
  %1042 = vmatprep.subr.bf16.mxu0 0
  %1043 = vmatpush1.bf16.msra.mxu0 %v761
  %1044 = vmatprep.mubr.bf16.mxu0 %v445
  %1045 = vmatmul.mubr.bf16.gmra.mrb[0].mxu0 %v444
  %v1046 = vpop.f32.mrb[0].mxu0
  %v1047 = vadd.f32 %v886, %v1046
  %v1048 = vpop.f32.mrb[0].mxu0
  %v1049 = vpop.f32.mrb[0].mxu0
  %v1050 = vadd.f32 %v889, %v1049
  %v1051 = vpop.f32.mrb[0].mxu0
  %1052 = vmatprep.mubr.bf16.mxu0 %v450
  %1053 = vmatmul.mubr.bf16.gmra.mrb[0].mxu0 %v449
  %v1054 = vpop.f32.mrb[0].mxu0
  %v1055 = vadd.f32 %v894, %v1054
  %v1056 = vpop.f32.mrb[0].mxu0
  %v1057 = vpop.f32.mrb[0].mxu0
  %v1058 = vadd.f32 %v897, %v1057
  %v1059 = vpop.f32.mrb[0].mxu0
  %1060 = vmatprep.mubr.bf16.mxu0 %v455
  %1061 = vmatmul.mubr.bf16.gmra.mrb[0].mxu0 %v454
  %v1062 = vpop.f32.mrb[0].mxu0
  %v1063 = vadd.f32 %v902, %v1062
  %v1064 = vpop.f32.mrb[0].mxu0
  %v1065 = vpop.f32.mrb[0].mxu0
  %v1066 = vadd.f32 %v905, %v1065
  %v1067 = vpop.f32.mrb[0].mxu0
  %1068 = vmatprep.mubr.bf16.mxu0 %v460
  %1069 = vmatmul.mubr.bf16.gmra.mrb[0].mxu0 %v459
  %v1070 = vpop.f32.mrb[0].mxu0
  %v1071 = vadd.f32 %v910, %v1070
  %v1072 = vpop.f32.mrb[0].mxu0
  %v1073 = vpop.f32.mrb[0].mxu0
  %v1074 = vadd.f32 %v913, %v1073
  %v1075 = vpop.f32.mrb[0].mxu0
  %1076 = vmatprep.mubr.bf16.mxu0 %v465
  %1077 = vmatmul.mubr.bf16.gmra.mrb[0].mxu0 %v464
  %v1078 = vpop.f32.mrb[0].mxu0
  %v1079 = vadd.f32 %v918, %v1078
  %v1080 = vpop.f32.mrb[0].mxu0
  %v1081 = vpop.f32.mrb[0].mxu0
  %v1082 = vadd.f32 %v921, %v1081
  %v1083 = vpop.f32.mrb[0].mxu0
  %1084 = vmatprep.mubr.bf16.mxu0 %v470
  %1085 = vmatmul.mubr.bf16.gmra.mrb[0].mxu0 %v469
  %v1086 = vpop.f32.mrb[0].mxu0
  %v1087 = vadd.f32 %v926, %v1086
  %v1088 = vpop.f32.mrb[0].mxu0
  %v1089 = vpop.f32.mrb[0].mxu0
  %v1090 = vadd.f32 %v929, %v1089
  %v1091 = vpop.f32.mrb[0].mxu0
  %1092 = vmatprep.mubr.bf16.mxu0 %v475
  %1093 = vmatmul.mubr.bf16.gmra.mrb[0].mxu0 %v474
  %v1094 = vpop.f32.mrb[0].mxu0
  %v1095 = vadd.f32 %v934, %v1094
  %v1096 = vpop.f32.mrb[0].mxu0
  %v1097 = vpop.f32.mrb[0].mxu0
  %v1098 = vadd.f32 %v937, %v1097
  %v1099 = vpop.f32.mrb[0].mxu0
  %1100 = vmatprep.mubr.bf16.mxu0 %v480
  %1101 = vmatmul.mubr.bf16.gmra.mrb[0].mxu0 %v479
  %v1102 = vpop.f32.mrb[0].mxu0
  %v1103 = vadd.f32 %v942, %v1102
  %v1104 = vpop.f32.mrb[0].mxu0
  %v1105 = vpop.f32.mrb[0].mxu0
  %v1106 = vadd.f32 %v945, %v1105
  %v1107 = vpop.f32.mrb[0].mxu0
  %1108 = vmatprep.mubr.bf16.mxu0 %v485
  %1109 = vmatmul.mubr.bf16.gmra.mrb[0].mxu0 %v484
  %v1110 = vpop.f32.mrb[0].mxu0
  %v1111 = vadd.f32 %v950, %v1110
  %v1112 = vpop.f32.mrb[0].mxu0
  %v1113 = vpop.f32.mrb[0].mxu0
  %v1114 = vadd.f32 %v953, %v1113
  %v1115 = vpop.f32.mrb[0].mxu0
  %1116 = vmatprep.mubr.bf16.mxu0 %v490
  %1117 = vmatmul.mubr.bf16.gmra.mrb[0].mxu0 %v489
  %v1118 = vpop.f32.mrb[0].mxu0
  %v1119 = vadd.f32 %v958, %v1118
  %v1120 = vpop.f32.mrb[0].mxu0
  %v1121 = vpop.f32.mrb[0].mxu0
  %v1122 = vadd.f32 %v961, %v1121
  %v1123 = vpop.f32.mrb[0].mxu0
  %1124 = vmatprep.mubr.bf16.mxu0 %v495
  %1125 = vmatmul.mubr.bf16.gmra.mrb[0].mxu0 %v494
  %v1126 = vpop.f32.mrb[0].mxu0
  %v1127 = vadd.f32 %v966, %v1126
  %v1128 = vpop.f32.mrb[0].mxu0
  %v1129 = vpop.f32.mrb[0].mxu0
  %v1130 = vadd.f32 %v969, %v1129
  %v1131 = vpop.f32.mrb[0].mxu0
  %1132 = vmatprep.mubr.bf16.mxu0 %v500
  %1133 = vmatmul.mubr.bf16.gmra.mrb[0].mxu0 %v499
  %v1134 = vpop.f32.mrb[0].mxu0
  %v1135 = vadd.f32 %v974, %v1134
  %v1136 = vpop.f32.mrb[0].mxu0
  %v1137 = vpop.f32.mrb[0].mxu0
  %v1138 = vadd.f32 %v977, %v1137
  %v1139 = vpop.f32.mrb[0].mxu0
  %1140 = vmatprep.mubr.bf16.mxu0 %v505
  %1141 = vmatmul.mubr.bf16.gmra.mrb[0].mxu0 %v504
  %v1142 = vpop.f32.mrb[0].mxu0
  %v1143 = vadd.f32 %v982, %v1142
  %v1144 = vpop.f32.mrb[0].mxu0
  %v1145 = vpop.f32.mrb[0].mxu0
  %v1146 = vadd.f32 %v985, %v1145
  %v1147 = vpop.f32.mrb[0].mxu0
  %1148 = vmatprep.mubr.bf16.mxu0 %v510
  %1149 = vmatmul.mubr.bf16.gmra.mrb[0].mxu0 %v509
  %v1150 = vpop.f32.mrb[0].mxu0
  %v1151 = vadd.f32 %v990, %v1150
  %v1152 = vpop.f32.mrb[0].mxu0
  %v1153 = vpop.f32.mrb[0].mxu0
  %v1154 = vadd.f32 %v993, %v1153
  %v1155 = vpop.f32.mrb[0].mxu0
  %1156 = vmatprep.mubr.bf16.mxu0 %v515
  %1157 = vmatmul.mubr.bf16.gmra.mrb[0].mxu0 %v514
  %v1158 = vpop.f32.mrb[0].mxu0
  %v1159 = vadd.f32 %v998, %v1158
  %v1160 = vpop.f32.mrb[0].mxu0
  %v1161 = vpop.f32.mrb[0].mxu0
  %v1162 = vadd.f32 %v1001, %v1161
  %v1163 = vpop.f32.mrb[0].mxu0
  %1164 = vmatprep.mubr.bf16.mxu0 %v520
  %1165 = vmatmul.mubr.bf16.gmra.mrb[0].mxu0 %v519
  %v1166 = vpop.f32.mrb[0].mxu0
  %v1167 = vadd.f32 %v1006, %v1166
  %v1168 = vpop.f32.mrb[0].mxu0
  %v1169 = vpop.f32.mrb[0].mxu0
  %v1170 = vadd.f32 %v1009, %v1169
  %v1171 = vpop.f32.mrb[0].mxu0
  %1172 = vdwg.mxu0
  %1173 = vmatprep.subr.bf16.mxu0 0
  %1174 = vmatpush1.bf16.msra.mxu0 %v762
  %1175 = vmatprep.subr.bf16.mxu0 0
  %1176 = vmatpush1.bf16.msra.mxu0 %v763
  %1177 = vmatprep.subr.bf16.mxu0 0
  %1178 = vmatpush1.bf16.msra.mxu0 %v764
  %1179 = vmatprep.subr.bf16.mxu0 0
  %1180 = vmatpush1.bf16.msra.mxu0 %v765
  %1181 = vmatprep.subr.bf16.mxu0 0
  %1182 = vmatpush1.bf16.msra.mxu0 0
  %1183 = vmatprep.subr.bf16.mxu0 0
  %1184 = vmatpush1.bf16.msra.mxu0 0
  %1185 = vmatprep.subr.bf16.mxu0 0
  %1186 = vmatpush1.bf16.msra.mxu0 0
  %1187 = vmatprep.subr.bf16.mxu0 0
  %1188 = vmatpush1.bf16.msra.mxu0 0
  %1189 = vmatprep.subr.bf16.mxu0 0
  %1190 = vmatpush1.bf16.msra.mxu0 0
  %1191 = vmatprep.subr.bf16.mxu0 0
  %1192 = vmatpush1.bf16.msra.mxu0 0
  %1193 = vmatprep.subr.bf16.mxu0 0
  %1194 = vmatpush1.bf16.msra.mxu0 0
  %1195 = vmatprep.subr.bf16.mxu0 0
  %1196 = vmatpush1.bf16.msra.mxu0 0
  %1197 = vmatprep.subr.bf16.mxu0 0
  %1198 = vmatpush1.bf16.msra.mxu0 0
  %1199 = vmatprep.subr.bf16.mxu0 0
  %1200 = vmatpush1.bf16.msra.mxu0 0
  %1201 = vmatprep.subr.bf16.mxu0 0
  %1202 = vmatpush1.bf16.msra.mxu0 0
  %1203 = vmatprep.subr.bf16.mxu0 0
  %1204 = vmatpush1.bf16.msra.mxu0 0
  %1205 = vmatprep.mubr.bf16.mxu0 0
  %1206 = vmatmul.mubr.bf16.gmra.mrb[0].mxu0 %v804
  %v1207 = vpop.f32.mrb[0].mxu0
  %v1208 = vadd.f32 %v1047, %v1207
  %v1209 = vpop.f32.mrb[0].mxu0
  %v1210 = vpop.f32.mrb[0].mxu0
  %v1211 = vadd.f32 %v1050, %v1210
  %v1212 = vpop.f32.mrb[0].mxu0
  %1213 = vmatprep.mubr.bf16.mxu0 0
  %1214 = vmatmul.mubr.bf16.gmra.mrb[0].mxu0 %v807
  %v1215 = vpop.f32.mrb[0].mxu0
  %v1216 = vadd.f32 %v1055, %v1215
  %v1217 = vpop.f32.mrb[0].mxu0
  %v1218 = vpop.f32.mrb[0].mxu0
  %v1219 = vadd.f32 %v1058, %v1218
  %v1220 = vpop.f32.mrb[0].mxu0
  %1221 = vmatprep.mubr.bf16.mxu0 0
  %1222 = vmatmul.mubr.bf16.gmra.mrb[0].mxu0 %v810
  %v1223 = vpop.f32.mrb[0].mxu0
  %v1224 = vadd.f32 %v1063, %v1223
  %v1225 = vpop.f32.mrb[0].mxu0
  %v1226 = vpop.f32.mrb[0].mxu0
  %v1227 = vadd.f32 %v1066, %v1226
  %v1228 = vpop.f32.mrb[0].mxu0
  %1229 = vmatprep.mubr.bf16.mxu0 0
  %1230 = vmatmul.mubr.bf16.gmra.mrb[0].mxu0 %v813
  %v1231 = vpop.f32.mrb[0].mxu0
  %v1232 = vadd.f32 %v1071, %v1231
  %v1233 = vpop.f32.mrb[0].mxu0
  %v1234 = vpop.f32.mrb[0].mxu0
  %v1235 = vadd.f32 %v1074, %v1234
  %v1236 = vpop.f32.mrb[0].mxu0
  %1237 = vmatprep.mubr.bf16.mxu0 0
  %1238 = vmatmul.mubr.bf16.gmra.mrb[0].mxu0 %v816
  %v1239 = vpop.f32.mrb[0].mxu0
  %v1240 = vadd.f32 %v1079, %v1239
  %v1241 = vpop.f32.mrb[0].mxu0
  %v1242 = vpop.f32.mrb[0].mxu0
  %v1243 = vadd.f32 %v1082, %v1242
  %v1244 = vpop.f32.mrb[0].mxu0
  %1245 = vmatprep.mubr.bf16.mxu0 0
  %1246 = vmatmul.mubr.bf16.gmra.mrb[0].mxu0 %v819
  %v1247 = vpop.f32.mrb[0].mxu0
  %v1248 = vadd.f32 %v1087, %v1247
  %v1249 = vpop.f32.mrb[0].mxu0
  %v1250 = vpop.f32.mrb[0].mxu0
  %v1251 = vadd.f32 %v1090, %v1250
  %v1252 = vpop.f32.mrb[0].mxu0
  %1253 = vmatprep.mubr.bf16.mxu0 0
  %1254 = vmatmul.mubr.bf16.gmra.mrb[0].mxu0 %v822
  %v1255 = vpop.f32.mrb[0].mxu0
  %v1256 = vadd.f32 %v1095, %v1255
  %v1257 = vpop.f32.mrb[0].mxu0
  %v1258 = vpop.f32.mrb[0].mxu0
  %v1259 = vadd.f32 %v1098, %v1258
  %v1260 = vpop.f32.mrb[0].mxu0
  %1261 = vmatprep.mubr.bf16.mxu0 0
  %1262 = vmatmul.mubr.bf16.gmra.mrb[0].mxu0 %v825
  %v1263 = vpop.f32.mrb[0].mxu0
  %v1264 = vadd.f32 %v1103, %v1263
  %v1265 = vpop.f32.mrb[0].mxu0
  %v1266 = vpop.f32.mrb[0].mxu0
  %v1267 = vadd.f32 %v1106, %v1266
  %v1268 = vpop.f32.mrb[0].mxu0
  %1269 = vmatprep.mubr.bf16.mxu0 0
  %1270 = vmatmul.mubr.bf16.gmra.mrb[0].mxu0 %v828
  %v1271 = vpop.f32.mrb[0].mxu0
  %v1272 = vadd.f32 %v1111, %v1271
  %v1273 = vpop.f32.mrb[0].mxu0
  %v1274 = vpop.f32.mrb[0].mxu0
  %v1275 = vadd.f32 %v1114, %v1274
  %v1276 = vpop.f32.mrb[0].mxu0
  %1277 = vmatprep.mubr.bf16.mxu0 0
  %1278 = vmatmul.mubr.bf16.gmra.mrb[0].mxu0 %v831
  %v1279 = vpop.f32.mrb[0].mxu0
  %v1280 = vadd.f32 %v1119, %v1279
  %v1281 = vpop.f32.mrb[0].mxu0
  %v1282 = vpop.f32.mrb[0].mxu0
  %v1283 = vadd.f32 %v1122, %v1282
  %v1284 = vpop.f32.mrb[0].mxu0
  %1285 = vmatprep.mubr.bf16.mxu0 0
  %1286 = vmatmul.mubr.bf16.gmra.mrb[0].mxu0 %v834
  %v1287 = vpop.f32.mrb[0].mxu0
  %v1288 = vadd.f32 %v1127, %v1287
  %v1289 = vpop.f32.mrb[0].mxu0
  %v1290 = vpop.f32.mrb[0].mxu0
  %v1291 = vadd.f32 %v1130, %v1290
  %v1292 = vpop.f32.mrb[0].mxu0
  %1293 = vmatprep.mubr.bf16.mxu0 0
  %1294 = vmatmul.mubr.bf16.gmra.mrb[0].mxu0 %v837
  %v1295 = vpop.f32.mrb[0].mxu0
  %v1296 = vadd.f32 %v1135, %v1295
  %v1297 = vpop.f32.mrb[0].mxu0
  %v1298 = vpop.f32.mrb[0].mxu0
  %v1299 = vadd.f32 %v1138, %v1298
  %v1300 = vpop.f32.mrb[0].mxu0
  %1301 = vmatprep.mubr.bf16.mxu0 0
  %1302 = vmatmul.mubr.bf16.gmra.mrb[0].mxu0 %v840
  %v1303 = vpop.f32.mrb[0].mxu0
  %v1304 = vadd.f32 %v1143, %v1303
  %v1305 = vpop.f32.mrb[0].mxu0
  %v1306 = vpop.f32.mrb[0].mxu0
  %v1307 = vadd.f32 %v1146, %v1306
  %v1308 = vpop.f32.mrb[0].mxu0
  %1309 = vmatprep.mubr.bf16.mxu0 0
  %1310 = vmatmul.mubr.bf16.gmra.mrb[0].mxu0 %v843
  %v1311 = vpop.f32.mrb[0].mxu0
  %v1312 = vadd.f32 %v1151, %v1311
  %v1313 = vpop.f32.mrb[0].mxu0
  %v1314 = vpop.f32.mrb[0].mxu0
  %v1315 = vadd.f32 %v1154, %v1314
  %v1316 = vpop.f32.mrb[0].mxu0
  %1317 = vmatprep.mubr.bf16.mxu0 0
  %1318 = vmatmul.mubr.bf16.gmra.mrb[0].mxu0 %v846
  %v1319 = vpop.f32.mrb[0].mxu0
  %v1320 = vadd.f32 %v1159, %v1319
  %v1321 = vpop.f32.mrb[0].mxu0
  %v1322 = vpop.f32.mrb[0].mxu0
  %v1323 = vadd.f32 %v1162, %v1322
  %v1324 = vpop.f32.mrb[0].mxu0
  %1325 = vmatprep.mubr.bf16.mxu0 0
  %1326 = vmatmul.mubr.bf16.gmra.mrb[0].mxu0 %v849
  %v1327 = vpop.f32.mrb[0].mxu0
  %v1328 = vadd.f32 %v1167, %v1327
  %v1329 = vpop.f32.mrb[0].mxu0
  %v1330 = vpop.f32.mrb[0].mxu0
  %v1331 = vadd.f32 %v1170, %v1330
  %v1332 = vpop.f32.mrb[0].mxu0
  %1333 = vdwg.mxu0
  %v1334 = vadd.f32 %v1208, %v1211
  %v1335 = vadd.f32 %v1334, %v1216
  %v1336 = vadd.f32 %v1335, %v1219
  %v1337 = vadd.f32 %v1336, %v1224
  %v1338 = vadd.f32 %v1337, %v1227
  %v1339 = vadd.f32 %v1338, %v1232
  %v1340 = vadd.f32 %v1339, %v1235
  %v1341 = vadd.f32 %v1340, %v1240
  %v1342 = vadd.f32 %v1341, %v1243
  %v1343 = vadd.f32 %v1342, %v1248
  %v1344 = vadd.f32 %v1343, %v1251
  %v1345 = vadd.f32 %v1344, %v1256
  %v1346 = vadd.f32 %v1345, %v1259
  %v1347 = vadd.f32 %v1346, %v1264
  %v1348 = vadd.f32 %v1347, %v1267
  %v1349 = vadd.f32 %v1348, %v1272
  %v1350 = vadd.f32 %v1349, %v1275
  %v1351 = vadd.f32 %v1350, %v1280
  %v1352 = vadd.f32 %v1351, %v1283
  %v1353 = vadd.f32 %v1352, %v1288
  %v1354 = vadd.f32 %v1353, %v1291
  %v1355 = vadd.f32 %v1354, %v1296
  %v1356 = vadd.f32 %v1355, %v1299
  %v1357 = vadd.f32 %v1356, %v1304
  %v1358 = vadd.f32 %v1357, %v1307
  %v1359 = vadd.f32 %v1358, %v1312
  %v1360 = vadd.f32 %v1359, %v1315
  %v1361 = vadd.f32 %v1360, %v1320
  %v1362 = vadd.f32 %v1361, %v1323
  %v1363 = vadd.f32 %v1362, %v1328
  %v1364 = vadd.f32 %v1363, %v1331
  %v1365 = vrot.slane %v1364, 4
  %v1366 = vadd.f32 %v1364, %v1365
  %v1367 = vrot.slane %v1366, 2
  %v1368 = vadd.f32 %v1366, %v1367
  %v1369 = vrot.slane %v1368, 1
  %v1370 = vadd.f32 %v1368, %v1369
  %v1371 = vmul.f32 %v1208, %v1208
  %v1372 = vmul.f32 %v1211, %v1211
  %v1373 = vmul.f32 %v1216, %v1216
  %v1374 = vmul.f32 %v1219, %v1219
  %v1375 = vmul.f32 %v1224, %v1224
  %v1376 = vmul.f32 %v1227, %v1227
  %v1377 = vmul.f32 %v1232, %v1232
  %v1378 = vmul.f32 %v1235, %v1235
  %v1379 = vmul.f32 %v1240, %v1240
  %v1380 = vmul.f32 %v1243, %v1243
  %v1381 = vmul.f32 %v1248, %v1248
  %v1382 = vmul.f32 %v1251, %v1251
  %v1383 = vmul.f32 %v1256, %v1256
  %v1384 = vmul.f32 %v1259, %v1259
  %v1385 = vmul.f32 %v1264, %v1264
  %v1386 = vmul.f32 %v1267, %v1267
  %v1387 = vmul.f32 %v1272, %v1272
  %v1388 = vmul.f32 %v1275, %v1275
  %v1389 = vmul.f32 %v1280, %v1280
  %v1390 = vmul.f32 %v1283, %v1283
  %v1391 = vmul.f32 %v1288, %v1288
  %v1392 = vmul.f32 %v1291, %v1291
  %v1393 = vmul.f32 %v1296, %v1296
  %v1394 = vmul.f32 %v1299, %v1299
  %v1395 = vmul.f32 %v1304, %v1304
  %v1396 = vmul.f32 %v1307, %v1307
  %v1397 = vmul.f32 %v1312, %v1312
  %v1398 = vmul.f32 %v1315, %v1315
  %v1399 = vmul.f32 %v1320, %v1320
  %v1400 = vmul.f32 %v1323, %v1323
  %v1401 = vmul.f32 %v1328, %v1328
  %v1402 = vmul.f32 %v1331, %v1331
  %v1403 = vadd.f32 %v1371, %v1372
  %v1404 = vadd.f32 %v1403, %v1373
  %v1405 = vadd.f32 %v1404, %v1374
  %v1406 = vadd.f32 %v1405, %v1375
  %v1407 = vadd.f32 %v1406, %v1376
  %v1408 = vadd.f32 %v1407, %v1377
  %v1409 = vadd.f32 %v1408, %v1378
  %v1410 = vadd.f32 %v1409, %v1379
  %v1411 = vadd.f32 %v1410, %v1380
  %v1412 = vadd.f32 %v1411, %v1381
  %v1413 = vadd.f32 %v1412, %v1382
  %v1414 = vadd.f32 %v1413, %v1383
  %v1415 = vadd.f32 %v1414, %v1384
  %v1416 = vadd.f32 %v1415, %v1385
  %v1417 = vadd.f32 %v1416, %v1386
  %v1418 = vadd.f32 %v1417, %v1387
  %v1419 = vadd.f32 %v1418, %v1388
  %v1420 = vadd.f32 %v1419, %v1389
  %v1421 = vadd.f32 %v1420, %v1390
  %v1422 = vadd.f32 %v1421, %v1391
  %v1423 = vadd.f32 %v1422, %v1392
  %v1424 = vadd.f32 %v1423, %v1393
  %v1425 = vadd.f32 %v1424, %v1394
  %v1426 = vadd.f32 %v1425, %v1395
  %v1427 = vadd.f32 %v1426, %v1396
  %v1428 = vadd.f32 %v1427, %v1397
  %v1429 = vadd.f32 %v1428, %v1398
  %v1430 = vadd.f32 %v1429, %v1399
  %v1431 = vadd.f32 %v1430, %v1400
  %v1432 = vadd.f32 %v1431, %v1401
  %v1433 = vadd.f32 %v1432, %v1402
  %v1434 = vrot.slane %v1433, 4
  %v1435 = vadd.f32 %v1433, %v1434
  %v1436 = vrot.slane %v1435, 2
  %v1437 = vadd.f32 %v1435, %v1436
  %v1438 = vrot.slane %v1437, 1
  %v1439 = vadd.f32 %v1437, %v1438
  %1440 = vrot.lane.b32.xlu0 %v1370, 16
  %v1441 = vpop.permute.xlu0 %1440
  %v1442 = vadd.f32 %v1370, %v1441
  %1443 = vrot.lane.b32.xlu0 %v1439, 16
  %v1444 = vpop.permute.xlu0 %1443
  %v1445 = vadd.f32 %v1439, %v1444
  %1446 = vrot.lane.b32.xlu0 %v1442, 32
  %v1447 = vpop.permute.xlu0 %1446
  %v1448 = vadd.f32 %v1442, %v1447
  %1449 = vrot.lane.b32.xlu0 %v1445, 32
  %v1450 = vpop.permute.xlu0 %1449
  %v1451 = vadd.f32 %v1445, %v1450
  %1452 = vrot.lane.b32.xlu0 %v1448, 64
  %v1453 = vpop.permute.xlu0 %1452
  %v1454 = vadd.f32 %v1448, %v1453
  %1455 = vrot.lane.b32.xlu0 %v1451, 64
  %v1456 = vpop.permute.xlu0 %1455
  %v1457 = vadd.f32 %v1451, %v1456
  %v1458 = vmul.f32 %v1454, 0.00048828125
  %v1459 = vmul.f32 %v1457, 0.00048828125
  %v1460 = vmul.f32 %v1458, %v1458
  %v1461 = vsub.f32 %v1459, %v1460
  %v1462 = vmax.f32 %v1461, 0.0
  %v1463 = vld [vmem:[%s2] sm:$0x1]
  %v1464 = vadd.f32 %v1462, 1e-05
  %v1465 = vrsqrt.pop %v1464
  %v1466 = vmul.f32 %v1463, %v1465
  %v1467 = vld [vmem:[%s3] sm:$0x1]
  %v1468 = vmul.f32 %v1458, %v1466
  %v1469 = vsub.f32 %v1467, %v1468
  %v1471 = vlaneseq
  %v1472 = vshrl.u32 %v1471, 7
  %v1473 = vsub.s32 0, %v1472
  %v1474 = vrot.slane %v1466, %v1473
  %v1476 = vmul.f32 %v1208, %v1474
  %v1477 = vmul.f32 %v1211, %v1474
  %v1478 = vmul.f32 %v1216, %v1474
  %v1479 = vmul.f32 %v1219, %v1474
  %v1480 = vmul.f32 %v1224, %v1474
  %v1481 = vmul.f32 %v1227, %v1474
  %v1482 = vmul.f32 %v1232, %v1474
  %v1483 = vmul.f32 %v1235, %v1474
  %v1484 = vmul.f32 %v1240, %v1474
  %v1485 = vmul.f32 %v1243, %v1474
  %v1486 = vmul.f32 %v1248, %v1474
  %v1487 = vmul.f32 %v1251, %v1474
  %v1488 = vmul.f32 %v1256, %v1474
  %v1489 = vmul.f32 %v1259, %v1474
  %v1490 = vmul.f32 %v1264, %v1474
  %v1491 = vmul.f32 %v1267, %v1474
  %v1492 = vmul.f32 %v1272, %v1474
  %v1493 = vmul.f32 %v1275, %v1474
  %v1494 = vmul.f32 %v1280, %v1474
  %v1495 = vmul.f32 %v1283, %v1474
  %v1496 = vmul.f32 %v1288, %v1474
  %v1497 = vmul.f32 %v1291, %v1474
  %v1498 = vmul.f32 %v1296, %v1474
  %v1499 = vmul.f32 %v1299, %v1474
  %v1500 = vmul.f32 %v1304, %v1474
  %v1501 = vmul.f32 %v1307, %v1474
  %v1502 = vmul.f32 %v1312, %v1474
  %v1503 = vmul.f32 %v1315, %v1474
  %v1504 = vmul.f32 %v1320, %v1474
  %v1505 = vmul.f32 %v1323, %v1474
  %v1506 = vmul.f32 %v1328, %v1474
  %v1507 = vmul.f32 %v1331, %v1474
  %v1509 = vlaneseq
  %v1510 = vshrl.u32 %v1509, 7
  %v1511 = vsub.s32 0, %v1510
  %v1512 = vrot.slane %v1469, %v1511
  %v1514 = vadd.f32 %v1476, %v1512
  %v1515 = vadd.f32 %v1477, %v1512
  %v1516 = vadd.f32 %v1478, %v1512
  %v1517 = vadd.f32 %v1479, %v1512
  %v1518 = vadd.f32 %v1480, %v1512
  %v1519 = vadd.f32 %v1481, %v1512
  %v1520 = vadd.f32 %v1482, %v1512
  %v1521 = vadd.f32 %v1483, %v1512
  %v1522 = vadd.f32 %v1484, %v1512
  %v1523 = vadd.f32 %v1485, %v1512
  %v1524 = vadd.f32 %v1486, %v1512
  %v1525 = vadd.f32 %v1487, %v1512
  %v1526 = vadd.f32 %v1488, %v1512
  %v1527 = vadd.f32 %v1489, %v1512
  %v1528 = vadd.f32 %v1490, %v1512
  %v1529 = vadd.f32 %v1491, %v1512
  %v1530 = vadd.f32 %v1492, %v1512
  %v1531 = vadd.f32 %v1493, %v1512
  %v1532 = vadd.f32 %v1494, %v1512
  %v1533 = vadd.f32 %v1495, %v1512
  %v1534 = vadd.f32 %v1496, %v1512
  %v1535 = vadd.f32 %v1497, %v1512
  %v1536 = vadd.f32 %v1498, %v1512
  %v1537 = vadd.f32 %v1499, %v1512
  %v1538 = vadd.f32 %v1500, %v1512
  %v1539 = vadd.f32 %v1501, %v1512
  %v1540 = vadd.f32 %v1502, %v1512
  %v1541 = vadd.f32 %v1503, %v1512
  %v1542 = vadd.f32 %v1504, %v1512
  %v1543 = vadd.f32 %v1505, %v1512
  %v1544 = vadd.f32 %v1506, %v1512
  %v1545 = vadd.f32 %v1507, %v1512
  %vm1546 = vcmp.ge.f32.partialorder %v1514, 0.0
  %vm1547 = vcmp.ge.f32.partialorder %v1515, 0.0
  %vm1548 = vcmp.ge.f32.partialorder %v1516, 0.0
  %vm1549 = vcmp.ge.f32.partialorder %v1517, 0.0
  %vm1550 = vcmp.ge.f32.partialorder %v1518, 0.0
  %vm1551 = vcmp.ge.f32.partialorder %v1519, 0.0
  %vm1552 = vcmp.ge.f32.partialorder %v1520, 0.0
  %vm1553 = vcmp.ge.f32.partialorder %v1521, 0.0
  %vm1554 = vcmp.ge.f32.partialorder %v1522, 0.0
  %vm1555 = vcmp.ge.f32.partialorder %v1523, 0.0
  %vm1556 = vcmp.ge.f32.partialorder %v1524, 0.0
  %vm1557 = vcmp.ge.f32.partialorder %v1525, 0.0
  %vm1558 = vcmp.ge.f32.partialorder %v1526, 0.0
  %vm1559 = vcmp.ge.f32.partialorder %v1527, 0.0
  %vm1560 = vcmp.ge.f32.partialorder %v1528, 0.0
  %vm1561 = vcmp.ge.f32.partialorder %v1529, 0.0
  %vm1562 = vcmp.ge.f32.partialorder %v1530, 0.0
  %vm1563 = vcmp.ge.f32.partialorder %v1531, 0.0
  %vm1564 = vcmp.ge.f32.partialorder %v1532, 0.0
  %vm1565 = vcmp.ge.f32.partialorder %v1533, 0.0
  %vm1566 = vcmp.ge.f32.partialorder %v1534, 0.0
  %vm1567 = vcmp.ge.f32.partialorder %v1535, 0.0
  %vm1568 = vcmp.ge.f32.partialorder %v1536, 0.0
  %vm1569 = vcmp.ge.f32.partialorder %v1537, 0.0
  %vm1570 = vcmp.ge.f32.partialorder %v1538, 0.0
  %vm1571 = vcmp.ge.f32.partialorder %v1539, 0.0
  %vm1572 = vcmp.ge.f32.partialorder %v1540, 0.0
  %vm1573 = vcmp.ge.f32.partialorder %v1541, 0.0
  %vm1574 = vcmp.ge.f32.partialorder %v1542, 0.0
  %vm1575 = vcmp.ge.f32.partialorder %v1543, 0.0
  %vm1576 = vcmp.ge.f32.partialorder %v1544, 0.0
  %vm1577 = vcmp.ge.f32.partialorder %v1545, 0.0
  %v1578 = vmul.f32 %v1514, 0.01
  %v1579 = vmul.f32 %v1515, 0.01
  %v1580 = vmul.f32 %v1516, 0.01
  %v1581 = vmul.f32 %v1517, 0.01
  %v1582 = vmul.f32 %v1518, 0.01
  %v1583 = vmul.f32 %v1519, 0.01
  %v1584 = vmul.f32 %v1520, 0.01
  %v1585 = vmul.f32 %v1521, 0.01
  %v1586 = vmul.f32 %v1522, 0.01
  %v1587 = vmul.f32 %v1523, 0.01
  %v1588 = vmul.f32 %v1524, 0.01
  %v1589 = vmul.f32 %v1525, 0.01
  %v1590 = vmul.f32 %v1526, 0.01
  %v1591 = vmul.f32 %v1527, 0.01
  %v1592 = vmul.f32 %v1528, 0.01
  %v1593 = vmul.f32 %v1529, 0.01
  %v1594 = vmul.f32 %v1530, 0.01
  %v1595 = vmul.f32 %v1531, 0.01
  %v1596 = vmul.f32 %v1532, 0.01
  %v1597 = vmul.f32 %v1533, 0.01
  %v1598 = vmul.f32 %v1534, 0.01
  %v1599 = vmul.f32 %v1535, 0.01
  %v1600 = vmul.f32 %v1536, 0.01
  %v1601 = vmul.f32 %v1537, 0.01
  %v1602 = vmul.f32 %v1538, 0.01
  %v1603 = vmul.f32 %v1539, 0.01
  %v1604 = vmul.f32 %v1540, 0.01
  %v1605 = vmul.f32 %v1541, 0.01
  %v1606 = vmul.f32 %v1542, 0.01
  %v1607 = vmul.f32 %v1543, 0.01
  %v1608 = vmul.f32 %v1544, 0.01
  %v1609 = vmul.f32 %v1545, 0.01
  %v1610 = vsel %vm1546, %v1514, %v1578
  %v1611 = vsel %vm1547, %v1515, %v1579
  %v1612 = vsel %vm1548, %v1516, %v1580
  %v1613 = vsel %vm1549, %v1517, %v1581
  %v1614 = vsel %vm1550, %v1518, %v1582
  %v1615 = vsel %vm1551, %v1519, %v1583
  %v1616 = vsel %vm1552, %v1520, %v1584
  %v1617 = vsel %vm1553, %v1521, %v1585
  %v1618 = vsel %vm1554, %v1522, %v1586
  %v1619 = vsel %vm1555, %v1523, %v1587
  %v1620 = vsel %vm1556, %v1524, %v1588
  %v1621 = vsel %vm1557, %v1525, %v1589
  %v1622 = vsel %vm1558, %v1526, %v1590
  %v1623 = vsel %vm1559, %v1527, %v1591
  %v1624 = vsel %vm1560, %v1528, %v1592
  %v1625 = vsel %vm1561, %v1529, %v1593
  %v1626 = vsel %vm1562, %v1530, %v1594
  %v1627 = vsel %vm1563, %v1531, %v1595
  %v1628 = vsel %vm1564, %v1532, %v1596
  %v1629 = vsel %vm1565, %v1533, %v1597
  %v1630 = vsel %vm1566, %v1534, %v1598
  %v1631 = vsel %vm1567, %v1535, %v1599
  %v1632 = vsel %vm1568, %v1536, %v1600
  %v1633 = vsel %vm1569, %v1537, %v1601
  %v1634 = vsel %vm1570, %v1538, %v1602
  %v1635 = vsel %vm1571, %v1539, %v1603
  %v1636 = vsel %vm1572, %v1540, %v1604
  %v1637 = vsel %vm1573, %v1541, %v1605
  %v1638 = vsel %vm1574, %v1542, %v1606
  %v1639 = vsel %vm1575, %v1543, %v1607
  %v1640 = vsel %vm1576, %v1544, %v1608
  %v1641 = vsel %vm1577, %v1545, %v1609
  %v1642 = vpack.c.bf16 %v1611, %v1610
  %v1643 = vpack.c.bf16 %v1613, %v1612
  %v1644 = vpack.c.bf16 %v1615, %v1614
  %v1645 = vpack.c.bf16 %v1617, %v1616
  %v1646 = vpack.c.bf16 %v1619, %v1618
  %v1647 = vpack.c.bf16 %v1621, %v1620
  %v1648 = vpack.c.bf16 %v1623, %v1622
  %v1649 = vpack.c.bf16 %v1625, %v1624
  %v1650 = vpack.c.bf16 %v1627, %v1626
  %v1651 = vpack.c.bf16 %v1629, %v1628
  %v1652 = vpack.c.bf16 %v1631, %v1630
  %v1653 = vpack.c.bf16 %v1633, %v1632
  %v1654 = vpack.c.bf16 %v1635, %v1634
  %v1655 = vpack.c.bf16 %v1637, %v1636
  %v1656 = vpack.c.bf16 %v1639, %v1638
  %v1657 = vpack.c.bf16 %v1641, %v1640
  %v1674 = vunpack.c.l.b16 %v1642
  %v1675 = vunpack.c.h.b16 %v1642
  %v1676 = vunpack.c.l.b16 %v1643
  %v1677 = vunpack.c.h.b16 %v1643
  %v1678 = vunpack.c.l.b16 %v1644
  %v1679 = vunpack.c.h.b16 %v1644
  %v1680 = vunpack.c.l.b16 %v1645
  %v1681 = vunpack.c.h.b16 %v1645
  %v1682 = vunpack.c.l.b16 %v1646
  %v1683 = vunpack.c.h.b16 %v1646
  %v1684 = vunpack.c.l.b16 %v1647
  %v1685 = vunpack.c.h.b16 %v1647
  %v1686 = vunpack.c.l.b16 %v1648
  %v1687 = vunpack.c.h.b16 %v1648
  %v1688 = vunpack.c.l.b16 %v1649
  %v1689 = vunpack.c.h.b16 %v1649
  %v1690 = vunpack.c.l.b16 %v1650
  %v1691 = vunpack.c.h.b16 %v1650
  %v1692 = vunpack.c.l.b16 %v1651
  %v1693 = vunpack.c.h.b16 %v1651
  %v1694 = vunpack.c.l.b16 %v1652
  %v1695 = vunpack.c.h.b16 %v1652
  %v1696 = vunpack.c.l.b16 %v1653
  %v1697 = vunpack.c.h.b16 %v1653
  %v1698 = vunpack.c.l.b16 %v1654
  %v1699 = vunpack.c.h.b16 %v1654
  %v1700 = vunpack.c.l.b16 %v1655
  %v1701 = vunpack.c.h.b16 %v1655
  %v1702 = vunpack.c.l.b16 %v1656
  %v1703 = vunpack.c.h.b16 %v1656
  %v1704 = vunpack.c.l.b16 %v1657
  %v1705 = vunpack.c.h.b16 %v1657
  %v1706 = vpack.c.b16 %v1674, %v1674
  %v1707 = vpack.c.b16 %v1675, %v1675
  %v1708 = vpack.c.b16 %v1676, %v1676
  %v1709 = vpack.c.b16 %v1677, %v1677
  %v1710 = vpack.c.b16 %v1678, %v1678
  %v1711 = vpack.c.b16 %v1679, %v1679
  %v1712 = vpack.c.b16 %v1680, %v1680
  %v1713 = vpack.c.b16 %v1681, %v1681
  %v1714 = vpack.c.b16 %v1682, %v1682
  %v1715 = vpack.c.b16 %v1683, %v1683
  %v1716 = vpack.c.b16 %v1684, %v1684
  %v1717 = vpack.c.b16 %v1685, %v1685
  %v1718 = vpack.c.b16 %v1686, %v1686
  %v1719 = vpack.c.b16 %v1687, %v1687
  %v1720 = vpack.c.b16 %v1688, %v1688
  %v1721 = vpack.c.b16 %v1689, %v1689
  %v1722 = vpack.c.b16 %v1690, %v1690
  %v1723 = vpack.c.b16 %v1691, %v1691
  %v1724 = vpack.c.b16 %v1692, %v1692
  %v1725 = vpack.c.b16 %v1693, %v1693
  %v1726 = vpack.c.b16 %v1694, %v1694
  %v1727 = vpack.c.b16 %v1695, %v1695
  %v1728 = vpack.c.b16 %v1696, %v1696
  %v1729 = vpack.c.b16 %v1697, %v1697
  %v1730 = vpack.c.b16 %v1698, %v1698
  %v1731 = vpack.c.b16 %v1699, %v1699
  %v1732 = vpack.c.b16 %v1700, %v1700
  %v1733 = vpack.c.b16 %v1701, %v1701
  %v1734 = vpack.c.b16 %v1702, %v1702
  %v1735 = vpack.c.b16 %v1703, %v1703
  %v1736 = vpack.c.b16 %v1704, %v1704
  %v1737 = vpack.c.b16 %v1705, %v1705
  %1770 = vst [vmem:[%s4] sm:$0xf] %v1706
  %1771 = vst [vmem:[%s4 + $0x4] sm:$0xf] %v1707
  %1772 = vst [vmem:[%s4 + $0x8] sm:$0xf] %v1708
  %1773 = vst [vmem:[%s4 + $0xc] sm:$0xf] %v1709
  %1774 = vst [vmem:[%s4 + $0x10] sm:$0xf] %v1710
  %1775 = vst [vmem:[%s4 + $0x14] sm:$0xf] %v1711
  %1776 = vst [vmem:[%s4 + $0x18] sm:$0xf] %v1712
  %1777 = vst [vmem:[%s4 + $0x1c] sm:$0xf] %v1713
  %1778 = vst [vmem:[%s4 + $0x20] sm:$0xf] %v1714
  %1779 = vst [vmem:[%s4 + $0x24] sm:$0xf] %v1715
  %1780 = vst [vmem:[%s4 + $0x28] sm:$0xf] %v1716
  %1781 = vst [vmem:[%s4 + $0x2c] sm:$0xf] %v1717
  %1782 = vst [vmem:[%s4 + $0x30] sm:$0xf] %v1718
  %1783 = vst [vmem:[%s4 + $0x34] sm:$0xf] %v1719
  %1784 = vst [vmem:[%s4 + $0x38] sm:$0xf] %v1720
  %1785 = vst [vmem:[%s4 + $0x3c] sm:$0xf] %v1721
  %1786 = vst [vmem:[%s4 + $0x40] sm:$0xf] %v1722
  %1787 = vst [vmem:[%s4 + $0x44] sm:$0xf] %v1723
  %1788 = vst [vmem:[%s4 + $0x48] sm:$0xf] %v1724
  %1789 = vst [vmem:[%s4 + $0x4c] sm:$0xf] %v1725
  %1790 = vst [vmem:[%s4 + $0x50] sm:$0xf] %v1726
  %1791 = vst [vmem:[%s4 + $0x54] sm:$0xf] %v1727
  %1792 = vst [vmem:[%s4 + $0x58] sm:$0xf] %v1728
  %1793 = vst [vmem:[%s4 + $0x5c] sm:$0xf] %v1729
  %1794 = vst [vmem:[%s4 + $0x60] sm:$0xf] %v1730
  %1795 = vst [vmem:[%s4 + $0x64] sm:$0xf] %v1731
  %1796 = vst [vmem:[%s4 + $0x68] sm:$0xf] %v1732
  %1797 = vst [vmem:[%s4 + $0x6c] sm:$0xf] %v1733
  %1798 = vst [vmem:[%s4 + $0x70] sm:$0xf] %v1734
  %1799 = vst [vmem:[%s4 + $0x74] sm:$0xf] %v1735
  %1800 = vst [vmem:[%s4 + $0x78] sm:$0xf] %v1736
  %1801 = vst [vmem:[%s4 + $0x7c] sm:$0xf] %v1737
  // Predicated region
  $region18: #{discriminator_forward.6} parent=0 // pred_check
    _
  $region19: #{discriminator_forward.6} parent=0 // pred_check_branch
    %1803 = sbr.rel (0) target = $region21
  $region20: #{discriminator_forward.6} parent=0 // pred_region
    _
  $region21: #{discriminator_forward.6} parent=0 // pred_fallthru
    _
  // Predicated region
  $region22: #{discriminator_forward.6} parent=0 // pred_check
    _
  $region23: #{discriminator_forward.6} parent=0 // pred_check_branch
    %1805 = sbr.rel (0) target = $region25
  $region24: #{discriminator_forward.6} parent=0 // pred_region
    _
  $region25: #{discriminator_forward.6} parent=0 // pred_fallthru
    _

// kernel: discriminator_forward.7
$region0: #{discriminator_forward.7}
  #allocation0 [shape = 'u32[]', space=smem, size = 0x4, offset = 0x4, fixed_abs, tag = 'smem constant byte address 0x4 - core index']
  #allocation1 [shape = 'u32[144,128]{1,0:T(1,128)}', space=vmem, size = 0x12000, scoped, tag = 'internal scratch']
  %s0 = inlined_call_operand.vmem [shape: bf16[128,576], index: 0, kind: input, shape index: {}]
  %s1 = inlined_call_operand.vmem [shape: bf16[576,128], index: 1, kind: input, shape index: {}]
  %s2 = inlined_call_operand.vmem [shape: f32[1,128], index: 2, kind: input, shape index: {}]
  %s3 = inlined_call_operand.vmem [shape: f32[1,128], index: 3, kind: input, shape index: {}]
  %s4 = inlined_call_operand.vmem [shape: bf16[128,128], index: 4, kind: output, shape index: {}]
  %s5 = sld [smem:[#allocation0]]
  $region26: #{discriminator_forward.7} parent=0
    _
  %s7 = ssub.s32 1, %s5
  %s8 = scalar_select 0, %s7, %s5
  // Predicated region
  $region2: #{discriminator_forward.7} parent=0 // pred_check
    _
  $region3: #{discriminator_forward.7} parent=0 // pred_check_branch
    %10 = sbr.rel (0) target = $region5
  $region4: #{discriminator_forward.7} parent=0 // pred_region
    _
  $region5: #{discriminator_forward.7} parent=0 // pred_fallthru
    _
  // Predicated region
  $region6: #{discriminator_forward.7} parent=0 // pred_check
    _
  $region7: #{discriminator_forward.7} parent=0 // pred_check_branch
    %12 = sbr.rel (0) target = $region9
  $region8: #{discriminator_forward.7} parent=0 // pred_region
    _
  $region9: #{discriminator_forward.7} parent=0 // pred_fallthru
    _
  // Predicated region
  $region10: #{discriminator_forward.7} parent=0 // pred_check
    _
  $region11: #{discriminator_forward.7} parent=0 // pred_check_branch
    %14 = sbr.rel (0) target = $region13
  $region12: #{discriminator_forward.7} parent=0 // pred_region
    _
  $region13: #{discriminator_forward.7} parent=0 // pred_fallthru
    _
  // Predicated region
  $region14: #{discriminator_forward.7} parent=0 // pred_check
    _
  $region15: #{discriminator_forward.7} parent=0 // pred_check_branch
    %16 = sbr.rel (0) target = $region17
  $region16: #{discriminator_forward.7} parent=0 // pred_region
    _
  $region17: #{discriminator_forward.7} parent=0 // pred_fallthru
    _
  %v18 = vld [vmem:[%s0] sm:$0xff]
  %v19 = vld [vmem:[%s0 + $0x8] sm:$0xff]
  %v20 = vld [vmem:[%s0 + $0x10] sm:$0xf]
  %v21 = vld [vmem:[%s0 + $0x14] sm:$0xff]
  %v22 = vld [vmem:[%s0 + $0x1c] sm:$0xff]
  %v23 = vld [vmem:[%s0 + $0x24] sm:$0xf]
  %v24 = vld [vmem:[%s0 + $0x28] sm:$0xff]
  %v25 = vld [vmem:[%s0 + $0x30] sm:$0xff]
  %v26 = vld [vmem:[%s0 + $0x38] sm:$0xf]
  %v27 = vld [vmem:[%s0 + $0x3c] sm:$0xff]
  %v28 = vld [vmem:[%s0 + $0x44] sm:$0xff]
  %v29 = vld [vmem:[%s0 + $0x4c] sm:$0xf]
  %v30 = vld [vmem:[%s0 + $0x50] sm:$0xff]
  %v31 = vld [vmem:[%s0 + $0x58] sm:$0xff]
  %v32 = vld [vmem:[%s0 + $0x60] sm:$0xf]
  %v33 = vld [vmem:[%s0 + $0x64] sm:$0xff]
  %v34 = vld [vmem:[%s0 + $0x6c] sm:$0xff]
  %v35 = vld [vmem:[%s0 + $0x74] sm:$0xf]
  %v36 = vld [vmem:[%s0 + $0x78] sm:$0xff]
  %v37 = vld [vmem:[%s0 + $0x80] sm:$0xff]
  %v38 = vld [vmem:[%s0 + $0x88] sm:$0xf]
  %v39 = vld [vmem:[%s0 + $0x8c] sm:$0xff]
  %v40 = vld [vmem:[%s0 + $0x94] sm:$0xff]
  %v41 = vld [vmem:[%s0 + $0x9c] sm:$0xf]
  %v42 = vld [vmem:[%s0 + $0xa0] sm:$0xff]
  %v43 = vld [vmem:[%s0 + $0xa8] sm:$0xff]
  %v44 = vld [vmem:[%s0 + $0xb0] sm:$0xf]
  %v45 = vld [vmem:[%s0 + $0xb4] sm:$0xff]
  %v46 = vld [vmem:[%s0 + $0xbc] sm:$0xff]
  %v47 = vld [vmem:[%s0 + $0xc4] sm:$0xf]
  %v48 = vld [vmem:[%s0 + $0xc8] sm:$0xff]
  %v49 = vld [vmem:[%s0 + $0xd0] sm:$0xff]
  %v50 = vld [vmem:[%s0 + $0xd8] sm:$0xf]
  %v51 = vld [vmem:[%s0 + $0xdc] sm:$0xff]
  %v52 = vld [vmem:[%s0 + $0xe4] sm:$0xff]
  %v53 = vld [vmem:[%s0 + $0xec] sm:$0xf]
  %v54 = vld [vmem:[%s0 + $0xf0] sm:$0xff]
  %v55 = vld [vmem:[%s0 + $0xf8] sm:$0xff]
  %v56 = vld [vmem:[%s0 + $0x100] sm:$0xf]
  %v57 = vld [vmem:[%s0 + $0x104] sm:$0xff]
  %v58 = vld [vmem:[%s0 + $0x10c] sm:$0xff]
  %v59 = vld [vmem:[%s0 + $0x114] sm:$0xf]
  %v60 = vld [vmem:[%s0 + $0x118] sm:$0xff]
  %v61 = vld [vmem:[%s0 + $0x120] sm:$0xff]
  %v62 = vld [vmem:[%s0 + $0x128] sm:$0xf]
  %v63 = vld [vmem:[%s0 + $0x12c] sm:$0xff]
  %v64 = vld [vmem:[%s0 + $0x134] sm:$0xff]
  %v65 = vld [vmem:[%s0 + $0x13c] sm:$0xf]
  %v66 = vld [vmem:[%s1] sm:$0xf]
  %v67 = vld [vmem:[%s1 + $0x4] sm:$0xf]
  %v68 = vld [vmem:[%s1 + $0x8] sm:$0xf]
  %v69 = vld [vmem:[%s1 + $0xc] sm:$0xf]
  %v70 = vld [vmem:[%s1 + $0x10] sm:$0xf]
  %v71 = vld [vmem:[%s1 + $0x14] sm:$0xf]
  %v72 = vld [vmem:[%s1 + $0x18] sm:$0xf]
  %v73 = vld [vmem:[%s1 + $0x1c] sm:$0xf]
  %v74 = vld [vmem:[%s1 + $0x20] sm:$0xf]
  %v75 = vld [vmem:[%s1 + $0x24] sm:$0xf]
  %v76 = vld [vmem:[%s1 + $0x28] sm:$0xf]
  %v77 = vld [vmem:[%s1 + $0x2c] sm:$0xf]
  %v78 = vld [vmem:[%s1 + $0x30] sm:$0xf]
  %v79 = vld [vmem:[%s1 + $0x34] sm:$0xf]
  %v80 = vld [vmem:[%s1 + $0x38] sm:$0xf]
  %v81 = vld [vmem:[%s1 + $0x3c] sm:$0xf]
  %v82 = vld [vmem:[%s1 + $0x40] sm:$0xf]
  %v83 = vld [vmem:[%s1 + $0x44] sm:$0xf]
  %v84 = vld [vmem:[%s1 + $0x48] sm:$0xf]
  %v85 = vld [vmem:[%s1 + $0x4c] sm:$0xf]
  %v86 = vld [vmem:[%s1 + $0x50] sm:$0xf]
  %v87 = vld [vmem:[%s1 + $0x54] sm:$0xf]
  %v88 = vld [vmem:[%s1 + $0x58] sm:$0xf]
  %v89 = vld [vmem:[%s1 + $0x5c] sm:$0xf]
  %v90 = vld [vmem:[%s1 + $0x60] sm:$0xf]
  %v91 = vld [vmem:[%s1 + $0x64] sm:$0xf]
  %v92 = vld [vmem:[%s1 + $0x68] sm:$0xf]
  %v93 = vld [vmem:[%s1 + $0x6c] sm:$0xf]
  %v94 = vld [vmem:[%s1 + $0x70] sm:$0xf]
  %v95 = vld [vmem:[%s1 + $0x74] sm:$0xf]
  %v96 = vld [vmem:[%s1 + $0x78] sm:$0xf]
  %v97 = vld [vmem:[%s1 + $0x7c] sm:$0xf]
  %v98 = vld [vmem:[%s1 + $0x80] sm:$0xf]
  %v99 = vld [vmem:[%s1 + $0x84] sm:$0xf]
  %v100 = vld [vmem:[%s1 + $0x88] sm:$0xf]
  %v101 = vld [vmem:[%s1 + $0x8c] sm:$0xf]
  %v102 = vld [vmem:[%s1 + $0x90] sm:$0xf]
  %v103 = vld [vmem:[%s1 + $0x94] sm:$0xf]
  %v104 = vld [vmem:[%s1 + $0x98] sm:$0xf]
  %v105 = vld [vmem:[%s1 + $0x9c] sm:$0xf]
  %v106 = vld [vmem:[%s1 + $0xa0] sm:$0xf]
  %v107 = vld [vmem:[%s1 + $0xa4] sm:$0xf]
  %v108 = vld [vmem:[%s1 + $0xa8] sm:$0xf]
  %v109 = vld [vmem:[%s1 + $0xac] sm:$0xf]
  %v110 = vld [vmem:[%s1 + $0xb0] sm:$0xf]
  %v111 = vld [vmem:[%s1 + $0xb4] sm:$0xf]
  %v112 = vld [vmem:[%s1 + $0xb8] sm:$0xf]
  %v113 = vld [vmem:[%s1 + $0xbc] sm:$0xf]
  %v114 = vld [vmem:[%s1 + $0xc0] sm:$0xf]
  %v115 = vld [vmem:[%s1 + $0xc4] sm:$0xf]
  %v116 = vld [vmem:[%s1 + $0xc8] sm:$0xf]
  %v117 = vld [vmem:[%s1 + $0xcc] sm:$0xf]
  %v118 = vld [vmem:[%s1 + $0xd0] sm:$0xf]
  %v119 = vld [vmem:[%s1 + $0xd4] sm:$0xf]
  %v120 = vld [vmem:[%s1 + $0xd8] sm:$0xf]
  %v121 = vld [vmem:[%s1 + $0xdc] sm:$0xf]
  %v122 = vld [vmem:[%s1 + $0xe0] sm:$0xf]
  %v123 = vld [vmem:[%s1 + $0xe4] sm:$0xf]
  %v124 = vld [vmem:[%s1 + $0xe8] sm:$0xf]
  %v125 = vld [vmem:[%s1 + $0xec] sm:$0xf]
  %v126 = vld [vmem:[%s1 + $0xf0] sm:$0xf]
  %v127 = vld [vmem:[%s1 + $0xf4] sm:$0xf]
  %v128 = vld [vmem:[%s1 + $0xf8] sm:$0xf]
  %v129 = vld [vmem:[%s1 + $0xfc] sm:$0xf]
  %v130 = vld [vmem:[%s1 + $0x100] sm:$0xf]
  %v131 = vld [vmem:[%s1 + $0x104] sm:$0xf]
  %v132 = vld [vmem:[%s1 + $0x108] sm:$0xf]
  %v133 = vld [vmem:[%s1 + $0x10c] sm:$0xf]
  %v134 = vld [vmem:[%s1 + $0x110] sm:$0xf]
  %v135 = vld [vmem:[%s1 + $0x114] sm:$0xf]
  %v136 = vld [vmem:[%s1 + $0x118] sm:$0xf]
  %v137 = vld [vmem:[%s1 + $0x11c] sm:$0xf]
  %v186 = vunpack.c.l.b16 %v18
  %v187 = vunpack.c.h.b16 %v18
  %v188 = vunpack.c.l.b16 %v19
  %v189 = vunpack.c.h.b16 %v19
  %v190 = vunpack.c.l.b16 %v20
  %v191 = vunpack.c.l.b16 %v21
  %v192 = vunpack.c.h.b16 %v21
  %v193 = vunpack.c.l.b16 %v22
  %v194 = vunpack.c.h.b16 %v22
  %v195 = vunpack.c.l.b16 %v23
  %v196 = vunpack.c.l.b16 %v24
  %v197 = vunpack.c.h.b16 %v24
  %v198 = vunpack.c.l.b16 %v25
  %v199 = vunpack.c.h.b16 %v25
  %v200 = vunpack.c.l.b16 %v26
  %v201 = vunpack.c.l.b16 %v27
  %v202 = vunpack.c.h.b16 %v27
  %v203 = vunpack.c.l.b16 %v28
  %v204 = vunpack.c.h.b16 %v28
  %v205 = vunpack.c.l.b16 %v29
  %v206 = vunpack.c.l.b16 %v30
  %v207 = vunpack.c.h.b16 %v30
  %v208 = vunpack.c.l.b16 %v31
  %v209 = vunpack.c.h.b16 %v31
  %v210 = vunpack.c.l.b16 %v32
  %v211 = vunpack.c.l.b16 %v33
  %v212 = vunpack.c.h.b16 %v33
  %v213 = vunpack.c.l.b16 %v34
  %v214 = vunpack.c.h.b16 %v34
  %v215 = vunpack.c.l.b16 %v35
  %v216 = vunpack.c.l.b16 %v36
  %v217 = vunpack.c.h.b16 %v36
  %v218 = vunpack.c.l.b16 %v37
  %v219 = vunpack.c.h.b16 %v37
  %v220 = vunpack.c.l.b16 %v38
  %v221 = vunpack.c.l.b16 %v39
  %v222 = vunpack.c.h.b16 %v39
  %v223 = vunpack.c.l.b16 %v40
  %v224 = vunpack.c.h.b16 %v40
  %v225 = vunpack.c.l.b16 %v41
  %v226 = vunpack.c.l.b16 %v42
  %v227 = vunpack.c.h.b16 %v42
  %v228 = vunpack.c.l.b16 %v43
  %v229 = vunpack.c.h.b16 %v43
  %v230 = vunpack.c.l.b16 %v44
  %v231 = vunpack.c.l.b16 %v45
  %v232 = vunpack.c.h.b16 %v45
  %v233 = vunpack.c.l.b16 %v46
  %v234 = vunpack.c.h.b16 %v46
  %v235 = vunpack.c.l.b16 %v47
  %v236 = vunpack.c.l.b16 %v48
  %v237 = vunpack.c.h.b16 %v48
  %v238 = vunpack.c.l.b16 %v49
  %v239 = vunpack.c.h.b16 %v49
  %v240 = vunpack.c.l.b16 %v50
  %v241 = vunpack.c.l.b16 %v51
  %v242 = vunpack.c.h.b16 %v51
  %v243 = vunpack.c.l.b16 %v52
  %v244 = vunpack.c.h.b16 %v52
  %v245 = vunpack.c.l.b16 %v53
  %v246 = vunpack.c.l.b16 %v54
  %v247 = vunpack.c.h.b16 %v54
  %v248 = vunpack.c.l.b16 %v55
  %v249 = vunpack.c.h.b16 %v55
  %v250 = vunpack.c.l.b16 %v56
  %v251 = vunpack.c.l.b16 %v57
  %v252 = vunpack.c.h.b16 %v57
  %v253 = vunpack.c.l.b16 %v58
  %v254 = vunpack.c.h.b16 %v58
  %v255 = vunpack.c.l.b16 %v59
  %v256 = vunpack.c.l.b16 %v60
  %v257 = vunpack.c.h.b16 %v60
  %v258 = vunpack.c.l.b16 %v61
  %v259 = vunpack.c.h.b16 %v61
  %v260 = vunpack.c.l.b16 %v62
  %v261 = vunpack.c.l.b16 %v63
  %v262 = vunpack.c.h.b16 %v63
  %v263 = vunpack.c.l.b16 %v64
  %v264 = vunpack.c.h.b16 %v64
  %v265 = vunpack.c.l.b16 %v65
  %v266 = vpack.c.b16 %v191, %v186
  %v267 = vpack.c.b16 %v192, %v187
  %v268 = vpack.c.b16 %v193, %v188
  %v269 = vpack.c.b16 %v194, %v189
  %v270 = vpack.c.b16 %v195, %v190
  %v271 = vpack.c.b16 %v201, %v196
  %v272 = vpack.c.b16 %v202, %v197
  %v273 = vpack.c.b16 %v203, %v198
  %v274 = vpack.c.b16 %v204, %v199
  %v275 = vpack.c.b16 %v205, %v200
  %v276 = vpack.c.b16 %v211, %v206
  %v277 = vpack.c.b16 %v212, %v207
  %v278 = vpack.c.b16 %v213, %v208
  %v279 = vpack.c.b16 %v214, %v209
  %v280 = vpack.c.b16 %v215, %v210
  %v281 = vpack.c.b16 %v221, %v216
  %v282 = vpack.c.b16 %v222, %v217
  %v283 = vpack.c.b16 %v223, %v218
  %v284 = vpack.c.b16 %v224, %v219
  %v285 = vpack.c.b16 %v225, %v220
  %v286 = vpack.c.b16 %v231, %v226
  %v287 = vpack.c.b16 %v232, %v227
  %v288 = vpack.c.b16 %v233, %v228
  %v289 = vpack.c.b16 %v234, %v229
  %v290 = vpack.c.b16 %v235, %v230
  %v291 = vpack.c.b16 %v241, %v236
  %v292 = vpack.c.b16 %v242, %v237
  %v293 = vpack.c.b16 %v243, %v238
  %v294 = vpack.c.b16 %v244, %v239
  %v295 = vpack.c.b16 %v245, %v240
  %v296 = vpack.c.b16 %v251, %v246
  %v297 = vpack.c.b16 %v252, %v247
  %v298 = vpack.c.b16 %v253, %v248
  %v299 = vpack.c.b16 %v254, %v249
  %v300 = vpack.c.b16 %v255, %v250
  %v301 = vpack.c.b16 %v261, %v256
  %v302 = vpack.c.b16 %v262, %v257
  %v303 = vpack.c.b16 %v263, %v258
  %v304 = vpack.c.b16 %v264, %v259
  %v305 = vpack.c.b16 %v265, %v260
  %v410 = vunpack.c.l.b16 %v66
  %v411 = vunpack.c.l.b16 %v67
  %v412 = vunpack.c.l.b16 %v68
  %v413 = vunpack.c.l.b16 %v69
  %v414 = vunpack.c.l.b16 %v70
  %v415 = vunpack.c.l.b16 %v71
  %v416 = vunpack.c.l.b16 %v72
  %v417 = vunpack.c.l.b16 %v73
  %v418 = vunpack.c.l.b16 %v74
  %v419 = vunpack.c.l.b16 %v75
  %v420 = vunpack.c.l.b16 %v76
  %v421 = vunpack.c.l.b16 %v77
  %v422 = vunpack.c.l.b16 %v78
  %v423 = vunpack.c.l.b16 %v79
  %v424 = vunpack.c.l.b16 %v80
  %v425 = vunpack.c.l.b16 %v81
  %v426 = vunpack.c.l.b16 %v82
  %v427 = vunpack.c.l.b16 %v83
  %v428 = vunpack.c.l.b16 %v84
  %v429 = vunpack.c.l.b16 %v85
  %v430 = vunpack.c.l.b16 %v86
  %v431 = vunpack.c.l.b16 %v87
  %v432 = vunpack.c.l.b16 %v88
  %v433 = vunpack.c.l.b16 %v89
  %v434 = vunpack.c.l.b16 %v90
  %v435 = vunpack.c.l.b16 %v91
  %v436 = vunpack.c.l.b16 %v92
  %v437 = vunpack.c.l.b16 %v93
  %v438 = vunpack.c.l.b16 %v94
  %v439 = vunpack.c.l.b16 %v95
  %v440 = vunpack.c.l.b16 %v96
  %v441 = vunpack.c.l.b16 %v97
  %v442 = vunpack.c.l.b16 %v98
  %v443 = vunpack.c.l.b16 %v99
  %v444 = vunpack.c.l.b16 %v100
  %v445 = vunpack.c.l.b16 %v101
  %v446 = vunpack.c.l.b16 %v102
  %v447 = vunpack.c.l.b16 %v103
  %v448 = vunpack.c.l.b16 %v104
  %v449 = vunpack.c.l.b16 %v105
  %v450 = vunpack.c.l.b16 %v106
  %v451 = vunpack.c.l.b16 %v107
  %v452 = vunpack.c.l.b16 %v108
  %v453 = vunpack.c.l.b16 %v109
  %v454 = vunpack.c.l.b16 %v110
  %v455 = vunpack.c.l.b16 %v111
  %v456 = vunpack.c.l.b16 %v112
  %v457 = vunpack.c.l.b16 %v113
  %v458 = vunpack.c.l.b16 %v114
  %v459 = vunpack.c.l.b16 %v115
  %v460 = vunpack.c.l.b16 %v116
  %v461 = vunpack.c.l.b16 %v117
  %v462 = vunpack.c.l.b16 %v118
  %v463 = vunpack.c.l.b16 %v119
  %v464 = vunpack.c.l.b16 %v120
  %v465 = vunpack.c.l.b16 %v121
  %v466 = vunpack.c.l.b16 %v122
  %v467 = vunpack.c.l.b16 %v123
  %v468 = vunpack.c.l.b16 %v124
  %v469 = vunpack.c.l.b16 %v125
  %v470 = vunpack.c.l.b16 %v126
  %v471 = vunpack.c.l.b16 %v127
  %v472 = vunpack.c.l.b16 %v128
  %v473 = vunpack.c.l.b16 %v129
  %v474 = vunpack.c.l.b16 %v130
  %v475 = vunpack.c.l.b16 %v131
  %v476 = vunpack.c.l.b16 %v132
  %v477 = vunpack.c.l.b16 %v133
  %v478 = vunpack.c.l.b16 %v134
  %v479 = vunpack.c.l.b16 %v135
  %v480 = vunpack.c.l.b16 %v136
  %v481 = vunpack.c.l.b16 %v137
  %v482 = vpack.c.b16 %v411, %v410
  %v483 = vpack.c.b16 %v413, %v412
  %v484 = vpack.c.b16 %v415, %v414
  %v485 = vpack.c.b16 %v417, %v416
  %v486 = vpack.c.b16 %v419, %v418
  %v487 = vpack.c.b16 %v421, %v420
  %v488 = vpack.c.b16 %v423, %v422
  %v489 = vpack.c.b16 %v425, %v424
  %v490 = vpack.c.b16 %v427, %v426
  %v491 = vpack.c.b16 %v429, %v428
  %v492 = vpack.c.b16 %v431, %v430
  %v493 = vpack.c.b16 %v433, %v432
  %v494 = vpack.c.b16 %v435, %v434
  %v495 = vpack.c.b16 %v437, %v436
  %v496 = vpack.c.b16 %v439, %v438
  %v497 = vpack.c.b16 %v441, %v440
  %v498 = vpack.c.b16 %v443, %v442
  %v499 = vpack.c.b16 %v445, %v444
  %v500 = vpack.c.b16 %v447, %v446
  %v501 = vpack.c.b16 %v449, %v448
  %v502 = vpack.c.b16 %v451, %v450
  %v503 = vpack.c.b16 %v453, %v452
  %v504 = vpack.c.b16 %v455, %v454
  %v505 = vpack.c.b16 %v457, %v456
  %v506 = vpack.c.b16 %v459, %v458
  %v507 = vpack.c.b16 %v461, %v460
  %v508 = vpack.c.b16 %v463, %v462
  %v509 = vpack.c.b16 %v465, %v464
  %v510 = vpack.c.b16 %v467, %v466
  %v511 = vpack.c.b16 %v469, %v468
  %v512 = vpack.c.b16 %v471, %v470
  %v513 = vpack.c.b16 %v473, %v472
  %v514 = vpack.c.b16 %v475, %v474
  %v515 = vpack.c.b16 %v477, %v476
  %v516 = vpack.c.b16 %v479, %v478
  %v517 = vpack.c.b16 %v481, %v480
  %vm554 = vcmask 523264
  %v556 = vsel %vm554, %v270, 0
  %v559 = vsel %vm554, %v275, 0
  %v562 = vsel %vm554, %v280, 0
  %v565 = vsel %vm554, %v285, 0
  %v568 = vsel %vm554, %v290, 0
  %v571 = vsel %vm554, %v295, 0
  %v574 = vsel %vm554, %v300, 0
  %v577 = vsel %vm554, %v305, 0
  %579 = vmatprep.subr.bf16.mxu0 0
  %580 = vmatpush1.bf16.msra.mxu0 %v482
  %581 = vmatprep.subr.bf16.mxu0 0
  %582 = vmatpush1.bf16.msra.mxu0 %v483
  %583 = vmatprep.subr.bf16.mxu0 0
  %584 = vmatpush1.bf16.msra.mxu0 %v484
  %585 = vmatprep.subr.bf16.mxu0 0
  %586 = vmatpush1.bf16.msra.mxu0 %v485
  %587 = vmatprep.subr.bf16.mxu0 0
  %588 = vmatpush1.bf16.msra.mxu0 %v486
  %589 = vmatprep.subr.bf16.mxu0 0
  %590 = vmatpush1.bf16.msra.mxu0 %v487
  %591 = vmatprep.subr.bf16.mxu0 0
  %592 = vmatpush1.bf16.msra.mxu0 %v488
  %593 = vmatprep.subr.bf16.mxu0 0
  %594 = vmatpush1.bf16.msra.mxu0 %v489
  %595 = vmatprep.subr.bf16.mxu0 0
  %596 = vmatpush1.bf16.msra.mxu0 %v490
  %597 = vmatprep.subr.bf16.mxu0 0
  %598 = vmatpush1.bf16.msra.mxu0 %v491
  %599 = vmatprep.subr.bf16.mxu0 0
  %600 = vmatpush1.bf16.msra.mxu0 %v492
  %601 = vmatprep.subr.bf16.mxu0 0
  %602 = vmatpush1.bf16.msra.mxu0 %v493
  %603 = vmatprep.subr.bf16.mxu0 0
  %604 = vmatpush1.bf16.msra.mxu0 %v494
  %605 = vmatprep.subr.bf16.mxu0 0
  %606 = vmatpush1.bf16.msra.mxu0 %v495
  %607 = vmatprep.subr.bf16.mxu0 0
  %608 = vmatpush1.bf16.msra.mxu0 %v496
  %609 = vmatprep.subr.bf16.mxu0 0
  %610 = vmatpush1.bf16.msra.mxu0 %v497
  %611 = vmatprep.mubr.bf16.mxu0 %v267
  %612 = vmatmul.mubr.bf16.gmra.mrb[0].mxu0 %v266
  %v613 = vpop.f32.mrb[0].mxu0
  %v614 = vadd.f32 0.0, %v613
  %v615 = vpop.f32.mrb[0].mxu0
  %v616 = vpop.f32.mrb[0].mxu0
  %v617 = vadd.f32 0.0, %v616
  %v618 = vpop.f32.mrb[0].mxu0
  %619 = vmatprep.mubr.bf16.mxu0 %v272
  %620 = vmatmul.mubr.bf16.gmra.mrb[0].mxu0 %v271
  %v621 = vpop.f32.mrb[0].mxu0
  %v622 = vadd.f32 0.0, %v621
  %v623 = vpop.f32.mrb[0].mxu0
  %v624 = vpop.f32.mrb[0].mxu0
  %v625 = vadd.f32 0.0, %v624
  %v626 = vpop.f32.mrb[0].mxu0
  %627 = vmatprep.mubr.bf16.mxu0 %v277
  %628 = vmatmul.mubr.bf16.gmra.mrb[0].mxu0 %v276
  %v629 = vpop.f32.mrb[0].mxu0
  %v630 = vadd.f32 0.0, %v629
  %v631 = vpop.f32.mrb[0].mxu0
  %v632 = vpop.f32.mrb[0].mxu0
  %v633 = vadd.f32 0.0, %v632
  %v634 = vpop.f32.mrb[0].mxu0
  %635 = vmatprep.mubr.bf16.mxu0 %v282
  %636 = vmatmul.mubr.bf16.gmra.mrb[0].mxu0 %v281
  %v637 = vpop.f32.mrb[0].mxu0
  %v638 = vadd.f32 0.0, %v637
  %v639 = vpop.f32.mrb[0].mxu0
  %v640 = vpop.f32.mrb[0].mxu0
  %v641 = vadd.f32 0.0, %v640
  %v642 = vpop.f32.mrb[0].mxu0
  %643 = vmatprep.mubr.bf16.mxu0 %v287
  %644 = vmatmul.mubr.bf16.gmra.mrb[0].mxu0 %v286
  %v645 = vpop.f32.mrb[0].mxu0
  %v646 = vadd.f32 0.0, %v645
  %v647 = vpop.f32.mrb[0].mxu0
  %v648 = vpop.f32.mrb[0].mxu0
  %v649 = vadd.f32 0.0, %v648
  %v650 = vpop.f32.mrb[0].mxu0
  %651 = vmatprep.mubr.bf16.mxu0 %v292
  %652 = vmatmul.mubr.bf16.gmra.mrb[0].mxu0 %v291
  %v653 = vpop.f32.mrb[0].mxu0
  %v654 = vadd.f32 0.0, %v653
  %v655 = vpop.f32.mrb[0].mxu0
  %v656 = vpop.f32.mrb[0].mxu0
  %v657 = vadd.f32 0.0, %v656
  %v658 = vpop.f32.mrb[0].mxu0
  %659 = vmatprep.mubr.bf16.mxu0 %v297
  %660 = vmatmul.mubr.bf16.gmra.mrb[0].mxu0 %v296
  %v661 = vpop.f32.mrb[0].mxu0
  %v662 = vadd.f32 0.0, %v661
  %v663 = vpop.f32.mrb[0].mxu0
  %v664 = vpop.f32.mrb[0].mxu0
  %v665 = vadd.f32 0.0, %v664
  %v666 = vpop.f32.mrb[0].mxu0
  %667 = vmatprep.mubr.bf16.mxu0 %v302
  %668 = vmatmul.mubr.bf16.gmra.mrb[0].mxu0 %v301
  %v669 = vpop.f32.mrb[0].mxu0
  %v670 = vadd.f32 0.0, %v669
  %v671 = vpop.f32.mrb[0].mxu0
  %v672 = vpop.f32.mrb[0].mxu0
  %v673 = vadd.f32 0.0, %v672
  %v674 = vpop.f32.mrb[0].mxu0
  %675 = vdwg.mxu0
  %676 = vmatprep.subr.bf16.mxu0 0
  %677 = vmatpush1.bf16.msra.mxu0 %v498
  %678 = vmatprep.subr.bf16.mxu0 0
  %679 = vmatpush1.bf16.msra.mxu0 %v499
  %680 = vmatprep.subr.bf16.mxu0 0
  %681 = vmatpush1.bf16.msra.mxu0 %v500
  %682 = vmatprep.subr.bf16.mxu0 0
  %683 = vmatpush1.bf16.msra.mxu0 %v501
  %684 = vmatprep.subr.bf16.mxu0 0
  %685 = vmatpush1.bf16.msra.mxu0 %v502
  %686 = vmatprep.subr.bf16.mxu0 0
  %687 = vmatpush1.bf16.msra.mxu0 %v503
  %688 = vmatprep.subr.bf16.mxu0 0
  %689 = vmatpush1.bf16.msra.mxu0 %v504
  %690 = vmatprep.subr.bf16.mxu0 0
  %691 = vmatpush1.bf16.msra.mxu0 %v505
  %692 = vmatprep.subr.bf16.mxu0 0
  %693 = vmatpush1.bf16.msra.mxu0 %v506
  %694 = vmatprep.subr.bf16.mxu0 0
  %695 = vmatpush1.bf16.msra.mxu0 %v507
  %696 = vmatprep.subr.bf16.mxu0 0
  %697 = vmatpush1.bf16.msra.mxu0 %v508
  %698 = vmatprep.subr.bf16.mxu0 0
  %699 = vmatpush1.bf16.msra.mxu0 %v509
  %700 = vmatprep.subr.bf16.mxu0 0
  %701 = vmatpush1.bf16.msra.mxu0 %v510
  %702 = vmatprep.subr.bf16.mxu0 0
  %703 = vmatpush1.bf16.msra.mxu0 %v511
  %704 = vmatprep.subr.bf16.mxu0 0
  %705 = vmatpush1.bf16.msra.mxu0 %v512
  %706 = vmatprep.subr.bf16.mxu0 0
  %707 = vmatpush1.bf16.msra.mxu0 %v513
  %708 = vmatprep.mubr.bf16.mxu0 %v269
  %709 = vmatmul.mubr.bf16.gmra.mrb[0].mxu0 %v268
  %v710 = vpop.f32.mrb[0].mxu0
  %v711 = vadd.f32 %v614, %v710
  %v712 = vpop.f32.mrb[0].mxu0
  %v713 = vpop.f32.mrb[0].mxu0
  %v714 = vadd.f32 %v617, %v713
  %v715 = vpop.f32.mrb[0].mxu0
  %716 = vmatprep.mubr.bf16.mxu0 %v274
  %717 = vmatmul.mubr.bf16.gmra.mrb[0].mxu0 %v273
  %v718 = vpop.f32.mrb[0].mxu0
  %v719 = vadd.f32 %v622, %v718
  %v720 = vpop.f32.mrb[0].mxu0
  %v721 = vpop.f32.mrb[0].mxu0
  %v722 = vadd.f32 %v625, %v721
  %v723 = vpop.f32.mrb[0].mxu0
  %724 = vmatprep.mubr.bf16.mxu0 %v279
  %725 = vmatmul.mubr.bf16.gmra.mrb[0].mxu0 %v278
  %v726 = vpop.f32.mrb[0].mxu0
  %v727 = vadd.f32 %v630, %v726
  %v728 = vpop.f32.mrb[0].mxu0
  %v729 = vpop.f32.mrb[0].mxu0
  %v730 = vadd.f32 %v633, %v729
  %v731 = vpop.f32.mrb[0].mxu0
  %732 = vmatprep.mubr.bf16.mxu0 %v284
  %733 = vmatmul.mubr.bf16.gmra.mrb[0].mxu0 %v283
  %v734 = vpop.f32.mrb[0].mxu0
  %v735 = vadd.f32 %v638, %v734
  %v736 = vpop.f32.mrb[0].mxu0
  %v737 = vpop.f32.mrb[0].mxu0
  %v738 = vadd.f32 %v641, %v737
  %v739 = vpop.f32.mrb[0].mxu0
  %740 = vmatprep.mubr.bf16.mxu0 %v289
  %741 = vmatmul.mubr.bf16.gmra.mrb[0].mxu0 %v288
  %v742 = vpop.f32.mrb[0].mxu0
  %v743 = vadd.f32 %v646, %v742
  %v744 = vpop.f32.mrb[0].mxu0
  %v745 = vpop.f32.mrb[0].mxu0
  %v746 = vadd.f32 %v649, %v745
  %v747 = vpop.f32.mrb[0].mxu0
  %748 = vmatprep.mubr.bf16.mxu0 %v294
  %749 = vmatmul.mubr.bf16.gmra.mrb[0].mxu0 %v293
  %v750 = vpop.f32.mrb[0].mxu0
  %v751 = vadd.f32 %v654, %v750
  %v752 = vpop.f32.mrb[0].mxu0
  %v753 = vpop.f32.mrb[0].mxu0
  %v754 = vadd.f32 %v657, %v753
  %v755 = vpop.f32.mrb[0].mxu0
  %756 = vmatprep.mubr.bf16.mxu0 %v299
  %757 = vmatmul.mubr.bf16.gmra.mrb[0].mxu0 %v298
  %v758 = vpop.f32.mrb[0].mxu0
  %v759 = vadd.f32 %v662, %v758
  %v760 = vpop.f32.mrb[0].mxu0
  %v761 = vpop.f32.mrb[0].mxu0
  %v762 = vadd.f32 %v665, %v761
  %v763 = vpop.f32.mrb[0].mxu0
  %764 = vmatprep.mubr.bf16.mxu0 %v304
  %765 = vmatmul.mubr.bf16.gmra.mrb[0].mxu0 %v303
  %v766 = vpop.f32.mrb[0].mxu0
  %v767 = vadd.f32 %v670, %v766
  %v768 = vpop.f32.mrb[0].mxu0
  %v769 = vpop.f32.mrb[0].mxu0
  %v770 = vadd.f32 %v673, %v769
  %v771 = vpop.f32.mrb[0].mxu0
  %772 = vdwg.mxu0
  %773 = vmatprep.subr.bf16.mxu0 0
  %774 = vmatpush1.bf16.msra.mxu0 %v514
  %775 = vmatprep.subr.bf16.mxu0 0
  %776 = vmatpush1.bf16.msra.mxu0 %v515
  %777 = vmatprep.subr.bf16.mxu0 0
  %778 = vmatpush1.bf16.msra.mxu0 %v516
  %779 = vmatprep.subr.bf16.mxu0 0
  %780 = vmatpush1.bf16.msra.mxu0 %v517
  %781 = vmatprep.subr.bf16.mxu0 0
  %782 = vmatpush1.bf16.msra.mxu0 0
  %783 = vmatprep.subr.bf16.mxu0 0
  %784 = vmatpush1.bf16.msra.mxu0 0
  %785 = vmatprep.subr.bf16.mxu0 0
  %786 = vmatpush1.bf16.msra.mxu0 0
  %787 = vmatprep.subr.bf16.mxu0 0
  %788 = vmatpush1.bf16.msra.mxu0 0
  %789 = vmatprep.subr.bf16.mxu0 0
  %790 = vmatpush1.bf16.msra.mxu0 0
  %791 = vmatprep.subr.bf16.mxu0 0
  %792 = vmatpush1.bf16.msra.mxu0 0
  %793 = vmatprep.subr.bf16.mxu0 0
  %794 = vmatpush1.bf16.msra.mxu0 0
  %795 = vmatprep.subr.bf16.mxu0 0
  %796 = vmatpush1.bf16.msra.mxu0 0
  %797 = vmatprep.subr.bf16.mxu0 0
  %798 = vmatpush1.bf16.msra.mxu0 0
  %799 = vmatprep.subr.bf16.mxu0 0
  %800 = vmatpush1.bf16.msra.mxu0 0
  %801 = vmatprep.subr.bf16.mxu0 0
  %802 = vmatpush1.bf16.msra.mxu0 0
  %803 = vmatprep.subr.bf16.mxu0 0
  %804 = vmatpush1.bf16.msra.mxu0 0
  %805 = vmatprep.mubr.bf16.mxu0 0
  %806 = vmatmul.mubr.bf16.gmra.mrb[0].mxu0 %v556
  %v807 = vpop.f32.mrb[0].mxu0
  %v808 = vadd.f32 %v711, %v807
  %v809 = vpop.f32.mrb[0].mxu0
  %v810 = vpop.f32.mrb[0].mxu0
  %v811 = vadd.f32 %v714, %v810
  %v812 = vpop.f32.mrb[0].mxu0
  %813 = vmatprep.mubr.bf16.mxu0 0
  %814 = vmatmul.mubr.bf16.gmra.mrb[0].mxu0 %v559
  %v815 = vpop.f32.mrb[0].mxu0
  %v816 = vadd.f32 %v719, %v815
  %v817 = vpop.f32.mrb[0].mxu0
  %v818 = vpop.f32.mrb[0].mxu0
  %v819 = vadd.f32 %v722, %v818
  %v820 = vpop.f32.mrb[0].mxu0
  %821 = vmatprep.mubr.bf16.mxu0 0
  %822 = vmatmul.mubr.bf16.gmra.mrb[0].mxu0 %v562
  %v823 = vpop.f32.mrb[0].mxu0
  %v824 = vadd.f32 %v727, %v823
  %v825 = vpop.f32.mrb[0].mxu0
  %v826 = vpop.f32.mrb[0].mxu0
  %v827 = vadd.f32 %v730, %v826
  %v828 = vpop.f32.mrb[0].mxu0
  %829 = vmatprep.mubr.bf16.mxu0 0
  %830 = vmatmul.mubr.bf16.gmra.mrb[0].mxu0 %v565
  %v831 = vpop.f32.mrb[0].mxu0
  %v832 = vadd.f32 %v735, %v831
  %v833 = vpop.f32.mrb[0].mxu0
  %v834 = vpop.f32.mrb[0].mxu0
  %v835 = vadd.f32 %v738, %v834
  %v836 = vpop.f32.mrb[0].mxu0
  %837 = vmatprep.mubr.bf16.mxu0 0
  %838 = vmatmul.mubr.bf16.gmra.mrb[0].mxu0 %v568
  %v839 = vpop.f32.mrb[0].mxu0
  %v840 = vadd.f32 %v743, %v839
  %v841 = vpop.f32.mrb[0].mxu0
  %v842 = vpop.f32.mrb[0].mxu0
  %v843 = vadd.f32 %v746, %v842
  %v844 = vpop.f32.mrb[0].mxu0
  %845 = vmatprep.mubr.bf16.mxu0 0
  %846 = vmatmul.mubr.bf16.gmra.mrb[0].mxu0 %v571
  %v847 = vpop.f32.mrb[0].mxu0
  %v848 = vadd.f32 %v751, %v847
  %v849 = vpop.f32.mrb[0].mxu0
  %v850 = vpop.f32.mrb[0].mxu0
  %v851 = vadd.f32 %v754, %v850
  %v852 = vpop.f32.mrb[0].mxu0
  %853 = vmatprep.mubr.bf16.mxu0 0
  %854 = vmatmul.mubr.bf16.gmra.mrb[0].mxu0 %v574
  %v855 = vpop.f32.mrb[0].mxu0
  %v856 = vadd.f32 %v759, %v855
  %v857 = vpop.f32.mrb[0].mxu0
  %v858 = vpop.f32.mrb[0].mxu0
  %v859 = vadd.f32 %v762, %v858
  %v860 = vpop.f32.mrb[0].mxu0
  %861 = vmatprep.mubr.bf16.mxu0 0
  %862 = vmatmul.mubr.bf16.gmra.mrb[0].mxu0 %v577
  %v863 = vpop.f32.mrb[0].mxu0
  %v864 = vadd.f32 %v767, %v863
  %v865 = vpop.f32.mrb[0].mxu0
  %v866 = vpop.f32.mrb[0].mxu0
  %v867 = vadd.f32 %v770, %v866
  %v868 = vpop.f32.mrb[0].mxu0
  %869 = vdwg.mxu0
  %v870 = vadd.f32 %v808, %v811
  %v871 = vadd.f32 %v870, %v816
  %v872 = vadd.f32 %v871, %v819
  %v873 = vadd.f32 %v872, %v824
  %v874 = vadd.f32 %v873, %v827
  %v875 = vadd.f32 %v874, %v832
  %v876 = vadd.f32 %v875, %v835
  %v877 = vadd.f32 %v876, %v840
  %v878 = vadd.f32 %v877, %v843
  %v879 = vadd.f32 %v878, %v848
  %v880 = vadd.f32 %v879, %v851
  %v881 = vadd.f32 %v880, %v856
  %v882 = vadd.f32 %v881, %v859
  %v883 = vadd.f32 %v882, %v864
  %v884 = vadd.f32 %v883, %v867
  %v885 = vrot.slane %v884, 4
  %v886 = vadd.f32 %v884, %v885
  %v887 = vrot.slane %v886, 2
  %v888 = vadd.f32 %v886, %v887
  %v889 = vrot.slane %v888, 1
  %v890 = vadd.f32 %v888, %v889
  %v891 = vmul.f32 %v808, %v808
  %v892 = vmul.f32 %v811, %v811
  %v893 = vmul.f32 %v816, %v816
  %v894 = vmul.f32 %v819, %v819
  %v895 = vmul.f32 %v824, %v824
  %v896 = vmul.f32 %v827, %v827
  %v897 = vmul.f32 %v832, %v832
  %v898 = vmul.f32 %v835, %v835
  %v899 = vmul.f32 %v840, %v840
  %v900 = vmul.f32 %v843, %v843
  %v901 = vmul.f32 %v848, %v848
  %v902 = vmul.f32 %v851, %v851
  %v903 = vmul.f32 %v856, %v856
  %v904 = vmul.f32 %v859, %v859
  %v905 = vmul.f32 %v864, %v864
  %v906 = vmul.f32 %v867, %v867
  %v907 = vadd.f32 %v891, %v892
  %v908 = vadd.f32 %v907, %v893
  %v909 = vadd.f32 %v908, %v894
  %v910 = vadd.f32 %v909, %v895
  %v911 = vadd.f32 %v910, %v896
  %v912 = vadd.f32 %v911, %v897
  %v913 = vadd.f32 %v912, %v898
  %v914 = vadd.f32 %v913, %v899
  %v915 = vadd.f32 %v914, %v900
  %v916 = vadd.f32 %v915, %v901
  %v917 = vadd.f32 %v916, %v902
  %v918 = vadd.f32 %v917, %v903
  %v919 = vadd.f32 %v918, %v904
  %v920 = vadd.f32 %v919, %v905
  %v921 = vadd.f32 %v920, %v906
  %v922 = vrot.slane %v921, 4
  %v923 = vadd.f32 %v921, %v922
  %v924 = vrot.slane %v923, 2
  %v925 = vadd.f32 %v923, %v924
  %v926 = vrot.slane %v925, 1
  %v927 = vadd.f32 %v925, %v926
  %928 = vrot.lane.b32.xlu0 %v890, 32
  %v929 = vpop.permute.xlu0 %928
  %v930 = vadd.f32 %v890, %v929
  %931 = vrot.lane.b32.xlu0 %v927, 32
  %v932 = vpop.permute.xlu0 %931
  %v933 = vadd.f32 %v927, %v932
  %934 = vrot.lane.b32.xlu0 %v930, 64
  %v935 = vpop.permute.xlu0 %934
  %v936 = vadd.f32 %v930, %v935
  %937 = vrot.lane.b32.xlu0 %v933, 64
  %v938 = vpop.permute.xlu0 %937
  %v939 = vadd.f32 %v933, %v938
  %v940 = vmul.f32 %v936, 0.001953125
  %v941 = vmul.f32 %v939, 0.001953125
  %v942 = vmul.f32 %v940, %v940
  %v943 = vsub.f32 %v941, %v942
  %v944 = vmax.f32 %v943, 0.0
  %v945 = vld [vmem:[%s2] sm:$0x1]
  %v946 = vadd.f32 %v944, 1e-05
  %v947 = vrsqrt.pop %v946
  %v948 = vmul.f32 %v945, %v947
  %v949 = vld [vmem:[%s3] sm:$0x1]
  %v950 = vmul.f32 %v940, %v948
  %v951 = vsub.f32 %v949, %v950
  %v953 = vlaneseq
  %v954 = vshrl.u32 %v953, 7
  %v955 = vsub.s32 0, %v954
  %v956 = vrot.slane %v948, %v955
  %v958 = vmul.f32 %v808, %v956
  %v959 = vmul.f32 %v811, %v956
  %v960 = vmul.f32 %v816, %v956
  %v961 = vmul.f32 %v819, %v956
  %v962 = vmul.f32 %v824, %v956
  %v963 = vmul.f32 %v827, %v956
  %v964 = vmul.f32 %v832, %v956
  %v965 = vmul.f32 %v835, %v956
  %v966 = vmul.f32 %v840, %v956
  %v967 = vmul.f32 %v843, %v956
  %v968 = vmul.f32 %v848, %v956
  %v969 = vmul.f32 %v851, %v956
  %v970 = vmul.f32 %v856, %v956
  %v971 = vmul.f32 %v859, %v956
  %v972 = vmul.f32 %v864, %v956
  %v973 = vmul.f32 %v867, %v956
  %v975 = vlaneseq
  %v976 = vshrl.u32 %v975, 7
  %v977 = vsub.s32 0, %v976
  %v978 = vrot.slane %v951, %v977
  %v980 = vadd.f32 %v958, %v978
  %v981 = vadd.f32 %v959, %v978
  %v982 = vadd.f32 %v960, %v978
  %v983 = vadd.f32 %v961, %v978
  %v984 = vadd.f32 %v962, %v978
  %v985 = vadd.f32 %v963, %v978
  %v986 = vadd.f32 %v964, %v978
  %v987 = vadd.f32 %v965, %v978
  %v988 = vadd.f32 %v966, %v978
  %v989 = vadd.f32 %v967, %v978
  %v990 = vadd.f32 %v968, %v978
  %v991 = vadd.f32 %v969, %v978
  %v992 = vadd.f32 %v970, %v978
  %v993 = vadd.f32 %v971, %v978
  %v994 = vadd.f32 %v972, %v978
  %v995 = vadd.f32 %v973, %v978
  %vm996 = vcmp.ge.f32.partialorder %v980, 0.0
  %vm997 = vcmp.ge.f32.partialorder %v981, 0.0
  %vm998 = vcmp.ge.f32.partialorder %v982, 0.0
  %vm999 = vcmp.ge.f32.partialorder %v983, 0.0
  %vm1000 = vcmp.ge.f32.partialorder %v984, 0.0
  %vm1001 = vcmp.ge.f32.partialorder %v985, 0.0
  %vm1002 = vcmp.ge.f32.partialorder %v986, 0.0
  %vm1003 = vcmp.ge.f32.partialorder %v987, 0.0
  %vm1004 = vcmp.ge.f32.partialorder %v988, 0.0
  %vm1005 = vcmp.ge.f32.partialorder %v989, 0.0
  %vm1006 = vcmp.ge.f32.partialorder %v990, 0.0
  %vm1007 = vcmp.ge.f32.partialorder %v991, 0.0
  %vm1008 = vcmp.ge.f32.partialorder %v992, 0.0
  %vm1009 = vcmp.ge.f32.partialorder %v993, 0.0
  %vm1010 = vcmp.ge.f32.partialorder %v994, 0.0
  %vm1011 = vcmp.ge.f32.partialorder %v995, 0.0
  %v1012 = vmul.f32 %v980, 0.01
  %v1013 = vmul.f32 %v981, 0.01
  %v1014 = vmul.f32 %v982, 0.01
  %v1015 = vmul.f32 %v983, 0.01
  %v1016 = vmul.f32 %v984, 0.01
  %v1017 = vmul.f32 %v985, 0.01
  %v1018 = vmul.f32 %v986, 0.01
  %v1019 = vmul.f32 %v987, 0.01
  %v1020 = vmul.f32 %v988, 0.01
  %v1021 = vmul.f32 %v989, 0.01
  %v1022 = vmul.f32 %v990, 0.01
  %v1023 = vmul.f32 %v991, 0.01
  %v1024 = vmul.f32 %v992, 0.01
  %v1025 = vmul.f32 %v993, 0.01
  %v1026 = vmul.f32 %v994, 0.01
  %v1027 = vmul.f32 %v995, 0.01
  %v1028 = vsel %vm996, %v980, %v1012
  %v1029 = vsel %vm997, %v981, %v1013
  %v1030 = vsel %vm998, %v982, %v1014
  %v1031 = vsel %vm999, %v983, %v1015
  %v1032 = vsel %vm1000, %v984, %v1016
  %v1033 = vsel %vm1001, %v985, %v1017
  %v1034 = vsel %vm1002, %v986, %v1018
  %v1035 = vsel %vm1003, %v987, %v1019
  %v1036 = vsel %vm1004, %v988, %v1020
  %v1037 = vsel %vm1005, %v989, %v1021
  %v1038 = vsel %vm1006, %v990, %v1022
  %v1039 = vsel %vm1007, %v991, %v1023
  %v1040 = vsel %vm1008, %v992, %v1024
  %v1041 = vsel %vm1009, %v993, %v1025
  %v1042 = vsel %vm1010, %v994, %v1026
  %v1043 = vsel %vm1011, %v995, %v1027
  %v1044 = vpack.c.bf16 %v1029, %v1028
  %v1045 = vpack.c.bf16 %v1031, %v1030
  %v1046 = vpack.c.bf16 %v1033, %v1032
  %v1047 = vpack.c.bf16 %v1035, %v1034
  %v1048 = vpack.c.bf16 %v1037, %v1036
  %v1049 = vpack.c.bf16 %v1039, %v1038
  %v1050 = vpack.c.bf16 %v1041, %v1040
  %v1051 = vpack.c.bf16 %v1043, %v1042
  %v1060 = vunpack.c.l.b16 %v1044
  %v1061 = vunpack.c.h.b16 %v1044
  %v1062 = vunpack.c.l.b16 %v1045
  %v1063 = vunpack.c.h.b16 %v1045
  %v1064 = vunpack.c.l.b16 %v1046
  %v1065 = vunpack.c.h.b16 %v1046
  %v1066 = vunpack.c.l.b16 %v1047
  %v1067 = vunpack.c.h.b16 %v1047
  %v1068 = vunpack.c.l.b16 %v1048
  %v1069 = vunpack.c.h.b16 %v1048
  %v1070 = vunpack.c.l.b16 %v1049
  %v1071 = vunpack.c.h.b16 %v1049
  %v1072 = vunpack.c.l.b16 %v1050
  %v1073 = vunpack.c.h.b16 %v1050
  %v1074 = vunpack.c.l.b16 %v1051
  %v1075 = vunpack.c.h.b16 %v1051
  %v1076 = vpack.c.b16 %v1060, %v1060
  %v1077 = vpack.c.b16 %v1061, %v1061
  %v1078 = vpack.c.b16 %v1062, %v1062
  %v1079 = vpack.c.b16 %v1063, %v1063
  %v1080 = vpack.c.b16 %v1064, %v1064
  %v1081 = vpack.c.b16 %v1065, %v1065
  %v1082 = vpack.c.b16 %v1066, %v1066
  %v1083 = vpack.c.b16 %v1067, %v1067
  %v1084 = vpack.c.b16 %v1068, %v1068
  %v1085 = vpack.c.b16 %v1069, %v1069
  %v1086 = vpack.c.b16 %v1070, %v1070
  %v1087 = vpack.c.b16 %v1071, %v1071
  %v1088 = vpack.c.b16 %v1072, %v1072
  %v1089 = vpack.c.b16 %v1073, %v1073
  %v1090 = vpack.c.b16 %v1074, %v1074
  %v1091 = vpack.c.b16 %v1075, %v1075
  %1108 = vst [vmem:[%s4] sm:$0xf] %v1076
  %1109 = vst [vmem:[%s4 + $0x4] sm:$0xf] %v1077
  %1110 = vst [vmem:[%s4 + $0x8] sm:$0xf] %v1078
  %1111 = vst [vmem:[%s4 + $0xc] sm:$0xf] %v1079
  %1112 = vst [vmem:[%s4 + $0x10] sm:$0xf] %v1080
  %1113 = vst [vmem:[%s4 + $0x14] sm:$0xf] %v1081
  %1114 = vst [vmem:[%s4 + $0x18] sm:$0xf] %v1082
  %1115 = vst [vmem:[%s4 + $0x1c] sm:$0xf] %v1083
  %1116 = vst [vmem:[%s4 + $0x20] sm:$0xf] %v1084
  %1117 = vst [vmem:[%s4 + $0x24] sm:$0xf] %v1085
  %1118 = vst [vmem:[%s4 + $0x28] sm:$0xf] %v1086
  %1119 = vst [vmem:[%s4 + $0x2c] sm:$0xf] %v1087
  %1120 = vst [vmem:[%s4 + $0x30] sm:$0xf] %v1088
  %1121 = vst [vmem:[%s4 + $0x34] sm:$0xf] %v1089
  %1122 = vst [vmem:[%s4 + $0x38] sm:$0xf] %v1090
  %1123 = vst [vmem:[%s4 + $0x3c] sm:$0xf] %v1091
  // Predicated region
  $region18: #{discriminator_forward.7} parent=0 // pred_check
    _
  $region19: #{discriminator_forward.7} parent=0 // pred_check_branch
    %1125 = sbr.rel (0) target = $region21
  $region20: #{discriminator_forward.7} parent=0 // pred_region
    _
  $region21: #{discriminator_forward.7} parent=0 // pred_fallthru
    _
  // Predicated region
  $region22: #{discriminator_forward.7} parent=0 // pred_check
    _
  $region23: #{discriminator_forward.7} parent=0 // pred_check_branch
    %1127 = sbr.rel (0) target = $region25
  $region24: #{discriminator_forward.7} parent=0 // pred_region
    _
  $region25: #{discriminator_forward.7} parent=0 // pred_fallthru
    _

// kernel: discriminator_forward.8
$region0: #{discriminator_forward.8}
  #allocation0 [shape = 'u32[]', space=smem, size = 0x4, offset = 0x4, fixed_abs, tag = 'smem constant byte address 0x4 - core index']
  #allocation1 [shape = 'u32[144,128]{1,0:T(1,128)}', space=vmem, size = 0x12000, scoped, tag = 'internal scratch']
  %s0 = inlined_call_operand.vmem [shape: bf16[64,576], index: 0, kind: input, shape index: {}]
  %s1 = inlined_call_operand.vmem [shape: bf16[576,128], index: 1, kind: input, shape index: {}]
  %s2 = inlined_call_operand.vmem [shape: f32[1,128], index: 2, kind: input, shape index: {}]
  %s3 = inlined_call_operand.vmem [shape: f32[1,128], index: 3, kind: input, shape index: {}]
  %s4 = inlined_call_operand.vmem [shape: bf16[64,128], index: 4, kind: output, shape index: {}]
  %s5 = sld [smem:[#allocation0]]
  $region26: #{discriminator_forward.8} parent=0
    _
  %s7 = ssub.s32 1, %s5
  %s8 = scalar_select 0, %s7, %s5
  // Predicated region
  $region2: #{discriminator_forward.8} parent=0 // pred_check
    _
  $region3: #{discriminator_forward.8} parent=0 // pred_check_branch
    %10 = sbr.rel (0) target = $region5
  $region4: #{discriminator_forward.8} parent=0 // pred_region
    _
  $region5: #{discriminator_forward.8} parent=0 // pred_fallthru
    _
  // Predicated region
  $region6: #{discriminator_forward.8} parent=0 // pred_check
    _
  $region7: #{discriminator_forward.8} parent=0 // pred_check_branch
    %12 = sbr.rel (0) target = $region9
  $region8: #{discriminator_forward.8} parent=0 // pred_region
    _
  $region9: #{discriminator_forward.8} parent=0 // pred_fallthru
    _
  // Predicated region
  $region10: #{discriminator_forward.8} parent=0 // pred_check
    _
  $region11: #{discriminator_forward.8} parent=0 // pred_check_branch
    %14 = sbr.rel (0) target = $region13
  $region12: #{discriminator_forward.8} parent=0 // pred_region
    _
  $region13: #{discriminator_forward.8} parent=0 // pred_fallthru
    _
  // Predicated region
  $region14: #{discriminator_forward.8} parent=0 // pred_check
    _
  $region15: #{discriminator_forward.8} parent=0 // pred_check_branch
    %16 = sbr.rel (0) target = $region17
  $region16: #{discriminator_forward.8} parent=0 // pred_region
    _
  $region17: #{discriminator_forward.8} parent=0 // pred_fallthru
    _
  %v18 = vld [vmem:[%s0] sm:$0xff]
  %v19 = vld [vmem:[%s0 + $0x8] sm:$0xff]
  %v20 = vld [vmem:[%s0 + $0x10] sm:$0xf]
  %v21 = vld [vmem:[%s0 + $0x14] sm:$0xff]
  %v22 = vld [vmem:[%s0 + $0x1c] sm:$0xff]
  %v23 = vld [vmem:[%s0 + $0x24] sm:$0xf]
  %v24 = vld [vmem:[%s0 + $0x28] sm:$0xff]
  %v25 = vld [vmem:[%s0 + $0x30] sm:$0xff]
  %v26 = vld [vmem:[%s0 + $0x38] sm:$0xf]
  %v27 = vld [vmem:[%s0 + $0x3c] sm:$0xff]
  %v28 = vld [vmem:[%s0 + $0x44] sm:$0xff]
  %v29 = vld [vmem:[%s0 + $0x4c] sm:$0xf]
  %v30 = vld [vmem:[%s0 + $0x50] sm:$0xff]
  %v31 = vld [vmem:[%s0 + $0x58] sm:$0xff]
  %v32 = vld [vmem:[%s0 + $0x60] sm:$0xf]
  %v33 = vld [vmem:[%s0 + $0x64] sm:$0xff]
  %v34 = vld [vmem:[%s0 + $0x6c] sm:$0xff]
  %v35 = vld [vmem:[%s0 + $0x74] sm:$0xf]
  %v36 = vld [vmem:[%s0 + $0x78] sm:$0xff]
  %v37 = vld [vmem:[%s0 + $0x80] sm:$0xff]
  %v38 = vld [vmem:[%s0 + $0x88] sm:$0xf]
  %v39 = vld [vmem:[%s0 + $0x8c] sm:$0xff]
  %v40 = vld [vmem:[%s0 + $0x94] sm:$0xff]
  %v41 = vld [vmem:[%s0 + $0x9c] sm:$0xf]
  %v42 = vld [vmem:[%s1] sm:$0xf]
  %v43 = vld [vmem:[%s1 + $0x4] sm:$0xf]
  %v44 = vld [vmem:[%s1 + $0x8] sm:$0xf]
  %v45 = vld [vmem:[%s1 + $0xc] sm:$0xf]
  %v46 = vld [vmem:[%s1 + $0x10] sm:$0xf]
  %v47 = vld [vmem:[%s1 + $0x14] sm:$0xf]
  %v48 = vld [vmem:[%s1 + $0x18] sm:$0xf]
  %v49 = vld [vmem:[%s1 + $0x1c] sm:$0xf]
  %v50 = vld [vmem:[%s1 + $0x20] sm:$0xf]
  %v51 = vld [vmem:[%s1 + $0x24] sm:$0xf]
  %v52 = vld [vmem:[%s1 + $0x28] sm:$0xf]
  %v53 = vld [vmem:[%s1 + $0x2c] sm:$0xf]
  %v54 = vld [vmem:[%s1 + $0x30] sm:$0xf]
  %v55 = vld [vmem:[%s1 + $0x34] sm:$0xf]
  %v56 = vld [vmem:[%s1 + $0x38] sm:$0xf]
  %v57 = vld [vmem:[%s1 + $0x3c] sm:$0xf]
  %v58 = vld [vmem:[%s1 + $0x40] sm:$0xf]
  %v59 = vld [vmem:[%s1 + $0x44] sm:$0xf]
  %v60 = vld [vmem:[%s1 + $0x48] sm:$0xf]
  %v61 = vld [vmem:[%s1 + $0x4c] sm:$0xf]
  %v62 = vld [vmem:[%s1 + $0x50] sm:$0xf]
  %v63 = vld [vmem:[%s1 + $0x54] sm:$0xf]
  %v64 = vld [vmem:[%s1 + $0x58] sm:$0xf]
  %v65 = vld [vmem:[%s1 + $0x5c] sm:$0xf]
  %v66 = vld [vmem:[%s1 + $0x60] sm:$0xf]
  %v67 = vld [vmem:[%s1 + $0x64] sm:$0xf]
  %v68 = vld [vmem:[%s1 + $0x68] sm:$0xf]
  %v69 = vld [vmem:[%s1 + $0x6c] sm:$0xf]
  %v70 = vld [vmem:[%s1 + $0x70] sm:$0xf]
  %v71 = vld [vmem:[%s1 + $0x74] sm:$0xf]
  %v72 = vld [vmem:[%s1 + $0x78] sm:$0xf]
  %v73 = vld [vmem:[%s1 + $0x7c] sm:$0xf]
  %v74 = vld [vmem:[%s1 + $0x80] sm:$0xf]
  %v75 = vld [vmem:[%s1 + $0x84] sm:$0xf]
  %v76 = vld [vmem:[%s1 + $0x88] sm:$0xf]
  %v77 = vld [vmem:[%s1 + $0x8c] sm:$0xf]
  %v78 = vld [vmem:[%s1 + $0x90] sm:$0xf]
  %v79 = vld [vmem:[%s1 + $0x94] sm:$0xf]
  %v80 = vld [vmem:[%s1 + $0x98] sm:$0xf]
  %v81 = vld [vmem:[%s1 + $0x9c] sm:$0xf]
  %v82 = vld [vmem:[%s1 + $0xa0] sm:$0xf]
  %v83 = vld [vmem:[%s1 + $0xa4] sm:$0xf]
  %v84 = vld [vmem:[%s1 + $0xa8] sm:$0xf]
  %v85 = vld [vmem:[%s1 + $0xac] sm:$0xf]
  %v86 = vld [vmem:[%s1 + $0xb0] sm:$0xf]
  %v87 = vld [vmem:[%s1 + $0xb4] sm:$0xf]
  %v88 = vld [vmem:[%s1 + $0xb8] sm:$0xf]
  %v89 = vld [vmem:[%s1 + $0xbc] sm:$0xf]
  %v90 = vld [vmem:[%s1 + $0xc0] sm:$0xf]
  %v91 = vld [vmem:[%s1 + $0xc4] sm:$0xf]
  %v92 = vld [vmem:[%s1 + $0xc8] sm:$0xf]
  %v93 = vld [vmem:[%s1 + $0xcc] sm:$0xf]
  %v94 = vld [vmem:[%s1 + $0xd0] sm:$0xf]
  %v95 = vld [vmem:[%s1 + $0xd4] sm:$0xf]
  %v96 = vld [vmem:[%s1 + $0xd8] sm:$0xf]
  %v97 = vld [vmem:[%s1 + $0xdc] sm:$0xf]
  %v98 = vld [vmem:[%s1 + $0xe0] sm:$0xf]
  %v99 = vld [vmem:[%s1 + $0xe4] sm:$0xf]
  %v100 = vld [vmem:[%s1 + $0xe8] sm:$0xf]
  %v101 = vld [vmem:[%s1 + $0xec] sm:$0xf]
  %v102 = vld [vmem:[%s1 + $0xf0] sm:$0xf]
  %v103 = vld [vmem:[%s1 + $0xf4] sm:$0xf]
  %v104 = vld [vmem:[%s1 + $0xf8] sm:$0xf]
  %v105 = vld [vmem:[%s1 + $0xfc] sm:$0xf]
  %v106 = vld [vmem:[%s1 + $0x100] sm:$0xf]
  %v107 = vld [vmem:[%s1 + $0x104] sm:$0xf]
  %v108 = vld [vmem:[%s1 + $0x108] sm:$0xf]
  %v109 = vld [vmem:[%s1 + $0x10c] sm:$0xf]
  %v110 = vld [vmem:[%s1 + $0x110] sm:$0xf]
  %v111 = vld [vmem:[%s1 + $0x114] sm:$0xf]
  %v112 = vld [vmem:[%s1 + $0x118] sm:$0xf]
  %v113 = vld [vmem:[%s1 + $0x11c] sm:$0xf]
  %v138 = vunpack.c.l.b16 %v18
  %v139 = vunpack.c.h.b16 %v18
  %v140 = vunpack.c.l.b16 %v19
  %v141 = vunpack.c.h.b16 %v19
  %v142 = vunpack.c.l.b16 %v20
  %v143 = vunpack.c.l.b16 %v21
  %v144 = vunpack.c.h.b16 %v21
  %v145 = vunpack.c.l.b16 %v22
  %v146 = vunpack.c.h.b16 %v22
  %v147 = vunpack.c.l.b16 %v23
  %v148 = vunpack.c.l.b16 %v24
  %v149 = vunpack.c.h.b16 %v24
  %v150 = vunpack.c.l.b16 %v25
  %v151 = vunpack.c.h.b16 %v25
  %v152 = vunpack.c.l.b16 %v26
  %v153 = vunpack.c.l.b16 %v27
  %v154 = vunpack.c.h.b16 %v27
  %v155 = vunpack.c.l.b16 %v28
  %v156 = vunpack.c.h.b16 %v28
  %v157 = vunpack.c.l.b16 %v29
  %v158 = vunpack.c.l.b16 %v30
  %v159 = vunpack.c.h.b16 %v30
  %v160 = vunpack.c.l.b16 %v31
  %v161 = vunpack.c.h.b16 %v31
  %v162 = vunpack.c.l.b16 %v32
  %v163 = vunpack.c.l.b16 %v33
  %v164 = vunpack.c.h.b16 %v33
  %v165 = vunpack.c.l.b16 %v34
  %v166 = vunpack.c.h.b16 %v34
  %v167 = vunpack.c.l.b16 %v35
  %v168 = vunpack.c.l.b16 %v36
  %v169 = vunpack.c.h.b16 %v36
  %v170 = vunpack.c.l.b16 %v37
  %v171 = vunpack.c.h.b16 %v37
  %v172 = vunpack.c.l.b16 %v38
  %v173 = vunpack.c.l.b16 %v39
  %v174 = vunpack.c.h.b16 %v39
  %v175 = vunpack.c.l.b16 %v40
  %v176 = vunpack.c.h.b16 %v40
  %v177 = vunpack.c.l.b16 %v41
  %v178 = vpack.c.b16 %v143, %v138
  %v179 = vpack.c.b16 %v144, %v139
  %v180 = vpack.c.b16 %v145, %v140
  %v181 = vpack.c.b16 %v146, %v141
  %v182 = vpack.c.b16 %v147, %v142
  %v183 = vpack.c.b16 %v153, %v148
  %v184 = vpack.c.b16 %v154, %v149
  %v185 = vpack.c.b16 %v155, %v150
  %v186 = vpack.c.b16 %v156, %v151
  %v187 = vpack.c.b16 %v157, %v152
  %v188 = vpack.c.b16 %v163, %v158
  %v189 = vpack.c.b16 %v164, %v159
  %v190 = vpack.c.b16 %v165, %v160
  %v191 = vpack.c.b16 %v166, %v161
  %v192 = vpack.c.b16 %v167, %v162
  %v193 = vpack.c.b16 %v173, %v168
  %v194 = vpack.c.b16 %v174, %v169
  %v195 = vpack.c.b16 %v175, %v170
  %v196 = vpack.c.b16 %v176, %v171
  %v197 = vpack.c.b16 %v177, %v172
  %v286 = vunpack.c.l.b16 %v42
  %v287 = vunpack.c.l.b16 %v43
  %v288 = vunpack.c.l.b16 %v44
  %v289 = vunpack.c.l.b16 %v45
  %v290 = vunpack.c.l.b16 %v46
  %v291 = vunpack.c.l.b16 %v47
  %v292 = vunpack.c.l.b16 %v48
  %v293 = vunpack.c.l.b16 %v49
  %v294 = vunpack.c.l.b16 %v50
  %v295 = vunpack.c.l.b16 %v51
  %v296 = vunpack.c.l.b16 %v52
  %v297 = vunpack.c.l.b16 %v53
  %v298 = vunpack.c.l.b16 %v54
  %v299 = vunpack.c.l.b16 %v55
  %v300 = vunpack.c.l.b16 %v56
  %v301 = vunpack.c.l.b16 %v57
  %v302 = vunpack.c.l.b16 %v58
  %v303 = vunpack.c.l.b16 %v59
  %v304 = vunpack.c.l.b16 %v60
  %v305 = vunpack.c.l.b16 %v61
  %v306 = vunpack.c.l.b16 %v62
  %v307 = vunpack.c.l.b16 %v63
  %v308 = vunpack.c.l.b16 %v64
  %v309 = vunpack.c.l.b16 %v65
  %v310 = vunpack.c.l.b16 %v66
  %v311 = vunpack.c.l.b16 %v67
  %v312 = vunpack.c.l.b16 %v68
  %v313 = vunpack.c.l.b16 %v69
  %v314 = vunpack.c.l.b16 %v70
  %v315 = vunpack.c.l.b16 %v71
  %v316 = vunpack.c.l.b16 %v72
  %v317 = vunpack.c.l.b16 %v73
  %v318 = vunpack.c.l.b16 %v74
  %v319 = vunpack.c.l.b16 %v75
  %v320 = vunpack.c.l.b16 %v76
  %v321 = vunpack.c.l.b16 %v77
  %v322 = vunpack.c.l.b16 %v78
  %v323 = vunpack.c.l.b16 %v79
  %v324 = vunpack.c.l.b16 %v80
  %v325 = vunpack.c.l.b16 %v81
  %v326 = vunpack.c.l.b16 %v82
  %v327 = vunpack.c.l.b16 %v83
  %v328 = vunpack.c.l.b16 %v84
  %v329 = vunpack.c.l.b16 %v85
  %v330 = vunpack.c.l.b16 %v86
  %v331 = vunpack.c.l.b16 %v87
  %v332 = vunpack.c.l.b16 %v88
  %v333 = vunpack.c.l.b16 %v89
  %v334 = vunpack.c.l.b16 %v90
  %v335 = vunpack.c.l.b16 %v91
  %v336 = vunpack.c.l.b16 %v92
  %v337 = vunpack.c.l.b16 %v93
  %v338 = vunpack.c.l.b16 %v94
  %v339 = vunpack.c.l.b16 %v95
  %v340 = vunpack.c.l.b16 %v96
  %v341 = vunpack.c.l.b16 %v97
  %v342 = vunpack.c.l.b16 %v98
  %v343 = vunpack.c.l.b16 %v99
  %v344 = vunpack.c.l.b16 %v100
  %v345 = vunpack.c.l.b16 %v101
  %v346 = vunpack.c.l.b16 %v102
  %v347 = vunpack.c.l.b16 %v103
  %v348 = vunpack.c.l.b16 %v104
  %v349 = vunpack.c.l.b16 %v105
  %v350 = vunpack.c.l.b16 %v106
  %v351 = vunpack.c.l.b16 %v107
  %v352 = vunpack.c.l.b16 %v108
  %v353 = vunpack.c.l.b16 %v109
  %v354 = vunpack.c.l.b16 %v110
  %v355 = vunpack.c.l.b16 %v111
  %v356 = vunpack.c.l.b16 %v112
  %v357 = vunpack.c.l.b16 %v113
  %v358 = vpack.c.b16 %v287, %v286
  %v359 = vpack.c.b16 %v289, %v288
  %v360 = vpack.c.b16 %v291, %v290
  %v361 = vpack.c.b16 %v293, %v292
  %v362 = vpack.c.b16 %v295, %v294
  %v363 = vpack.c.b16 %v297, %v296
  %v364 = vpack.c.b16 %v299, %v298
  %v365 = vpack.c.b16 %v301, %v300
  %v366 = vpack.c.b16 %v303, %v302
  %v367 = vpack.c.b16 %v305, %v304
  %v368 = vpack.c.b16 %v307, %v306
  %v369 = vpack.c.b16 %v309, %v308
  %v370 = vpack.c.b16 %v311, %v310
  %v371 = vpack.c.b16 %v313, %v312
  %v372 = vpack.c.b16 %v315, %v314
  %v373 = vpack.c.b16 %v317, %v316
  %v374 = vpack.c.b16 %v319, %v318
  %v375 = vpack.c.b16 %v321, %v320
  %v376 = vpack.c.b16 %v323, %v322
  %v377 = vpack.c.b16 %v325, %v324
  %v378 = vpack.c.b16 %v327, %v326
  %v379 = vpack.c.b16 %v329, %v328
  %v380 = vpack.c.b16 %v331, %v330
  %v381 = vpack.c.b16 %v333, %v332
  %v382 = vpack.c.b16 %v335, %v334
  %v383 = vpack.c.b16 %v337, %v336
  %v384 = vpack.c.b16 %v339, %v338
  %v385 = vpack.c.b16 %v341, %v340
  %v386 = vpack.c.b16 %v343, %v342
  %v387 = vpack.c.b16 %v345, %v344
  %v388 = vpack.c.b16 %v347, %v346
  %v389 = vpack.c.b16 %v349, %v348
  %v390 = vpack.c.b16 %v351, %v350
  %v391 = vpack.c.b16 %v353, %v352
  %v392 = vpack.c.b16 %v355, %v354
  %v393 = vpack.c.b16 %v357, %v356
  %vm430 = vcmask 523264
  %v432 = vsel %vm430, %v182, 0
  %v435 = vsel %vm430, %v187, 0
  %v438 = vsel %vm430, %v192, 0
  %v441 = vsel %vm430, %v197, 0
  %443 = vmatprep.subr.bf16.mxu0 0
  %444 = vmatpush1.bf16.msra.mxu0 %v358
  %445 = vmatprep.subr.bf16.mxu0 0
  %446 = vmatpush1.bf16.msra.mxu0 %v359
  %447 = vmatprep.subr.bf16.mxu0 0
  %448 = vmatpush1.bf16.msra.mxu0 %v360
  %449 = vmatprep.subr.bf16.mxu0 0
  %450 = vmatpush1.bf16.msra.mxu0 %v361
  %451 = vmatprep.subr.bf16.mxu0 0
  %452 = vmatpush1.bf16.msra.mxu0 %v362
  %453 = vmatprep.subr.bf16.mxu0 0
  %454 = vmatpush1.bf16.msra.mxu0 %v363
  %455 = vmatprep.subr.bf16.mxu0 0
  %456 = vmatpush1.bf16.msra.mxu0 %v364
  %457 = vmatprep.subr.bf16.mxu0 0
  %458 = vmatpush1.bf16.msra.mxu0 %v365
  %459 = vmatprep.subr.bf16.mxu0 0
  %460 = vmatpush1.bf16.msra.mxu0 %v366
  %461 = vmatprep.subr.bf16.mxu0 0
  %462 = vmatpush1.bf16.msra.mxu0 %v367
  %463 = vmatprep.subr.bf16.mxu0 0
  %464 = vmatpush1.bf16.msra.mxu0 %v368
  %465 = vmatprep.subr.bf16.mxu0 0
  %466 = vmatpush1.bf16.msra.mxu0 %v369
  %467 = vmatprep.subr.bf16.mxu0 0
  %468 = vmatpush1.bf16.msra.mxu0 %v370
  %469 = vmatprep.subr.bf16.mxu0 0
  %470 = vmatpush1.bf16.msra.mxu0 %v371
  %471 = vmatprep.subr.bf16.mxu0 0
  %472 = vmatpush1.bf16.msra.mxu0 %v372
  %473 = vmatprep.subr.bf16.mxu0 0
  %474 = vmatpush1.bf16.msra.mxu0 %v373
  %475 = vmatprep.mubr.bf16.mxu0 %v179
  %476 = vmatmul.mubr.bf16.gmra.mrb[0].mxu0 %v178
  %v477 = vpop.f32.mrb[0].mxu0
  %v478 = vadd.f32 0.0, %v477
  %v479 = vpop.f32.mrb[0].mxu0
  %v480 = vpop.f32.mrb[0].mxu0
  %v481 = vadd.f32 0.0, %v480
  %v482 = vpop.f32.mrb[0].mxu0
  %483 = vmatprep.mubr.bf16.mxu0 %v184
  %484 = vmatmul.mubr.bf16.gmra.mrb[0].mxu0 %v183
  %v485 = vpop.f32.mrb[0].mxu0
  %v486 = vadd.f32 0.0, %v485
  %v487 = vpop.f32.mrb[0].mxu0
  %v488 = vpop.f32.mrb[0].mxu0
  %v489 = vadd.f32 0.0, %v488
  %v490 = vpop.f32.mrb[0].mxu0
  %491 = vmatprep.mubr.bf16.mxu0 %v189
  %492 = vmatmul.mubr.bf16.gmra.mrb[0].mxu0 %v188
  %v493 = vpop.f32.mrb[0].mxu0
  %v494 = vadd.f32 0.0, %v493
  %v495 = vpop.f32.mrb[0].mxu0
  %v496 = vpop.f32.mrb[0].mxu0
  %v497 = vadd.f32 0.0, %v496
  %v498 = vpop.f32.mrb[0].mxu0
  %499 = vmatprep.mubr.bf16.mxu0 %v194
  %500 = vmatmul.mubr.bf16.gmra.mrb[0].mxu0 %v193
  %v501 = vpop.f32.mrb[0].mxu0
  %v502 = vadd.f32 0.0, %v501
  %v503 = vpop.f32.mrb[0].mxu0
  %v504 = vpop.f32.mrb[0].mxu0
  %v505 = vadd.f32 0.0, %v504
  %v506 = vpop.f32.mrb[0].mxu0
  %507 = vdwg.mxu0
  %508 = vmatprep.subr.bf16.mxu0 0
  %509 = vmatpush1.bf16.msra.mxu0 %v374
  %510 = vmatprep.subr.bf16.mxu0 0
  %511 = vmatpush1.bf16.msra.mxu0 %v375
  %512 = vmatprep.subr.bf16.mxu0 0
  %513 = vmatpush1.bf16.msra.mxu0 %v376
  %514 = vmatprep.subr.bf16.mxu0 0
  %515 = vmatpush1.bf16.msra.mxu0 %v377
  %516 = vmatprep.subr.bf16.mxu0 0
  %517 = vmatpush1.bf16.msra.mxu0 %v378
  %518 = vmatprep.subr.bf16.mxu0 0
  %519 = vmatpush1.bf16.msra.mxu0 %v379
  %520 = vmatprep.subr.bf16.mxu0 0
  %521 = vmatpush1.bf16.msra.mxu0 %v380
  %522 = vmatprep.subr.bf16.mxu0 0
  %523 = vmatpush1.bf16.msra.mxu0 %v381
  %524 = vmatprep.subr.bf16.mxu0 0
  %525 = vmatpush1.bf16.msra.mxu0 %v382
  %526 = vmatprep.subr.bf16.mxu0 0
  %527 = vmatpush1.bf16.msra.mxu0 %v383
  %528 = vmatprep.subr.bf16.mxu0 0
  %529 = vmatpush1.bf16.msra.mxu0 %v384
  %530 = vmatprep.subr.bf16.mxu0 0
  %531 = vmatpush1.bf16.msra.mxu0 %v385
  %532 = vmatprep.subr.bf16.mxu0 0
  %533 = vmatpush1.bf16.msra.mxu0 %v386
  %534 = vmatprep.subr.bf16.mxu0 0
  %535 = vmatpush1.bf16.msra.mxu0 %v387
  %536 = vmatprep.subr.bf16.mxu0 0
  %537 = vmatpush1.bf16.msra.mxu0 %v388
  %538 = vmatprep.subr.bf16.mxu0 0
  %539 = vmatpush1.bf16.msra.mxu0 %v389
  %540 = vmatprep.mubr.bf16.mxu0 %v181
  %541 = vmatmul.mubr.bf16.gmra.mrb[0].mxu0 %v180
  %v542 = vpop.f32.mrb[0].mxu0
  %v543 = vadd.f32 %v478, %v542
  %v544 = vpop.f32.mrb[0].mxu0
  %v545 = vpop.f32.mrb[0].mxu0
  %v546 = vadd.f32 %v481, %v545
  %v547 = vpop.f32.mrb[0].mxu0
  %548 = vmatprep.mubr.bf16.mxu0 %v186
  %549 = vmatmul.mubr.bf16.gmra.mrb[0].mxu0 %v185
  %v550 = vpop.f32.mrb[0].mxu0
  %v551 = vadd.f32 %v486, %v550
  %v552 = vpop.f32.mrb[0].mxu0
  %v553 = vpop.f32.mrb[0].mxu0
  %v554 = vadd.f32 %v489, %v553
  %v555 = vpop.f32.mrb[0].mxu0
  %556 = vmatprep.mubr.bf16.mxu0 %v191
  %557 = vmatmul.mubr.bf16.gmra.mrb[0].mxu0 %v190
  %v558 = vpop.f32.mrb[0].mxu0
  %v559 = vadd.f32 %v494, %v558
  %v560 = vpop.f32.mrb[0].mxu0
  %v561 = vpop.f32.mrb[0].mxu0
  %v562 = vadd.f32 %v497, %v561
  %v563 = vpop.f32.mrb[0].mxu0
  %564 = vmatprep.mubr.bf16.mxu0 %v196
  %565 = vmatmul.mubr.bf16.gmra.mrb[0].mxu0 %v195
  %v566 = vpop.f32.mrb[0].mxu0
  %v567 = vadd.f32 %v502, %v566
  %v568 = vpop.f32.mrb[0].mxu0
  %v569 = vpop.f32.mrb[0].mxu0
  %v570 = vadd.f32 %v505, %v569
  %v571 = vpop.f32.mrb[0].mxu0
  %572 = vdwg.mxu0
  %573 = vmatprep.subr.bf16.mxu0 0
  %574 = vmatpush1.bf16.msra.mxu0 %v390
  %575 = vmatprep.subr.bf16.mxu0 0
  %576 = vmatpush1.bf16.msra.mxu0 %v391
  %577 = vmatprep.subr.bf16.mxu0 0
  %578 = vmatpush1.bf16.msra.mxu0 %v392
  %579 = vmatprep.subr.bf16.mxu0 0
  %580 = vmatpush1.bf16.msra.mxu0 %v393
  %581 = vmatprep.subr.bf16.mxu0 0
  %582 = vmatpush1.bf16.msra.mxu0 0
  %583 = vmatprep.subr.bf16.mxu0 0
  %584 = vmatpush1.bf16.msra.mxu0 0
  %585 = vmatprep.subr.bf16.mxu0 0
  %586 = vmatpush1.bf16.msra.mxu0 0
  %587 = vmatprep.subr.bf16.mxu0 0
  %588 = vmatpush1.bf16.msra.mxu0 0
  %589 = vmatprep.subr.bf16.mxu0 0
  %590 = vmatpush1.bf16.msra.mxu0 0
  %591 = vmatprep.subr.bf16.mxu0 0
  %592 = vmatpush1.bf16.msra.mxu0 0
  %593 = vmatprep.subr.bf16.mxu0 0
  %594 = vmatpush1.bf16.msra.mxu0 0
  %595 = vmatprep.subr.bf16.mxu0 0
  %596 = vmatpush1.bf16.msra.mxu0 0
  %597 = vmatprep.subr.bf16.mxu0 0
  %598 = vmatpush1.bf16.msra.mxu0 0
  %599 = vmatprep.subr.bf16.mxu0 0
  %600 = vmatpush1.bf16.msra.mxu0 0
  %601 = vmatprep.subr.bf16.mxu0 0
  %602 = vmatpush1.bf16.msra.mxu0 0
  %603 = vmatprep.subr.bf16.mxu0 0
  %604 = vmatpush1.bf16.msra.mxu0 0
  %605 = vmatprep.mubr.bf16.mxu0 0
  %606 = vmatmul.mubr.bf16.gmra.mrb[0].mxu0 %v432
  %v607 = vpop.f32.mrb[0].mxu0
  %v608 = vadd.f32 %v543, %v607
  %v609 = vpop.f32.mrb[0].mxu0
  %v610 = vpop.f32.mrb[0].mxu0
  %v611 = vadd.f32 %v546, %v610
  %v612 = vpop.f32.mrb[0].mxu0
  %613 = vmatprep.mubr.bf16.mxu0 0
  %614 = vmatmul.mubr.bf16.gmra.mrb[0].mxu0 %v435
  %v615 = vpop.f32.mrb[0].mxu0
  %v616 = vadd.f32 %v551, %v615
  %v617 = vpop.f32.mrb[0].mxu0
  %v618 = vpop.f32.mrb[0].mxu0
  %v619 = vadd.f32 %v554, %v618
  %v620 = vpop.f32.mrb[0].mxu0
  %621 = vmatprep.mubr.bf16.mxu0 0
  %622 = vmatmul.mubr.bf16.gmra.mrb[0].mxu0 %v438
  %v623 = vpop.f32.mrb[0].mxu0
  %v624 = vadd.f32 %v559, %v623
  %v625 = vpop.f32.mrb[0].mxu0
  %v626 = vpop.f32.mrb[0].mxu0
  %v627 = vadd.f32 %v562, %v626
  %v628 = vpop.f32.mrb[0].mxu0
  %629 = vmatprep.mubr.bf16.mxu0 0
  %630 = vmatmul.mubr.bf16.gmra.mrb[0].mxu0 %v441
  %v631 = vpop.f32.mrb[0].mxu0
  %v632 = vadd.f32 %v567, %v631
  %v633 = vpop.f32.mrb[0].mxu0
  %v634 = vpop.f32.mrb[0].mxu0
  %v635 = vadd.f32 %v570, %v634
  %v636 = vpop.f32.mrb[0].mxu0
  %637 = vdwg.mxu0
  %v638 = vadd.f32 %v608, %v611
  %v639 = vadd.f32 %v638, %v616
  %v640 = vadd.f32 %v639, %v619
  %v641 = vadd.f32 %v640, %v624
  %v642 = vadd.f32 %v641, %v627
  %v643 = vadd.f32 %v642, %v632
  %v644 = vadd.f32 %v643, %v635
  %v645 = vrot.slane %v644, 4
  %v646 = vadd.f32 %v644, %v645
  %v647 = vrot.slane %v646, 2
  %v648 = vadd.f32 %v646, %v647
  %v649 = vrot.slane %v648, 1
  %v650 = vadd.f32 %v648, %v649
  %v651 = vmul.f32 %v608, %v608
  %v652 = vmul.f32 %v611, %v611
  %v653 = vmul.f32 %v616, %v616
  %v654 = vmul.f32 %v619, %v619
  %v655 = vmul.f32 %v624, %v624
  %v656 = vmul.f32 %v627, %v627
  %v657 = vmul.f32 %v632, %v632
  %v658 = vmul.f32 %v635, %v635
  %v659 = vadd.f32 %v651, %v652
  %v660 = vadd.f32 %v659, %v653
  %v661 = vadd.f32 %v660, %v654
  %v662 = vadd.f32 %v661, %v655
  %v663 = vadd.f32 %v662, %v656
  %v664 = vadd.f32 %v663, %v657
  %v665 = vadd.f32 %v664, %v658
  %v666 = vrot.slane %v665, 4
  %v667 = vadd.f32 %v665, %v666
  %v668 = vrot.slane %v667, 2
  %v669 = vadd.f32 %v667, %v668
  %v670 = vrot.slane %v669, 1
  %v671 = vadd.f32 %v669, %v670
  %672 = vrot.lane.b32.xlu0 %v650, 64
  %v673 = vpop.permute.xlu0 %672
  %v674 = vadd.f32 %v650, %v673
  %675 = vrot.lane.b32.xlu0 %v671, 64
  %v676 = vpop.permute.xlu0 %675
  %v677 = vadd.f32 %v671, %v676
  %v678 = vmul.f32 %v674, 0.0078125
  %v679 = vmul.f32 %v677, 0.0078125
  %v680 = vmul.f32 %v678, %v678
  %v681 = vsub.f32 %v679, %v680
  %v682 = vmax.f32 %v681, 0.0
  %v683 = vld [vmem:[%s2] sm:$0x1]
  %v684 = vadd.f32 %v682, 1e-05
  %v685 = vrsqrt.pop %v684
  %v686 = vmul.f32 %v683, %v685
  %v687 = vld [vmem:[%s3] sm:$0x1]
  %v688 = vmul.f32 %v678, %v686
  %v689 = vsub.f32 %v687, %v688
  %v691 = vlaneseq
  %v692 = vshrl.u32 %v691, 7
  %v693 = vsub.s32 0, %v692
  %v694 = vrot.slane %v686, %v693
  %v696 = vmul.f32 %v608, %v694
  %v697 = vmul.f32 %v611, %v694
  %v698 = vmul.f32 %v616, %v694
  %v699 = vmul.f32 %v619, %v694
  %v700 = vmul.f32 %v624, %v694
  %v701 = vmul.f32 %v627, %v694
  %v702 = vmul.f32 %v632, %v694
  %v703 = vmul.f32 %v635, %v694
  %v705 = vlaneseq
  %v706 = vshrl.u32 %v705, 7
  %v707 = vsub.s32 0, %v706
  %v708 = vrot.slane %v689, %v707
  %v710 = vadd.f32 %v696, %v708
  %v711 = vadd.f32 %v697, %v708
  %v712 = vadd.f32 %v698, %v708
  %v713 = vadd.f32 %v699, %v708
  %v714 = vadd.f32 %v700, %v708
  %v715 = vadd.f32 %v701, %v708
  %v716 = vadd.f32 %v702, %v708
  %v717 = vadd.f32 %v703, %v708
  %vm718 = vcmp.ge.f32.partialorder %v710, 0.0
  %vm719 = vcmp.ge.f32.partialorder %v711, 0.0
  %vm720 = vcmp.ge.f32.partialorder %v712, 0.0
  %vm721 = vcmp.ge.f32.partialorder %v713, 0.0
  %vm722 = vcmp.ge.f32.partialorder %v714, 0.0
  %vm723 = vcmp.ge.f32.partialorder %v715, 0.0
  %vm724 = vcmp.ge.f32.partialorder %v716, 0.0
  %vm725 = vcmp.ge.f32.partialorder %v717, 0.0
  %v726 = vmul.f32 %v710, 0.01
  %v727 = vmul.f32 %v711, 0.01
  %v728 = vmul.f32 %v712, 0.01
  %v729 = vmul.f32 %v713, 0.01
  %v730 = vmul.f32 %v714, 0.01
  %v731 = vmul.f32 %v715, 0.01
  %v732 = vmul.f32 %v716, 0.01
  %v733 = vmul.f32 %v717, 0.01
  %v734 = vsel %vm718, %v710, %v726
  %v735 = vsel %vm719, %v711, %v727
  %v736 = vsel %vm720, %v712, %v728
  %v737 = vsel %vm721, %v713, %v729
  %v738 = vsel %vm722, %v714, %v730
  %v739 = vsel %vm723, %v715, %v731
  %v740 = vsel %vm724, %v716, %v732
  %v741 = vsel %vm725, %v717, %v733
  %v742 = vpack.c.bf16 %v735, %v734
  %v743 = vpack.c.bf16 %v737, %v736
  %v744 = vpack.c.bf16 %v739, %v738
  %v745 = vpack.c.bf16 %v741, %v740
  %v750 = vunpack.c.l.b16 %v742
  %v751 = vunpack.c.h.b16 %v742
  %v752 = vunpack.c.l.b16 %v743
  %v753 = vunpack.c.h.b16 %v743
  %v754 = vunpack.c.l.b16 %v744
  %v755 = vunpack.c.h.b16 %v744
  %v756 = vunpack.c.l.b16 %v745
  %v757 = vunpack.c.h.b16 %v745
  %v758 = vpack.c.b16 %v750, %v750
  %v759 = vpack.c.b16 %v751, %v751
  %v760 = vpack.c.b16 %v752, %v752
  %v761 = vpack.c.b16 %v753, %v753
  %v762 = vpack.c.b16 %v754, %v754
  %v763 = vpack.c.b16 %v755, %v755
  %v764 = vpack.c.b16 %v756, %v756
  %v765 = vpack.c.b16 %v757, %v757
  %774 = vst [vmem:[%s4] sm:$0xf] %v758
  %775 = vst [vmem:[%s4 + $0x4] sm:$0xf] %v759
  %776 = vst [vmem:[%s4 + $0x8] sm:$0xf] %v760
  %777 = vst [vmem:[%s4 + $0xc] sm:$0xf] %v761
  %778 = vst [vmem:[%s4 + $0x10] sm:$0xf] %v762
  %779 = vst [vmem:[%s4 + $0x14] sm:$0xf] %v763
  %780 = vst [vmem:[%s4 + $0x18] sm:$0xf] %v764
  %781 = vst [vmem:[%s4 + $0x1c] sm:$0xf] %v765
  // Predicated region
  $region18: #{discriminator_forward.8} parent=0 // pred_check
    _
  $region19: #{discriminator_forward.8} parent=0 // pred_check_branch
    %783 = sbr.rel (0) target = $region21
  $region20: #{discriminator_forward.8} parent=0 // pred_region
    _
  $region21: #{discriminator_forward.8} parent=0 // pred_fallthru
    _
  // Predicated region
  $region22: #{discriminator_forward.8} parent=0 // pred_check
    _
  $region23: #{discriminator_forward.8} parent=0 // pred_check_branch
    %785 = sbr.rel (0) target = $region25
  $region24: #{discriminator_forward.8} parent=0 // pred_region
    _
  $region25: #{discriminator_forward.8} parent=0 // pred_fallthru
    _

// kernel: discriminator_forward.9
$region0: #{discriminator_forward.9}
  #allocation0 [shape = 'u32[]', space=smem, size = 0x4, offset = 0x4, fixed_abs, tag = 'smem constant byte address 0x4 - core index']
  #allocation1 [shape = 'u32[144,128]{1,0:T(1,128)}', space=vmem, size = 0x12000, scoped, tag = 'internal scratch']
  #allocation2 [shape = 'f32[1,1]{1,0:T(1,128)S(1)}', space=vmem, size = 0x200, scoped, tag = 'scoped memory for discriminator_forward.9']
  %s0 = inlined_call_operand.vmem [shape: bf16[2,4096], index: 0, kind: input, shape index: {}]
  %s1 = inlined_call_operand.vmem [shape: bf16[4096,64], index: 1, kind: input, shape index: {}]
  %s2 = inlined_call_operand.vmem [shape: f32[1,64], index: 2, kind: input, shape index: {}]
  %s3 = inlined_call_operand.vmem [shape: f32[1,64], index: 3, kind: input, shape index: {}]
  %s4 = inlined_call_operand.<no memory space> [shape: f32[1,1], index: 4, kind: input, shape index: {}]
  %s5 = inlined_call_operand.vmem [shape: f32[2,1], index: 5, kind: output, shape index: {}]
  %s6 = sld [smem:[#allocation0]]
  $region30: #{discriminator_forward.9} parent=0
    _
  %s8 = ssub.s32 1, %s6
  %s9 = scalar_select 0, %s8, %s6
  %v10 = vstv %s4
  %11 = vst [vmem:[#allocation2] sm:$0x1] %v10
  // Predicated region
  $region2: #{discriminator_forward.9} parent=0 // pred_check
    _
  $region3: #{discriminator_forward.9} parent=0 // pred_check_branch
    %13 = sbr.rel (0) target = $region5
  $region4: #{discriminator_forward.9} parent=0 // pred_region
    _
  $region5: #{discriminator_forward.9} parent=0 // pred_fallthru
    _
  // Predicated region
  $region6: #{discriminator_forward.9} parent=0 // pred_check
    _
  $region7: #{discriminator_forward.9} parent=0 // pred_check_branch
    %15 = sbr.rel (0) target = $region9
  $region8: #{discriminator_forward.9} parent=0 // pred_region
    _
  $region9: #{discriminator_forward.9} parent=0 // pred_fallthru
    _
  // Predicated region
  $region10: #{discriminator_forward.9} parent=0 // pred_check
    _
  $region11: #{discriminator_forward.9} parent=0 // pred_check_branch
    %17 = sbr.rel (0) target = $region13
  $region12: #{discriminator_forward.9} parent=0 // pred_region
    _
  $region13: #{discriminator_forward.9} parent=0 // pred_fallthru
    _
  // Predicated region
  $region14: #{discriminator_forward.9} parent=0 // pred_check
    _
  $region15: #{discriminator_forward.9} parent=0 // pred_check_branch
    %19 = sbr.rel (0) target = $region17
  $region16: #{discriminator_forward.9} parent=0 // pred_region
    _
  $region17: #{discriminator_forward.9} parent=0 // pred_fallthru
    _
  // Predicated region
  $region18: #{discriminator_forward.9} parent=0 // pred_check
    _
  $region19: #{discriminator_forward.9} parent=0 // pred_check_branch
    %21 = sbr.rel (0) target = $region21
  $region20: #{discriminator_forward.9} parent=0 // pred_region
    _
  $region21: #{discriminator_forward.9} parent=0 // pred_fallthru
    _
  %v23 = vld [vmem:[%s0] sm:$0xff]
  %v24 = vld [vmem:[%s0 + $0x8] sm:$0xff]
  %v25 = vld [vmem:[%s0 + $0x10] sm:$0xff]
  %v26 = vld [vmem:[%s0 + $0x18] sm:$0xff]
  %v27 = vld [vmem:[%s1] sm:$0xf]
  %v28 = vld [vmem:[%s1 + $0x4] sm:$0xf]
  %v29 = vld [vmem:[%s1 + $0x8] sm:$0xf]
  %v30 = vld [vmem:[%s1 + $0xc] sm:$0xf]
  %v31 = vld [vmem:[%s1 + $0x10] sm:$0xf]
  %v32 = vld [vmem:[%s1 + $0x14] sm:$0xf]
  %v33 = vld [vmem:[%s1 + $0x18] sm:$0xf]
  %v34 = vld [vmem:[%s1 + $0x1c] sm:$0xf]
  %v35 = vld [vmem:[%s1 + $0x20] sm:$0xf]
  %v36 = vld [vmem:[%s1 + $0x24] sm:$0xf]
  %v37 = vld [vmem:[%s1 + $0x28] sm:$0xf]
  %v38 = vld [vmem:[%s1 + $0x2c] sm:$0xf]
  %v39 = vld [vmem:[%s1 + $0x30] sm:$0xf]
  %v40 = vld [vmem:[%s1 + $0x34] sm:$0xf]
  %v41 = vld [vmem:[%s1 + $0x38] sm:$0xf]
  %v42 = vld [vmem:[%s1 + $0x3c] sm:$0xf]
  %v43 = vld [vmem:[%s1 + $0x40] sm:$0xf]
  %v44 = vld [vmem:[%s1 + $0x44] sm:$0xf]
  %v45 = vld [vmem:[%s1 + $0x48] sm:$0xf]
  %v46 = vld [vmem:[%s1 + $0x4c] sm:$0xf]
  %v47 = vld [vmem:[%s1 + $0x50] sm:$0xf]
  %v48 = vld [vmem:[%s1 + $0x54] sm:$0xf]
  %v49 = vld [vmem:[%s1 + $0x58] sm:$0xf]
  %v50 = vld [vmem:[%s1 + $0x5c] sm:$0xf]
  %v51 = vld [vmem:[%s1 + $0x60] sm:$0xf]
  %v52 = vld [vmem:[%s1 + $0x64] sm:$0xf]
  %v53 = vld [vmem:[%s1 + $0x68] sm:$0xf]
  %v54 = vld [vmem:[%s1 + $0x6c] sm:$0xf]
  %v55 = vld [vmem:[%s1 + $0x70] sm:$0xf]
  %v56 = vld [vmem:[%s1 + $0x74] sm:$0xf]
  %v57 = vld [vmem:[%s1 + $0x78] sm:$0xf]
  %v58 = vld [vmem:[%s1 + $0x7c] sm:$0xf]
  %v59 = vld [vmem:[%s1 + $0x80] sm:$0xf]
  %v60 = vld [vmem:[%s1 + $0x84] sm:$0xf]
  %v61 = vld [vmem:[%s1 + $0x88] sm:$0xf]
  %v62 = vld [vmem:[%s1 + $0x8c] sm:$0xf]
  %v63 = vld [vmem:[%s1 + $0x90] sm:$0xf]
  %v64 = vld [vmem:[%s1 + $0x94] sm:$0xf]
  %v65 = vld [vmem:[%s1 + $0x98] sm:$0xf]
  %v66 = vld [vmem:[%s1 + $0x9c] sm:$0xf]
  %v67 = vld [vmem:[%s1 + $0xa0] sm:$0xf]
  %v68 = vld [vmem:[%s1 + $0xa4] sm:$0xf]
  %v69 = vld [vmem:[%s1 + $0xa8] sm:$0xf]
  %v70 = vld [vmem:[%s1 + $0xac] sm:$0xf]
  %v71 = vld [vmem:[%s1 + $0xb0] sm:$0xf]
  %v72 = vld [vmem:[%s1 + $0xb4] sm:$0xf]
  %v73 = vld [vmem:[%s1 + $0xb8] sm:$0xf]
  %v74 = vld [vmem:[%s1 + $0xbc] sm:$0xf]
  %v75 = vld [vmem:[%s1 + $0xc0] sm:$0xf]
  %v76 = vld [vmem:[%s1 + $0xc4] sm:$0xf]
  %v77 = vld [vmem:[%s1 + $0xc8] sm:$0xf]
  %v78 = vld [vmem:[%s1 + $0xcc] sm:$0xf]
  %v79 = vld [vmem:[%s1 + $0xd0] sm:$0xf]
  %v80 = vld [vmem:[%s1 + $0xd4] sm:$0xf]
  %v81 = vld [vmem:[%s1 + $0xd8] sm:$0xf]
  %v82 = vld [vmem:[%s1 + $0xdc] sm:$0xf]
  %v83 = vld [vmem:[%s1 + $0xe0] sm:$0xf]
  %v84 = vld [vmem:[%s1 + $0xe4] sm:$0xf]
  %v85 = vld [vmem:[%s1 + $0xe8] sm:$0xf]
  %v86 = vld [vmem:[%s1 + $0xec] sm:$0xf]
  %v87 = vld [vmem:[%s1 + $0xf0] sm:$0xf]
  %v88 = vld [vmem:[%s1 + $0xf4] sm:$0xf]
  %v89 = vld [vmem:[%s1 + $0xf8] sm:$0xf]
  %v90 = vld [vmem:[%s1 + $0xfc] sm:$0xf]
  %v91 = vld [vmem:[%s1 + $0x100] sm:$0xf]
  %v92 = vld [vmem:[%s1 + $0x104] sm:$0xf]
  %v93 = vld [vmem:[%s1 + $0x108] sm:$0xf]
  %v94 = vld [vmem:[%s1 + $0x10c] sm:$0xf]
  %v95 = vld [vmem:[%s1 + $0x110] sm:$0xf]
  %v96 = vld [vmem:[%s1 + $0x114] sm:$0xf]
  %v97 = vld [vmem:[%s1 + $0x118] sm:$0xf]
  %v98 = vld [vmem:[%s1 + $0x11c] sm:$0xf]
  %v99 = vld [vmem:[%s1 + $0x120] sm:$0xf]
  %v100 = vld [vmem:[%s1 + $0x124] sm:$0xf]
  %v101 = vld [vmem:[%s1 + $0x128] sm:$0xf]
  %v102 = vld [vmem:[%s1 + $0x12c] sm:$0xf]
  %v103 = vld [vmem:[%s1 + $0x130] sm:$0xf]
  %v104 = vld [vmem:[%s1 + $0x134] sm:$0xf]
  %v105 = vld [vmem:[%s1 + $0x138] sm:$0xf]
  %v106 = vld [vmem:[%s1 + $0x13c] sm:$0xf]
  %v107 = vld [vmem:[%s1 + $0x140] sm:$0xf]
  %v108 = vld [vmem:[%s1 + $0x144] sm:$0xf]
  %v109 = vld [vmem:[%s1 + $0x148] sm:$0xf]
  %v110 = vld [vmem:[%s1 + $0x14c] sm:$0xf]
  %v111 = vld [vmem:[%s1 + $0x150] sm:$0xf]
  %v112 = vld [vmem:[%s1 + $0x154] sm:$0xf]
  %v113 = vld [vmem:[%s1 + $0x158] sm:$0xf]
  %v114 = vld [vmem:[%s1 + $0x15c] sm:$0xf]
  %v115 = vld [vmem:[%s1 + $0x160] sm:$0xf]
  %v116 = vld [vmem:[%s1 + $0x164] sm:$0xf]
  %v117 = vld [vmem:[%s1 + $0x168] sm:$0xf]
  %v118 = vld [vmem:[%s1 + $0x16c] sm:$0xf]
  %v119 = vld [vmem:[%s1 + $0x170] sm:$0xf]
  %v120 = vld [vmem:[%s1 + $0x174] sm:$0xf]
  %v121 = vld [vmem:[%s1 + $0x178] sm:$0xf]
  %v122 = vld [vmem:[%s1 + $0x17c] sm:$0xf]
  %v123 = vld [vmem:[%s1 + $0x180] sm:$0xf]
  %v124 = vld [vmem:[%s1 + $0x184] sm:$0xf]
  %v125 = vld [vmem:[%s1 + $0x188] sm:$0xf]
  %v126 = vld [vmem:[%s1 + $0x18c] sm:$0xf]
  %v127 = vld [vmem:[%s1 + $0x190] sm:$0xf]
  %v128 = vld [vmem:[%s1 + $0x194] sm:$0xf]
  %v129 = vld [vmem:[%s1 + $0x198] sm:$0xf]
  %v130 = vld [vmem:[%s1 + $0x19c] sm:$0xf]
  %v131 = vld [vmem:[%s1 + $0x1a0] sm:$0xf]
  %v132 = vld [vmem:[%s1 + $0x1a4] sm:$0xf]
  %v133 = vld [vmem:[%s1 + $0x1a8] sm:$0xf]
  %v134 = vld [vmem:[%s1 + $0x1ac] sm:$0xf]
  %v135 = vld [vmem:[%s1 + $0x1b0] sm:$0xf]
  %v136 = vld [vmem:[%s1 + $0x1b4] sm:$0xf]
  %v137 = vld [vmem:[%s1 + $0x1b8] sm:$0xf]
  %v138 = vld [vmem:[%s1 + $0x1bc] sm:$0xf]
  %v139 = vld [vmem:[%s1 + $0x1c0] sm:$0xf]
  %v140 = vld [vmem:[%s1 + $0x1c4] sm:$0xf]
  %v141 = vld [vmem:[%s1 + $0x1c8] sm:$0xf]
  %v142 = vld [vmem:[%s1 + $0x1cc] sm:$0xf]
  %v143 = vld [vmem:[%s1 + $0x1d0] sm:$0xf]
  %v144 = vld [vmem:[%s1 + $0x1d4] sm:$0xf]
  %v145 = vld [vmem:[%s1 + $0x1d8] sm:$0xf]
  %v146 = vld [vmem:[%s1 + $0x1dc] sm:$0xf]
  %v147 = vld [vmem:[%s1 + $0x1e0] sm:$0xf]
  %v148 = vld [vmem:[%s1 + $0x1e4] sm:$0xf]
  %v149 = vld [vmem:[%s1 + $0x1e8] sm:$0xf]
  %v150 = vld [vmem:[%s1 + $0x1ec] sm:$0xf]
  %v151 = vld [vmem:[%s1 + $0x1f0] sm:$0xf]
  %v152 = vld [vmem:[%s1 + $0x1f4] sm:$0xf]
  %v153 = vld [vmem:[%s1 + $0x1f8] sm:$0xf]
  %v154 = vld [vmem:[%s1 + $0x1fc] sm:$0xf]
  %v155 = vld [vmem:[%s1 + $0x200] sm:$0xf]
  %v156 = vld [vmem:[%s1 + $0x204] sm:$0xf]
  %v157 = vld [vmem:[%s1 + $0x208] sm:$0xf]
  %v158 = vld [vmem:[%s1 + $0x20c] sm:$0xf]
  %v159 = vld [vmem:[%s1 + $0x210] sm:$0xf]
  %v160 = vld [vmem:[%s1 + $0x214] sm:$0xf]
  %v161 = vld [vmem:[%s1 + $0x218] sm:$0xf]
  %v162 = vld [vmem:[%s1 + $0x21c] sm:$0xf]
  %v163 = vld [vmem:[%s1 + $0x220] sm:$0xf]
  %v164 = vld [vmem:[%s1 + $0x224] sm:$0xf]
  %v165 = vld [vmem:[%s1 + $0x228] sm:$0xf]
  %v166 = vld [vmem:[%s1 + $0x22c] sm:$0xf]
  %v167 = vld [vmem:[%s1 + $0x230] sm:$0xf]
  %v168 = vld [vmem:[%s1 + $0x234] sm:$0xf]
  %v169 = vld [vmem:[%s1 + $0x238] sm:$0xf]
  %v170 = vld [vmem:[%s1 + $0x23c] sm:$0xf]
  %v171 = vld [vmem:[%s1 + $0x240] sm:$0xf]
  %v172 = vld [vmem:[%s1 + $0x244] sm:$0xf]
  %v173 = vld [vmem:[%s1 + $0x248] sm:$0xf]
  %v174 = vld [vmem:[%s1 + $0x24c] sm:$0xf]
  %v175 = vld [vmem:[%s1 + $0x250] sm:$0xf]
  %v176 = vld [vmem:[%s1 + $0x254] sm:$0xf]
  %v177 = vld [vmem:[%s1 + $0x258] sm:$0xf]
  %v178 = vld [vmem:[%s1 + $0x25c] sm:$0xf]
  %v179 = vld [vmem:[%s1 + $0x260] sm:$0xf]
  %v180 = vld [vmem:[%s1 + $0x264] sm:$0xf]
  %v181 = vld [vmem:[%s1 + $0x268] sm:$0xf]
  %v182 = vld [vmem:[%s1 + $0x26c] sm:$0xf]
  %v183 = vld [vmem:[%s1 + $0x270] sm:$0xf]
  %v184 = vld [vmem:[%s1 + $0x274] sm:$0xf]
  %v185 = vld [vmem:[%s1 + $0x278] sm:$0xf]
  %v186 = vld [vmem:[%s1 + $0x27c] sm:$0xf]
  %v187 = vld [vmem:[%s1 + $0x280] sm:$0xf]
  %v188 = vld [vmem:[%s1 + $0x284] sm:$0xf]
  %v189 = vld [vmem:[%s1 + $0x288] sm:$0xf]
  %v190 = vld [vmem:[%s1 + $0x28c] sm:$0xf]
  %v191 = vld [vmem:[%s1 + $0x290] sm:$0xf]
  %v192 = vld [vmem:[%s1 + $0x294] sm:$0xf]
  %v193 = vld [vmem:[%s1 + $0x298] sm:$0xf]
  %v194 = vld [vmem:[%s1 + $0x29c] sm:$0xf]
  %v195 = vld [vmem:[%s1 + $0x2a0] sm:$0xf]
  %v196 = vld [vmem:[%s1 + $0x2a4] sm:$0xf]
  %v197 = vld [vmem:[%s1 + $0x2a8] sm:$0xf]
  %v198 = vld [vmem:[%s1 + $0x2ac] sm:$0xf]
  %v199 = vld [vmem:[%s1 + $0x2b0] sm:$0xf]
  %v200 = vld [vmem:[%s1 + $0x2b4] sm:$0xf]
  %v201 = vld [vmem:[%s1 + $0x2b8] sm:$0xf]
  %v202 = vld [vmem:[%s1 + $0x2bc] sm:$0xf]
  %v203 = vld [vmem:[%s1 + $0x2c0] sm:$0xf]
  %v204 = vld [vmem:[%s1 + $0x2c4] sm:$0xf]
  %v205 = vld [vmem:[%s1 + $0x2c8] sm:$0xf]
  %v206 = vld [vmem:[%s1 + $0x2cc] sm:$0xf]
  %v207 = vld [vmem:[%s1 + $0x2d0] sm:$0xf]
  %v208 = vld [vmem:[%s1 + $0x2d4] sm:$0xf]
  %v209 = vld [vmem:[%s1 + $0x2d8] sm:$0xf]
  %v210 = vld [vmem:[%s1 + $0x2dc] sm:$0xf]
  %v211 = vld [vmem:[%s1 + $0x2e0] sm:$0xf]
  %v212 = vld [vmem:[%s1 + $0x2e4] sm:$0xf]
  %v213 = vld [vmem:[%s1 + $0x2e8] sm:$0xf]
  %v214 = vld [vmem:[%s1 + $0x2ec] sm:$0xf]
  %v215 = vld [vmem:[%s1 + $0x2f0] sm:$0xf]
  %v216 = vld [vmem:[%s1 + $0x2f4] sm:$0xf]
  %v217 = vld [vmem:[%s1 + $0x2f8] sm:$0xf]
  %v218 = vld [vmem:[%s1 + $0x2fc] sm:$0xf]
  %v219 = vld [vmem:[%s1 + $0x300] sm:$0xf]
  %v220 = vld [vmem:[%s1 + $0x304] sm:$0xf]
  %v221 = vld [vmem:[%s1 + $0x308] sm:$0xf]
  %v222 = vld [vmem:[%s1 + $0x30c] sm:$0xf]
  %v223 = vld [vmem:[%s1 + $0x310] sm:$0xf]
  %v224 = vld [vmem:[%s1 + $0x314] sm:$0xf]
  %v225 = vld [vmem:[%s1 + $0x318] sm:$0xf]
  %v226 = vld [vmem:[%s1 + $0x31c] sm:$0xf]
  %v227 = vld [vmem:[%s1 + $0x320] sm:$0xf]
  %v228 = vld [vmem:[%s1 + $0x324] sm:$0xf]
  %v229 = vld [vmem:[%s1 + $0x328] sm:$0xf]
  %v230 = vld [vmem:[%s1 + $0x32c] sm:$0xf]
  %v231 = vld [vmem:[%s1 + $0x330] sm:$0xf]
  %v232 = vld [vmem:[%s1 + $0x334] sm:$0xf]
  %v233 = vld [vmem:[%s1 + $0x338] sm:$0xf]
  %v234 = vld [vmem:[%s1 + $0x33c] sm:$0xf]
  %v235 = vld [vmem:[%s1 + $0x340] sm:$0xf]
  %v236 = vld [vmem:[%s1 + $0x344] sm:$0xf]
  %v237 = vld [vmem:[%s1 + $0x348] sm:$0xf]
  %v238 = vld [vmem:[%s1 + $0x34c] sm:$0xf]
  %v239 = vld [vmem:[%s1 + $0x350] sm:$0xf]
  %v240 = vld [vmem:[%s1 + $0x354] sm:$0xf]
  %v241 = vld [vmem:[%s1 + $0x358] sm:$0xf]
  %v242 = vld [vmem:[%s1 + $0x35c] sm:$0xf]
  %v243 = vld [vmem:[%s1 + $0x360] sm:$0xf]
  %v244 = vld [vmem:[%s1 + $0x364] sm:$0xf]
  %v245 = vld [vmem:[%s1 + $0x368] sm:$0xf]
  %v246 = vld [vmem:[%s1 + $0x36c] sm:$0xf]
  %v247 = vld [vmem:[%s1 + $0x370] sm:$0xf]
  %v248 = vld [vmem:[%s1 + $0x374] sm:$0xf]
  %v249 = vld [vmem:[%s1 + $0x378] sm:$0xf]
  %v250 = vld [vmem:[%s1 + $0x37c] sm:$0xf]
  %v251 = vld [vmem:[%s1 + $0x380] sm:$0xf]
  %v252 = vld [vmem:[%s1 + $0x384] sm:$0xf]
  %v253 = vld [vmem:[%s1 + $0x388] sm:$0xf]
  %v254 = vld [vmem:[%s1 + $0x38c] sm:$0xf]
  %v255 = vld [vmem:[%s1 + $0x390] sm:$0xf]
  %v256 = vld [vmem:[%s1 + $0x394] sm:$0xf]
  %v257 = vld [vmem:[%s1 + $0x398] sm:$0xf]
  %v258 = vld [vmem:[%s1 + $0x39c] sm:$0xf]
  %v259 = vld [vmem:[%s1 + $0x3a0] sm:$0xf]
  %v260 = vld [vmem:[%s1 + $0x3a4] sm:$0xf]
  %v261 = vld [vmem:[%s1 + $0x3a8] sm:$0xf]
  %v262 = vld [vmem:[%s1 + $0x3ac] sm:$0xf]
  %v263 = vld [vmem:[%s1 + $0x3b0] sm:$0xf]
  %v264 = vld [vmem:[%s1 + $0x3b4] sm:$0xf]
  %v265 = vld [vmem:[%s1 + $0x3b8] sm:$0xf]
  %v266 = vld [vmem:[%s1 + $0x3bc] sm:$0xf]
  %v267 = vld [vmem:[%s1 + $0x3c0] sm:$0xf]
  %v268 = vld [vmem:[%s1 + $0x3c4] sm:$0xf]
  %v269 = vld [vmem:[%s1 + $0x3c8] sm:$0xf]
  %v270 = vld [vmem:[%s1 + $0x3cc] sm:$0xf]
  %v271 = vld [vmem:[%s1 + $0x3d0] sm:$0xf]
  %v272 = vld [vmem:[%s1 + $0x3d4] sm:$0xf]
  %v273 = vld [vmem:[%s1 + $0x3d8] sm:$0xf]
  %v274 = vld [vmem:[%s1 + $0x3dc] sm:$0xf]
  %v275 = vld [vmem:[%s1 + $0x3e0] sm:$0xf]
  %v276 = vld [vmem:[%s1 + $0x3e4] sm:$0xf]
  %v277 = vld [vmem:[%s1 + $0x3e8] sm:$0xf]
  %v278 = vld [vmem:[%s1 + $0x3ec] sm:$0xf]
  %v279 = vld [vmem:[%s1 + $0x3f0] sm:$0xf]
  %v280 = vld [vmem:[%s1 + $0x3f4] sm:$0xf]
  %v281 = vld [vmem:[%s1 + $0x3f8] sm:$0xf]
  %v282 = vld [vmem:[%s1 + $0x3fc] sm:$0xf]
  %v283 = vld [vmem:[%s1 + $0x400] sm:$0xf]
  %v284 = vld [vmem:[%s1 + $0x404] sm:$0xf]
  %v285 = vld [vmem:[%s1 + $0x408] sm:$0xf]
  %v286 = vld [vmem:[%s1 + $0x40c] sm:$0xf]
  %v287 = vld [vmem:[%s1 + $0x410] sm:$0xf]
  %v288 = vld [vmem:[%s1 + $0x414] sm:$0xf]
  %v289 = vld [vmem:[%s1 + $0x418] sm:$0xf]
  %v290 = vld [vmem:[%s1 + $0x41c] sm:$0xf]
  %v291 = vld [vmem:[%s1 + $0x420] sm:$0xf]
  %v292 = vld [vmem:[%s1 + $0x424] sm:$0xf]
  %v293 = vld [vmem:[%s1 + $0x428] sm:$0xf]
  %v294 = vld [vmem:[%s1 + $0x42c] sm:$0xf]
  %v295 = vld [vmem:[%s1 + $0x430] sm:$0xf]
  %v296 = vld [vmem:[%s1 + $0x434] sm:$0xf]
  %v297 = vld [vmem:[%s1 + $0x438] sm:$0xf]
  %v298 = vld [vmem:[%s1 + $0x43c] sm:$0xf]
  %v299 = vld [vmem:[%s1 + $0x440] sm:$0xf]
  %v300 = vld [vmem:[%s1 + $0x444] sm:$0xf]
  %v301 = vld [vmem:[%s1 + $0x448] sm:$0xf]
  %v302 = vld [vmem:[%s1 + $0x44c] sm:$0xf]
  %v303 = vld [vmem:[%s1 + $0x450] sm:$0xf]
  %v304 = vld [vmem:[%s1 + $0x454] sm:$0xf]
  %v305 = vld [vmem:[%s1 + $0x458] sm:$0xf]
  %v306 = vld [vmem:[%s1 + $0x45c] sm:$0xf]
  %v307 = vld [vmem:[%s1 + $0x460] sm:$0xf]
  %v308 = vld [vmem:[%s1 + $0x464] sm:$0xf]
  %v309 = vld [vmem:[%s1 + $0x468] sm:$0xf]
  %v310 = vld [vmem:[%s1 + $0x46c] sm:$0xf]
  %v311 = vld [vmem:[%s1 + $0x470] sm:$0xf]
  %v312 = vld [vmem:[%s1 + $0x474] sm:$0xf]
  %v313 = vld [vmem:[%s1 + $0x478] sm:$0xf]
  %v314 = vld [vmem:[%s1 + $0x47c] sm:$0xf]
  %v315 = vld [vmem:[%s1 + $0x480] sm:$0xf]
  %v316 = vld [vmem:[%s1 + $0x484] sm:$0xf]
  %v317 = vld [vmem:[%s1 + $0x488] sm:$0xf]
  %v318 = vld [vmem:[%s1 + $0x48c] sm:$0xf]
  %v319 = vld [vmem:[%s1 + $0x490] sm:$0xf]
  %v320 = vld [vmem:[%s1 + $0x494] sm:$0xf]
  %v321 = vld [vmem:[%s1 + $0x498] sm:$0xf]
  %v322 = vld [vmem:[%s1 + $0x49c] sm:$0xf]
  %v323 = vld [vmem:[%s1 + $0x4a0] sm:$0xf]
  %v324 = vld [vmem:[%s1 + $0x4a4] sm:$0xf]
  %v325 = vld [vmem:[%s1 + $0x4a8] sm:$0xf]
  %v326 = vld [vmem:[%s1 + $0x4ac] sm:$0xf]
  %v327 = vld [vmem:[%s1 + $0x4b0] sm:$0xf]
  %v328 = vld [vmem:[%s1 + $0x4b4] sm:$0xf]
  %v329 = vld [vmem:[%s1 + $0x4b8] sm:$0xf]
  %v330 = vld [vmem:[%s1 + $0x4bc] sm:$0xf]
  %v331 = vld [vmem:[%s1 + $0x4c0] sm:$0xf]
  %v332 = vld [vmem:[%s1 + $0x4c4] sm:$0xf]
  %v333 = vld [vmem:[%s1 + $0x4c8] sm:$0xf]
  %v334 = vld [vmem:[%s1 + $0x4cc] sm:$0xf]
  %v335 = vld [vmem:[%s1 + $0x4d0] sm:$0xf]
  %v336 = vld [vmem:[%s1 + $0x4d4] sm:$0xf]
  %v337 = vld [vmem:[%s1 + $0x4d8] sm:$0xf]
  %v338 = vld [vmem:[%s1 + $0x4dc] sm:$0xf]
  %v339 = vld [vmem:[%s1 + $0x4e0] sm:$0xf]
  %v340 = vld [vmem:[%s1 + $0x4e4] sm:$0xf]
  %v341 = vld [vmem:[%s1 + $0x4e8] sm:$0xf]
  %v342 = vld [vmem:[%s1 + $0x4ec] sm:$0xf]
  %v343 = vld [vmem:[%s1 + $0x4f0] sm:$0xf]
  %v344 = vld [vmem:[%s1 + $0x4f4] sm:$0xf]
  %v345 = vld [vmem:[%s1 + $0x4f8] sm:$0xf]
  %v346 = vld [vmem:[%s1 + $0x4fc] sm:$0xf]
  %v347 = vld [vmem:[%s1 + $0x500] sm:$0xf]
  %v348 = vld [vmem:[%s1 + $0x504] sm:$0xf]
  %v349 = vld [vmem:[%s1 + $0x508] sm:$0xf]
  %v350 = vld [vmem:[%s1 + $0x50c] sm:$0xf]
  %v351 = vld [vmem:[%s1 + $0x510] sm:$0xf]
  %v352 = vld [vmem:[%s1 + $0x514] sm:$0xf]
  %v353 = vld [vmem:[%s1 + $0x518] sm:$0xf]
  %v354 = vld [vmem:[%s1 + $0x51c] sm:$0xf]
  %v355 = vld [vmem:[%s1 + $0x520] sm:$0xf]
  %v356 = vld [vmem:[%s1 + $0x524] sm:$0xf]
  %v357 = vld [vmem:[%s1 + $0x528] sm:$0xf]
  %v358 = vld [vmem:[%s1 + $0x52c] sm:$0xf]
  %v359 = vld [vmem:[%s1 + $0x530] sm:$0xf]
  %v360 = vld [vmem:[%s1 + $0x534] sm:$0xf]
  %v361 = vld [vmem:[%s1 + $0x538] sm:$0xf]
  %v362 = vld [vmem:[%s1 + $0x53c] sm:$0xf]
  %v363 = vld [vmem:[%s1 + $0x540] sm:$0xf]
  %v364 = vld [vmem:[%s1 + $0x544] sm:$0xf]
  %v365 = vld [vmem:[%s1 + $0x548] sm:$0xf]
  %v366 = vld [vmem:[%s1 + $0x54c] sm:$0xf]
  %v367 = vld [vmem:[%s1 + $0x550] sm:$0xf]
  %v368 = vld [vmem:[%s1 + $0x554] sm:$0xf]
  %v369 = vld [vmem:[%s1 + $0x558] sm:$0xf]
  %v370 = vld [vmem:[%s1 + $0x55c] sm:$0xf]
  %v371 = vld [vmem:[%s1 + $0x560] sm:$0xf]
  %v372 = vld [vmem:[%s1 + $0x564] sm:$0xf]
  %v373 = vld [vmem:[%s1 + $0x568] sm:$0xf]
  %v374 = vld [vmem:[%s1 + $0x56c] sm:$0xf]
  %v375 = vld [vmem:[%s1 + $0x570] sm:$0xf]
  %v376 = vld [vmem:[%s1 + $0x574] sm:$0xf]
  %v377 = vld [vmem:[%s1 + $0x578] sm:$0xf]
  %v378 = vld [vmem:[%s1 + $0x57c] sm:$0xf]
  %v379 = vld [vmem:[%s1 + $0x580] sm:$0xf]
  %v380 = vld [vmem:[%s1 + $0x584] sm:$0xf]
  %v381 = vld [vmem:[%s1 + $0x588] sm:$0xf]
  %v382 = vld [vmem:[%s1 + $0x58c] sm:$0xf]
  %v383 = vld [vmem:[%s1 + $0x590] sm:$0xf]
  %v384 = vld [vmem:[%s1 + $0x594] sm:$0xf]
  %v385 = vld [vmem:[%s1 + $0x598] sm:$0xf]
  %v386 = vld [vmem:[%s1 + $0x59c] sm:$0xf]
  %v387 = vld [vmem:[%s1 + $0x5a0] sm:$0xf]
  %v388 = vld [vmem:[%s1 + $0x5a4] sm:$0xf]
  %v389 = vld [vmem:[%s1 + $0x5a8] sm:$0xf]
  %v390 = vld [vmem:[%s1 + $0x5ac] sm:$0xf]
  %v391 = vld [vmem:[%s1 + $0x5b0] sm:$0xf]
  %v392 = vld [vmem:[%s1 + $0x5b4] sm:$0xf]
  %v393 = vld [vmem:[%s1 + $0x5b8] sm:$0xf]
  %v394 = vld [vmem:[%s1 + $0x5bc] sm:$0xf]
  %v395 = vld [vmem:[%s1 + $0x5c0] sm:$0xf]
  %v396 = vld [vmem:[%s1 + $0x5c4] sm:$0xf]
  %v397 = vld [vmem:[%s1 + $0x5c8] sm:$0xf]
  %v398 = vld [vmem:[%s1 + $0x5cc] sm:$0xf]
  %v399 = vld [vmem:[%s1 + $0x5d0] sm:$0xf]
  %v400 = vld [vmem:[%s1 + $0x5d4] sm:$0xf]
  %v401 = vld [vmem:[%s1 + $0x5d8] sm:$0xf]
  %v402 = vld [vmem:[%s1 + $0x5dc] sm:$0xf]
  %v403 = vld [vmem:[%s1 + $0x5e0] sm:$0xf]
  %v404 = vld [vmem:[%s1 + $0x5e4] sm:$0xf]
  %v405 = vld [vmem:[%s1 + $0x5e8] sm:$0xf]
  %v406 = vld [vmem:[%s1 + $0x5ec] sm:$0xf]
  %v407 = vld [vmem:[%s1 + $0x5f0] sm:$0xf]
  %v408 = vld [vmem:[%s1 + $0x5f4] sm:$0xf]
  %v409 = vld [vmem:[%s1 + $0x5f8] sm:$0xf]
  %v410 = vld [vmem:[%s1 + $0x5fc] sm:$0xf]
  %v411 = vld [vmem:[%s1 + $0x600] sm:$0xf]
  %v412 = vld [vmem:[%s1 + $0x604] sm:$0xf]
  %v413 = vld [vmem:[%s1 + $0x608] sm:$0xf]
  %v414 = vld [vmem:[%s1 + $0x60c] sm:$0xf]
  %v415 = vld [vmem:[%s1 + $0x610] sm:$0xf]
  %v416 = vld [vmem:[%s1 + $0x614] sm:$0xf]
  %v417 = vld [vmem:[%s1 + $0x618] sm:$0xf]
  %v418 = vld [vmem:[%s1 + $0x61c] sm:$0xf]
  %v419 = vld [vmem:[%s1 + $0x620] sm:$0xf]
  %v420 = vld [vmem:[%s1 + $0x624] sm:$0xf]
  %v421 = vld [vmem:[%s1 + $0x628] sm:$0xf]
  %v422 = vld [vmem:[%s1 + $0x62c] sm:$0xf]
  %v423 = vld [vmem:[%s1 + $0x630] sm:$0xf]
  %v424 = vld [vmem:[%s1 + $0x634] sm:$0xf]
  %v425 = vld [vmem:[%s1 + $0x638] sm:$0xf]
  %v426 = vld [vmem:[%s1 + $0x63c] sm:$0xf]
  %v427 = vld [vmem:[%s1 + $0x640] sm:$0xf]
  %v428 = vld [vmem:[%s1 + $0x644] sm:$0xf]
  %v429 = vld [vmem:[%s1 + $0x648] sm:$0xf]
  %v430 = vld [vmem:[%s1 + $0x64c] sm:$0xf]
  %v431 = vld [vmem:[%s1 + $0x650] sm:$0xf]
  %v432 = vld [vmem:[%s1 + $0x654] sm:$0xf]
  %v433 = vld [vmem:[%s1 + $0x658] sm:$0xf]
  %v434 = vld [vmem:[%s1 + $0x65c] sm:$0xf]
  %v435 = vld [vmem:[%s1 + $0x660] sm:$0xf]
  %v436 = vld [vmem:[%s1 + $0x664] sm:$0xf]
  %v437 = vld [vmem:[%s1 + $0x668] sm:$0xf]
  %v438 = vld [vmem:[%s1 + $0x66c] sm:$0xf]
  %v439 = vld [vmem:[%s1 + $0x670] sm:$0xf]
  %v440 = vld [vmem:[%s1 + $0x674] sm:$0xf]
  %v441 = vld [vmem:[%s1 + $0x678] sm:$0xf]
  %v442 = vld [vmem:[%s1 + $0x67c] sm:$0xf]
  %v443 = vld [vmem:[%s1 + $0x680] sm:$0xf]
  %v444 = vld [vmem:[%s1 + $0x684] sm:$0xf]
  %v445 = vld [vmem:[%s1 + $0x688] sm:$0xf]
  %v446 = vld [vmem:[%s1 + $0x68c] sm:$0xf]
  %v447 = vld [vmem:[%s1 + $0x690] sm:$0xf]
  %v448 = vld [vmem:[%s1 + $0x694] sm:$0xf]
  %v449 = vld [vmem:[%s1 + $0x698] sm:$0xf]
  %v450 = vld [vmem:[%s1 + $0x69c] sm:$0xf]
  %v451 = vld [vmem:[%s1 + $0x6a0] sm:$0xf]
  %v452 = vld [vmem:[%s1 + $0x6a4] sm:$0xf]
  %v453 = vld [vmem:[%s1 + $0x6a8] sm:$0xf]
  %v454 = vld [vmem:[%s1 + $0x6ac] sm:$0xf]
  %v455 = vld [vmem:[%s1 + $0x6b0] sm:$0xf]
  %v456 = vld [vmem:[%s1 + $0x6b4] sm:$0xf]
  %v457 = vld [vmem:[%s1 + $0x6b8] sm:$0xf]
  %v458 = vld [vmem:[%s1 + $0x6bc] sm:$0xf]
  %v459 = vld [vmem:[%s1 + $0x6c0] sm:$0xf]
  %v460 = vld [vmem:[%s1 + $0x6c4] sm:$0xf]
  %v461 = vld [vmem:[%s1 + $0x6c8] sm:$0xf]
  %v462 = vld [vmem:[%s1 + $0x6cc] sm:$0xf]
  %v463 = vld [vmem:[%s1 + $0x6d0] sm:$0xf]
  %v464 = vld [vmem:[%s1 + $0x6d4] sm:$0xf]
  %v465 = vld [vmem:[%s1 + $0x6d8] sm:$0xf]
  %v466 = vld [vmem:[%s1 + $0x6dc] sm:$0xf]
  %v467 = vld [vmem:[%s1 + $0x6e0] sm:$0xf]
  %v468 = vld [vmem:[%s1 + $0x6e4] sm:$0xf]
  %v469 = vld [vmem:[%s1 + $0x6e8] sm:$0xf]
  %v470 = vld [vmem:[%s1 + $0x6ec] sm:$0xf]
  %v471 = vld [vmem:[%s1 + $0x6f0] sm:$0xf]
  %v472 = vld [vmem:[%s1 + $0x6f4] sm:$0xf]
  %v473 = vld [vmem:[%s1 + $0x6f8] sm:$0xf]
  %v474 = vld [vmem:[%s1 + $0x6fc] sm:$0xf]
  %v475 = vld [vmem:[%s1 + $0x700] sm:$0xf]
  %v476 = vld [vmem:[%s1 + $0x704] sm:$0xf]
  %v477 = vld [vmem:[%s1 + $0x708] sm:$0xf]
  %v478 = vld [vmem:[%s1 + $0x70c] sm:$0xf]
  %v479 = vld [vmem:[%s1 + $0x710] sm:$0xf]
  %v480 = vld [vmem:[%s1 + $0x714] sm:$0xf]
  %v481 = vld [vmem:[%s1 + $0x718] sm:$0xf]
  %v482 = vld [vmem:[%s1 + $0x71c] sm:$0xf]
  %v483 = vld [vmem:[%s1 + $0x720] sm:$0xf]
  %v484 = vld [vmem:[%s1 + $0x724] sm:$0xf]
  %v485 = vld [vmem:[%s1 + $0x728] sm:$0xf]
  %v486 = vld [vmem:[%s1 + $0x72c] sm:$0xf]
  %v487 = vld [vmem:[%s1 + $0x730] sm:$0xf]
  %v488 = vld [vmem:[%s1 + $0x734] sm:$0xf]
  %v489 = vld [vmem:[%s1 + $0x738] sm:$0xf]
  %v490 = vld [vmem:[%s1 + $0x73c] sm:$0xf]
  %v491 = vld [vmem:[%s1 + $0x740] sm:$0xf]
  %v492 = vld [vmem:[%s1 + $0x744] sm:$0xf]
  %v493 = vld [vmem:[%s1 + $0x748] sm:$0xf]
  %v494 = vld [vmem:[%s1 + $0x74c] sm:$0xf]
  %v495 = vld [vmem:[%s1 + $0x750] sm:$0xf]
  %v496 = vld [vmem:[%s1 + $0x754] sm:$0xf]
  %v497 = vld [vmem:[%s1 + $0x758] sm:$0xf]
  %v498 = vld [vmem:[%s1 + $0x75c] sm:$0xf]
  %v499 = vld [vmem:[%s1 + $0x760] sm:$0xf]
  %v500 = vld [vmem:[%s1 + $0x764] sm:$0xf]
  %v501 = vld [vmem:[%s1 + $0x768] sm:$0xf]
  %v502 = vld [vmem:[%s1 + $0x76c] sm:$0xf]
  %v503 = vld [vmem:[%s1 + $0x770] sm:$0xf]
  %v504 = vld [vmem:[%s1 + $0x774] sm:$0xf]
  %v505 = vld [vmem:[%s1 + $0x778] sm:$0xf]
  %v506 = vld [vmem:[%s1 + $0x77c] sm:$0xf]
  %v507 = vld [vmem:[%s1 + $0x780] sm:$0xf]
  %v508 = vld [vmem:[%s1 + $0x784] sm:$0xf]
  %v509 = vld [vmem:[%s1 + $0x788] sm:$0xf]
  %v510 = vld [vmem:[%s1 + $0x78c] sm:$0xf]
  %v511 = vld [vmem:[%s1 + $0x790] sm:$0xf]
  %v512 = vld [vmem:[%s1 + $0x794] sm:$0xf]
  %v513 = vld [vmem:[%s1 + $0x798] sm:$0xf]
  %v514 = vld [vmem:[%s1 + $0x79c] sm:$0xf]
  %v515 = vld [vmem:[%s1 + $0x7a0] sm:$0xf]
  %v516 = vld [vmem:[%s1 + $0x7a4] sm:$0xf]
  %v517 = vld [vmem:[%s1 + $0x7a8] sm:$0xf]
  %v518 = vld [vmem:[%s1 + $0x7ac] sm:$0xf]
  %v519 = vld [vmem:[%s1 + $0x7b0] sm:$0xf]
  %v520 = vld [vmem:[%s1 + $0x7b4] sm:$0xf]
  %v521 = vld [vmem:[%s1 + $0x7b8] sm:$0xf]
  %v522 = vld [vmem:[%s1 + $0x7bc] sm:$0xf]
  %v523 = vld [vmem:[%s1 + $0x7c0] sm:$0xf]
  %v524 = vld [vmem:[%s1 + $0x7c4] sm:$0xf]
  %v525 = vld [vmem:[%s1 + $0x7c8] sm:$0xf]
  %v526 = vld [vmem:[%s1 + $0x7cc] sm:$0xf]
  %v527 = vld [vmem:[%s1 + $0x7d0] sm:$0xf]
  %v528 = vld [vmem:[%s1 + $0x7d4] sm:$0xf]
  %v529 = vld [vmem:[%s1 + $0x7d8] sm:$0xf]
  %v530 = vld [vmem:[%s1 + $0x7dc] sm:$0xf]
  %v531 = vld [vmem:[%s1 + $0x7e0] sm:$0xf]
  %v532 = vld [vmem:[%s1 + $0x7e4] sm:$0xf]
  %v533 = vld [vmem:[%s1 + $0x7e8] sm:$0xf]
  %v534 = vld [vmem:[%s1 + $0x7ec] sm:$0xf]
  %v535 = vld [vmem:[%s1 + $0x7f0] sm:$0xf]
  %v536 = vld [vmem:[%s1 + $0x7f4] sm:$0xf]
  %v537 = vld [vmem:[%s1 + $0x7f8] sm:$0xf]
  %v538 = vld [vmem:[%s1 + $0x7fc] sm:$0xf]
  %v539 = vld [vmem:[%s2] sm:$0x1]
  %v541 = vlaneseq
  %v542 = vshrl.u32 %v541, 7
  %v543 = vsub.s32 0, %v542
  %v544 = vrot.slane %v539, %v543
  %v550 = vcombine.high %v23, %v23
  %v552 = vunpack.c.l.s4 1966171168
  %v553 = vunpack.c.0.s8 %v552
  %v554 = vlaneseq
  %v555 = vshrl.u32 %v554, 7
  %v556 = vsub.s32 %v553, %v555
  %v557 = vrot.slane %v23, %v556
  %v559 = vunpack.c.l.s4 1966171168
  %v560 = vunpack.c.0.s8 %v559
  %v561 = vlaneseq
  %v562 = vshrl.u32 %v561, 7
  %v563 = vsub.s32 %v560, %v562
  %v564 = vrot.slane %v550, %v563
  %v565 = vcombine.high %v557, %v557
  %v566 = vcombine.high %v564, %v564
  %v568 = vunpack.c.l.s4 1966171168
  %v569 = vunpack.c.0.s8 %v568
  %v570 = vlaneseq
  %v571 = vshrl.u32 %v570, 7
  %v572 = vsub.s32 %v569, %v571
  %v573 = vrot.slane %v557, %v572
  %v575 = vunpack.c.l.s4 1966171168
  %v576 = vunpack.c.0.s8 %v575
  %v577 = vlaneseq
  %v578 = vshrl.u32 %v577, 7
  %v579 = vsub.s32 %v576, %v578
  %v580 = vrot.slane %v564, %v579
  %v582 = vunpack.c.l.s4 1966171168
  %v583 = vunpack.c.0.s8 %v582
  %v584 = vlaneseq
  %v585 = vshrl.u32 %v584, 7
  %v586 = vsub.s32 %v583, %v585
  %v587 = vrot.slane %v565, %v586
  %v589 = vunpack.c.l.s4 1966171168
  %v590 = vunpack.c.0.s8 %v589
  %v591 = vlaneseq
  %v592 = vshrl.u32 %v591, 7
  %v593 = vsub.s32 %v590, %v592
  %v594 = vrot.slane %v566, %v593
  %v595 = vcombine.high %v573, %v573
  %v596 = vcombine.high %v580, %v580
  %v597 = vcombine.high %v587, %v587
  %v598 = vcombine.high %v594, %v594
  %v599 = vcombine.high %v24, %v24
  %v601 = vunpack.c.l.s4 1966171168
  %v602 = vunpack.c.0.s8 %v601
  %v603 = vlaneseq
  %v604 = vshrl.u32 %v603, 7
  %v605 = vsub.s32 %v602, %v604
  %v606 = vrot.slane %v24, %v605
  %v608 = vunpack.c.l.s4 1966171168
  %v609 = vunpack.c.0.s8 %v608
  %v610 = vlaneseq
  %v611 = vshrl.u32 %v610, 7
  %v612 = vsub.s32 %v609, %v611
  %v613 = vrot.slane %v599, %v612
  %v614 = vcombine.high %v606, %v606
  %v615 = vcombine.high %v613, %v613
  %v617 = vunpack.c.l.s4 1966171168
  %v618 = vunpack.c.0.s8 %v617
  %v619 = vlaneseq
  %v620 = vshrl.u32 %v619, 7
  %v621 = vsub.s32 %v618, %v620
  %v622 = vrot.slane %v606, %v621
  %v624 = vunpack.c.l.s4 1966171168
  %v625 = vunpack.c.0.s8 %v624
  %v626 = vlaneseq
  %v627 = vshrl.u32 %v626, 7
  %v628 = vsub.s32 %v625, %v627
  %v629 = vrot.slane %v613, %v628
  %v631 = vunpack.c.l.s4 1966171168
  %v632 = vunpack.c.0.s8 %v631
  %v633 = vlaneseq
  %v634 = vshrl.u32 %v633, 7
  %v635 = vsub.s32 %v632, %v634
  %v636 = vrot.slane %v614, %v635
  %v638 = vunpack.c.l.s4 1966171168
  %v639 = vunpack.c.0.s8 %v638
  %v640 = vlaneseq
  %v641 = vshrl.u32 %v640, 7
  %v642 = vsub.s32 %v639, %v641
  %v643 = vrot.slane %v615, %v642
  %v644 = vcombine.high %v622, %v622
  %v645 = vcombine.high %v629, %v629
  %v646 = vcombine.high %v636, %v636
  %v647 = vcombine.high %v643, %v643
  %v648 = vcombine.high %v25, %v25
  %v650 = vunpack.c.l.s4 1966171168
  %v651 = vunpack.c.0.s8 %v650
  %v652 = vlaneseq
  %v653 = vshrl.u32 %v652, 7
  %v654 = vsub.s32 %v651, %v653
  %v655 = vrot.slane %v25, %v654
  %v657 = vunpack.c.l.s4 1966171168
  %v658 = vunpack.c.0.s8 %v657
  %v659 = vlaneseq
  %v660 = vshrl.u32 %v659, 7
  %v661 = vsub.s32 %v658, %v660
  %v662 = vrot.slane %v648, %v661
  %v663 = vcombine.high %v655, %v655
  %v664 = vcombine.high %v662, %v662
  %v666 = vunpack.c.l.s4 1966171168
  %v667 = vunpack.c.0.s8 %v666
  %v668 = vlaneseq
  %v669 = vshrl.u32 %v668, 7
  %v670 = vsub.s32 %v667, %v669
  %v671 = vrot.slane %v655, %v670
  %v673 = vunpack.c.l.s4 1966171168
  %v674 = vunpack.c.0.s8 %v673
  %v675 = vlaneseq
  %v676 = vshrl.u32 %v675, 7
  %v677 = vsub.s32 %v674, %v676
  %v678 = vrot.slane %v662, %v677
  %v680 = vunpack.c.l.s4 1966171168
  %v681 = vunpack.c.0.s8 %v680
  %v682 = vlaneseq
  %v683 = vshrl.u32 %v682, 7
  %v684 = vsub.s32 %v681, %v683
  %v685 = vrot.slane %v663, %v684
  %v687 = vunpack.c.l.s4 1966171168
  %v688 = vunpack.c.0.s8 %v687
  %v689 = vlaneseq
  %v690 = vshrl.u32 %v689, 7
  %v691 = vsub.s32 %v688, %v690
  %v692 = vrot.slane %v664, %v691
  %v693 = vcombine.high %v671, %v671
  %v694 = vcombine.high %v678, %v678
  %v695 = vcombine.high %v685, %v685
  %v696 = vcombine.high %v692, %v692
  %v697 = vcombine.high %v26, %v26
  %v699 = vunpack.c.l.s4 1966171168
  %v700 = vunpack.c.0.s8 %v699
  %v701 = vlaneseq
  %v702 = vshrl.u32 %v701, 7
  %v703 = vsub.s32 %v700, %v702
  %v704 = vrot.slane %v26, %v703
  %v706 = vunpack.c.l.s4 1966171168
  %v707 = vunpack.c.0.s8 %v706
  %v708 = vlaneseq
  %v709 = vshrl.u32 %v708, 7
  %v710 = vsub.s32 %v707, %v709
  %v711 = vrot.slane %v697, %v710
  %v712 = vcombine.high %v704, %v704
  %v713 = vcombine.high %v711, %v711
  %v715 = vunpack.c.l.s4 1966171168
  %v716 = vunpack.c.0.s8 %v715
  %v717 = vlaneseq
  %v718 = vshrl.u32 %v717, 7
  %v719 = vsub.s32 %v716, %v718
  %v720 = vrot.slane %v704, %v719
  %v722 = vunpack.c.l.s4 1966171168
  %v723 = vunpack.c.0.s8 %v722
  %v724 = vlaneseq
  %v725 = vshrl.u32 %v724, 7
  %v726 = vsub.s32 %v723, %v725
  %v727 = vrot.slane %v711, %v726
  %v729 = vunpack.c.l.s4 1966171168
  %v730 = vunpack.c.0.s8 %v729
  %v731 = vlaneseq
  %v732 = vshrl.u32 %v731, 7
  %v733 = vsub.s32 %v730, %v732
  %v734 = vrot.slane %v712, %v733
  %v736 = vunpack.c.l.s4 1966171168
  %v737 = vunpack.c.0.s8 %v736
  %v738 = vlaneseq
  %v739 = vshrl.u32 %v738, 7
  %v740 = vsub.s32 %v737, %v739
  %v741 = vrot.slane %v713, %v740
  %v742 = vcombine.high %v720, %v720
  %v743 = vcombine.high %v727, %v727
  %v744 = vcombine.high %v734, %v734
  %v745 = vcombine.high %v741, %v741
  %v1290 = vunpack.c.l.b16 %v27
  %v1291 = vunpack.c.l.b16 %v28
  %v1292 = vunpack.c.l.b16 %v29
  %v1293 = vunpack.c.l.b16 %v30
  %v1294 = vunpack.c.l.b16 %v31
  %v1295 = vunpack.c.l.b16 %v32
  %v1296 = vunpack.c.l.b16 %v33
  %v1297 = vunpack.c.l.b16 %v34
  %v1298 = vunpack.c.l.b16 %v35
  %v1299 = vunpack.c.l.b16 %v36
  %v1300 = vunpack.c.l.b16 %v37
  %v1301 = vunpack.c.l.b16 %v38
  %v1302 = vunpack.c.l.b16 %v39
  %v1303 = vunpack.c.l.b16 %v40
  %v1304 = vunpack.c.l.b16 %v41
  %v1305 = vunpack.c.l.b16 %v42
  %v1306 = vunpack.c.l.b16 %v43
  %v1307 = vunpack.c.l.b16 %v44
  %v1308 = vunpack.c.l.b16 %v45
  %v1309 = vunpack.c.l.b16 %v46
  %v1310 = vunpack.c.l.b16 %v47
  %v1311 = vunpack.c.l.b16 %v48
  %v1312 = vunpack.c.l.b16 %v49
  %v1313 = vunpack.c.l.b16 %v50
  %v1314 = vunpack.c.l.b16 %v51
  %v1315 = vunpack.c.l.b16 %v52
  %v1316 = vunpack.c.l.b16 %v53
  %v1317 = vunpack.c.l.b16 %v54
  %v1318 = vunpack.c.l.b16 %v55
  %v1319 = vunpack.c.l.b16 %v56
  %v1320 = vunpack.c.l.b16 %v57
  %v1321 = vunpack.c.l.b16 %v58
  %v1322 = vunpack.c.l.b16 %v59
  %v1323 = vunpack.c.l.b16 %v60
  %v1324 = vunpack.c.l.b16 %v61
  %v1325 = vunpack.c.l.b16 %v62
  %v1326 = vunpack.c.l.b16 %v63
  %v1327 = vunpack.c.l.b16 %v64
  %v1328 = vunpack.c.l.b16 %v65
  %v1329 = vunpack.c.l.b16 %v66
  %v1330 = vunpack.c.l.b16 %v67
  %v1331 = vunpack.c.l.b16 %v68
  %v1332 = vunpack.c.l.b16 %v69
  %v1333 = vunpack.c.l.b16 %v70
  %v1334 = vunpack.c.l.b16 %v71
  %v1335 = vunpack.c.l.b16 %v72
  %v1336 = vunpack.c.l.b16 %v73
  %v1337 = vunpack.c.l.b16 %v74
  %v1338 = vunpack.c.l.b16 %v75
  %v1339 = vunpack.c.l.b16 %v76
  %v1340 = vunpack.c.l.b16 %v77
  %v1341 = vunpack.c.l.b16 %v78
  %v1342 = vunpack.c.l.b16 %v79
  %v1343 = vunpack.c.l.b16 %v80
  %v1344 = vunpack.c.l.b16 %v81
  %v1345 = vunpack.c.l.b16 %v82
  %v1346 = vunpack.c.l.b16 %v83
  %v1347 = vunpack.c.l.b16 %v84
  %v1348 = vunpack.c.l.b16 %v85
  %v1349 = vunpack.c.l.b16 %v86
  %v1350 = vunpack.c.l.b16 %v87
  %v1351 = vunpack.c.l.b16 %v88
  %v1352 = vunpack.c.l.b16 %v89
  %v1353 = vunpack.c.l.b16 %v90
  %v1354 = vunpack.c.l.b16 %v91
  %v1355 = vunpack.c.l.b16 %v92
  %v1356 = vunpack.c.l.b16 %v93
  %v1357 = vunpack.c.l.b16 %v94
  %v1358 = vunpack.c.l.b16 %v95
  %v1359 = vunpack.c.l.b16 %v96
  %v1360 = vunpack.c.l.b16 %v97
  %v1361 = vunpack.c.l.b16 %v98
  %v1362 = vunpack.c.l.b16 %v99
  %v1363 = vunpack.c.l.b16 %v100
  %v1364 = vunpack.c.l.b16 %v101
  %v1365 = vunpack.c.l.b16 %v102
  %v1366 = vunpack.c.l.b16 %v103
  %v1367 = vunpack.c.l.b16 %v104
  %v1368 = vunpack.c.l.b16 %v105
  %v1369 = vunpack.c.l.b16 %v106
  %v1370 = vunpack.c.l.b16 %v107
  %v1371 = vunpack.c.l.b16 %v108
  %v1372 = vunpack.c.l.b16 %v109
  %v1373 = vunpack.c.l.b16 %v110
  %v1374 = vunpack.c.l.b16 %v111
  %v1375 = vunpack.c.l.b16 %v112
  %v1376 = vunpack.c.l.b16 %v113
  %v1377 = vunpack.c.l.b16 %v114
  %v1378 = vunpack.c.l.b16 %v115
  %v1379 = vunpack.c.l.b16 %v116
  %v1380 = vunpack.c.l.b16 %v117
  %v1381 = vunpack.c.l.b16 %v118
  %v1382 = vunpack.c.l.b16 %v119
  %v1383 = vunpack.c.l.b16 %v120
  %v1384 = vunpack.c.l.b16 %v121
  %v1385 = vunpack.c.l.b16 %v122
  %v1386 = vunpack.c.l.b16 %v123
  %v1387 = vunpack.c.l.b16 %v124
  %v1388 = vunpack.c.l.b16 %v125
  %v1389 = vunpack.c.l.b16 %v126
  %v1390 = vunpack.c.l.b16 %v127
  %v1391 = vunpack.c.l.b16 %v128
  %v1392 = vunpack.c.l.b16 %v129
  %v1393 = vunpack.c.l.b16 %v130
  %v1394 = vunpack.c.l.b16 %v131
  %v1395 = vunpack.c.l.b16 %v132
  %v1396 = vunpack.c.l.b16 %v133
  %v1397 = vunpack.c.l.b16 %v134
  %v1398 = vunpack.c.l.b16 %v135
  %v1399 = vunpack.c.l.b16 %v136
  %v1400 = vunpack.c.l.b16 %v137
  %v1401 = vunpack.c.l.b16 %v138
  %v1402 = vunpack.c.l.b16 %v139
  %v1403 = vunpack.c.l.b16 %v140
  %v1404 = vunpack.c.l.b16 %v141
  %v1405 = vunpack.c.l.b16 %v142
  %v1406 = vunpack.c.l.b16 %v143
  %v1407 = vunpack.c.l.b16 %v144
  %v1408 = vunpack.c.l.b16 %v145
  %v1409 = vunpack.c.l.b16 %v146
  %v1410 = vunpack.c.l.b16 %v147
  %v1411 = vunpack.c.l.b16 %v148
  %v1412 = vunpack.c.l.b16 %v149
  %v1413 = vunpack.c.l.b16 %v150
  %v1414 = vunpack.c.l.b16 %v151
  %v1415 = vunpack.c.l.b16 %v152
  %v1416 = vunpack.c.l.b16 %v153
  %v1417 = vunpack.c.l.b16 %v154
  %v1418 = vunpack.c.l.b16 %v155
  %v1419 = vunpack.c.l.b16 %v156
  %v1420 = vunpack.c.l.b16 %v157
  %v1421 = vunpack.c.l.b16 %v158
  %v1422 = vunpack.c.l.b16 %v159
  %v1423 = vunpack.c.l.b16 %v160
  %v1424 = vunpack.c.l.b16 %v161
  %v1425 = vunpack.c.l.b16 %v162
  %v1426 = vunpack.c.l.b16 %v163
  %v1427 = vunpack.c.l.b16 %v164
  %v1428 = vunpack.c.l.b16 %v165
  %v1429 = vunpack.c.l.b16 %v166
  %v1430 = vunpack.c.l.b16 %v167
  %v1431 = vunpack.c.l.b16 %v168
  %v1432 = vunpack.c.l.b16 %v169
  %v1433 = vunpack.c.l.b16 %v170
  %v1434 = vunpack.c.l.b16 %v171
  %v1435 = vunpack.c.l.b16 %v172
  %v1436 = vunpack.c.l.b16 %v173
  %v1437 = vunpack.c.l.b16 %v174
  %v1438 = vunpack.c.l.b16 %v175
  %v1439 = vunpack.c.l.b16 %v176
  %v1440 = vunpack.c.l.b16 %v177
  %v1441 = vunpack.c.l.b16 %v178
  %v1442 = vunpack.c.l.b16 %v179
  %v1443 = vunpack.c.l.b16 %v180
  %v1444 = vunpack.c.l.b16 %v181
  %v1445 = vunpack.c.l.b16 %v182
  %v1446 = vunpack.c.l.b16 %v183
  %v1447 = vunpack.c.l.b16 %v184
  %v1448 = vunpack.c.l.b16 %v185
  %v1449 = vunpack.c.l.b16 %v186
  %v1450 = vunpack.c.l.b16 %v187
  %v1451 = vunpack.c.l.b16 %v188
  %v1452 = vunpack.c.l.b16 %v189
  %v1453 = vunpack.c.l.b16 %v190
  %v1454 = vunpack.c.l.b16 %v191
  %v1455 = vunpack.c.l.b16 %v192
  %v1456 = vunpack.c.l.b16 %v193
  %v1457 = vunpack.c.l.b16 %v194
  %v1458 = vunpack.c.l.b16 %v195
  %v1459 = vunpack.c.l.b16 %v196
  %v1460 = vunpack.c.l.b16 %v197
  %v1461 = vunpack.c.l.b16 %v198
  %v1462 = vunpack.c.l.b16 %v199
  %v1463 = vunpack.c.l.b16 %v200
  %v1464 = vunpack.c.l.b16 %v201
  %v1465 = vunpack.c.l.b16 %v202
  %v1466 = vunpack.c.l.b16 %v203
  %v1467 = vunpack.c.l.b16 %v204
  %v1468 = vunpack.c.l.b16 %v205
  %v1469 = vunpack.c.l.b16 %v206
  %v1470 = vunpack.c.l.b16 %v207
  %v1471 = vunpack.c.l.b16 %v208
  %v1472 = vunpack.c.l.b16 %v209
  %v1473 = vunpack.c.l.b16 %v210
  %v1474 = vunpack.c.l.b16 %v211
  %v1475 = vunpack.c.l.b16 %v212
  %v1476 = vunpack.c.l.b16 %v213
  %v1477 = vunpack.c.l.b16 %v214
  %v1478 = vunpack.c.l.b16 %v215
  %v1479 = vunpack.c.l.b16 %v216
  %v1480 = vunpack.c.l.b16 %v217
  %v1481 = vunpack.c.l.b16 %v218
  %v1482 = vunpack.c.l.b16 %v219
  %v1483 = vunpack.c.l.b16 %v220
  %v1484 = vunpack.c.l.b16 %v221
  %v1485 = vunpack.c.l.b16 %v222
  %v1486 = vunpack.c.l.b16 %v223
  %v1487 = vunpack.c.l.b16 %v224
  %v1488 = vunpack.c.l.b16 %v225
  %v1489 = vunpack.c.l.b16 %v226
  %v1490 = vunpack.c.l.b16 %v227
  %v1491 = vunpack.c.l.b16 %v228
  %v1492 = vunpack.c.l.b16 %v229
  %v1493 = vunpack.c.l.b16 %v230
  %v1494 = vunpack.c.l.b16 %v231
  %v1495 = vunpack.c.l.b16 %v232
  %v1496 = vunpack.c.l.b16 %v233
  %v1497 = vunpack.c.l.b16 %v234
  %v1498 = vunpack.c.l.b16 %v235
  %v1499 = vunpack.c.l.b16 %v236
  %v1500 = vunpack.c.l.b16 %v237
  %v1501 = vunpack.c.l.b16 %v238
  %v1502 = vunpack.c.l.b16 %v239
  %v1503 = vunpack.c.l.b16 %v240
  %v1504 = vunpack.c.l.b16 %v241
  %v1505 = vunpack.c.l.b16 %v242
  %v1506 = vunpack.c.l.b16 %v243
  %v1507 = vunpack.c.l.b16 %v244
  %v1508 = vunpack.c.l.b16 %v245
  %v1509 = vunpack.c.l.b16 %v246
  %v1510 = vunpack.c.l.b16 %v247
  %v1511 = vunpack.c.l.b16 %v248
  %v1512 = vunpack.c.l.b16 %v249
  %v1513 = vunpack.c.l.b16 %v250
  %v1514 = vunpack.c.l.b16 %v251
  %v1515 = vunpack.c.l.b16 %v252
  %v1516 = vunpack.c.l.b16 %v253
  %v1517 = vunpack.c.l.b16 %v254
  %v1518 = vunpack.c.l.b16 %v255
  %v1519 = vunpack.c.l.b16 %v256
  %v1520 = vunpack.c.l.b16 %v257
  %v1521 = vunpack.c.l.b16 %v258
  %v1522 = vunpack.c.l.b16 %v259
  %v1523 = vunpack.c.l.b16 %v260
  %v1524 = vunpack.c.l.b16 %v261
  %v1525 = vunpack.c.l.b16 %v262
  %v1526 = vunpack.c.l.b16 %v263
  %v1527 = vunpack.c.l.b16 %v264
  %v1528 = vunpack.c.l.b16 %v265
  %v1529 = vunpack.c.l.b16 %v266
  %v1530 = vunpack.c.l.b16 %v267
  %v1531 = vunpack.c.l.b16 %v268
  %v1532 = vunpack.c.l.b16 %v269
  %v1533 = vunpack.c.l.b16 %v270
  %v1534 = vunpack.c.l.b16 %v271
  %v1535 = vunpack.c.l.b16 %v272
  %v1536 = vunpack.c.l.b16 %v273
  %v1537 = vunpack.c.l.b16 %v274
  %v1538 = vunpack.c.l.b16 %v275
  %v1539 = vunpack.c.l.b16 %v276
  %v1540 = vunpack.c.l.b16 %v277
  %v1541 = vunpack.c.l.b16 %v278
  %v1542 = vunpack.c.l.b16 %v279
  %v1543 = vunpack.c.l.b16 %v280
  %v1544 = vunpack.c.l.b16 %v281
  %v1545 = vunpack.c.l.b16 %v282
  %v1546 = vunpack.c.l.b16 %v283
  %v1547 = vunpack.c.l.b16 %v284
  %v1548 = vunpack.c.l.b16 %v285
  %v1549 = vunpack.c.l.b16 %v286
  %v1550 = vunpack.c.l.b16 %v287
  %v1551 = vunpack.c.l.b16 %v288
  %v1552 = vunpack.c.l.b16 %v289
  %v1553 = vunpack.c.l.b16 %v290
  %v1554 = vunpack.c.l.b16 %v291
  %v1555 = vunpack.c.l.b16 %v292
  %v1556 = vunpack.c.l.b16 %v293
  %v1557 = vunpack.c.l.b16 %v294
  %v1558 = vunpack.c.l.b16 %v295
  %v1559 = vunpack.c.l.b16 %v296
  %v1560 = vunpack.c.l.b16 %v297
  %v1561 = vunpack.c.l.b16 %v298
  %v1562 = vunpack.c.l.b16 %v299
  %v1563 = vunpack.c.l.b16 %v300
  %v1564 = vunpack.c.l.b16 %v301
  %v1565 = vunpack.c.l.b16 %v302
  %v1566 = vunpack.c.l.b16 %v303
  %v1567 = vunpack.c.l.b16 %v304
  %v1568 = vunpack.c.l.b16 %v305
  %v1569 = vunpack.c.l.b16 %v306
  %v1570 = vunpack.c.l.b16 %v307
  %v1571 = vunpack.c.l.b16 %v308
  %v1572 = vunpack.c.l.b16 %v309
  %v1573 = vunpack.c.l.b16 %v310
  %v1574 = vunpack.c.l.b16 %v311
  %v1575 = vunpack.c.l.b16 %v312
  %v1576 = vunpack.c.l.b16 %v313
  %v1577 = vunpack.c.l.b16 %v314
  %v1578 = vunpack.c.l.b16 %v315
  %v1579 = vunpack.c.l.b16 %v316
  %v1580 = vunpack.c.l.b16 %v317
  %v1581 = vunpack.c.l.b16 %v318
  %v1582 = vunpack.c.l.b16 %v319
  %v1583 = vunpack.c.l.b16 %v320
  %v1584 = vunpack.c.l.b16 %v321
  %v1585 = vunpack.c.l.b16 %v322
  %v1586 = vunpack.c.l.b16 %v323
  %v1587 = vunpack.c.l.b16 %v324
  %v1588 = vunpack.c.l.b16 %v325
  %v1589 = vunpack.c.l.b16 %v326
  %v1590 = vunpack.c.l.b16 %v327
  %v1591 = vunpack.c.l.b16 %v328
  %v1592 = vunpack.c.l.b16 %v329
  %v1593 = vunpack.c.l.b16 %v330
  %v1594 = vunpack.c.l.b16 %v331
  %v1595 = vunpack.c.l.b16 %v332
  %v1596 = vunpack.c.l.b16 %v333
  %v1597 = vunpack.c.l.b16 %v334
  %v1598 = vunpack.c.l.b16 %v335
  %v1599 = vunpack.c.l.b16 %v336
  %v1600 = vunpack.c.l.b16 %v337
  %v1601 = vunpack.c.l.b16 %v338
  %v1602 = vunpack.c.l.b16 %v339
  %v1603 = vunpack.c.l.b16 %v340
  %v1604 = vunpack.c.l.b16 %v341
  %v1605 = vunpack.c.l.b16 %v342
  %v1606 = vunpack.c.l.b16 %v343
  %v1607 = vunpack.c.l.b16 %v344
  %v1608 = vunpack.c.l.b16 %v345
  %v1609 = vunpack.c.l.b16 %v346
  %v1610 = vunpack.c.l.b16 %v347
  %v1611 = vunpack.c.l.b16 %v348
  %v1612 = vunpack.c.l.b16 %v349
  %v1613 = vunpack.c.l.b16 %v350
  %v1614 = vunpack.c.l.b16 %v351
  %v1615 = vunpack.c.l.b16 %v352
  %v1616 = vunpack.c.l.b16 %v353
  %v1617 = vunpack.c.l.b16 %v354
  %v1618 = vunpack.c.l.b16 %v355
  %v1619 = vunpack.c.l.b16 %v356
  %v1620 = vunpack.c.l.b16 %v357
  %v1621 = vunpack.c.l.b16 %v358
  %v1622 = vunpack.c.l.b16 %v359
  %v1623 = vunpack.c.l.b16 %v360
  %v1624 = vunpack.c.l.b16 %v361
  %v1625 = vunpack.c.l.b16 %v362
  %v1626 = vunpack.c.l.b16 %v363
  %v1627 = vunpack.c.l.b16 %v364
  %v1628 = vunpack.c.l.b16 %v365
  %v1629 = vunpack.c.l.b16 %v366
  %v1630 = vunpack.c.l.b16 %v367
  %v1631 = vunpack.c.l.b16 %v368
  %v1632 = vunpack.c.l.b16 %v369
  %v1633 = vunpack.c.l.b16 %v370
  %v1634 = vunpack.c.l.b16 %v371
  %v1635 = vunpack.c.l.b16 %v372
  %v1636 = vunpack.c.l.b16 %v373
  %v1637 = vunpack.c.l.b16 %v374
  %v1638 = vunpack.c.l.b16 %v375
  %v1639 = vunpack.c.l.b16 %v376
  %v1640 = vunpack.c.l.b16 %v377
  %v1641 = vunpack.c.l.b16 %v378
  %v1642 = vunpack.c.l.b16 %v379
  %v1643 = vunpack.c.l.b16 %v380
  %v1644 = vunpack.c.l.b16 %v381
  %v1645 = vunpack.c.l.b16 %v382
  %v1646 = vunpack.c.l.b16 %v383
  %v1647 = vunpack.c.l.b16 %v384
  %v1648 = vunpack.c.l.b16 %v385
  %v1649 = vunpack.c.l.b16 %v386
  %v1650 = vunpack.c.l.b16 %v387
  %v1651 = vunpack.c.l.b16 %v388
  %v1652 = vunpack.c.l.b16 %v389
  %v1653 = vunpack.c.l.b16 %v390
  %v1654 = vunpack.c.l.b16 %v391
  %v1655 = vunpack.c.l.b16 %v392
  %v1656 = vunpack.c.l.b16 %v393
  %v1657 = vunpack.c.l.b16 %v394
  %v1658 = vunpack.c.l.b16 %v395
  %v1659 = vunpack.c.l.b16 %v396
  %v1660 = vunpack.c.l.b16 %v397
  %v1661 = vunpack.c.l.b16 %v398
  %v1662 = vunpack.c.l.b16 %v399
  %v1663 = vunpack.c.l.b16 %v400
  %v1664 = vunpack.c.l.b16 %v401
  %v1665 = vunpack.c.l.b16 %v402
  %v1666 = vunpack.c.l.b16 %v403
  %v1667 = vunpack.c.l.b16 %v404
  %v1668 = vunpack.c.l.b16 %v405
  %v1669 = vunpack.c.l.b16 %v406
  %v1670 = vunpack.c.l.b16 %v407
  %v1671 = vunpack.c.l.b16 %v408
  %v1672 = vunpack.c.l.b16 %v409
  %v1673 = vunpack.c.l.b16 %v410
  %v1674 = vunpack.c.l.b16 %v411
  %v1675 = vunpack.c.l.b16 %v412
  %v1676 = vunpack.c.l.b16 %v413
  %v1677 = vunpack.c.l.b16 %v414
  %v1678 = vunpack.c.l.b16 %v415
  %v1679 = vunpack.c.l.b16 %v416
  %v1680 = vunpack.c.l.b16 %v417
  %v1681 = vunpack.c.l.b16 %v418
  %v1682 = vunpack.c.l.b16 %v419
  %v1683 = vunpack.c.l.b16 %v420
  %v1684 = vunpack.c.l.b16 %v421
  %v1685 = vunpack.c.l.b16 %v422
  %v1686 = vunpack.c.l.b16 %v423
  %v1687 = vunpack.c.l.b16 %v424
  %v1688 = vunpack.c.l.b16 %v425
  %v1689 = vunpack.c.l.b16 %v426
  %v1690 = vunpack.c.l.b16 %v427
  %v1691 = vunpack.c.l.b16 %v428
  %v1692 = vunpack.c.l.b16 %v429
  %v1693 = vunpack.c.l.b16 %v430
  %v1694 = vunpack.c.l.b16 %v431
  %v1695 = vunpack.c.l.b16 %v432
  %v1696 = vunpack.c.l.b16 %v433
  %v1697 = vunpack.c.l.b16 %v434
  %v1698 = vunpack.c.l.b16 %v435
  %v1699 = vunpack.c.l.b16 %v436
  %v1700 = vunpack.c.l.b16 %v437
  %v1701 = vunpack.c.l.b16 %v438
  %v1702 = vunpack.c.l.b16 %v439
  %v1703 = vunpack.c.l.b16 %v440
  %v1704 = vunpack.c.l.b16 %v441
  %v1705 = vunpack.c.l.b16 %v442
  %v1706 = vunpack.c.l.b16 %v443
  %v1707 = vunpack.c.l.b16 %v444
  %v1708 = vunpack.c.l.b16 %v445
  %v1709 = vunpack.c.l.b16 %v446
  %v1710 = vunpack.c.l.b16 %v447
  %v1711 = vunpack.c.l.b16 %v448
  %v1712 = vunpack.c.l.b16 %v449
  %v1713 = vunpack.c.l.b16 %v450
  %v1714 = vunpack.c.l.b16 %v451
  %v1715 = vunpack.c.l.b16 %v452
  %v1716 = vunpack.c.l.b16 %v453
  %v1717 = vunpack.c.l.b16 %v454
  %v1718 = vunpack.c.l.b16 %v455
  %v1719 = vunpack.c.l.b16 %v456
  %v1720 = vunpack.c.l.b16 %v457
  %v1721 = vunpack.c.l.b16 %v458
  %v1722 = vunpack.c.l.b16 %v459
  %v1723 = vunpack.c.l.b16 %v460
  %v1724 = vunpack.c.l.b16 %v461
  %v1725 = vunpack.c.l.b16 %v462
  %v1726 = vunpack.c.l.b16 %v463
  %v1727 = vunpack.c.l.b16 %v464
  %v1728 = vunpack.c.l.b16 %v465
  %v1729 = vunpack.c.l.b16 %v466
  %v1730 = vunpack.c.l.b16 %v467
  %v1731 = vunpack.c.l.b16 %v468
  %v1732 = vunpack.c.l.b16 %v469
  %v1733 = vunpack.c.l.b16 %v470
  %v1734 = vunpack.c.l.b16 %v471
  %v1735 = vunpack.c.l.b16 %v472
  %v1736 = vunpack.c.l.b16 %v473
  %v1737 = vunpack.c.l.b16 %v474
  %v1738 = vunpack.c.l.b16 %v475
  %v1739 = vunpack.c.l.b16 %v476
  %v1740 = vunpack.c.l.b16 %v477
  %v1741 = vunpack.c.l.b16 %v478
  %v1742 = vunpack.c.l.b16 %v479
  %v1743 = vunpack.c.l.b16 %v480
  %v1744 = vunpack.c.l.b16 %v481
  %v1745 = vunpack.c.l.b16 %v482
  %v1746 = vunpack.c.l.b16 %v483
  %v1747 = vunpack.c.l.b16 %v484
  %v1748 = vunpack.c.l.b16 %v485
  %v1749 = vunpack.c.l.b16 %v486
  %v1750 = vunpack.c.l.b16 %v487
  %v1751 = vunpack.c.l.b16 %v488
  %v1752 = vunpack.c.l.b16 %v489
  %v1753 = vunpack.c.l.b16 %v490
  %v1754 = vunpack.c.l.b16 %v491
  %v1755 = vunpack.c.l.b16 %v492
  %v1756 = vunpack.c.l.b16 %v493
  %v1757 = vunpack.c.l.b16 %v494
  %v1758 = vunpack.c.l.b16 %v495
  %v1759 = vunpack.c.l.b16 %v496
  %v1760 = vunpack.c.l.b16 %v497
  %v1761 = vunpack.c.l.b16 %v498
  %v1762 = vunpack.c.l.b16 %v499
  %v1763 = vunpack.c.l.b16 %v500
  %v1764 = vunpack.c.l.b16 %v501
  %v1765 = vunpack.c.l.b16 %v502
  %v1766 = vunpack.c.l.b16 %v503
  %v1767 = vunpack.c.l.b16 %v504
  %v1768 = vunpack.c.l.b16 %v505
  %v1769 = vunpack.c.l.b16 %v506
  %v1770 = vunpack.c.l.b16 %v507
  %v1771 = vunpack.c.l.b16 %v508
  %v1772 = vunpack.c.l.b16 %v509
  %v1773 = vunpack.c.l.b16 %v510
  %v1774 = vunpack.c.l.b16 %v511
  %v1775 = vunpack.c.l.b16 %v512
  %v1776 = vunpack.c.l.b16 %v513
  %v1777 = vunpack.c.l.b16 %v514
  %v1778 = vunpack.c.l.b16 %v515
  %v1779 = vunpack.c.l.b16 %v516
  %v1780 = vunpack.c.l.b16 %v517
  %v1781 = vunpack.c.l.b16 %v518
  %v1782 = vunpack.c.l.b16 %v519
  %v1783 = vunpack.c.l.b16 %v520
  %v1784 = vunpack.c.l.b16 %v521
  %v1785 = vunpack.c.l.b16 %v522
  %v1786 = vunpack.c.l.b16 %v523
  %v1787 = vunpack.c.l.b16 %v524
  %v1788 = vunpack.c.l.b16 %v525
  %v1789 = vunpack.c.l.b16 %v526
  %v1790 = vunpack.c.l.b16 %v527
  %v1791 = vunpack.c.l.b16 %v528
  %v1792 = vunpack.c.l.b16 %v529
  %v1793 = vunpack.c.l.b16 %v530
  %v1794 = vunpack.c.l.b16 %v531
  %v1795 = vunpack.c.l.b16 %v532
  %v1796 = vunpack.c.l.b16 %v533
  %v1797 = vunpack.c.l.b16 %v534
  %v1798 = vunpack.c.l.b16 %v535
  %v1799 = vunpack.c.l.b16 %v536
  %v1800 = vunpack.c.l.b16 %v537
  %v1801 = vunpack.c.l.b16 %v538
  %v1802 = vpack.c.b16 %v1291, %v1290
  %v1803 = vpack.c.b16 %v1293, %v1292
  %v1804 = vpack.c.b16 %v1295, %v1294
  %v1805 = vpack.c.b16 %v1297, %v1296
  %v1806 = vpack.c.b16 %v1299, %v1298
  %v1807 = vpack.c.b16 %v1301, %v1300
  %v1808 = vpack.c.b16 %v1303, %v1302
  %v1809 = vpack.c.b16 %v1305, %v1304
  %v1810 = vpack.c.b16 %v1307, %v1306
  %v1811 = vpack.c.b16 %v1309, %v1308
  %v1812 = vpack.c.b16 %v1311, %v1310
  %v1813 = vpack.c.b16 %v1313, %v1312
  %v1814 = vpack.c.b16 %v1315, %v1314
  %v1815 = vpack.c.b16 %v1317, %v1316
  %v1816 = vpack.c.b16 %v1319, %v1318
  %v1817 = vpack.c.b16 %v1321, %v1320
  %v1818 = vpack.c.b16 %v1323, %v1322
  %v1819 = vpack.c.b16 %v1325, %v1324
  %v1820 = vpack.c.b16 %v1327, %v1326
  %v1821 = vpack.c.b16 %v1329, %v1328
  %v1822 = vpack.c.b16 %v1331, %v1330
  %v1823 = vpack.c.b16 %v1333, %v1332
  %v1824 = vpack.c.b16 %v1335, %v1334
  %v1825 = vpack.c.b16 %v1337, %v1336
  %v1826 = vpack.c.b16 %v1339, %v1338
  %v1827 = vpack.c.b16 %v1341, %v1340
  %v1828 = vpack.c.b16 %v1343, %v1342
  %v1829 = vpack.c.b16 %v1345, %v1344
  %v1830 = vpack.c.b16 %v1347, %v1346
  %v1831 = vpack.c.b16 %v1349, %v1348
  %v1832 = vpack.c.b16 %v1351, %v1350
  %v1833 = vpack.c.b16 %v1353, %v1352
  %v1834 = vpack.c.b16 %v1355, %v1354
  %v1835 = vpack.c.b16 %v1357, %v1356
  %v1836 = vpack.c.b16 %v1359, %v1358
  %v1837 = vpack.c.b16 %v1361, %v1360
  %v1838 = vpack.c.b16 %v1363, %v1362
  %v1839 = vpack.c.b16 %v1365, %v1364
  %v1840 = vpack.c.b16 %v1367, %v1366
  %v1841 = vpack.c.b16 %v1369, %v1368
  %v1842 = vpack.c.b16 %v1371, %v1370
  %v1843 = vpack.c.b16 %v1373, %v1372
  %v1844 = vpack.c.b16 %v1375, %v1374
  %v1845 = vpack.c.b16 %v1377, %v1376
  %v1846 = vpack.c.b16 %v1379, %v1378
  %v1847 = vpack.c.b16 %v1381, %v1380
  %v1848 = vpack.c.b16 %v1383, %v1382
  %v1849 = vpack.c.b16 %v1385, %v1384
  %v1850 = vpack.c.b16 %v1387, %v1386
  %v1851 = vpack.c.b16 %v1389, %v1388
  %v1852 = vpack.c.b16 %v1391, %v1390
  %v1853 = vpack.c.b16 %v1393, %v1392
  %v1854 = vpack.c.b16 %v1395, %v1394
  %v1855 = vpack.c.b16 %v1397, %v1396
  %v1856 = vpack.c.b16 %v1399, %v1398
  %v1857 = vpack.c.b16 %v1401, %v1400
  %v1858 = vpack.c.b16 %v1403, %v1402
  %v1859 = vpack.c.b16 %v1405, %v1404
  %v1860 = vpack.c.b16 %v1407, %v1406
  %v1861 = vpack.c.b16 %v1409, %v1408
  %v1862 = vpack.c.b16 %v1411, %v1410
  %v1863 = vpack.c.b16 %v1413, %v1412
  %v1864 = vpack.c.b16 %v1415, %v1414
  %v1865 = vpack.c.b16 %v1417, %v1416
  %v1866 = vpack.c.b16 %v1419, %v1418
  %v1867 = vpack.c.b16 %v1421, %v1420
  %v1868 = vpack.c.b16 %v1423, %v1422
  %v1869 = vpack.c.b16 %v1425, %v1424
  %v1870 = vpack.c.b16 %v1427, %v1426
  %v1871 = vpack.c.b16 %v1429, %v1428
  %v1872 = vpack.c.b16 %v1431, %v1430
  %v1873 = vpack.c.b16 %v1433, %v1432
  %v1874 = vpack.c.b16 %v1435, %v1434
  %v1875 = vpack.c.b16 %v1437, %v1436
  %v1876 = vpack.c.b16 %v1439, %v1438
  %v1877 = vpack.c.b16 %v1441, %v1440
  %v1878 = vpack.c.b16 %v1443, %v1442
  %v1879 = vpack.c.b16 %v1445, %v1444
  %v1880 = vpack.c.b16 %v1447, %v1446
  %v1881 = vpack.c.b16 %v1449, %v1448
  %v1882 = vpack.c.b16 %v1451, %v1450
  %v1883 = vpack.c.b16 %v1453, %v1452
  %v1884 = vpack.c.b16 %v1455, %v1454
  %v1885 = vpack.c.b16 %v1457, %v1456
  %v1886 = vpack.c.b16 %v1459, %v1458
  %v1887 = vpack.c.b16 %v1461, %v1460
  %v1888 = vpack.c.b16 %v1463, %v1462
  %v1889 = vpack.c.b16 %v1465, %v1464
  %v1890 = vpack.c.b16 %v1467, %v1466
  %v1891 = vpack.c.b16 %v1469, %v1468
  %v1892 = vpack.c.b16 %v1471, %v1470
  %v1893 = vpack.c.b16 %v1473, %v1472
  %v1894 = vpack.c.b16 %v1475, %v1474
  %v1895 = vpack.c.b16 %v1477, %v1476
  %v1896 = vpack.c.b16 %v1479, %v1478
  %v1897 = vpack.c.b16 %v1481, %v1480
  %v1898 = vpack.c.b16 %v1483, %v1482
  %v1899 = vpack.c.b16 %v1485, %v1484
  %v1900 = vpack.c.b16 %v1487, %v1486
  %v1901 = vpack.c.b16 %v1489, %v1488
  %v1902 = vpack.c.b16 %v1491, %v1490
  %v1903 = vpack.c.b16 %v1493, %v1492
  %v1904 = vpack.c.b16 %v1495, %v1494
  %v1905 = vpack.c.b16 %v1497, %v1496
  %v1906 = vpack.c.b16 %v1499, %v1498
  %v1907 = vpack.c.b16 %v1501, %v1500
  %v1908 = vpack.c.b16 %v1503, %v1502
  %v1909 = vpack.c.b16 %v1505, %v1504
  %v1910 = vpack.c.b16 %v1507, %v1506
  %v1911 = vpack.c.b16 %v1509, %v1508
  %v1912 = vpack.c.b16 %v1511, %v1510
  %v1913 = vpack.c.b16 %v1513, %v1512
  %v1914 = vpack.c.b16 %v1515, %v1514
  %v1915 = vpack.c.b16 %v1517, %v1516
  %v1916 = vpack.c.b16 %v1519, %v1518
  %v1917 = vpack.c.b16 %v1521, %v1520
  %v1918 = vpack.c.b16 %v1523, %v1522
  %v1919 = vpack.c.b16 %v1525, %v1524
  %v1920 = vpack.c.b16 %v1527, %v1526
  %v1921 = vpack.c.b16 %v1529, %v1528
  %v1922 = vpack.c.b16 %v1531, %v1530
  %v1923 = vpack.c.b16 %v1533, %v1532
  %v1924 = vpack.c.b16 %v1535, %v1534
  %v1925 = vpack.c.b16 %v1537, %v1536
  %v1926 = vpack.c.b16 %v1539, %v1538
  %v1927 = vpack.c.b16 %v1541, %v1540
  %v1928 = vpack.c.b16 %v1543, %v1542
  %v1929 = vpack.c.b16 %v1545, %v1544
  %v1930 = vpack.c.b16 %v1547, %v1546
  %v1931 = vpack.c.b16 %v1549, %v1548
  %v1932 = vpack.c.b16 %v1551, %v1550
  %v1933 = vpack.c.b16 %v1553, %v1552
  %v1934 = vpack.c.b16 %v1555, %v1554
  %v1935 = vpack.c.b16 %v1557, %v1556
  %v1936 = vpack.c.b16 %v1559, %v1558
  %v1937 = vpack.c.b16 %v1561, %v1560
  %v1938 = vpack.c.b16 %v1563, %v1562
  %v1939 = vpack.c.b16 %v1565, %v1564
  %v1940 = vpack.c.b16 %v1567, %v1566
  %v1941 = vpack.c.b16 %v1569, %v1568
  %v1942 = vpack.c.b16 %v1571, %v1570
  %v1943 = vpack.c.b16 %v1573, %v1572
  %v1944 = vpack.c.b16 %v1575, %v1574
  %v1945 = vpack.c.b16 %v1577, %v1576
  %v1946 = vpack.c.b16 %v1579, %v1578
  %v1947 = vpack.c.b16 %v1581, %v1580
  %v1948 = vpack.c.b16 %v1583, %v1582
  %v1949 = vpack.c.b16 %v1585, %v1584
  %v1950 = vpack.c.b16 %v1587, %v1586
  %v1951 = vpack.c.b16 %v1589, %v1588
  %v1952 = vpack.c.b16 %v1591, %v1590
  %v1953 = vpack.c.b16 %v1593, %v1592
  %v1954 = vpack.c.b16 %v1595, %v1594
  %v1955 = vpack.c.b16 %v1597, %v1596
  %v1956 = vpack.c.b16 %v1599, %v1598
  %v1957 = vpack.c.b16 %v1601, %v1600
  %v1958 = vpack.c.b16 %v1603, %v1602
  %v1959 = vpack.c.b16 %v1605, %v1604
  %v1960 = vpack.c.b16 %v1607, %v1606
  %v1961 = vpack.c.b16 %v1609, %v1608
  %v1962 = vpack.c.b16 %v1611, %v1610
  %v1963 = vpack.c.b16 %v1613, %v1612
  %v1964 = vpack.c.b16 %v1615, %v1614
  %v1965 = vpack.c.b16 %v1617, %v1616
  %v1966 = vpack.c.b16 %v1619, %v1618
  %v1967 = vpack.c.b16 %v1621, %v1620
  %v1968 = vpack.c.b16 %v1623, %v1622
  %v1969 = vpack.c.b16 %v1625, %v1624
  %v1970 = vpack.c.b16 %v1627, %v1626
  %v1971 = vpack.c.b16 %v1629, %v1628
  %v1972 = vpack.c.b16 %v1631, %v1630
  %v1973 = vpack.c.b16 %v1633, %v1632
  %v1974 = vpack.c.b16 %v1635, %v1634
  %v1975 = vpack.c.b16 %v1637, %v1636
  %v1976 = vpack.c.b16 %v1639, %v1638
  %v1977 = vpack.c.b16 %v1641, %v1640
  %v1978 = vpack.c.b16 %v1643, %v1642
  %v1979 = vpack.c.b16 %v1645, %v1644
  %v1980 = vpack.c.b16 %v1647, %v1646
  %v1981 = vpack.c.b16 %v1649, %v1648
  %v1982 = vpack.c.b16 %v1651, %v1650
  %v1983 = vpack.c.b16 %v1653, %v1652
  %v1984 = vpack.c.b16 %v1655, %v1654
  %v1985 = vpack.c.b16 %v1657, %v1656
  %v1986 = vpack.c.b16 %v1659, %v1658
  %v1987 = vpack.c.b16 %v1661, %v1660
  %v1988 = vpack.c.b16 %v1663, %v1662
  %v1989 = vpack.c.b16 %v1665, %v1664
  %v1990 = vpack.c.b16 %v1667, %v1666
  %v1991 = vpack.c.b16 %v1669, %v1668
  %v1992 = vpack.c.b16 %v1671, %v1670
  %v1993 = vpack.c.b16 %v1673, %v1672
  %v1994 = vpack.c.b16 %v1675, %v1674
  %v1995 = vpack.c.b16 %v1677, %v1676
  %v1996 = vpack.c.b16 %v1679, %v1678
  %v1997 = vpack.c.b16 %v1681, %v1680
  %v1998 = vpack.c.b16 %v1683, %v1682
  %v1999 = vpack.c.b16 %v1685, %v1684
  %v2000 = vpack.c.b16 %v1687, %v1686
  %v2001 = vpack.c.b16 %v1689, %v1688
  %v2002 = vpack.c.b16 %v1691, %v1690
  %v2003 = vpack.c.b16 %v1693, %v1692
  %v2004 = vpack.c.b16 %v1695, %v1694
  %v2005 = vpack.c.b16 %v1697, %v1696
  %v2006 = vpack.c.b16 %v1699, %v1698
  %v2007 = vpack.c.b16 %v1701, %v1700
  %v2008 = vpack.c.b16 %v1703, %v1702
  %v2009 = vpack.c.b16 %v1705, %v1704
  %v2010 = vpack.c.b16 %v1707, %v1706
  %v2011 = vpack.c.b16 %v1709, %v1708
  %v2012 = vpack.c.b16 %v1711, %v1710
  %v2013 = vpack.c.b16 %v1713, %v1712
  %v2014 = vpack.c.b16 %v1715, %v1714
  %v2015 = vpack.c.b16 %v1717, %v1716
  %v2016 = vpack.c.b16 %v1719, %v1718
  %v2017 = vpack.c.b16 %v1721, %v1720
  %v2018 = vpack.c.b16 %v1723, %v1722
  %v2019 = vpack.c.b16 %v1725, %v1724
  %v2020 = vpack.c.b16 %v1727, %v1726
  %v2021 = vpack.c.b16 %v1729, %v1728
  %v2022 = vpack.c.b16 %v1731, %v1730
  %v2023 = vpack.c.b16 %v1733, %v1732
  %v2024 = vpack.c.b16 %v1735, %v1734
  %v2025 = vpack.c.b16 %v1737, %v1736
  %v2026 = vpack.c.b16 %v1739, %v1738
  %v2027 = vpack.c.b16 %v1741, %v1740
  %v2028 = vpack.c.b16 %v1743, %v1742
  %v2029 = vpack.c.b16 %v1745, %v1744
  %v2030 = vpack.c.b16 %v1747, %v1746
  %v2031 = vpack.c.b16 %v1749, %v1748
  %v2032 = vpack.c.b16 %v1751, %v1750
  %v2033 = vpack.c.b16 %v1753, %v1752
  %v2034 = vpack.c.b16 %v1755, %v1754
  %v2035 = vpack.c.b16 %v1757, %v1756
  %v2036 = vpack.c.b16 %v1759, %v1758
  %v2037 = vpack.c.b16 %v1761, %v1760
  %v2038 = vpack.c.b16 %v1763, %v1762
  %v2039 = vpack.c.b16 %v1765, %v1764
  %v2040 = vpack.c.b16 %v1767, %v1766
  %v2041 = vpack.c.b16 %v1769, %v1768
  %v2042 = vpack.c.b16 %v1771, %v1770
  %v2043 = vpack.c.b16 %v1773, %v1772
  %v2044 = vpack.c.b16 %v1775, %v1774
  %v2045 = vpack.c.b16 %v1777, %v1776
  %v2046 = vpack.c.b16 %v1779, %v1778
  %v2047 = vpack.c.b16 %v1781, %v1780
  %v2048 = vpack.c.b16 %v1783, %v1782
  %v2049 = vpack.c.b16 %v1785, %v1784
  %v2050 = vpack.c.b16 %v1787, %v1786
  %v2051 = vpack.c.b16 %v1789, %v1788
  %v2052 = vpack.c.b16 %v1791, %v1790
  %v2053 = vpack.c.b16 %v1793, %v1792
  %v2054 = vpack.c.b16 %v1795, %v1794
  %v2055 = vpack.c.b16 %v1797, %v1796
  %v2056 = vpack.c.b16 %v1799, %v1798
  %v2057 = vpack.c.b16 %v1801, %v1800
  %2314 = vmatprep.subr.bf16.mxu0 0
  %2315 = vmatpush1.bf16.msra.mxu0 %v1802
  %2316 = vmatprep.subr.bf16.mxu0 0
  %2317 = vmatpush1.bf16.msra.mxu0 %v1803
  %2318 = vmatprep.subr.bf16.mxu0 0
  %2319 = vmatpush1.bf16.msra.mxu0 %v1804
  %2320 = vmatprep.subr.bf16.mxu0 0
  %2321 = vmatpush1.bf16.msra.mxu0 %v1805
  %2322 = vmatprep.subr.bf16.mxu0 0
  %2323 = vmatpush1.bf16.msra.mxu0 %v1806
  %2324 = vmatprep.subr.bf16.mxu0 0
  %2325 = vmatpush1.bf16.msra.mxu0 %v1807
  %2326 = vmatprep.subr.bf16.mxu0 0
  %2327 = vmatpush1.bf16.msra.mxu0 %v1808
  %2328 = vmatprep.subr.bf16.mxu0 0
  %2329 = vmatpush1.bf16.msra.mxu0 %v1809
  %2330 = vmatprep.subr.bf16.mxu0 0
  %2331 = vmatpush1.bf16.msra.mxu0 %v1810
  %2332 = vmatprep.subr.bf16.mxu0 0
  %2333 = vmatpush1.bf16.msra.mxu0 %v1811
  %2334 = vmatprep.subr.bf16.mxu0 0
  %2335 = vmatpush1.bf16.msra.mxu0 %v1812
  %2336 = vmatprep.subr.bf16.mxu0 0
  %2337 = vmatpush1.bf16.msra.mxu0 %v1813
  %2338 = vmatprep.subr.bf16.mxu0 0
  %2339 = vmatpush1.bf16.msra.mxu0 %v1814
  %2340 = vmatprep.subr.bf16.mxu0 0
  %2341 = vmatpush1.bf16.msra.mxu0 %v1815
  %2342 = vmatprep.subr.bf16.mxu0 0
  %2343 = vmatpush1.bf16.msra.mxu0 %v1816
  %2344 = vmatprep.subr.bf16.mxu0 0
  %2345 = vmatpush1.bf16.msra.mxu0 %v1817
  %2346 = vmatprep.mubr.bf16.mxu0 %v587
  %2347 = vmatmul.mubr.bf16.gmra.mrb[0].mxu0 %v573
  %v2348 = vpop.f32.mrb[0].mxu0
  %v2349 = vadd.f32 %v544, %v2348
  %v2350 = vpop.f32.mrb[0].mxu0
  %v2351 = vpop.f32.mrb[0].mxu0
  %v2352 = vpop.f32.mrb[0].mxu0
  %2353 = vdwg.mxu0
  %2354 = vmatprep.subr.bf16.mxu0 0
  %2355 = vmatpush1.bf16.msra.mxu0 %v1818
  %2356 = vmatprep.subr.bf16.mxu0 0
  %2357 = vmatpush1.bf16.msra.mxu0 %v1819
  %2358 = vmatprep.subr.bf16.mxu0 0
  %2359 = vmatpush1.bf16.msra.mxu0 %v1820
  %2360 = vmatprep.subr.bf16.mxu0 0
  %2361 = vmatpush1.bf16.msra.mxu0 %v1821
  %2362 = vmatprep.subr.bf16.mxu0 0
  %2363 = vmatpush1.bf16.msra.mxu0 %v1822
  %2364 = vmatprep.subr.bf16.mxu0 0
  %2365 = vmatpush1.bf16.msra.mxu0 %v1823
  %2366 = vmatprep.subr.bf16.mxu0 0
  %2367 = vmatpush1.bf16.msra.mxu0 %v1824
  %2368 = vmatprep.subr.bf16.mxu0 0
  %2369 = vmatpush1.bf16.msra.mxu0 %v1825
  %2370 = vmatprep.subr.bf16.mxu0 0
  %2371 = vmatpush1.bf16.msra.mxu0 %v1826
  %2372 = vmatprep.subr.bf16.mxu0 0
  %2373 = vmatpush1.bf16.msra.mxu0 %v1827
  %2374 = vmatprep.subr.bf16.mxu0 0
  %2375 = vmatpush1.bf16.msra.mxu0 %v1828
  %2376 = vmatprep.subr.bf16.mxu0 0
  %2377 = vmatpush1.bf16.msra.mxu0 %v1829
  %2378 = vmatprep.subr.bf16.mxu0 0
  %2379 = vmatpush1.bf16.msra.mxu0 %v1830
  %2380 = vmatprep.subr.bf16.mxu0 0
  %2381 = vmatpush1.bf16.msra.mxu0 %v1831
  %2382 = vmatprep.subr.bf16.mxu0 0
  %2383 = vmatpush1.bf16.msra.mxu0 %v1832
  %2384 = vmatprep.subr.bf16.mxu0 0
  %2385 = vmatpush1.bf16.msra.mxu0 %v1833
  %2386 = vmatprep.mubr.bf16.mxu0 %v597
  %2387 = vmatmul.mubr.bf16.gmra.mrb[0].mxu0 %v595
  %v2388 = vpop.f32.mrb[0].mxu0
  %v2389 = vadd.f32 %v2349, %v2388
  %v2390 = vpop.f32.mrb[0].mxu0
  %v2391 = vpop.f32.mrb[0].mxu0
  %v2392 = vpop.f32.mrb[0].mxu0
  %2393 = vdwg.mxu0
  %2394 = vmatprep.subr.bf16.mxu0 0
  %2395 = vmatpush1.bf16.msra.mxu0 %v1834
  %2396 = vmatprep.subr.bf16.mxu0 0
  %2397 = vmatpush1.bf16.msra.mxu0 %v1835
  %2398 = vmatprep.subr.bf16.mxu0 0
  %2399 = vmatpush1.bf16.msra.mxu0 %v1836
  %2400 = vmatprep.subr.bf16.mxu0 0
  %2401 = vmatpush1.bf16.msra.mxu0 %v1837
  %2402 = vmatprep.subr.bf16.mxu0 0
  %2403 = vmatpush1.bf16.msra.mxu0 %v1838
  %2404 = vmatprep.subr.bf16.mxu0 0
  %2405 = vmatpush1.bf16.msra.mxu0 %v1839
  %2406 = vmatprep.subr.bf16.mxu0 0
  %2407 = vmatpush1.bf16.msra.mxu0 %v1840
  %2408 = vmatprep.subr.bf16.mxu0 0
  %2409 = vmatpush1.bf16.msra.mxu0 %v1841
  %2410 = vmatprep.subr.bf16.mxu0 0
  %2411 = vmatpush1.bf16.msra.mxu0 %v1842
  %2412 = vmatprep.subr.bf16.mxu0 0
  %2413 = vmatpush1.bf16.msra.mxu0 %v1843
  %2414 = vmatprep.subr.bf16.mxu0 0
  %2415 = vmatpush1.bf16.msra.mxu0 %v1844
  %2416 = vmatprep.subr.bf16.mxu0 0
  %2417 = vmatpush1.bf16.msra.mxu0 %v1845
  %2418 = vmatprep.subr.bf16.mxu0 0
  %2419 = vmatpush1.bf16.msra.mxu0 %v1846
  %2420 = vmatprep.subr.bf16.mxu0 0
  %2421 = vmatpush1.bf16.msra.mxu0 %v1847
  %2422 = vmatprep.subr.bf16.mxu0 0
  %2423 = vmatpush1.bf16.msra.mxu0 %v1848
  %2424 = vmatprep.subr.bf16.mxu0 0
  %2425 = vmatpush1.bf16.msra.mxu0 %v1849
  %2426 = vmatprep.mubr.bf16.mxu0 %v594
  %2427 = vmatmul.mubr.bf16.gmra.mrb[0].mxu0 %v580
  %v2428 = vpop.f32.mrb[0].mxu0
  %v2429 = vadd.f32 %v2389, %v2428
  %v2430 = vpop.f32.mrb[0].mxu0
  %v2431 = vpop.f32.mrb[0].mxu0
  %v2432 = vpop.f32.mrb[0].mxu0
  %2433 = vdwg.mxu0
  %2434 = vmatprep.subr.bf16.mxu0 0
  %2435 = vmatpush1.bf16.msra.mxu0 %v1850
  %2436 = vmatprep.subr.bf16.mxu0 0
  %2437 = vmatpush1.bf16.msra.mxu0 %v1851
  %2438 = vmatprep.subr.bf16.mxu0 0
  %2439 = vmatpush1.bf16.msra.mxu0 %v1852
  %2440 = vmatprep.subr.bf16.mxu0 0
  %2441 = vmatpush1.bf16.msra.mxu0 %v1853
  %2442 = vmatprep.subr.bf16.mxu0 0
  %2443 = vmatpush1.bf16.msra.mxu0 %v1854
  %2444 = vmatprep.subr.bf16.mxu0 0
  %2445 = vmatpush1.bf16.msra.mxu0 %v1855
  %2446 = vmatprep.subr.bf16.mxu0 0
  %2447 = vmatpush1.bf16.msra.mxu0 %v1856
  %2448 = vmatprep.subr.bf16.mxu0 0
  %2449 = vmatpush1.bf16.msra.mxu0 %v1857
  %2450 = vmatprep.subr.bf16.mxu0 0
  %2451 = vmatpush1.bf16.msra.mxu0 %v1858
  %2452 = vmatprep.subr.bf16.mxu0 0
  %2453 = vmatpush1.bf16.msra.mxu0 %v1859
  %2454 = vmatprep.subr.bf16.mxu0 0
  %2455 = vmatpush1.bf16.msra.mxu0 %v1860
  %2456 = vmatprep.subr.bf16.mxu0 0
  %2457 = vmatpush1.bf16.msra.mxu0 %v1861
  %2458 = vmatprep.subr.bf16.mxu0 0
  %2459 = vmatpush1.bf16.msra.mxu0 %v1862
  %2460 = vmatprep.subr.bf16.mxu0 0
  %2461 = vmatpush1.bf16.msra.mxu0 %v1863
  %2462 = vmatprep.subr.bf16.mxu0 0
  %2463 = vmatpush1.bf16.msra.mxu0 %v1864
  %2464 = vmatprep.subr.bf16.mxu0 0
  %2465 = vmatpush1.bf16.msra.mxu0 %v1865
  %2466 = vmatprep.mubr.bf16.mxu0 %v598
  %2467 = vmatmul.mubr.bf16.gmra.mrb[0].mxu0 %v596
  %v2468 = vpop.f32.mrb[0].mxu0
  %v2469 = vadd.f32 %v2429, %v2468
  %v2470 = vpop.f32.mrb[0].mxu0
  %v2471 = vpop.f32.mrb[0].mxu0
  %v2472 = vpop.f32.mrb[0].mxu0
  %2473 = vdwg.mxu0
  %2474 = vmatprep.subr.bf16.mxu0 0
  %2475 = vmatpush1.bf16.msra.mxu0 %v1866
  %2476 = vmatprep.subr.bf16.mxu0 0
  %2477 = vmatpush1.bf16.msra.mxu0 %v1867
  %2478 = vmatprep.subr.bf16.mxu0 0
  %2479 = vmatpush1.bf16.msra.mxu0 %v1868
  %2480 = vmatprep.subr.bf16.mxu0 0
  %2481 = vmatpush1.bf16.msra.mxu0 %v1869
  %2482 = vmatprep.subr.bf16.mxu0 0
  %2483 = vmatpush1.bf16.msra.mxu0 %v1870
  %2484 = vmatprep.subr.bf16.mxu0 0
  %2485 = vmatpush1.bf16.msra.mxu0 %v1871
  %2486 = vmatprep.subr.bf16.mxu0 0
  %2487 = vmatpush1.bf16.msra.mxu0 %v1872
  %2488 = vmatprep.subr.bf16.mxu0 0
  %2489 = vmatpush1.bf16.msra.mxu0 %v1873
  %2490 = vmatprep.subr.bf16.mxu0 0
  %2491 = vmatpush1.bf16.msra.mxu0 %v1874
  %2492 = vmatprep.subr.bf16.mxu0 0
  %2493 = vmatpush1.bf16.msra.mxu0 %v1875
  %2494 = vmatprep.subr.bf16.mxu0 0
  %2495 = vmatpush1.bf16.msra.mxu0 %v1876
  %2496 = vmatprep.subr.bf16.mxu0 0
  %2497 = vmatpush1.bf16.msra.mxu0 %v1877
  %2498 = vmatprep.subr.bf16.mxu0 0
  %2499 = vmatpush1.bf16.msra.mxu0 %v1878
  %2500 = vmatprep.subr.bf16.mxu0 0
  %2501 = vmatpush1.bf16.msra.mxu0 %v1879
  %2502 = vmatprep.subr.bf16.mxu0 0
  %2503 = vmatpush1.bf16.msra.mxu0 %v1880
  %2504 = vmatprep.subr.bf16.mxu0 0
  %2505 = vmatpush1.bf16.msra.mxu0 %v1881
  %2506 = vmatprep.mubr.bf16.mxu0 %v636
  %2507 = vmatmul.mubr.bf16.gmra.mrb[0].mxu0 %v622
  %v2508 = vpop.f32.mrb[0].mxu0
  %v2509 = vadd.f32 %v2469, %v2508
  %v2510 = vpop.f32.mrb[0].mxu0
  %v2511 = vpop.f32.mrb[0].mxu0
  %v2512 = vpop.f32.mrb[0].mxu0
  %2513 = vdwg.mxu0
  %2514 = vmatprep.subr.bf16.mxu0 0
  %2515 = vmatpush1.bf16.msra.mxu0 %v1882
  %2516 = vmatprep.subr.bf16.mxu0 0
  %2517 = vmatpush1.bf16.msra.mxu0 %v1883
  %2518 = vmatprep.subr.bf16.mxu0 0
  %2519 = vmatpush1.bf16.msra.mxu0 %v1884
  %2520 = vmatprep.subr.bf16.mxu0 0
  %2521 = vmatpush1.bf16.msra.mxu0 %v1885
  %2522 = vmatprep.subr.bf16.mxu0 0
  %2523 = vmatpush1.bf16.msra.mxu0 %v1886
  %2524 = vmatprep.subr.bf16.mxu0 0
  %2525 = vmatpush1.bf16.msra.mxu0 %v1887
  %2526 = vmatprep.subr.bf16.mxu0 0
  %2527 = vmatpush1.bf16.msra.mxu0 %v1888
  %2528 = vmatprep.subr.bf16.mxu0 0
  %2529 = vmatpush1.bf16.msra.mxu0 %v1889
  %2530 = vmatprep.subr.bf16.mxu0 0
  %2531 = vmatpush1.bf16.msra.mxu0 %v1890
  %2532 = vmatprep.subr.bf16.mxu0 0
  %2533 = vmatpush1.bf16.msra.mxu0 %v1891
  %2534 = vmatprep.subr.bf16.mxu0 0
  %2535 = vmatpush1.bf16.msra.mxu0 %v1892
  %2536 = vmatprep.subr.bf16.mxu0 0
  %2537 = vmatpush1.bf16.msra.mxu0 %v1893
  %2538 = vmatprep.subr.bf16.mxu0 0
  %2539 = vmatpush1.bf16.msra.mxu0 %v1894
  %2540 = vmatprep.subr.bf16.mxu0 0
  %2541 = vmatpush1.bf16.msra.mxu0 %v1895
  %2542 = vmatprep.subr.bf16.mxu0 0
  %2543 = vmatpush1.bf16.msra.mxu0 %v1896
  %2544 = vmatprep.subr.bf16.mxu0 0
  %2545 = vmatpush1.bf16.msra.mxu0 %v1897
  %2546 = vmatprep.mubr.bf16.mxu0 %v646
  %2547 = vmatmul.mubr.bf16.gmra.mrb[0].mxu0 %v644
  %v2548 = vpop.f32.mrb[0].mxu0
  %v2549 = vadd.f32 %v2509, %v2548
  %v2550 = vpop.f32.mrb[0].mxu0
  %v2551 = vpop.f32.mrb[0].mxu0
  %v2552 = vpop.f32.mrb[0].mxu0
  %2553 = vdwg.mxu0
  %2554 = vmatprep.subr.bf16.mxu0 0
  %2555 = vmatpush1.bf16.msra.mxu0 %v1898
  %2556 = vmatprep.subr.bf16.mxu0 0
  %2557 = vmatpush1.bf16.msra.mxu0 %v1899
  %2558 = vmatprep.subr.bf16.mxu0 0
  %2559 = vmatpush1.bf16.msra.mxu0 %v1900
  %2560 = vmatprep.subr.bf16.mxu0 0
  %2561 = vmatpush1.bf16.msra.mxu0 %v1901
  %2562 = vmatprep.subr.bf16.mxu0 0
  %2563 = vmatpush1.bf16.msra.mxu0 %v1902
  %2564 = vmatprep.subr.bf16.mxu0 0
  %2565 = vmatpush1.bf16.msra.mxu0 %v1903
  %2566 = vmatprep.subr.bf16.mxu0 0
  %2567 = vmatpush1.bf16.msra.mxu0 %v1904
  %2568 = vmatprep.subr.bf16.mxu0 0
  %2569 = vmatpush1.bf16.msra.mxu0 %v1905
  %2570 = vmatprep.subr.bf16.mxu0 0
  %2571 = vmatpush1.bf16.msra.mxu0 %v1906
  %2572 = vmatprep.subr.bf16.mxu0 0
  %2573 = vmatpush1.bf16.msra.mxu0 %v1907
  %2574 = vmatprep.subr.bf16.mxu0 0
  %2575 = vmatpush1.bf16.msra.mxu0 %v1908
  %2576 = vmatprep.subr.bf16.mxu0 0
  %2577 = vmatpush1.bf16.msra.mxu0 %v1909
  %2578 = vmatprep.subr.bf16.mxu0 0
  %2579 = vmatpush1.bf16.msra.mxu0 %v1910
  %2580 = vmatprep.subr.bf16.mxu0 0
  %2581 = vmatpush1.bf16.msra.mxu0 %v1911
  %2582 = vmatprep.subr.bf16.mxu0 0
  %2583 = vmatpush1.bf16.msra.mxu0 %v1912
  %2584 = vmatprep.subr.bf16.mxu0 0
  %2585 = vmatpush1.bf16.msra.mxu0 %v1913
  %2586 = vmatprep.mubr.bf16.mxu0 %v643
  %2587 = vmatmul.mubr.bf16.gmra.mrb[0].mxu0 %v629
  %v2588 = vpop.f32.mrb[0].mxu0
  %v2589 = vadd.f32 %v2549, %v2588
  %v2590 = vpop.f32.mrb[0].mxu0
  %v2591 = vpop.f32.mrb[0].mxu0
  %v2592 = vpop.f32.mrb[0].mxu0
  %2593 = vdwg.mxu0
  %2594 = vmatprep.subr.bf16.mxu0 0
  %2595 = vmatpush1.bf16.msra.mxu0 %v1914
  %2596 = vmatprep.subr.bf16.mxu0 0
  %2597 = vmatpush1.bf16.msra.mxu0 %v1915
  %2598 = vmatprep.subr.bf16.mxu0 0
  %2599 = vmatpush1.bf16.msra.mxu0 %v1916
  %2600 = vmatprep.subr.bf16.mxu0 0
  %2601 = vmatpush1.bf16.msra.mxu0 %v1917
  %2602 = vmatprep.subr.bf16.mxu0 0
  %2603 = vmatpush1.bf16.msra.mxu0 %v1918
  %2604 = vmatprep.subr.bf16.mxu0 0
  %2605 = vmatpush1.bf16.msra.mxu0 %v1919
  %2606 = vmatprep.subr.bf16.mxu0 0
  %2607 = vmatpush1.bf16.msra.mxu0 %v1920
  %2608 = vmatprep.subr.bf16.mxu0 0
  %2609 = vmatpush1.bf16.msra.mxu0 %v1921
  %2610 = vmatprep.subr.bf16.mxu0 0
  %2611 = vmatpush1.bf16.msra.mxu0 %v1922
  %2612 = vmatprep.subr.bf16.mxu0 0
  %2613 = vmatpush1.bf16.msra.mxu0 %v1923
  %2614 = vmatprep.subr.bf16.mxu0 0
  %2615 = vmatpush1.bf16.msra.mxu0 %v1924
  %2616 = vmatprep.subr.bf16.mxu0 0
  %2617 = vmatpush1.bf16.msra.mxu0 %v1925
  %2618 = vmatprep.subr.bf16.mxu0 0
  %2619 = vmatpush1.bf16.msra.mxu0 %v1926
  %2620 = vmatprep.subr.bf16.mxu0 0
  %2621 = vmatpush1.bf16.msra.mxu0 %v1927
  %2622 = vmatprep.subr.bf16.mxu0 0
  %2623 = vmatpush1.bf16.msra.mxu0 %v1928
  %2624 = vmatprep.subr.bf16.mxu0 0
  %2625 = vmatpush1.bf16.msra.mxu0 %v1929
  %2626 = vmatprep.mubr.bf16.mxu0 %v647
  %2627 = vmatmul.mubr.bf16.gmra.mrb[0].mxu0 %v645
  %v2628 = vpop.f32.mrb[0].mxu0
  %v2629 = vadd.f32 %v2589, %v2628
  %v2630 = vpop.f32.mrb[0].mxu0
  %v2631 = vpop.f32.mrb[0].mxu0
  %v2632 = vpop.f32.mrb[0].mxu0
  %2633 = vdwg.mxu0
  %2634 = vmatprep.subr.bf16.mxu0 0
  %2635 = vmatpush1.bf16.msra.mxu0 %v1930
  %2636 = vmatprep.subr.bf16.mxu0 0
  %2637 = vmatpush1.bf16.msra.mxu0 %v1931
  %2638 = vmatprep.subr.bf16.mxu0 0
  %2639 = vmatpush1.bf16.msra.mxu0 %v1932
  %2640 = vmatprep.subr.bf16.mxu0 0
  %2641 = vmatpush1.bf16.msra.mxu0 %v1933
  %2642 = vmatprep.subr.bf16.mxu0 0
  %2643 = vmatpush1.bf16.msra.mxu0 %v1934
  %2644 = vmatprep.subr.bf16.mxu0 0
  %2645 = vmatpush1.bf16.msra.mxu0 %v1935
  %2646 = vmatprep.subr.bf16.mxu0 0
  %2647 = vmatpush1.bf16.msra.mxu0 %v1936
  %2648 = vmatprep.subr.bf16.mxu0 0
  %2649 = vmatpush1.bf16.msra.mxu0 %v1937
  %2650 = vmatprep.subr.bf16.mxu0 0
  %2651 = vmatpush1.bf16.msra.mxu0 %v1938
  %2652 = vmatprep.subr.bf16.mxu0 0
  %2653 = vmatpush1.bf16.msra.mxu0 %v1939
  %2654 = vmatprep.subr.bf16.mxu0 0
  %2655 = vmatpush1.bf16.msra.mxu0 %v1940
  %2656 = vmatprep.subr.bf16.mxu0 0
  %2657 = vmatpush1.bf16.msra.mxu0 %v1941
  %2658 = vmatprep.subr.bf16.mxu0 0
  %2659 = vmatpush1.bf16.msra.mxu0 %v1942
  %2660 = vmatprep.subr.bf16.mxu0 0
  %2661 = vmatpush1.bf16.msra.mxu0 %v1943
  %2662 = vmatprep.subr.bf16.mxu0 0
  %2663 = vmatpush1.bf16.msra.mxu0 %v1944
  %2664 = vmatprep.subr.bf16.mxu0 0
  %2665 = vmatpush1.bf16.msra.mxu0 %v1945
  %2666 = vmatprep.mubr.bf16.mxu0 %v685
  %2667 = vmatmul.mubr.bf16.gmra.mrb[0].mxu0 %v671
  %v2668 = vpop.f32.mrb[0].mxu0
  %v2669 = vadd.f32 %v2629, %v2668
  %v2670 = vpop.f32.mrb[0].mxu0
  %v2671 = vpop.f32.mrb[0].mxu0
  %v2672 = vpop.f32.mrb[0].mxu0
  %2673 = vdwg.mxu0
  %2674 = vmatprep.subr.bf16.mxu0 0
  %2675 = vmatpush1.bf16.msra.mxu0 %v1946
  %2676 = vmatprep.subr.bf16.mxu0 0
  %2677 = vmatpush1.bf16.msra.mxu0 %v1947
  %2678 = vmatprep.subr.bf16.mxu0 0
  %2679 = vmatpush1.bf16.msra.mxu0 %v1948
  %2680 = vmatprep.subr.bf16.mxu0 0
  %2681 = vmatpush1.bf16.msra.mxu0 %v1949
  %2682 = vmatprep.subr.bf16.mxu0 0
  %2683 = vmatpush1.bf16.msra.mxu0 %v1950
  %2684 = vmatprep.subr.bf16.mxu0 0
  %2685 = vmatpush1.bf16.msra.mxu0 %v1951
  %2686 = vmatprep.subr.bf16.mxu0 0
  %2687 = vmatpush1.bf16.msra.mxu0 %v1952
  %2688 = vmatprep.subr.bf16.mxu0 0
  %2689 = vmatpush1.bf16.msra.mxu0 %v1953
  %2690 = vmatprep.subr.bf16.mxu0 0
  %2691 = vmatpush1.bf16.msra.mxu0 %v1954
  %2692 = vmatprep.subr.bf16.mxu0 0
  %2693 = vmatpush1.bf16.msra.mxu0 %v1955
  %2694 = vmatprep.subr.bf16.mxu0 0
  %2695 = vmatpush1.bf16.msra.mxu0 %v1956
  %2696 = vmatprep.subr.bf16.mxu0 0
  %2697 = vmatpush1.bf16.msra.mxu0 %v1957
  %2698 = vmatprep.subr.bf16.mxu0 0
  %2699 = vmatpush1.bf16.msra.mxu0 %v1958
  %2700 = vmatprep.subr.bf16.mxu0 0
  %2701 = vmatpush1.bf16.msra.mxu0 %v1959
  %2702 = vmatprep.subr.bf16.mxu0 0
  %2703 = vmatpush1.bf16.msra.mxu0 %v1960
  %2704 = vmatprep.subr.bf16.mxu0 0
  %2705 = vmatpush1.bf16.msra.mxu0 %v1961
  %2706 = vmatprep.mubr.bf16.mxu0 %v695
  %2707 = vmatmul.mubr.bf16.gmra.mrb[0].mxu0 %v693
  %v2708 = vpop.f32.mrb[0].mxu0
  %v2709 = vadd.f32 %v2669, %v2708
  %v2710 = vpop.f32.mrb[0].mxu0
  %v2711 = vpop.f32.mrb[0].mxu0
  %v2712 = vpop.f32.mrb[0].mxu0
  %2713 = vdwg.mxu0
  %2714 = vmatprep.subr.bf16.mxu0 0
  %2715 = vmatpush1.bf16.msra.mxu0 %v1962
  %2716 = vmatprep.subr.bf16.mxu0 0
  %2717 = vmatpush1.bf16.msra.mxu0 %v1963
  %2718 = vmatprep.subr.bf16.mxu0 0
  %2719 = vmatpush1.bf16.msra.mxu0 %v1964
  %2720 = vmatprep.subr.bf16.mxu0 0
  %2721 = vmatpush1.bf16.msra.mxu0 %v1965
  %2722 = vmatprep.subr.bf16.mxu0 0
  %2723 = vmatpush1.bf16.msra.mxu0 %v1966
  %2724 = vmatprep.subr.bf16.mxu0 0
  %2725 = vmatpush1.bf16.msra.mxu0 %v1967
  %2726 = vmatprep.subr.bf16.mxu0 0
  %2727 = vmatpush1.bf16.msra.mxu0 %v1968
  %2728 = vmatprep.subr.bf16.mxu0 0
  %2729 = vmatpush1.bf16.msra.mxu0 %v1969
  %2730 = vmatprep.subr.bf16.mxu0 0
  %2731 = vmatpush1.bf16.msra.mxu0 %v1970
  %2732 = vmatprep.subr.bf16.mxu0 0
  %2733 = vmatpush1.bf16.msra.mxu0 %v1971
  %2734 = vmatprep.subr.bf16.mxu0 0
  %2735 = vmatpush1.bf16.msra.mxu0 %v1972
  %2736 = vmatprep.subr.bf16.mxu0 0
  %2737 = vmatpush1.bf16.msra.mxu0 %v1973
  %2738 = vmatprep.subr.bf16.mxu0 0
  %2739 = vmatpush1.bf16.msra.mxu0 %v1974
  %2740 = vmatprep.subr.bf16.mxu0 0
  %2741 = vmatpush1.bf16.msra.mxu0 %v1975
  %2742 = vmatprep.subr.bf16.mxu0 0
  %2743 = vmatpush1.bf16.msra.mxu0 %v1976
  %2744 = vmatprep.subr.bf16.mxu0 0
  %2745 = vmatpush1.bf16.msra.mxu0 %v1977
  %2746 = vmatprep.mubr.bf16.mxu0 %v692
  %2747 = vmatmul.mubr.bf16.gmra.mrb[0].mxu0 %v678
  %v2748 = vpop.f32.mrb[0].mxu0
  %v2749 = vadd.f32 %v2709, %v2748
  %v2750 = vpop.f32.mrb[0].mxu0
  %v2751 = vpop.f32.mrb[0].mxu0
  %v2752 = vpop.f32.mrb[0].mxu0
  %2753 = vdwg.mxu0
  %2754 = vmatprep.subr.bf16.mxu0 0
  %2755 = vmatpush1.bf16.msra.mxu0 %v1978
  %2756 = vmatprep.subr.bf16.mxu0 0
  %2757 = vmatpush1.bf16.msra.mxu0 %v1979
  %2758 = vmatprep.subr.bf16.mxu0 0
  %2759 = vmatpush1.bf16.msra.mxu0 %v1980
  %2760 = vmatprep.subr.bf16.mxu0 0
  %2761 = vmatpush1.bf16.msra.mxu0 %v1981
  %2762 = vmatprep.subr.bf16.mxu0 0
  %2763 = vmatpush1.bf16.msra.mxu0 %v1982
  %2764 = vmatprep.subr.bf16.mxu0 0
  %2765 = vmatpush1.bf16.msra.mxu0 %v1983
  %2766 = vmatprep.subr.bf16.mxu0 0
  %2767 = vmatpush1.bf16.msra.mxu0 %v1984
  %2768 = vmatprep.subr.bf16.mxu0 0
  %2769 = vmatpush1.bf16.msra.mxu0 %v1985
  %2770 = vmatprep.subr.bf16.mxu0 0
  %2771 = vmatpush1.bf16.msra.mxu0 %v1986
  %2772 = vmatprep.subr.bf16.mxu0 0
  %2773 = vmatpush1.bf16.msra.mxu0 %v1987
  %2774 = vmatprep.subr.bf16.mxu0 0
  %2775 = vmatpush1.bf16.msra.mxu0 %v1988
  %2776 = vmatprep.subr.bf16.mxu0 0
  %2777 = vmatpush1.bf16.msra.mxu0 %v1989
  %2778 = vmatprep.subr.bf16.mxu0 0
  %2779 = vmatpush1.bf16.msra.mxu0 %v1990
  %2780 = vmatprep.subr.bf16.mxu0 0
  %2781 = vmatpush1.bf16.msra.mxu0 %v1991
  %2782 = vmatprep.subr.bf16.mxu0 0
  %2783 = vmatpush1.bf16.msra.mxu0 %v1992
  %2784 = vmatprep.subr.bf16.mxu0 0
  %2785 = vmatpush1.bf16.msra.mxu0 %v1993
  %2786 = vmatprep.mubr.bf16.mxu0 %v696
  %2787 = vmatmul.mubr.bf16.gmra.mrb[0].mxu0 %v694
  %v2788 = vpop.f32.mrb[0].mxu0
  %v2789 = vadd.f32 %v2749, %v2788
  %v2790 = vpop.f32.mrb[0].mxu0
  %v2791 = vpop.f32.mrb[0].mxu0
  %v2792 = vpop.f32.mrb[0].mxu0
  %2793 = vdwg.mxu0
  %2794 = vmatprep.subr.bf16.mxu0 0
  %2795 = vmatpush1.bf16.msra.mxu0 %v1994
  %2796 = vmatprep.subr.bf16.mxu0 0
  %2797 = vmatpush1.bf16.msra.mxu0 %v1995
  %2798 = vmatprep.subr.bf16.mxu0 0
  %2799 = vmatpush1.bf16.msra.mxu0 %v1996
  %2800 = vmatprep.subr.bf16.mxu0 0
  %2801 = vmatpush1.bf16.msra.mxu0 %v1997
  %2802 = vmatprep.subr.bf16.mxu0 0
  %2803 = vmatpush1.bf16.msra.mxu0 %v1998
  %2804 = vmatprep.subr.bf16.mxu0 0
  %2805 = vmatpush1.bf16.msra.mxu0 %v1999
  %2806 = vmatprep.subr.bf16.mxu0 0
  %2807 = vmatpush1.bf16.msra.mxu0 %v2000
  %2808 = vmatprep.subr.bf16.mxu0 0
  %2809 = vmatpush1.bf16.msra.mxu0 %v2001
  %2810 = vmatprep.subr.bf16.mxu0 0
  %2811 = vmatpush1.bf16.msra.mxu0 %v2002
  %2812 = vmatprep.subr.bf16.mxu0 0
  %2813 = vmatpush1.bf16.msra.mxu0 %v2003
  %2814 = vmatprep.subr.bf16.mxu0 0
  %2815 = vmatpush1.bf16.msra.mxu0 %v2004
  %2816 = vmatprep.subr.bf16.mxu0 0
  %2817 = vmatpush1.bf16.msra.mxu0 %v2005
  %2818 = vmatprep.subr.bf16.mxu0 0
  %2819 = vmatpush1.bf16.msra.mxu0 %v2006
  %2820 = vmatprep.subr.bf16.mxu0 0
  %2821 = vmatpush1.bf16.msra.mxu0 %v2007
  %2822 = vmatprep.subr.bf16.mxu0 0
  %2823 = vmatpush1.bf16.msra.mxu0 %v2008
  %2824 = vmatprep.subr.bf16.mxu0 0
  %2825 = vmatpush1.bf16.msra.mxu0 %v2009
  %2826 = vmatprep.mubr.bf16.mxu0 %v734
  %2827 = vmatmul.mubr.bf16.gmra.mrb[0].mxu0 %v720
  %v2828 = vpop.f32.mrb[0].mxu0
  %v2829 = vadd.f32 %v2789, %v2828
  %v2830 = vpop.f32.mrb[0].mxu0
  %v2831 = vpop.f32.mrb[0].mxu0
  %v2832 = vpop.f32.mrb[0].mxu0
  %2833 = vdwg.mxu0
  %2834 = vmatprep.subr.bf16.mxu0 0
  %2835 = vmatpush1.bf16.msra.mxu0 %v2010
  %2836 = vmatprep.subr.bf16.mxu0 0
  %2837 = vmatpush1.bf16.msra.mxu0 %v2011
  %2838 = vmatprep.subr.bf16.mxu0 0
  %2839 = vmatpush1.bf16.msra.mxu0 %v2012
  %2840 = vmatprep.subr.bf16.mxu0 0
  %2841 = vmatpush1.bf16.msra.mxu0 %v2013
  %2842 = vmatprep.subr.bf16.mxu0 0
  %2843 = vmatpush1.bf16.msra.mxu0 %v2014
  %2844 = vmatprep.subr.bf16.mxu0 0
  %2845 = vmatpush1.bf16.msra.mxu0 %v2015
  %2846 = vmatprep.subr.bf16.mxu0 0
  %2847 = vmatpush1.bf16.msra.mxu0 %v2016
  %2848 = vmatprep.subr.bf16.mxu0 0
  %2849 = vmatpush1.bf16.msra.mxu0 %v2017
  %2850 = vmatprep.subr.bf16.mxu0 0
  %2851 = vmatpush1.bf16.msra.mxu0 %v2018
  %2852 = vmatprep.subr.bf16.mxu0 0
  %2853 = vmatpush1.bf16.msra.mxu0 %v2019
  %2854 = vmatprep.subr.bf16.mxu0 0
  %2855 = vmatpush1.bf16.msra.mxu0 %v2020
  %2856 = vmatprep.subr.bf16.mxu0 0
  %2857 = vmatpush1.bf16.msra.mxu0 %v2021
  %2858 = vmatprep.subr.bf16.mxu0 0
  %2859 = vmatpush1.bf16.msra.mxu0 %v2022
  %2860 = vmatprep.subr.bf16.mxu0 0
  %2861 = vmatpush1.bf16.msra.mxu0 %v2023
  %2862 = vmatprep.subr.bf16.mxu0 0
  %2863 = vmatpush1.bf16.msra.mxu0 %v2024
  %2864 = vmatprep.subr.bf16.mxu0 0
  %2865 = vmatpush1.bf16.msra.mxu0 %v2025
  %2866 = vmatprep.mubr.bf16.mxu0 %v744
  %2867 = vmatmul.mubr.bf16.gmra.mrb[0].mxu0 %v742
  %v2868 = vpop.f32.mrb[0].mxu0
  %v2869 = vadd.f32 %v2829, %v2868
  %v2870 = vpop.f32.mrb[0].mxu0
  %v2871 = vpop.f32.mrb[0].mxu0
  %v2872 = vpop.f32.mrb[0].mxu0
  %2873 = vdwg.mxu0
  %2874 = vmatprep.subr.bf16.mxu0 0
  %2875 = vmatpush1.bf16.msra.mxu0 %v2026
  %2876 = vmatprep.subr.bf16.mxu0 0
  %2877 = vmatpush1.bf16.msra.mxu0 %v2027
  %2878 = vmatprep.subr.bf16.mxu0 0
  %2879 = vmatpush1.bf16.msra.mxu0 %v2028
  %2880 = vmatprep.subr.bf16.mxu0 0
  %2881 = vmatpush1.bf16.msra.mxu0 %v2029
  %2882 = vmatprep.subr.bf16.mxu0 0
  %2883 = vmatpush1.bf16.msra.mxu0 %v2030
  %2884 = vmatprep.subr.bf16.mxu0 0
  %2885 = vmatpush1.bf16.msra.mxu0 %v2031
  %2886 = vmatprep.subr.bf16.mxu0 0
  %2887 = vmatpush1.bf16.msra.mxu0 %v2032
  %2888 = vmatprep.subr.bf16.mxu0 0
  %2889 = vmatpush1.bf16.msra.mxu0 %v2033
  %2890 = vmatprep.subr.bf16.mxu0 0
  %2891 = vmatpush1.bf16.msra.mxu0 %v2034
  %2892 = vmatprep.subr.bf16.mxu0 0
  %2893 = vmatpush1.bf16.msra.mxu0 %v2035
  %2894 = vmatprep.subr.bf16.mxu0 0
  %2895 = vmatpush1.bf16.msra.mxu0 %v2036
  %2896 = vmatprep.subr.bf16.mxu0 0
  %2897 = vmatpush1.bf16.msra.mxu0 %v2037
  %2898 = vmatprep.subr.bf16.mxu0 0
  %2899 = vmatpush1.bf16.msra.mxu0 %v2038
  %2900 = vmatprep.subr.bf16.mxu0 0
  %2901 = vmatpush1.bf16.msra.mxu0 %v2039
  %2902 = vmatprep.subr.bf16.mxu0 0
  %2903 = vmatpush1.bf16.msra.mxu0 %v2040
  %2904 = vmatprep.subr.bf16.mxu0 0
  %2905 = vmatpush1.bf16.msra.mxu0 %v2041
  %2906 = vmatprep.mubr.bf16.mxu0 %v741
  %2907 = vmatmul.mubr.bf16.gmra.mrb[0].mxu0 %v727
  %v2908 = vpop.f32.mrb[0].mxu0
  %v2909 = vadd.f32 %v2869, %v2908
  %v2910 = vpop.f32.mrb[0].mxu0
  %v2911 = vpop.f32.mrb[0].mxu0
  %v2912 = vpop.f32.mrb[0].mxu0
  %2913 = vdwg.mxu0
  %2914 = vmatprep.subr.bf16.mxu0 0
  %2915 = vmatpush1.bf16.msra.mxu0 %v2042
  %2916 = vmatprep.subr.bf16.mxu0 0
  %2917 = vmatpush1.bf16.msra.mxu0 %v2043
  %2918 = vmatprep.subr.bf16.mxu0 0
  %2919 = vmatpush1.bf16.msra.mxu0 %v2044
  %2920 = vmatprep.subr.bf16.mxu0 0
  %2921 = vmatpush1.bf16.msra.mxu0 %v2045
  %2922 = vmatprep.subr.bf16.mxu0 0
  %2923 = vmatpush1.bf16.msra.mxu0 %v2046
  %2924 = vmatprep.subr.bf16.mxu0 0
  %2925 = vmatpush1.bf16.msra.mxu0 %v2047
  %2926 = vmatprep.subr.bf16.mxu0 0
  %2927 = vmatpush1.bf16.msra.mxu0 %v2048
  %2928 = vmatprep.subr.bf16.mxu0 0
  %2929 = vmatpush1.bf16.msra.mxu0 %v2049
  %2930 = vmatprep.subr.bf16.mxu0 0
  %2931 = vmatpush1.bf16.msra.mxu0 %v2050
  %2932 = vmatprep.subr.bf16.mxu0 0
  %2933 = vmatpush1.bf16.msra.mxu0 %v2051
  %2934 = vmatprep.subr.bf16.mxu0 0
  %2935 = vmatpush1.bf16.msra.mxu0 %v2052
  %2936 = vmatprep.subr.bf16.mxu0 0
  %2937 = vmatpush1.bf16.msra.mxu0 %v2053
  %2938 = vmatprep.subr.bf16.mxu0 0
  %2939 = vmatpush1.bf16.msra.mxu0 %v2054
  %2940 = vmatprep.subr.bf16.mxu0 0
  %2941 = vmatpush1.bf16.msra.mxu0 %v2055
  %2942 = vmatprep.subr.bf16.mxu0 0
  %2943 = vmatpush1.bf16.msra.mxu0 %v2056
  %2944 = vmatprep.subr.bf16.mxu0 0
  %2945 = vmatpush1.bf16.msra.mxu0 %v2057
  %2946 = vmatprep.mubr.bf16.mxu0 %v745
  %2947 = vmatmul.mubr.bf16.gmra.mrb[0].mxu0 %v743
  %v2948 = vpop.f32.mrb[0].mxu0
  %v2949 = vadd.f32 %v2909, %v2948
  %v2950 = vpop.f32.mrb[0].mxu0
  %v2951 = vpop.f32.mrb[0].mxu0
  %v2952 = vpop.f32.mrb[0].mxu0
  %2953 = vdwg.mxu0
  %vm2954 = vcmp.ge.f32.partialorder %v2949, 0.0
  %v2955 = vmul.f32 %v2949, 0.01
  %v2956 = vsel %vm2954, %v2949, %v2955
  %v2957 = vld [vmem:[%s3] sm:$0x1]
  %v2959 = vlaneseq
  %v2960 = vshrl.u32 %v2959, 7
  %v2961 = vsub.s32 0, %v2960
  %v2962 = vrot.slane %v2957, %v2961
  %v2964 = vmul.f32 %v2956, %v2962
  %vm2965 = vcmask 517120
  %v2966 = vsel %vm2965, %v2964, 0.0
  %2967 = vadd.xlane.f32.xlu0 %v2966
  %v2968 = vpop.xlane.xlu0 %2967
  %v2969 = vld [vmem:[#allocation2] sm:$0x1]
  %v2971 = vlaneseq
  %v2972 = vshrl.u32 %v2971, 7
  %v2973 = vsub.s32 0, %v2972
  %v2974 = vrot.slane %v2969, %v2973
  %v2976 = vadd.f32 %v2968, %v2974
  %v2977 = vmul.f32 %v2976, 0.5
  %v2978 = vtanh.pop %v2977
  %v2979 = vadd.f32 %v2978, 1.0
  %v2980 = vmul.f32 %v2979, 0.5
  %vm2981 = vcmask 1024
  %2982 = vst.msk [vmem:[%s5] sm:$0x3] %vm2981, %v2980
  // Predicated region
  $region22: #{discriminator_forward.9} parent=0 // pred_check
    _
  $region23: #{discriminator_forward.9} parent=0 // pred_check_branch
    %2984 = sbr.rel (0) target = $region25
  $region24: #{discriminator_forward.9} parent=0 // pred_region
    _
  $region25: #{discriminator_forward.9} parent=0 // pred_fallthru
    _
  // Predicated region
  $region26: #{discriminator_forward.9} parent=0 // pred_check
    _
  $region27: #{discriminator_forward.9} parent=0 // pred_check_branch
    %2986 = sbr.rel (0) target = $region29
  $region28: #{discriminator_forward.9} parent=0 // pred_region
    _
  $region29: #{discriminator_forward.9} parent=0 // pred_fallthru
    _

</llo_original>
